<compile_context>
chip_gen: v7x
topology: tpu7x:2x2x1
jax: 0.10.0
libtpu: 0.0.40
codegen_flags: <defaults>
</compile_context>

<pallas_src>
import functools

import jax
import jax.numpy as jnp
from jax import lax
from jax.experimental import pallas as pl
from jax.experimental.pallas import tpu as pltpu

_F32 = 4  # bytes per float32


def _round_up(a, m):
    return ((a + m - 1) // m) * m


def _cdiv(a, b):
    return (a + b - 1) // b


def _vmem_limit_bytes():
    """Generation-aware scoped-VMEM request with headroom for Mosaic scratch."""
    try:
        cap = int(pltpu.get_tpu_info().vmem_capacity_bytes)
    except Exception:
        cap = 64 * 1024 * 1024  # assume the smallest generation (v7x) if unknown
    # v5e/v6e (128 MiB physical) -> 96 MiB; v7x (64 MiB physical) -> 48 MiB.
    return max(32 * 1024 * 1024, min(cap - 16 * 1024 * 1024, 96 * 1024 * 1024))


# --------------------------------------------------------------------------
# Fused single-call kernel: whole per-batch forward in VMEM.
# --------------------------------------------------------------------------
def _fused_kernel(*refs, d, n_nodes, compute_dtype, has_mask):
    if has_mask:
        x_ref, w_ref, m_ref, o_ref = refs
    else:
        x_ref, w_ref, o_ref = refs
        m_ref = None

    x = x_ref[...].astype(compute_dtype)                       # (N, F)
    # One fused projection matmul: columns [K | Q | V].
    proj = jnp.dot(x, w_ref[...], preferred_element_type=jnp.float32)  # (N, 3D)
    k = proj[:, :d]
    q = proj[:, d:2 * d]
    v = proj[:, 2 * d:]
    if m_ref is not None:
        v = v * m_ref[...]                                     # masked_fill(V, 0)

    eps = jnp.float32(1e-6)
    k = jnp.where(k == 0.0, eps, k)
    q = jnp.where(q == 0.0, eps, q)
    # L2 row-normalization via rsqrt + multiply (EUP slot) instead of sqrt+div.
    k = k * lax.rsqrt(jnp.sum(k * k, axis=-1, keepdims=True))
    q = q * lax.rsqrt(jnp.sum(q * q, axis=-1, keepdims=True))

    # kv = K^T V (D, D) and ks_sum (1, D) live only in VMEM.
    kv = lax.dot_general(k.astype(compute_dtype), v.astype(compute_dtype),
                         (((0,), (0,)), ((), ())),
                         preferred_element_type=jnp.float32)
    ks = jnp.sum(k, axis=0, keepdims=True)

    n = jnp.float32(n_nodes)
    num = jnp.dot(q.astype(compute_dtype), kv.astype(compute_dtype),
                  preferred_element_type=jnp.float32) + n * v
    denom = jnp.sum(q * ks, axis=-1, keepdims=True) + n        # (N, 1)

    # Approx reciprocal on the EUP + one Newton step => ~f32-exact, no divide.
    inv = pl.reciprocal(denom, approx=True)
    inv = inv * (jnp.float32(2.0) - denom * inv)
    # heads == 1, so the final mean over the head dim is the identity.
    o_ref[...] = (num * inv).astype(o_ref.dtype)


# --------------------------------------------------------------------------
# Two-pass fallback kernels (large N): pass 1 accumulates kv / ks_sum.
# --------------------------------------------------------------------------
def _kv_accum_kernel(*refs, d, n_valid, n_tile, tiles_per_split, needs_mask,
                     compute_dtype, has_mask):
    if has_mask:
        x_ref, w_ref, m_ref, kv_ref, ks_ref = refs
    else:
        x_ref, w_ref, kv_ref, ks_ref = refs
        m_ref = None

    t = pl.program_id(2)

    @pl.when(t == 0)
    def _():
        kv_ref[...] = jnp.zeros_like(kv_ref)
        ks_ref[...] = jnp.zeros_like(ks_ref)

    x = x_ref[...].astype(compute_dtype)                       # (n_tile, F)
    proj = jnp.dot(x, w_ref[...], preferred_element_type=jnp.float32)  # (n_tile, 2D)
    k = proj[:, :d]
    v = proj[:, d:]
    if m_ref is not None:
        v = v * m_ref[...]

    eps = jnp.float32(1e-6)
    k = jnp.where(k == 0.0, eps, k)
    k = k * lax.rsqrt(jnp.sum(k * k, axis=-1, keepdims=True))

    if needs_mask:
        # Zero padded rows so they contribute to neither kv nor ks_sum.
        base = (pl.program_id(1) * tiles_per_split + t) * n_tile
        rows = base + lax.broadcasted_iota(jnp.int32, (n_tile, 1), 0)
        k = jnp.where(rows < n_valid, k, 0.0)

    kv_ref[...] += lax.dot_general(k.astype(compute_dtype), v.astype(compute_dtype),
                                   (((0,), (0,)), ((), ())),
                                   preferred_element_type=jnp.float32)
    ks_ref[...] += jnp.sum(k, axis=0, keepdims=True)


def _output_kernel(*refs, d, n_nodes, compute_dtype, has_mask):
    if has_mask:
        x_ref, w_ref, kv_ref, ks_ref, m_ref, o_ref = refs
    else:
        x_ref, w_ref, kv_ref, ks_ref, o_ref = refs
        m_ref = None

    x = x_ref[...].astype(compute_dtype)                       # (n_tile, F)
    proj = jnp.dot(x, w_ref[...], preferred_element_type=jnp.float32)  # (n_tile, 2D)
    q = proj[:, :d]
    v = proj[:, d:]
    if m_ref is not None:
        v = v * m_ref[...]

    eps = jnp.float32(1e-6)
    q = jnp.where(q == 0.0, eps, q)
    q = q * lax.rsqrt(jnp.sum(q * q, axis=-1, keepdims=True))

    n = jnp.float32(n_nodes)
    num = jnp.dot(q.astype(compute_dtype), kv_ref[...].astype(compute_dtype),
                  preferred_element_type=jnp.float32) + n * v
    denom = jnp.sum(q * ks_ref[...], axis=-1, keepdims=True) + n

    inv = pl.reciprocal(denom, approx=True)
    inv = inv * (jnp.float32(2.0) - denom * inv)
    o_ref[...] = (num * inv).astype(o_ref.dtype)


# --------------------------------------------------------------------------
# Wrapper
# --------------------------------------------------------------------------
def sgformer_attention(x, wq, wk, wv, mask=None, *, compute_dtype=jnp.float32,
                       out_dtype=None, node_tile=None, force_two_pass=False):
    """x: (B, N, F); wq/wk/wv: (F, D); mask: optional (B, N) bool. Returns (B, N, D)."""
    B, N, F = x.shape
    D = wq.shape[1]
    out_dtype = x.dtype if out_dtype is None else out_dtype
    out_isize = jnp.dtype(out_dtype).itemsize
    w_isize = jnp.dtype(compute_dtype).itemsize
    vmem_limit = _vmem_limit_bytes()

    has_mask = mask is not None
    mask_f = mask.astype(x.dtype).reshape(B, N, 1) if has_mask else None

    # ---------------- fused single-call path ----------------
    fused_bytes = (2 * N * F * _F32            # x block (double-buffered)
                   + 2 * N * D * _F32          # out block (double-buffered)
                   + N * 3 * D * _F32          # fused projection temp
                   + 6 * N * D * _F32          # k / q / v / num + slack
                   + (2 * N * _F32 if has_mask else 0)
                   + 2 * 3 * F * D * w_isize)  # fused weights
    if not force_two_pass and fused_bytes <= 0.7 * vmem_limit:
        w_all = jnp.concatenate([wk, wq, wv], axis=1).astype(compute_dtype)
        in_specs = [
            pl.BlockSpec((pl.Squeezed(), N, F), lambda b: (b, 0, 0)),
            pl.BlockSpec((F, 3 * D), lambda b: (0, 0)),
        ]
        args = [x, w_all]
        if has_mask:
            in_specs.append(pl.BlockSpec((pl.Squeezed(), N, 1), lambda b: (b, 0, 0)))
            args.append(mask_f)
        cost = pl.CostEstimate(
            flops=B * (2 * N * F * 3 * D + 2 * 2 * N * D * D),
            transcendentals=B * N * 3,
            bytes_accessed=B * N * F * _F32 + B * N * D * out_isize
                           + 3 * F * D * w_isize)
        return pl.pallas_call(
            functools.partial(_fused_kernel, d=D, n_nodes=float(N),
                              compute_dtype=compute_dtype, has_mask=has_mask),
            out_shape=jax.ShapeDtypeStruct((B, N, D), out_dtype),
            grid=(B,),
            in_specs=in_specs,
            out_specs=pl.BlockSpec((pl.Squeezed(), N, D), lambda b: (b, 0, 0)),
            compiler_params=pltpu.CompilerParams(
                dimension_semantics=("parallel",),
                vmem_limit_bytes=vmem_limit),
            cost_estimate=cost,
        )(*args)

    # ---------------- two-pass streaming path (large N) ----------------
    def _tile_bytes(nt):
        return (2 * nt * F * _F32 + 2 * nt * D * _F32 + nt * 2 * D * _F32
                + 5 * nt * D * _F32 + (2 * nt * _F32 if has_mask else 0)
                + 2 * D * D * _F32 + D * _F32 + 2 * 2 * F * D * w_isize)

    if node_tile is None:
        n_tile = 8
        for cand in (8192, 4096, 2048, 1024, 512, 256, 128, 64, 32, 16, 8):
            if _tile_bytes(cand) <= 0.6 * vmem_limit:
                n_tile = cand
                break
        n_tile = min(n_tile, _round_up(N, 8))   # never allocate more than needed
    else:
        assert node_tile % 8 == 0, "node_tile must be a multiple of 8"
        n_tile = node_tile

    tiles_total = _cdiv(N, n_tile)
    # Split the pass-1 node reduction 2-ways so v7x's second TensorCore helps
    # when B == 1 (harmless on single-TC chips: one extra tiny partial sum).
    n_split = 2 if (B == 1 and tiles_total >= 2) else 1
    tiles_total = _round_up(tiles_total, n_split)
    tiles_per_split = tiles_total // n_split
    padded_n = tiles_total * n_tile
    needs_mask = padded_n != N

    x_p, mask_p = x, mask_f
    if needs_mask:
        x_p = jnp.pad(x, ((0, 0), (0, padded_n - N), (0, 0)))
        if has_mask:
            mask_p = jnp.pad(mask_f, ((0, 0), (0, padded_n - N), (0, 0)))

    w_kv = jnp.concatenate([wk, wv], axis=1).astype(compute_dtype)
    w_qv = jnp.concatenate([wq, wv], axis=1).astype(compute_dtype)

    # ---- pass 1: kv = K^T V and ks_sum, accumulated in resident blocks.
    p1_in_specs = [
        pl.BlockSpec((pl.Squeezed(), n_tile, F),
                     lambda b, s, t: (b, s * tiles_per_split + t, 0)),
        pl.BlockSpec((F, 2 * D), lambda b, s, t: (0, 0)),
    ]
    p1_args = [x_p, w_kv]
    if has_mask:
        p1_in_specs.append(
            pl.BlockSpec((pl.Squeezed(), n_tile, 1),
                         lambda b, s, t: (b, s * tiles_per_split + t, 0)))
        p1_args.append(mask_p)

    kv_part, ks_part = pl.pallas_call(
        functools.partial(_kv_accum_kernel, d=D, n_valid=N, n_tile=n_tile,
                          tiles_per_split=tiles_per_split, needs_mask=needs_mask,
                          compute_dtype=compute_dtype, has_mask=has_mask),
        out_shape=(jax.ShapeDtypeStruct((B, n_split, D, D), jnp.float32),
                   jax.ShapeDtypeStruct((B, n_split, 1, D), jnp.float32)),
        grid=(B, n_split, tiles_per_split),
        in_specs=p1_in_specs,
        out_specs=(
            pl.BlockSpec((pl.Squeezed(), pl.Squeezed(), D, D),
                         lambda b, s, t: (b, s, 0, 0)),
            pl.BlockSpec((pl.Squeezed(), pl.Squeezed(), 1, D),
                         lambda b, s, t: (b, s, 0, 0)),
        ),
        compiler_params=pltpu.CompilerParams(
            dimension_semantics=("parallel", "parallel", "arbitrary"),
            vmem_limit_bytes=vmem_limit),
        cost_estimate=pl.CostEstimate(
            flops=B * padded_n * (2 * F * 2 * D + 2 * D * D),
            transcendentals=B * padded_n,
            bytes_accessed=B * padded_n * F * _F32
                           + B * n_split * (D * D + D) * _F32
                           + 2 * F * D * w_isize),
    )(*p1_args)

    kv = jnp.sum(kv_part, axis=1)                              # (B, D, D)
    ks = jnp.sum(ks_part, axis=1)                              # (B, 1, D)

    # ---- pass 2: stream node tiles, consume kv/ks directly (no glue ops).
    p2_in_specs = [
        pl.BlockSpec((pl.Squeezed(), n_tile, F), lambda b, t: (b, t, 0)),
        pl.BlockSpec((F, 2 * D), lambda b, t: (0, 0)),
        pl.BlockSpec((pl.Squeezed(), D, D), lambda b, t: (b, 0, 0)),
        pl.BlockSpec((pl.Squeezed(), 1, D), lambda b, t: (b, 0, 0)),
    ]
    p2_args = [x_p, w_qv, kv, ks]
    if has_mask:
        p2_in_specs.append(
            pl.BlockSpec((pl.Squeezed(), n_tile, 1), lambda b, t: (b, t, 0)))
        p2_args.append(mask_p)

    out = pl.pallas_call(
        functools.partial(_output_kernel, d=D, n_nodes=float(N),
                          compute_dtype=compute_dtype, has_mask=has_mask),
        out_shape=jax.ShapeDtypeStruct((B, padded_n, D), out_dtype),
        grid=(B, tiles_total),
        in_specs=p2_in_specs,
        out_specs=pl.BlockSpec((pl.Squeezed(), n_tile, D), lambda b, t: (b, t, 0)),
        compiler_params=pltpu.CompilerParams(
            dimension_semantics=("parallel", "parallel"),
            vmem_limit_bytes=vmem_limit),
        cost_estimate=pl.CostEstimate(
            flops=B * padded_n * (2 * F * 2 * D + 2 * D * D),
            transcendentals=B * padded_n * 2,
            bytes_accessed=B * padded_n * F * _F32
                           + B * padded_n * D * out_isize
                           + B * (D * D + D) * _F32 + 2 * F * D * w_isize),
    )(*p2_args)

    if needs_mask:
        out = out[:, :N, :]
    return out


def sgformer_attention_ref(x, wq, wk, wv, mask=None):
    """Pure-JAX reference mirroring the PyTorch forward (heads=1)."""
    B, N, F = x.shape
    q = x @ wq
    k = x @ wk
    v = x @ wv
    if mask is not None:
        v = jnp.where(mask[..., None], v, 0.0)
    eps = 1e-6
    q = jnp.where(q == 0.0, eps, q)
    k = jnp.where(k == 0.0, eps, k)
    q = q / jnp.linalg.norm(q, axis=-1, keepdims=True)
    k = k / jnp.linalg.norm(k, axis=-1, keepdims=True)
    kv = jnp.einsum('blm,bld->bmd', k, v)
    num = jnp.einsum('bnm,bmd->bnd', q, kv) + N * v
    ks_sum = jnp.sum(k, axis=1)
    denom = jnp.einsum('bnm,bm->bn', q, ks_sum)[..., None] + N
    return num / denom


if __name__ == "__main__":
    # Shapes consistent with the module: x in R^{B x N x F}, head_channels D=64,
    # heads=1, qkv_bias=False.
    B, N, F, D = 2, 1024, 32, 64

    key = jax.random.PRNGKey(0)
    kx, kq, kk, kvw, km = jax.random.split(key, 5)

    x = jax.random.normal(kx, (B, N, F), dtype=jnp.float32)
    # Deterministic kaiming_uniform-like init: U(-bound, bound), bound = sqrt(6/fan_in)
    bound = (6.0 / F) ** 0.5
    wq = jax.random.uniform(kq, (F, D), jnp.float32, -bound, bound)
    wk = jax.random.uniform(kk, (F, D), jnp.float32, -bound, bound)
    wv = jax.random.uniform(kvw, (F, D), jnp.float32, -bound, bound)

    # 1) Fused single-call path (x read from HBM once), f32 MXU operands.
    out = jax.block_until_ready(sgformer_attention(x, wq, wk, wv))
    ref = sgformer_attention_ref(x, wq, wk, wv)
    assert out.shape == (B, N, D)
    assert jnp.allclose(out, ref, atol=5e-4, rtol=5e-4), "fused f32 mismatch"

    # 2) Fused path with bf16 MXU operands (f32 accumulation) — the MXU-speed
    #    option from the review; validated at a bf16-appropriate tolerance.
    out_bf = jax.block_until_ready(
        sgformer_attention(x, wq, wk, wv, compute_dtype=jnp.bfloat16))
    assert jnp.allclose(out_bf, ref, atol=5e-2, rtol=5e-2), "fused bf16 mismatch"

    # 3) Two-pass streaming fallback (large-N path): non-divisible N exercises
    #    padding + pass-1 masking, B=1 exercises the 2-way reduction split,
    #    and a node mask exercises the masked_fill(V) branch.
    B2, N2 = 1, 1003
    x2 = jax.random.normal(kx, (B2, N2, F), dtype=jnp.float32)
    mask2 = jax.random.uniform(km, (B2, N2)) > 0.25
    out2 = jax.block_until_ready(
        sgformer_attention(x2, wq, wk, wv, mask=mask2,
                           node_tile=256, force_two_pass=True))
    ref2 = sgformer_attention_ref(x2, wq, wk, wv, mask=mask2)
    assert out2.shape == (B2, N2, D)
    assert jnp.allclose(out2, ref2, atol=5e-4, rtol=5e-4), "two-pass mismatch"

    print("KERNEL_OK")
</pallas_src>

<mosaic_0001>
module attributes {stable_mosaic.version = 11 : i64} {
  func.func @_fused_kernel(%arg0: i32, %arg1: memref<1x1024x32xf32, #tpu.memory_space<vmem>>, %arg2: memref<32x192xf32, #tpu.memory_space<vmem>>, %arg3: memref<1x1024x64xf32, #tpu.memory_space<vmem>>) attributes {dimension_semantics = [#tpu.dimension_semantics<parallel>], iteration_bounds = array<i64: 2>, scalar_prefetch = 0 : i64, scratch_operands = 0 : i64, tpu.core_type = #tpu.core_type<tc>, window_params = [{transform_indices = @transform_0, window_bounds = array<i64: 1, 1024, 32>}, {pipeline_mode = #tpu.pipeline_mode<synchronous>, transform_indices = @transform_1, window_bounds = array<i64: 32, 192>}, {transform_indices = @transform_2, window_bounds = array<i64: 1, 1024, 64>}]} {
    %c0 = arith.constant 0 : index
    %c0_0 = arith.constant 0 : index
    %c0_1 = arith.constant 0 : index
    %0 = vector.load %arg1[%c0, %c0_0, %c0_1] : memref<1x1024x32xf32, #tpu.memory_space<vmem>>, vector<1x1024x32xf32>
    %1 = vector.shape_cast %0 : vector<1x1024x32xf32> to vector<1024x32xf32>
    %c0_2 = arith.constant 0 : index
    %c0_3 = arith.constant 0 : index
    %2 = vector.load %arg2[%c0_2, %c0_3] : memref<32x192xf32, #tpu.memory_space<vmem>>, vector<32x192xf32>
    %cst = arith.constant dense<0.000000e+00> : vector<1024x192xf32>
    %3 = tpu.matmul %1, %2, %cst {dimension_numbers = #tpu.dot_dimension_numbers<[1], [0], [0], [1], [0, 0, 1, 1], [], []>} : vector<1024x32xf32>, vector<32x192xf32>, vector<1024x192xf32> -> vector<1024x192xf32>
    %4 = vector.extract_strided_slice %3 {offsets = [0, 0], sizes = [1024, 64], strides = [1, 1]} : vector<1024x192xf32> to vector<1024x64xf32>
    %5 = vector.extract_strided_slice %3 {offsets = [0, 64], sizes = [1024, 64], strides = [1, 1]} : vector<1024x192xf32> to vector<1024x64xf32>
    %6 = vector.extract_strided_slice %3 {offsets = [0, 128], sizes = [1024, 64], strides = [1, 1]} : vector<1024x192xf32> to vector<1024x64xf32>
    %cst_4 = arith.constant 0.000000e+00 : f32
    %7 = vector.broadcast %cst_4 : f32 to vector<1024x64xf32>
    %8 = arith.cmpf oeq, %4, %7 : vector<1024x64xf32>
    %cst_5 = arith.constant 9.99999997E-7 : f32
    %9 = vector.broadcast %cst_5 : f32 to vector<1024x64xf32>
    %10 = arith.select %8, %9, %4 : vector<1024x64xi1>, vector<1024x64xf32>
    %cst_6 = arith.constant 0.000000e+00 : f32
    %11 = vector.broadcast %cst_6 : f32 to vector<1024x64xf32>
    %12 = arith.cmpf oeq, %5, %11 : vector<1024x64xf32>
    %cst_7 = arith.constant 9.99999997E-7 : f32
    %13 = vector.broadcast %cst_7 : f32 to vector<1024x64xf32>
    %14 = arith.select %12, %13, %5 : vector<1024x64xi1>, vector<1024x64xf32>
    %15 = arith.mulf %10, %10 : vector<1024x64xf32>
    %cst_8 = arith.constant dense<0.000000e+00> : vector<1024xf32>
    %16 = vector.multi_reduction <add>, %15, %cst_8 [1] : vector<1024x64xf32> to vector<1024xf32>
    %17 = vector.shape_cast %16 : vector<1024xf32> to vector<1024x1xf32>
    %18 = math.rsqrt %17 : vector<1024x1xf32>
    %19 = vector.broadcast %18 : vector<1024x1xf32> to vector<1024x64xf32>
    %20 = arith.mulf %10, %19 : vector<1024x64xf32>
    %21 = arith.mulf %14, %14 : vector<1024x64xf32>
    %cst_9 = arith.constant dense<0.000000e+00> : vector<1024xf32>
    %22 = vector.multi_reduction <add>, %21, %cst_9 [1] : vector<1024x64xf32> to vector<1024xf32>
    %23 = vector.shape_cast %22 : vector<1024xf32> to vector<1024x1xf32>
    %24 = math.rsqrt %23 : vector<1024x1xf32>
    %25 = vector.broadcast %24 : vector<1024x1xf32> to vector<1024x64xf32>
    %26 = arith.mulf %14, %25 : vector<1024x64xf32>
    %cst_10 = arith.constant dense<0.000000e+00> : vector<64x64xf32>
    %27 = tpu.matmul %20, %6, %cst_10 {dimension_numbers = #tpu.dot_dimension_numbers<[0], [0], [1], [1], [0, 1, 1, 1], [], []>} : vector<1024x64xf32>, vector<1024x64xf32>, vector<64x64xf32> -> vector<64x64xf32>
    %cst_11 = arith.constant dense<0.000000e+00> : vector<64xf32>
    %28 = vector.multi_reduction <add>, %20, %cst_11 [0] : vector<1024x64xf32> to vector<64xf32>
    %29 = vector.shape_cast %28 : vector<64xf32> to vector<1x64xf32>
    %cst_12 = arith.constant dense<0.000000e+00> : vector<1024x64xf32>
    %30 = tpu.matmul %26, %27, %cst_12 {dimension_numbers = #tpu.dot_dimension_numbers<[1], [0], [0], [1], [0, 0, 1, 1], [], []>} : vector<1024x64xf32>, vector<64x64xf32>, vector<1024x64xf32> -> vector<1024x64xf32>
    %cst_13 = arith.constant 1.024000e+03 : f32
    %31 = vector.broadcast %cst_13 : f32 to vector<1024x64xf32>
    %32 = arith.mulf %31, %6 : vector<1024x64xf32>
    %33 = arith.addf %30, %32 : vector<1024x64xf32>
    %34 = vector.broadcast %29 : vector<1x64xf32> to vector<1024x64xf32>
    %35 = arith.mulf %26, %34 : vector<1024x64xf32>
    %cst_14 = arith.constant dense<0.000000e+00> : vector<1024xf32>
    %36 = vector.multi_reduction <add>, %35, %cst_14 [1] : vector<1024x64xf32> to vector<1024xf32>
    %37 = vector.shape_cast %36 : vector<1024xf32> to vector<1024x1xf32>
    %cst_15 = arith.constant 1.024000e+03 : f32
    %38 = vector.broadcast %cst_15 : f32 to vector<1024x1xf32>
    %39 = arith.addf %37, %38 : vector<1024x1xf32>
    %40 = tpu.reciprocal %39 {approx = true} : vector<1024x1xf32> -> vector<1024x1xf32>
    %41 = arith.mulf %39, %40 : vector<1024x1xf32>
    %cst_16 = arith.constant 2.000000e+00 : f32
    %42 = vector.broadcast %cst_16 : f32 to vector<1024x1xf32>
    %43 = arith.subf %42, %41 : vector<1024x1xf32>
    %44 = arith.mulf %40, %43 : vector<1024x1xf32>
    %45 = vector.broadcast %44 : vector<1024x1xf32> to vector<1024x64xf32>
    %46 = arith.mulf %33, %45 : vector<1024x64xf32>
    %c0_17 = arith.constant 0 : index
    %c0_18 = arith.constant 0 : index
    %c0_19 = arith.constant 0 : index
    %47 = vector.load %arg3[%c0_17, %c0_18, %c0_19] : memref<1x1024x64xf32, #tpu.memory_space<vmem>>, vector<1x1024x64xf32>
    %48 = vector.shape_cast %47 : vector<1x1024x64xf32> to vector<1024x64xf32>
    %49 = vector.shape_cast %46 : vector<1024x64xf32> to vector<1x1024x64xf32>
    tpu.vector_store %arg3[%c0_17, %c0_18, %c0_19], %49 {strides = array<i32>} : memref<1x1024x64xf32, #tpu.memory_space<vmem>>, vector<1x1024x64xf32>,
    return
  }
  func.func @transform_0(%arg0: i32) -> (i32, i32, i32) {
    %c0_i32 = arith.constant 0 : i32
    %c0_i32_0 = arith.constant 0 : i32
    %c0_i32_1 = arith.constant 0 : i32
    return %arg0, %c0_i32, %c0_i32_0 : i32, i32, i32
  }
  func.func @transform_1(%arg0: i32) -> (i32, i32) {
    %c0_i32 = arith.constant 0 : i32
    %c0_i32_0 = arith.constant 0 : i32
    %c0_i32_1 = arith.constant 0 : i32
    return %c0_i32, %c0_i32_0 : i32, i32
  }
  func.func @transform_2(%arg0: i32) -> (i32, i32, i32) {
    %c0_i32 = arith.constant 0 : i32
    %c0_i32_0 = arith.constant 0 : i32
    %c0_i32_1 = arith.constant 0 : i32
    return %arg0, %c0_i32, %c0_i32_0 : i32, i32, i32
  }
}

</mosaic_0001>

<llo_original>
// kernel: tpu_custom_call.1
$region0: #{tpu_custom_call.1}
  #allocation0 [shape = 'u32[]', space=smem, size = 0x4, offset = 0x4, fixed_abs, tag = 'smem constant byte address 0x4 - core index']
  #allocation1 [shape = 'u32[144,128]{1,0:T(1,128)}', space=vmem, size = 0x12000, scoped, tag = 'internal scratch']
  %s0 = inlined_call_operand.vmem [shape: f32[2,1024,32], index: 0, kind: input, shape index: {}]
  %s1 = inlined_call_operand.vmem [shape: f32[32,192], index: 1, kind: input, shape index: {}]
  %s2 = inlined_call_operand.vmem [shape: f32[2,1024,64], index: 2, kind: output, shape index: {}]
  %s3 = sld [smem:[#allocation0]]
  $region41: #{tpu_custom_call.1} parent=0
    _
  %s5 = ssub.s32 1, %s3
  %s6 = scalar_select 0, %s5, %s3
  loop: start=0, step=1, limit=4
  $region2: #{tpu_custom_call.1} parent=0 // loop_pre_header
    _
  $region3: #{tpu_custom_call.1} parent=0 // loop_header
    %s8 = sphi 0, %s12
    %p9 = scmp.ge.s32.totalorder %s8, 4
    %s18 = sphi 0, %s20
    %s21 = sphi 0, %s18
    %s22 = sphi 0, %s21
    %s38 = sphi 0, %s22
    %s42 = sphi 0, %s42
    %s44 = sphi 0, %s42
    %s45 = sphi 0, %s44
    %s59 = sphi 0, %s45
    %s65 = sphi 0, %s67
    %s68 = sphi 0, %s65
    %s69 = sphi 0, %s68
    %s85 = sphi 0, %s69
  $region4: #{tpu_custom_call.1} parent=0 // loop_header_branch
    %11 = sbr.rel (%p9) target = $region8
  $region5: #{tpu_custom_call.1} parent=0 // loop_body
    %s13 = ssub.s32 %s8, 1
    %s14 = ssub.s32 %s8, 2
    %s15 = sadd.s32 %s8, 1
    %s16 = ssub.s32 %s8, %s15
    %p17 = scmp.eq.s32.totalorder %s16, 0
    %s19 = sadd.s32 %s18, 1
    %s20 = scalar_select %p17, %s18, %s19
    %p23 = pneg %p17
    %p24 = scmp.eq.s32.totalorder %s8, 1
    %p25 = por %p23, %p24
    %p26 = scmp.ne.s32.totalorder %s18, %s21
    %p27 = scmp.eq.s32.totalorder %s8, 0
    %p28 = por %p26, %p27
    %p29 = scmp.ne.s32.totalorder %s18, %s21
    %p30 = scmp.eq.s32.totalorder %s13, 1
    %p31 = por %p29, %p30
    %p32 = scmp.ne.s32.totalorder %s21, %s22
    %p33 = scmp.eq.s32.totalorder %s13, 0
    %p34 = por %p32, %p33
    %p35 = scmp.ne.s32.totalorder %s21, %s22
    %p36 = scmp.eq.s32.totalorder %s14, 1
    %p37 = por %p35, %p36
    %p39 = scmp.ne.s32.totalorder %s22, %s38
    %p40 = scmp.eq.s32.totalorder %s14, 0
    %p41 = por %p39, %p40
    %s43 = sadd.s32 %s42, 1
    %p46 = scmp.eq.s32.totalorder %s8, 1
    %p47 = scmp.ne.s32.totalorder %s42, %s44
    %p48 = scmp.eq.s32.totalorder %s8, 0
    %p49 = por %p47, %p48
    %p50 = scmp.ne.s32.totalorder %s42, %s44
    %p51 = scmp.eq.s32.totalorder %s13, 1
    %p52 = por %p50, %p51
    %p53 = scmp.ne.s32.totalorder %s44, %s45
    %p54 = scmp.eq.s32.totalorder %s13, 0
    %p55 = por %p53, %p54
    %p56 = scmp.ne.s32.totalorder %s44, %s45
    %p57 = scmp.eq.s32.totalorder %s14, 1
    %p58 = por %p56, %p57
    %p60 = scmp.ne.s32.totalorder %s45, %s59
    %p61 = scmp.eq.s32.totalorder %s14, 0
    %p62 = por %p60, %p61
    %s63 = ssub.s32 %s8, %s15
    %p64 = scmp.eq.s32.totalorder %s63, 0
    %s66 = sadd.s32 %s65, 1
    %s67 = scalar_select %p64, %s65, %s66
    %p70 = pneg %p64
    %p71 = scmp.eq.s32.totalorder %s8, 1
    %p72 = por %p70, %p71
    %p73 = scmp.ne.s32.totalorder %s65, %s68
    %p74 = scmp.eq.s32.totalorder %s8, 0
    %p75 = por %p73, %p74
    %p76 = scmp.ne.s32.totalorder %s65, %s68
    %p77 = scmp.eq.s32.totalorder %s13, 1
    %p78 = por %p76, %p77
    %p79 = scmp.ne.s32.totalorder %s68, %s69
    %p80 = scmp.eq.s32.totalorder %s13, 0
    %p81 = por %p79, %p80
    %p82 = scmp.ne.s32.totalorder %s68, %s69
    %p83 = scmp.eq.s32.totalorder %s14, 1
    %p84 = por %p82, %p83
    %p86 = scmp.ne.s32.totalorder %s69, %s85
    %p87 = scmp.eq.s32.totalorder %s14, 0
    %p88 = por %p86, %p87
    %p89 = scmp.le.s32.totalorder 1, %s8
    %p90 = scmp.lt.s32.totalorder %s8, 3
    %p91 = pnand %p89, %p90
    %p92 = pneg %p91
    // Predicated region
    $region9: #{tpu_custom_call.1} parent=5 // pred_check
      _
    $region10: #{tpu_custom_call.1} parent=5 // pred_check_branch
      %94 = sbr.rel (%p91) target = $region12
    $region11: #{tpu_custom_call.1} parent=5 // pred_region
      %s95 = ssub.s32 %s8, 1
      // Predicated region
      $region13: #{tpu_custom_call.1} parent=11 // pred_check
        %p96 = pneg %p55
      $region14: #{tpu_custom_call.1} parent=11 // pred_check_branch
        %98 = sbr.rel (%p96) target = $region16
      $region15: #{tpu_custom_call.1} parent=11 // pred_region
        _
      $region16: #{tpu_custom_call.1} parent=11 // pred_fallthru
        _
    $region12: #{tpu_custom_call.1} parent=5 // pred_fallthru
      _
    %p99 = scmp.lt.s32.totalorder %s8, 2
    // Predicated region
    $region17: #{tpu_custom_call.1} parent=5 // pred_check
      %p100 = pneg %p99
    $region18: #{tpu_custom_call.1} parent=5 // pred_check_branch
      %102 = sbr.rel (%p100) target = $region20
    $region19: #{tpu_custom_call.1} parent=5 // pred_region
      // Predicated region
      $region21: #{tpu_custom_call.1} parent=19 // pred_check
        %p103 = pneg %p28
      $region22: #{tpu_custom_call.1} parent=19 // pred_check_branch
        %105 = sbr.rel (%p103) target = $region24
      $region23: #{tpu_custom_call.1} parent=19 // pred_region
        %p106 = scmp.lt.s32.totalorder %s8, 1
        %s107 = scalar_select %p106, %s8, 1
        %s108 = smul.addr %s107, 128
        %s109 = smul.addr %s108, 8
        %s110 = scalar_lea.vmem %s0, %s109
      $region24: #{tpu_custom_call.1} parent=19 // pred_fallthru
        _
    $region20: #{tpu_custom_call.1} parent=5 // pred_fallthru
      _
    %p111 = scmp.le.s32.totalorder 1, %s8
    %p112 = scmp.lt.s32.totalorder %s8, 3
    %p113 = pnand %p111, %p112
    %p114 = pneg %p113
    // Predicated region
    $region25: #{tpu_custom_call.1} parent=5 // pred_check
      _
    $region26: #{tpu_custom_call.1} parent=5 // pred_check_branch
      %116 = sbr.rel (%p113) target = $region28
    $region27: #{tpu_custom_call.1} parent=5 // pred_region
      %s117 = ssub.s32 %s8, 1
      %p118 = scmp.lt.s32.totalorder %s13, 1
      %s119 = scalar_select %p118, %s13, 1
      %s120 = smul.addr %s119, 128
      %s121 = smul.addr %s120, 8
      %s122 = scalar_lea.vmem %s0, %s121
      %p123 = pneg %p34
      %p124 = pneg %p31
      %p125 = pneg %p55
      %p126 = pneg %p52
      %p127 = pneg %p81
      %p128 = pneg %p78
      %p129 = scmp.lt.s32.totalorder %s13, 1
      %s130 = scalar_select %p129, %s13, 1
      %s131 = smul.addr %s130, 128
      %s132 = smul.addr %s131, 8
      %s133 = scalar_lea.vmem %s2, %s132
      %p134 = scmp.lt.s32.totalorder %s13, 1
      %s135 = scalar_select %p134, %s13, 1
      %s136 = smul.addr %s135, 128
      %s137 = smul.addr %s136, 8
      %s138 = scalar_lea.vmem %s0, %s137
      %p139 = scmp.lt.s32.totalorder %s13, 1
      %s140 = scalar_select %p139, %s13, 1
      %s141 = smul.addr %s140, 128
      %s142 = smul.addr %s141, 8
      %s143 = scalar_lea.vmem %s2, %s142
      %v144 = vld [vmem:[%s138] sm:$0xff]
      %v145 = vld [vmem:[%s138 + $0x8] sm:$0xff]
      %v146 = vld [vmem:[%s138 + $0x10] sm:$0xff]
      %v147 = vld [vmem:[%s138 + $0x18] sm:$0xff]
      %v148 = vld [vmem:[%s138 + $0x20] sm:$0xff]
      %v149 = vld [vmem:[%s138 + $0x28] sm:$0xff]
      %v150 = vld [vmem:[%s138 + $0x30] sm:$0xff]
      %v151 = vld [vmem:[%s138 + $0x38] sm:$0xff]
      %v152 = vld [vmem:[%s138 + $0x40] sm:$0xff]
      %v153 = vld [vmem:[%s138 + $0x48] sm:$0xff]
      %v154 = vld [vmem:[%s138 + $0x50] sm:$0xff]
      %v155 = vld [vmem:[%s138 + $0x58] sm:$0xff]
      %v156 = vld [vmem:[%s138 + $0x60] sm:$0xff]
      %v157 = vld [vmem:[%s138 + $0x68] sm:$0xff]
      %v158 = vld [vmem:[%s138 + $0x70] sm:$0xff]
      %v159 = vld [vmem:[%s138 + $0x78] sm:$0xff]
      %v160 = vld [vmem:[%s138 + $0x80] sm:$0xff]
      %v161 = vld [vmem:[%s138 + $0x88] sm:$0xff]
      %v162 = vld [vmem:[%s138 + $0x90] sm:$0xff]
      %v163 = vld [vmem:[%s138 + $0x98] sm:$0xff]
      %v164 = vld [vmem:[%s138 + $0xa0] sm:$0xff]
      %v165 = vld [vmem:[%s138 + $0xa8] sm:$0xff]
      %v166 = vld [vmem:[%s138 + $0xb0] sm:$0xff]
      %v167 = vld [vmem:[%s138 + $0xb8] sm:$0xff]
      %v168 = vld [vmem:[%s138 + $0xc0] sm:$0xff]
      %v169 = vld [vmem:[%s138 + $0xc8] sm:$0xff]
      %v170 = vld [vmem:[%s138 + $0xd0] sm:$0xff]
      %v171 = vld [vmem:[%s138 + $0xd8] sm:$0xff]
      %v172 = vld [vmem:[%s138 + $0xe0] sm:$0xff]
      %v173 = vld [vmem:[%s138 + $0xe8] sm:$0xff]
      %v174 = vld [vmem:[%s138 + $0xf0] sm:$0xff]
      %v175 = vld [vmem:[%s138 + $0xf8] sm:$0xff]
      %v176 = vld [vmem:[%s138 + $0x100] sm:$0xff]
      %v177 = vld [vmem:[%s138 + $0x108] sm:$0xff]
      %v178 = vld [vmem:[%s138 + $0x110] sm:$0xff]
      %v179 = vld [vmem:[%s138 + $0x118] sm:$0xff]
      %v180 = vld [vmem:[%s138 + $0x120] sm:$0xff]
      %v181 = vld [vmem:[%s138 + $0x128] sm:$0xff]
      %v182 = vld [vmem:[%s138 + $0x130] sm:$0xff]
      %v183 = vld [vmem:[%s138 + $0x138] sm:$0xff]
      %v184 = vld [vmem:[%s138 + $0x140] sm:$0xff]
      %v185 = vld [vmem:[%s138 + $0x148] sm:$0xff]
      %v186 = vld [vmem:[%s138 + $0x150] sm:$0xff]
      %v187 = vld [vmem:[%s138 + $0x158] sm:$0xff]
      %v188 = vld [vmem:[%s138 + $0x160] sm:$0xff]
      %v189 = vld [vmem:[%s138 + $0x168] sm:$0xff]
      %v190 = vld [vmem:[%s138 + $0x170] sm:$0xff]
      %v191 = vld [vmem:[%s138 + $0x178] sm:$0xff]
      %v192 = vld [vmem:[%s138 + $0x180] sm:$0xff]
      %v193 = vld [vmem:[%s138 + $0x188] sm:$0xff]
      %v194 = vld [vmem:[%s138 + $0x190] sm:$0xff]
      %v195 = vld [vmem:[%s138 + $0x198] sm:$0xff]
      %v196 = vld [vmem:[%s138 + $0x1a0] sm:$0xff]
      %v197 = vld [vmem:[%s138 + $0x1a8] sm:$0xff]
      %v198 = vld [vmem:[%s138 + $0x1b0] sm:$0xff]
      %v199 = vld [vmem:[%s138 + $0x1b8] sm:$0xff]
      %v200 = vld [vmem:[%s138 + $0x1c0] sm:$0xff]
      %v201 = vld [vmem:[%s138 + $0x1c8] sm:$0xff]
      %v202 = vld [vmem:[%s138 + $0x1d0] sm:$0xff]
      %v203 = vld [vmem:[%s138 + $0x1d8] sm:$0xff]
      %v204 = vld [vmem:[%s138 + $0x1e0] sm:$0xff]
      %v205 = vld [vmem:[%s138 + $0x1e8] sm:$0xff]
      %v206 = vld [vmem:[%s138 + $0x1f0] sm:$0xff]
      %v207 = vld [vmem:[%s138 + $0x1f8] sm:$0xff]
      %v208 = vld [vmem:[%s138 + $0x200] sm:$0xff]
      %v209 = vld [vmem:[%s138 + $0x208] sm:$0xff]
      %v210 = vld [vmem:[%s138 + $0x210] sm:$0xff]
      %v211 = vld [vmem:[%s138 + $0x218] sm:$0xff]
      %v212 = vld [vmem:[%s138 + $0x220] sm:$0xff]
      %v213 = vld [vmem:[%s138 + $0x228] sm:$0xff]
      %v214 = vld [vmem:[%s138 + $0x230] sm:$0xff]
      %v215 = vld [vmem:[%s138 + $0x238] sm:$0xff]
      %v216 = vld [vmem:[%s138 + $0x240] sm:$0xff]
      %v217 = vld [vmem:[%s138 + $0x248] sm:$0xff]
      %v218 = vld [vmem:[%s138 + $0x250] sm:$0xff]
      %v219 = vld [vmem:[%s138 + $0x258] sm:$0xff]
      %v220 = vld [vmem:[%s138 + $0x260] sm:$0xff]
      %v221 = vld [vmem:[%s138 + $0x268] sm:$0xff]
      %v222 = vld [vmem:[%s138 + $0x270] sm:$0xff]
      %v223 = vld [vmem:[%s138 + $0x278] sm:$0xff]
      %v224 = vld [vmem:[%s138 + $0x280] sm:$0xff]
      %v225 = vld [vmem:[%s138 + $0x288] sm:$0xff]
      %v226 = vld [vmem:[%s138 + $0x290] sm:$0xff]
      %v227 = vld [vmem:[%s138 + $0x298] sm:$0xff]
      %v228 = vld [vmem:[%s138 + $0x2a0] sm:$0xff]
      %v229 = vld [vmem:[%s138 + $0x2a8] sm:$0xff]
      %v230 = vld [vmem:[%s138 + $0x2b0] sm:$0xff]
      %v231 = vld [vmem:[%s138 + $0x2b8] sm:$0xff]
      %v232 = vld [vmem:[%s138 + $0x2c0] sm:$0xff]
      %v233 = vld [vmem:[%s138 + $0x2c8] sm:$0xff]
      %v234 = vld [vmem:[%s138 + $0x2d0] sm:$0xff]
      %v235 = vld [vmem:[%s138 + $0x2d8] sm:$0xff]
      %v236 = vld [vmem:[%s138 + $0x2e0] sm:$0xff]
      %v237 = vld [vmem:[%s138 + $0x2e8] sm:$0xff]
      %v238 = vld [vmem:[%s138 + $0x2f0] sm:$0xff]
      %v239 = vld [vmem:[%s138 + $0x2f8] sm:$0xff]
      %v240 = vld [vmem:[%s138 + $0x300] sm:$0xff]
      %v241 = vld [vmem:[%s138 + $0x308] sm:$0xff]
      %v242 = vld [vmem:[%s138 + $0x310] sm:$0xff]
      %v243 = vld [vmem:[%s138 + $0x318] sm:$0xff]
      %v244 = vld [vmem:[%s138 + $0x320] sm:$0xff]
      %v245 = vld [vmem:[%s138 + $0x328] sm:$0xff]
      %v246 = vld [vmem:[%s138 + $0x330] sm:$0xff]
      %v247 = vld [vmem:[%s138 + $0x338] sm:$0xff]
      %v248 = vld [vmem:[%s138 + $0x340] sm:$0xff]
      %v249 = vld [vmem:[%s138 + $0x348] sm:$0xff]
      %v250 = vld [vmem:[%s138 + $0x350] sm:$0xff]
      %v251 = vld [vmem:[%s138 + $0x358] sm:$0xff]
      %v252 = vld [vmem:[%s138 + $0x360] sm:$0xff]
      %v253 = vld [vmem:[%s138 + $0x368] sm:$0xff]
      %v254 = vld [vmem:[%s138 + $0x370] sm:$0xff]
      %v255 = vld [vmem:[%s138 + $0x378] sm:$0xff]
      %v256 = vld [vmem:[%s138 + $0x380] sm:$0xff]
      %v257 = vld [vmem:[%s138 + $0x388] sm:$0xff]
      %v258 = vld [vmem:[%s138 + $0x390] sm:$0xff]
      %v259 = vld [vmem:[%s138 + $0x398] sm:$0xff]
      %v260 = vld [vmem:[%s138 + $0x3a0] sm:$0xff]
      %v261 = vld [vmem:[%s138 + $0x3a8] sm:$0xff]
      %v262 = vld [vmem:[%s138 + $0x3b0] sm:$0xff]
      %v263 = vld [vmem:[%s138 + $0x3b8] sm:$0xff]
      %v264 = vld [vmem:[%s138 + $0x3c0] sm:$0xff]
      %v265 = vld [vmem:[%s138 + $0x3c8] sm:$0xff]
      %v266 = vld [vmem:[%s138 + $0x3d0] sm:$0xff]
      %v267 = vld [vmem:[%s138 + $0x3d8] sm:$0xff]
      %v268 = vld [vmem:[%s138 + $0x3e0] sm:$0xff]
      %v269 = vld [vmem:[%s138 + $0x3e8] sm:$0xff]
      %v270 = vld [vmem:[%s138 + $0x3f0] sm:$0xff]
      %v271 = vld [vmem:[%s138 + $0x3f8] sm:$0xff]
      %v272 = vld [vmem:[%s1] sm:$0xff]
      %v273 = vld [vmem:[%s1 + $0x8] sm:$0xff]
      %v274 = vld [vmem:[%s1 + $0x10] sm:$0xff]
      %v275 = vld [vmem:[%s1 + $0x18] sm:$0xff]
      %v276 = vld [vmem:[%s1 + $0x20] sm:$0xff]
      %v277 = vld [vmem:[%s1 + $0x28] sm:$0xff]
      %v278 = vld [vmem:[%s1 + $0x30] sm:$0xff]
      %v279 = vld [vmem:[%s1 + $0x38] sm:$0xff]
      %vm280 = vcmask 261120
      %v282 = vsel %vm280, %v144, 0
      %v285 = vsel %vm280, %v145, 0
      %v288 = vsel %vm280, %v146, 0
      %v291 = vsel %vm280, %v147, 0
      %v294 = vsel %vm280, %v148, 0
      %v297 = vsel %vm280, %v149, 0
      %v300 = vsel %vm280, %v150, 0
      %v303 = vsel %vm280, %v151, 0
      %v306 = vsel %vm280, %v152, 0
      %v309 = vsel %vm280, %v153, 0
      %v312 = vsel %vm280, %v154, 0
      %v315 = vsel %vm280, %v155, 0
      %v318 = vsel %vm280, %v156, 0
      %v321 = vsel %vm280, %v157, 0
      %v324 = vsel %vm280, %v158, 0
      %v327 = vsel %vm280, %v159, 0
      %v330 = vsel %vm280, %v160, 0
      %v333 = vsel %vm280, %v161, 0
      %v336 = vsel %vm280, %v162, 0
      %v339 = vsel %vm280, %v163, 0
      %v342 = vsel %vm280, %v164, 0
      %v345 = vsel %vm280, %v165, 0
      %v348 = vsel %vm280, %v166, 0
      %v351 = vsel %vm280, %v167, 0
      %v354 = vsel %vm280, %v168, 0
      %v357 = vsel %vm280, %v169, 0
      %v360 = vsel %vm280, %v170, 0
      %v363 = vsel %vm280, %v171, 0
      %v366 = vsel %vm280, %v172, 0
      %v369 = vsel %vm280, %v173, 0
      %v372 = vsel %vm280, %v174, 0
      %v375 = vsel %vm280, %v175, 0
      %v378 = vsel %vm280, %v176, 0
      %v381 = vsel %vm280, %v177, 0
      %v384 = vsel %vm280, %v178, 0
      %v387 = vsel %vm280, %v179, 0
      %v390 = vsel %vm280, %v180, 0
      %v393 = vsel %vm280, %v181, 0
      %v396 = vsel %vm280, %v182, 0
      %v399 = vsel %vm280, %v183, 0
      %v402 = vsel %vm280, %v184, 0
      %v405 = vsel %vm280, %v185, 0
      %v408 = vsel %vm280, %v186, 0
      %v411 = vsel %vm280, %v187, 0
      %v414 = vsel %vm280, %v188, 0
      %v417 = vsel %vm280, %v189, 0
      %v420 = vsel %vm280, %v190, 0
      %v423 = vsel %vm280, %v191, 0
      %v426 = vsel %vm280, %v192, 0
      %v429 = vsel %vm280, %v193, 0
      %v432 = vsel %vm280, %v194, 0
      %v435 = vsel %vm280, %v195, 0
      %v438 = vsel %vm280, %v196, 0
      %v441 = vsel %vm280, %v197, 0
      %v444 = vsel %vm280, %v198, 0
      %v447 = vsel %vm280, %v199, 0
      %v450 = vsel %vm280, %v200, 0
      %v453 = vsel %vm280, %v201, 0
      %v456 = vsel %vm280, %v202, 0
      %v459 = vsel %vm280, %v203, 0
      %v462 = vsel %vm280, %v204, 0
      %v465 = vsel %vm280, %v205, 0
      %v468 = vsel %vm280, %v206, 0
      %v471 = vsel %vm280, %v207, 0
      %v474 = vsel %vm280, %v208, 0
      %v477 = vsel %vm280, %v209, 0
      %v480 = vsel %vm280, %v210, 0
      %v483 = vsel %vm280, %v211, 0
      %v486 = vsel %vm280, %v212, 0
      %v489 = vsel %vm280, %v213, 0
      %v492 = vsel %vm280, %v214, 0
      %v495 = vsel %vm280, %v215, 0
      %v498 = vsel %vm280, %v216, 0
      %v501 = vsel %vm280, %v217, 0
      %v504 = vsel %vm280, %v218, 0
      %v507 = vsel %vm280, %v219, 0
      %v510 = vsel %vm280, %v220, 0
      %v513 = vsel %vm280, %v221, 0
      %v516 = vsel %vm280, %v222, 0
      %v519 = vsel %vm280, %v223, 0
      %v522 = vsel %vm280, %v224, 0
      %v525 = vsel %vm280, %v225, 0
      %v528 = vsel %vm280, %v226, 0
      %v531 = vsel %vm280, %v227, 0
      %v534 = vsel %vm280, %v228, 0
      %v537 = vsel %vm280, %v229, 0
      %v540 = vsel %vm280, %v230, 0
      %v543 = vsel %vm280, %v231, 0
      %v546 = vsel %vm280, %v232, 0
      %v549 = vsel %vm280, %v233, 0
      %v552 = vsel %vm280, %v234, 0
      %v555 = vsel %vm280, %v235, 0
      %v558 = vsel %vm280, %v236, 0
      %v561 = vsel %vm280, %v237, 0
      %v564 = vsel %vm280, %v238, 0
      %v567 = vsel %vm280, %v239, 0
      %v570 = vsel %vm280, %v240, 0
      %v573 = vsel %vm280, %v241, 0
      %v576 = vsel %vm280, %v242, 0
      %v579 = vsel %vm280, %v243, 0
      %v582 = vsel %vm280, %v244, 0
      %v585 = vsel %vm280, %v245, 0
      %v588 = vsel %vm280, %v246, 0
      %v591 = vsel %vm280, %v247, 0
      %v594 = vsel %vm280, %v248, 0
      %v597 = vsel %vm280, %v249, 0
      %v600 = vsel %vm280, %v250, 0
      %v603 = vsel %vm280, %v251, 0
      %v606 = vsel %vm280, %v252, 0
      %v609 = vsel %vm280, %v253, 0
      %v612 = vsel %vm280, %v254, 0
      %v615 = vsel %vm280, %v255, 0
      %v618 = vsel %vm280, %v256, 0
      %v621 = vsel %vm280, %v257, 0
      %v624 = vsel %vm280, %v258, 0
      %v627 = vsel %vm280, %v259, 0
      %v630 = vsel %vm280, %v260, 0
      %v633 = vsel %vm280, %v261, 0
      %v636 = vsel %vm280, %v262, 0
      %v639 = vsel %vm280, %v263, 0
      %v642 = vsel %vm280, %v264, 0
      %v645 = vsel %vm280, %v265, 0
      %v648 = vsel %vm280, %v266, 0
      %v651 = vsel %vm280, %v267, 0
      %v654 = vsel %vm280, %v268, 0
      %v657 = vsel %vm280, %v269, 0
      %v660 = vsel %vm280, %v270, 0
      %v663 = vsel %vm280, %v271, 0
      %665 = vmatprep.subr.mxu0 %v273
      %666 = vmatpush1.msra.mxu0 %v272
      %667 = vmatprep.subr.mxu0 %v275
      %668 = vmatpush1.msra.mxu0 %v274
      %669 = vmatprep.subr.mxu0 %v277
      %670 = vmatpush1.msra.mxu0 %v276
      %671 = vmatprep.subr.mxu0 %v279
      %672 = vmatpush1.msra.mxu0 %v278
      %673 = vmatprep.subr.mxu0 0.0
      %674 = vmatpush1.msra.mxu0 0.0
      %675 = vmatprep.subr.mxu0 0.0
      %676 = vmatpush1.msra.mxu0 0.0
      %677 = vmatprep.subr.mxu0 0.0
      %678 = vmatpush1.msra.mxu0 0.0
      %679 = vmatprep.subr.mxu0 0.0
      %680 = vmatpush1.msra.mxu0 0.0
      %681 = vmatprep.subr.mxu0 0.0
      %682 = vmatpush1.msra.mxu0 0.0
      %683 = vmatprep.subr.mxu0 0.0
      %684 = vmatpush1.msra.mxu0 0.0
      %685 = vmatprep.subr.mxu0 0.0
      %686 = vmatpush1.msra.mxu0 0.0
      %687 = vmatprep.subr.mxu0 0.0
      %688 = vmatpush1.msra.mxu0 0.0
      %689 = vmatprep.subr.mxu0 0.0
      %690 = vmatpush1.msra.mxu0 0.0
      %691 = vmatprep.subr.mxu0 0.0
      %692 = vmatpush1.msra.mxu0 0.0
      %693 = vmatprep.subr.mxu0 0.0
      %694 = vmatpush1.msra.mxu0 0.0
      %695 = vmatprep.subr.mxu0 0.0
      %696 = vmatpush1.msra.mxu0 0.0
      %697 = vmatprep.subr.mxu0 0.0
      %698 = vmatpush1.msra.mxu0 0.0
      %699 = vmatprep.subr.mxu0 0.0
      %700 = vmatpush1.msra.mxu0 0.0
      %701 = vmatprep.subr.mxu0 0.0
      %702 = vmatpush1.msra.mxu0 0.0
      %703 = vmatprep.subr.mxu0 0.0
      %704 = vmatpush1.msra.mxu0 0.0
      %705 = vmatprep.subr.mxu0 0.0
      %706 = vmatpush1.msra.mxu0 0.0
      %707 = vmatprep.subr.mxu0 0.0
      %708 = vmatpush1.msra.mxu0 0.0
      %709 = vmatprep.subr.mxu0 0.0
      %710 = vmatpush1.msra.mxu0 0.0
      %711 = vmatprep.subr.mxu0 0.0
      %712 = vmatpush1.msra.mxu0 0.0
      %713 = vmatprep.subr.mxu0 0.0
      %714 = vmatpush1.msra.mxu0 0.0
      %715 = vmatprep.subr.mxu0 0.0
      %716 = vmatpush1.msra.mxu0 0.0
      %717 = vmatprep.subr.mxu0 0.0
      %718 = vmatpush1.msra.mxu0 0.0
      %719 = vmatprep.subr.mxu0 0.0
      %720 = vmatpush1.msra.mxu0 0.0
      %721 = vmatprep.subr.mxu0 0.0
      %722 = vmatpush1.msra.mxu0 0.0
      %723 = vmatprep.subr.mxu0 0.0
      %724 = vmatpush1.msra.mxu0 0.0
      %725 = vmatprep.subr.mxu0 0.0
      %726 = vmatpush1.msra.mxu0 0.0
      %727 = vmatprep.subr.mxu0 0.0
      %728 = vmatpush1.msra.mxu0 0.0
      %729 = vmatprep.mubr.f32.mxu0 0.0
      %730 = vmatmul.mubr.f32.gmra.mrb[0].mxu0 %v282
      %v731 = vpop.f32.mrb[0].mxu0
      %v732 = vadd.f32 0.0, %v731
      %v733 = vpop.f32.mrb[0].mxu0
      %v734 = vadd.f32 0.0, %v733
      %735 = vmatprep.mubr.f32.mxu0 0.0
      %736 = vmatmul.mubr.f32.gmra.mrb[0].mxu0 %v285
      %v737 = vpop.f32.mrb[0].mxu0
      %v738 = vadd.f32 0.0, %v737
      %v739 = vpop.f32.mrb[0].mxu0
      %v740 = vadd.f32 0.0, %v739
      %741 = vmatprep.mubr.f32.mxu0 0.0
      %742 = vmatmul.mubr.f32.gmra.mrb[0].mxu0 %v288
      %v743 = vpop.f32.mrb[0].mxu0
      %v744 = vadd.f32 0.0, %v743
      %v745 = vpop.f32.mrb[0].mxu0
      %v746 = vadd.f32 0.0, %v745
      %747 = vmatprep.mubr.f32.mxu0 0.0
      %748 = vmatmul.mubr.f32.gmra.mrb[0].mxu0 %v291
      %v749 = vpop.f32.mrb[0].mxu0
      %v750 = vadd.f32 0.0, %v749
      %v751 = vpop.f32.mrb[0].mxu0
      %v752 = vadd.f32 0.0, %v751
      %753 = vmatprep.mubr.f32.mxu0 0.0
      %754 = vmatmul.mubr.f32.gmra.mrb[0].mxu0 %v294
      %v755 = vpop.f32.mrb[0].mxu0
      %v756 = vadd.f32 0.0, %v755
      %v757 = vpop.f32.mrb[0].mxu0
      %v758 = vadd.f32 0.0, %v757
      %759 = vmatprep.mubr.f32.mxu0 0.0
      %760 = vmatmul.mubr.f32.gmra.mrb[0].mxu0 %v297
      %v761 = vpop.f32.mrb[0].mxu0
      %v762 = vadd.f32 0.0, %v761
      %v763 = vpop.f32.mrb[0].mxu0
      %v764 = vadd.f32 0.0, %v763
      %765 = vmatprep.mubr.f32.mxu0 0.0
      %766 = vmatmul.mubr.f32.gmra.mrb[0].mxu0 %v300
      %v767 = vpop.f32.mrb[0].mxu0
      %v768 = vadd.f32 0.0, %v767
      %v769 = vpop.f32.mrb[0].mxu0
      %v770 = vadd.f32 0.0, %v769
      %771 = vmatprep.mubr.f32.mxu0 0.0
      %772 = vmatmul.mubr.f32.gmra.mrb[0].mxu0 %v303
      %v773 = vpop.f32.mrb[0].mxu0
      %v774 = vadd.f32 0.0, %v773
      %v775 = vpop.f32.mrb[0].mxu0
      %v776 = vadd.f32 0.0, %v775
      %777 = vmatprep.mubr.f32.mxu0 0.0
      %778 = vmatmul.mubr.f32.gmra.mrb[0].mxu0 %v306
      %v779 = vpop.f32.mrb[0].mxu0
      %v780 = vadd.f32 0.0, %v779
      %v781 = vpop.f32.mrb[0].mxu0
      %v782 = vadd.f32 0.0, %v781
      %783 = vmatprep.mubr.f32.mxu0 0.0
      %784 = vmatmul.mubr.f32.gmra.mrb[0].mxu0 %v309
      %v785 = vpop.f32.mrb[0].mxu0
      %v786 = vadd.f32 0.0, %v785
      %v787 = vpop.f32.mrb[0].mxu0
      %v788 = vadd.f32 0.0, %v787
      %789 = vmatprep.mubr.f32.mxu0 0.0
      %790 = vmatmul.mubr.f32.gmra.mrb[0].mxu0 %v312
      %v791 = vpop.f32.mrb[0].mxu0
      %v792 = vadd.f32 0.0, %v791
      %v793 = vpop.f32.mrb[0].mxu0
      %v794 = vadd.f32 0.0, %v793
      %795 = vmatprep.mubr.f32.mxu0 0.0
      %796 = vmatmul.mubr.f32.gmra.mrb[0].mxu0 %v315
      %v797 = vpop.f32.mrb[0].mxu0
      %v798 = vadd.f32 0.0, %v797
      %v799 = vpop.f32.mrb[0].mxu0
      %v800 = vadd.f32 0.0, %v799
      %801 = vmatprep.mubr.f32.mxu0 0.0
      %802 = vmatmul.mubr.f32.gmra.mrb[0].mxu0 %v318
      %v803 = vpop.f32.mrb[0].mxu0
      %v804 = vadd.f32 0.0, %v803
      %v805 = vpop.f32.mrb[0].mxu0
      %v806 = vadd.f32 0.0, %v805
      %807 = vmatprep.mubr.f32.mxu0 0.0
      %808 = vmatmul.mubr.f32.gmra.mrb[0].mxu0 %v321
      %v809 = vpop.f32.mrb[0].mxu0
      %v810 = vadd.f32 0.0, %v809
      %v811 = vpop.f32.mrb[0].mxu0
      %v812 = vadd.f32 0.0, %v811
      %813 = vmatprep.mubr.f32.mxu0 0.0
      %814 = vmatmul.mubr.f32.gmra.mrb[0].mxu0 %v324
      %v815 = vpop.f32.mrb[0].mxu0
      %v816 = vadd.f32 0.0, %v815
      %v817 = vpop.f32.mrb[0].mxu0
      %v818 = vadd.f32 0.0, %v817
      %819 = vmatprep.mubr.f32.mxu0 0.0
      %820 = vmatmul.mubr.f32.gmra.mrb[0].mxu0 %v327
      %v821 = vpop.f32.mrb[0].mxu0
      %v822 = vadd.f32 0.0, %v821
      %v823 = vpop.f32.mrb[0].mxu0
      %v824 = vadd.f32 0.0, %v823
      %825 = vmatprep.mubr.f32.mxu0 0.0
      %826 = vmatmul.mubr.f32.gmra.mrb[0].mxu0 %v330
      %v827 = vpop.f32.mrb[0].mxu0
      %v828 = vadd.f32 0.0, %v827
      %v829 = vpop.f32.mrb[0].mxu0
      %v830 = vadd.f32 0.0, %v829
      %831 = vmatprep.mubr.f32.mxu0 0.0
      %832 = vmatmul.mubr.f32.gmra.mrb[0].mxu0 %v333
      %v833 = vpop.f32.mrb[0].mxu0
      %v834 = vadd.f32 0.0, %v833
      %v835 = vpop.f32.mrb[0].mxu0
      %v836 = vadd.f32 0.0, %v835
      %837 = vmatprep.mubr.f32.mxu0 0.0
      %838 = vmatmul.mubr.f32.gmra.mrb[0].mxu0 %v336
      %v839 = vpop.f32.mrb[0].mxu0
      %v840 = vadd.f32 0.0, %v839
      %v841 = vpop.f32.mrb[0].mxu0
      %v842 = vadd.f32 0.0, %v841
      %843 = vmatprep.mubr.f32.mxu0 0.0
      %844 = vmatmul.mubr.f32.gmra.mrb[0].mxu0 %v339
      %v845 = vpop.f32.mrb[0].mxu0
      %v846 = vadd.f32 0.0, %v845
      %v847 = vpop.f32.mrb[0].mxu0
      %v848 = vadd.f32 0.0, %v847
      %849 = vmatprep.mubr.f32.mxu0 0.0
      %850 = vmatmul.mubr.f32.gmra.mrb[0].mxu0 %v342
      %v851 = vpop.f32.mrb[0].mxu0
      %v852 = vadd.f32 0.0, %v851
      %v853 = vpop.f32.mrb[0].mxu0
      %v854 = vadd.f32 0.0, %v853
      %855 = vmatprep.mubr.f32.mxu0 0.0
      %856 = vmatmul.mubr.f32.gmra.mrb[0].mxu0 %v345
      %v857 = vpop.f32.mrb[0].mxu0
      %v858 = vadd.f32 0.0, %v857
      %v859 = vpop.f32.mrb[0].mxu0
      %v860 = vadd.f32 0.0, %v859
      %861 = vmatprep.mubr.f32.mxu0 0.0
      %862 = vmatmul.mubr.f32.gmra.mrb[0].mxu0 %v348
      %v863 = vpop.f32.mrb[0].mxu0
      %v864 = vadd.f32 0.0, %v863
      %v865 = vpop.f32.mrb[0].mxu0
      %v866 = vadd.f32 0.0, %v865
      %867 = vmatprep.mubr.f32.mxu0 0.0
      %868 = vmatmul.mubr.f32.gmra.mrb[0].mxu0 %v351
      %v869 = vpop.f32.mrb[0].mxu0
      %v870 = vadd.f32 0.0, %v869
      %v871 = vpop.f32.mrb[0].mxu0
      %v872 = vadd.f32 0.0, %v871
      %873 = vmatprep.mubr.f32.mxu0 0.0
      %874 = vmatmul.mubr.f32.gmra.mrb[0].mxu0 %v354
      %v875 = vpop.f32.mrb[0].mxu0
      %v876 = vadd.f32 0.0, %v875
      %v877 = vpop.f32.mrb[0].mxu0
      %v878 = vadd.f32 0.0, %v877
      %879 = vmatprep.mubr.f32.mxu0 0.0
      %880 = vmatmul.mubr.f32.gmra.mrb[0].mxu0 %v357
      %v881 = vpop.f32.mrb[0].mxu0
      %v882 = vadd.f32 0.0, %v881
      %v883 = vpop.f32.mrb[0].mxu0
      %v884 = vadd.f32 0.0, %v883
      %885 = vmatprep.mubr.f32.mxu0 0.0
      %886 = vmatmul.mubr.f32.gmra.mrb[0].mxu0 %v360
      %v887 = vpop.f32.mrb[0].mxu0
      %v888 = vadd.f32 0.0, %v887
      %v889 = vpop.f32.mrb[0].mxu0
      %v890 = vadd.f32 0.0, %v889
      %891 = vmatprep.mubr.f32.mxu0 0.0
      %892 = vmatmul.mubr.f32.gmra.mrb[0].mxu0 %v363
      %v893 = vpop.f32.mrb[0].mxu0
      %v894 = vadd.f32 0.0, %v893
      %v895 = vpop.f32.mrb[0].mxu0
      %v896 = vadd.f32 0.0, %v895
      %897 = vmatprep.mubr.f32.mxu0 0.0
      %898 = vmatmul.mubr.f32.gmra.mrb[0].mxu0 %v366
      %v899 = vpop.f32.mrb[0].mxu0
      %v900 = vadd.f32 0.0, %v899
      %v901 = vpop.f32.mrb[0].mxu0
      %v902 = vadd.f32 0.0, %v901
      %903 = vmatprep.mubr.f32.mxu0 0.0
      %904 = vmatmul.mubr.f32.gmra.mrb[0].mxu0 %v369
      %v905 = vpop.f32.mrb[0].mxu0
      %v906 = vadd.f32 0.0, %v905
      %v907 = vpop.f32.mrb[0].mxu0
      %v908 = vadd.f32 0.0, %v907
      %909 = vmatprep.mubr.f32.mxu0 0.0
      %910 = vmatmul.mubr.f32.gmra.mrb[0].mxu0 %v372
      %v911 = vpop.f32.mrb[0].mxu0
      %v912 = vadd.f32 0.0, %v911
      %v913 = vpop.f32.mrb[0].mxu0
      %v914 = vadd.f32 0.0, %v913
      %915 = vmatprep.mubr.f32.mxu0 0.0
      %916 = vmatmul.mubr.f32.gmra.mrb[0].mxu0 %v375
      %v917 = vpop.f32.mrb[0].mxu0
      %v918 = vadd.f32 0.0, %v917
      %v919 = vpop.f32.mrb[0].mxu0
      %v920 = vadd.f32 0.0, %v919
      %921 = vmatprep.mubr.f32.mxu0 0.0
      %922 = vmatmul.mubr.f32.gmra.mrb[0].mxu0 %v378
      %v923 = vpop.f32.mrb[0].mxu0
      %v924 = vadd.f32 0.0, %v923
      %v925 = vpop.f32.mrb[0].mxu0
      %v926 = vadd.f32 0.0, %v925
      %927 = vmatprep.mubr.f32.mxu0 0.0
      %928 = vmatmul.mubr.f32.gmra.mrb[0].mxu0 %v381
      %v929 = vpop.f32.mrb[0].mxu0
      %v930 = vadd.f32 0.0, %v929
      %v931 = vpop.f32.mrb[0].mxu0
      %v932 = vadd.f32 0.0, %v931
      %933 = vmatprep.mubr.f32.mxu0 0.0
      %934 = vmatmul.mubr.f32.gmra.mrb[0].mxu0 %v384
      %v935 = vpop.f32.mrb[0].mxu0
      %v936 = vadd.f32 0.0, %v935
      %v937 = vpop.f32.mrb[0].mxu0
      %v938 = vadd.f32 0.0, %v937
      %939 = vmatprep.mubr.f32.mxu0 0.0
      %940 = vmatmul.mubr.f32.gmra.mrb[0].mxu0 %v387
      %v941 = vpop.f32.mrb[0].mxu0
      %v942 = vadd.f32 0.0, %v941
      %v943 = vpop.f32.mrb[0].mxu0
      %v944 = vadd.f32 0.0, %v943
      %945 = vmatprep.mubr.f32.mxu0 0.0
      %946 = vmatmul.mubr.f32.gmra.mrb[0].mxu0 %v390
      %v947 = vpop.f32.mrb[0].mxu0
      %v948 = vadd.f32 0.0, %v947
      %v949 = vpop.f32.mrb[0].mxu0
      %v950 = vadd.f32 0.0, %v949
      %951 = vmatprep.mubr.f32.mxu0 0.0
      %952 = vmatmul.mubr.f32.gmra.mrb[0].mxu0 %v393
      %v953 = vpop.f32.mrb[0].mxu0
      %v954 = vadd.f32 0.0, %v953
      %v955 = vpop.f32.mrb[0].mxu0
      %v956 = vadd.f32 0.0, %v955
      %957 = vmatprep.mubr.f32.mxu0 0.0
      %958 = vmatmul.mubr.f32.gmra.mrb[0].mxu0 %v396
      %v959 = vpop.f32.mrb[0].mxu0
      %v960 = vadd.f32 0.0, %v959
      %v961 = vpop.f32.mrb[0].mxu0
      %v962 = vadd.f32 0.0, %v961
      %963 = vmatprep.mubr.f32.mxu0 0.0
      %964 = vmatmul.mubr.f32.gmra.mrb[0].mxu0 %v399
      %v965 = vpop.f32.mrb[0].mxu0
      %v966 = vadd.f32 0.0, %v965
      %v967 = vpop.f32.mrb[0].mxu0
      %v968 = vadd.f32 0.0, %v967
      %969 = vmatprep.mubr.f32.mxu0 0.0
      %970 = vmatmul.mubr.f32.gmra.mrb[0].mxu0 %v402
      %v971 = vpop.f32.mrb[0].mxu0
      %v972 = vadd.f32 0.0, %v971
      %v973 = vpop.f32.mrb[0].mxu0
      %v974 = vadd.f32 0.0, %v973
      %975 = vmatprep.mubr.f32.mxu0 0.0
      %976 = vmatmul.mubr.f32.gmra.mrb[0].mxu0 %v405
      %v977 = vpop.f32.mrb[0].mxu0
      %v978 = vadd.f32 0.0, %v977
      %v979 = vpop.f32.mrb[0].mxu0
      %v980 = vadd.f32 0.0, %v979
      %981 = vmatprep.mubr.f32.mxu0 0.0
      %982 = vmatmul.mubr.f32.gmra.mrb[0].mxu0 %v408
      %v983 = vpop.f32.mrb[0].mxu0
      %v984 = vadd.f32 0.0, %v983
      %v985 = vpop.f32.mrb[0].mxu0
      %v986 = vadd.f32 0.0, %v985
      %987 = vmatprep.mubr.f32.mxu0 0.0
      %988 = vmatmul.mubr.f32.gmra.mrb[0].mxu0 %v411
      %v989 = vpop.f32.mrb[0].mxu0
      %v990 = vadd.f32 0.0, %v989
      %v991 = vpop.f32.mrb[0].mxu0
      %v992 = vadd.f32 0.0, %v991
      %993 = vmatprep.mubr.f32.mxu0 0.0
      %994 = vmatmul.mubr.f32.gmra.mrb[0].mxu0 %v414
      %v995 = vpop.f32.mrb[0].mxu0
      %v996 = vadd.f32 0.0, %v995
      %v997 = vpop.f32.mrb[0].mxu0
      %v998 = vadd.f32 0.0, %v997
      %999 = vmatprep.mubr.f32.mxu0 0.0
      %1000 = vmatmul.mubr.f32.gmra.mrb[0].mxu0 %v417
      %v1001 = vpop.f32.mrb[0].mxu0
      %v1002 = vadd.f32 0.0, %v1001
      %v1003 = vpop.f32.mrb[0].mxu0
      %v1004 = vadd.f32 0.0, %v1003
      %1005 = vmatprep.mubr.f32.mxu0 0.0
      %1006 = vmatmul.mubr.f32.gmra.mrb[0].mxu0 %v420
      %v1007 = vpop.f32.mrb[0].mxu0
      %v1008 = vadd.f32 0.0, %v1007
      %v1009 = vpop.f32.mrb[0].mxu0
      %v1010 = vadd.f32 0.0, %v1009
      %1011 = vmatprep.mubr.f32.mxu0 0.0
      %1012 = vmatmul.mubr.f32.gmra.mrb[0].mxu0 %v423
      %v1013 = vpop.f32.mrb[0].mxu0
      %v1014 = vadd.f32 0.0, %v1013
      %v1015 = vpop.f32.mrb[0].mxu0
      %v1016 = vadd.f32 0.0, %v1015
      %1017 = vmatprep.mubr.f32.mxu0 0.0
      %1018 = vmatmul.mubr.f32.gmra.mrb[0].mxu0 %v426
      %v1019 = vpop.f32.mrb[0].mxu0
      %v1020 = vadd.f32 0.0, %v1019
      %v1021 = vpop.f32.mrb[0].mxu0
      %v1022 = vadd.f32 0.0, %v1021
      %1023 = vmatprep.mubr.f32.mxu0 0.0
      %1024 = vmatmul.mubr.f32.gmra.mrb[0].mxu0 %v429
      %v1025 = vpop.f32.mrb[0].mxu0
      %v1026 = vadd.f32 0.0, %v1025
      %v1027 = vpop.f32.mrb[0].mxu0
      %v1028 = vadd.f32 0.0, %v1027
      %1029 = vmatprep.mubr.f32.mxu0 0.0
      %1030 = vmatmul.mubr.f32.gmra.mrb[0].mxu0 %v432
      %v1031 = vpop.f32.mrb[0].mxu0
      %v1032 = vadd.f32 0.0, %v1031
      %v1033 = vpop.f32.mrb[0].mxu0
      %v1034 = vadd.f32 0.0, %v1033
      %1035 = vmatprep.mubr.f32.mxu0 0.0
      %1036 = vmatmul.mubr.f32.gmra.mrb[0].mxu0 %v435
      %v1037 = vpop.f32.mrb[0].mxu0
      %v1038 = vadd.f32 0.0, %v1037
      %v1039 = vpop.f32.mrb[0].mxu0
      %v1040 = vadd.f32 0.0, %v1039
      %1041 = vmatprep.mubr.f32.mxu0 0.0
      %1042 = vmatmul.mubr.f32.gmra.mrb[0].mxu0 %v438
      %v1043 = vpop.f32.mrb[0].mxu0
      %v1044 = vadd.f32 0.0, %v1043
      %v1045 = vpop.f32.mrb[0].mxu0
      %v1046 = vadd.f32 0.0, %v1045
      %1047 = vmatprep.mubr.f32.mxu0 0.0
      %1048 = vmatmul.mubr.f32.gmra.mrb[0].mxu0 %v441
      %v1049 = vpop.f32.mrb[0].mxu0
      %v1050 = vadd.f32 0.0, %v1049
      %v1051 = vpop.f32.mrb[0].mxu0
      %v1052 = vadd.f32 0.0, %v1051
      %1053 = vmatprep.mubr.f32.mxu0 0.0
      %1054 = vmatmul.mubr.f32.gmra.mrb[0].mxu0 %v444
      %v1055 = vpop.f32.mrb[0].mxu0
      %v1056 = vadd.f32 0.0, %v1055
      %v1057 = vpop.f32.mrb[0].mxu0
      %v1058 = vadd.f32 0.0, %v1057
      %1059 = vmatprep.mubr.f32.mxu0 0.0
      %1060 = vmatmul.mubr.f32.gmra.mrb[0].mxu0 %v447
      %v1061 = vpop.f32.mrb[0].mxu0
      %v1062 = vadd.f32 0.0, %v1061
      %v1063 = vpop.f32.mrb[0].mxu0
      %v1064 = vadd.f32 0.0, %v1063
      %1065 = vmatprep.mubr.f32.mxu0 0.0
      %1066 = vmatmul.mubr.f32.gmra.mrb[0].mxu0 %v450
      %v1067 = vpop.f32.mrb[0].mxu0
      %v1068 = vadd.f32 0.0, %v1067
      %v1069 = vpop.f32.mrb[0].mxu0
      %v1070 = vadd.f32 0.0, %v1069
      %1071 = vmatprep.mubr.f32.mxu0 0.0
      %1072 = vmatmul.mubr.f32.gmra.mrb[0].mxu0 %v453
      %v1073 = vpop.f32.mrb[0].mxu0
      %v1074 = vadd.f32 0.0, %v1073
      %v1075 = vpop.f32.mrb[0].mxu0
      %v1076 = vadd.f32 0.0, %v1075
      %1077 = vmatprep.mubr.f32.mxu0 0.0
      %1078 = vmatmul.mubr.f32.gmra.mrb[0].mxu0 %v456
      %v1079 = vpop.f32.mrb[0].mxu0
      %v1080 = vadd.f32 0.0, %v1079
      %v1081 = vpop.f32.mrb[0].mxu0
      %v1082 = vadd.f32 0.0, %v1081
      %1083 = vmatprep.mubr.f32.mxu0 0.0
      %1084 = vmatmul.mubr.f32.gmra.mrb[0].mxu0 %v459
      %v1085 = vpop.f32.mrb[0].mxu0
      %v1086 = vadd.f32 0.0, %v1085
      %v1087 = vpop.f32.mrb[0].mxu0
      %v1088 = vadd.f32 0.0, %v1087
      %1089 = vmatprep.mubr.f32.mxu0 0.0
      %1090 = vmatmul.mubr.f32.gmra.mrb[0].mxu0 %v462
      %v1091 = vpop.f32.mrb[0].mxu0
      %v1092 = vadd.f32 0.0, %v1091
      %v1093 = vpop.f32.mrb[0].mxu0
      %v1094 = vadd.f32 0.0, %v1093
      %1095 = vmatprep.mubr.f32.mxu0 0.0
      %1096 = vmatmul.mubr.f32.gmra.mrb[0].mxu0 %v465
      %v1097 = vpop.f32.mrb[0].mxu0
      %v1098 = vadd.f32 0.0, %v1097
      %v1099 = vpop.f32.mrb[0].mxu0
      %v1100 = vadd.f32 0.0, %v1099
      %1101 = vmatprep.mubr.f32.mxu0 0.0
      %1102 = vmatmul.mubr.f32.gmra.mrb[0].mxu0 %v468
      %v1103 = vpop.f32.mrb[0].mxu0
      %v1104 = vadd.f32 0.0, %v1103
      %v1105 = vpop.f32.mrb[0].mxu0
      %v1106 = vadd.f32 0.0, %v1105
      %1107 = vmatprep.mubr.f32.mxu0 0.0
      %1108 = vmatmul.mubr.f32.gmra.mrb[0].mxu0 %v471
      %v1109 = vpop.f32.mrb[0].mxu0
      %v1110 = vadd.f32 0.0, %v1109
      %v1111 = vpop.f32.mrb[0].mxu0
      %v1112 = vadd.f32 0.0, %v1111
      %1113 = vmatprep.mubr.f32.mxu0 0.0
      %1114 = vmatmul.mubr.f32.gmra.mrb[0].mxu0 %v474
      %v1115 = vpop.f32.mrb[0].mxu0
      %v1116 = vadd.f32 0.0, %v1115
      %v1117 = vpop.f32.mrb[0].mxu0
      %v1118 = vadd.f32 0.0, %v1117
      %1119 = vmatprep.mubr.f32.mxu0 0.0
      %1120 = vmatmul.mubr.f32.gmra.mrb[0].mxu0 %v477
      %v1121 = vpop.f32.mrb[0].mxu0
      %v1122 = vadd.f32 0.0, %v1121
      %v1123 = vpop.f32.mrb[0].mxu0
      %v1124 = vadd.f32 0.0, %v1123
      %1125 = vmatprep.mubr.f32.mxu0 0.0
      %1126 = vmatmul.mubr.f32.gmra.mrb[0].mxu0 %v480
      %v1127 = vpop.f32.mrb[0].mxu0
      %v1128 = vadd.f32 0.0, %v1127
      %v1129 = vpop.f32.mrb[0].mxu0
      %v1130 = vadd.f32 0.0, %v1129
      %1131 = vmatprep.mubr.f32.mxu0 0.0
      %1132 = vmatmul.mubr.f32.gmra.mrb[0].mxu0 %v483
      %v1133 = vpop.f32.mrb[0].mxu0
      %v1134 = vadd.f32 0.0, %v1133
      %v1135 = vpop.f32.mrb[0].mxu0
      %v1136 = vadd.f32 0.0, %v1135
      %1137 = vmatprep.mubr.f32.mxu0 0.0
      %1138 = vmatmul.mubr.f32.gmra.mrb[0].mxu0 %v486
      %v1139 = vpop.f32.mrb[0].mxu0
      %v1140 = vadd.f32 0.0, %v1139
      %v1141 = vpop.f32.mrb[0].mxu0
      %v1142 = vadd.f32 0.0, %v1141
      %1143 = vmatprep.mubr.f32.mxu0 0.0
      %1144 = vmatmul.mubr.f32.gmra.mrb[0].mxu0 %v489
      %v1145 = vpop.f32.mrb[0].mxu0
      %v1146 = vadd.f32 0.0, %v1145
      %v1147 = vpop.f32.mrb[0].mxu0
      %v1148 = vadd.f32 0.0, %v1147
      %1149 = vmatprep.mubr.f32.mxu0 0.0
      %1150 = vmatmul.mubr.f32.gmra.mrb[0].mxu0 %v492
      %v1151 = vpop.f32.mrb[0].mxu0
      %v1152 = vadd.f32 0.0, %v1151
      %v1153 = vpop.f32.mrb[0].mxu0
      %v1154 = vadd.f32 0.0, %v1153
      %1155 = vmatprep.mubr.f32.mxu0 0.0
      %1156 = vmatmul.mubr.f32.gmra.mrb[0].mxu0 %v495
      %v1157 = vpop.f32.mrb[0].mxu0
      %v1158 = vadd.f32 0.0, %v1157
      %v1159 = vpop.f32.mrb[0].mxu0
      %v1160 = vadd.f32 0.0, %v1159
      %1161 = vmatprep.mubr.f32.mxu0 0.0
      %1162 = vmatmul.mubr.f32.gmra.mrb[0].mxu0 %v498
      %v1163 = vpop.f32.mrb[0].mxu0
      %v1164 = vadd.f32 0.0, %v1163
      %v1165 = vpop.f32.mrb[0].mxu0
      %v1166 = vadd.f32 0.0, %v1165
      %1167 = vmatprep.mubr.f32.mxu0 0.0
      %1168 = vmatmul.mubr.f32.gmra.mrb[0].mxu0 %v501
      %v1169 = vpop.f32.mrb[0].mxu0
      %v1170 = vadd.f32 0.0, %v1169
      %v1171 = vpop.f32.mrb[0].mxu0
      %v1172 = vadd.f32 0.0, %v1171
      %1173 = vmatprep.mubr.f32.mxu0 0.0
      %1174 = vmatmul.mubr.f32.gmra.mrb[0].mxu0 %v504
      %v1175 = vpop.f32.mrb[0].mxu0
      %v1176 = vadd.f32 0.0, %v1175
      %v1177 = vpop.f32.mrb[0].mxu0
      %v1178 = vadd.f32 0.0, %v1177
      %1179 = vmatprep.mubr.f32.mxu0 0.0
      %1180 = vmatmul.mubr.f32.gmra.mrb[0].mxu0 %v507
      %v1181 = vpop.f32.mrb[0].mxu0
      %v1182 = vadd.f32 0.0, %v1181
      %v1183 = vpop.f32.mrb[0].mxu0
      %v1184 = vadd.f32 0.0, %v1183
      %1185 = vmatprep.mubr.f32.mxu0 0.0
      %1186 = vmatmul.mubr.f32.gmra.mrb[0].mxu0 %v510
      %v1187 = vpop.f32.mrb[0].mxu0
      %v1188 = vadd.f32 0.0, %v1187
      %v1189 = vpop.f32.mrb[0].mxu0
      %v1190 = vadd.f32 0.0, %v1189
      %1191 = vmatprep.mubr.f32.mxu0 0.0
      %1192 = vmatmul.mubr.f32.gmra.mrb[0].mxu0 %v513
      %v1193 = vpop.f32.mrb[0].mxu0
      %v1194 = vadd.f32 0.0, %v1193
      %v1195 = vpop.f32.mrb[0].mxu0
      %v1196 = vadd.f32 0.0, %v1195
      %1197 = vmatprep.mubr.f32.mxu0 0.0
      %1198 = vmatmul.mubr.f32.gmra.mrb[0].mxu0 %v516
      %v1199 = vpop.f32.mrb[0].mxu0
      %v1200 = vadd.f32 0.0, %v1199
      %v1201 = vpop.f32.mrb[0].mxu0
      %v1202 = vadd.f32 0.0, %v1201
      %1203 = vmatprep.mubr.f32.mxu0 0.0
      %1204 = vmatmul.mubr.f32.gmra.mrb[0].mxu0 %v519
      %v1205 = vpop.f32.mrb[0].mxu0
      %v1206 = vadd.f32 0.0, %v1205
      %v1207 = vpop.f32.mrb[0].mxu0
      %v1208 = vadd.f32 0.0, %v1207
      %1209 = vmatprep.mubr.f32.mxu0 0.0
      %1210 = vmatmul.mubr.f32.gmra.mrb[0].mxu0 %v522
      %v1211 = vpop.f32.mrb[0].mxu0
      %v1212 = vadd.f32 0.0, %v1211
      %v1213 = vpop.f32.mrb[0].mxu0
      %v1214 = vadd.f32 0.0, %v1213
      %1215 = vmatprep.mubr.f32.mxu0 0.0
      %1216 = vmatmul.mubr.f32.gmra.mrb[0].mxu0 %v525
      %v1217 = vpop.f32.mrb[0].mxu0
      %v1218 = vadd.f32 0.0, %v1217
      %v1219 = vpop.f32.mrb[0].mxu0
      %v1220 = vadd.f32 0.0, %v1219
      %1221 = vmatprep.mubr.f32.mxu0 0.0
      %1222 = vmatmul.mubr.f32.gmra.mrb[0].mxu0 %v528
      %v1223 = vpop.f32.mrb[0].mxu0
      %v1224 = vadd.f32 0.0, %v1223
      %v1225 = vpop.f32.mrb[0].mxu0
      %v1226 = vadd.f32 0.0, %v1225
      %1227 = vmatprep.mubr.f32.mxu0 0.0
      %1228 = vmatmul.mubr.f32.gmra.mrb[0].mxu0 %v531
      %v1229 = vpop.f32.mrb[0].mxu0
      %v1230 = vadd.f32 0.0, %v1229
      %v1231 = vpop.f32.mrb[0].mxu0
      %v1232 = vadd.f32 0.0, %v1231
      %1233 = vmatprep.mubr.f32.mxu0 0.0
      %1234 = vmatmul.mubr.f32.gmra.mrb[0].mxu0 %v534
      %v1235 = vpop.f32.mrb[0].mxu0
      %v1236 = vadd.f32 0.0, %v1235
      %v1237 = vpop.f32.mrb[0].mxu0
      %v1238 = vadd.f32 0.0, %v1237
      %1239 = vmatprep.mubr.f32.mxu0 0.0
      %1240 = vmatmul.mubr.f32.gmra.mrb[0].mxu0 %v537
      %v1241 = vpop.f32.mrb[0].mxu0
      %v1242 = vadd.f32 0.0, %v1241
      %v1243 = vpop.f32.mrb[0].mxu0
      %v1244 = vadd.f32 0.0, %v1243
      %1245 = vmatprep.mubr.f32.mxu0 0.0
      %1246 = vmatmul.mubr.f32.gmra.mrb[0].mxu0 %v540
      %v1247 = vpop.f32.mrb[0].mxu0
      %v1248 = vadd.f32 0.0, %v1247
      %v1249 = vpop.f32.mrb[0].mxu0
      %v1250 = vadd.f32 0.0, %v1249
      %1251 = vmatprep.mubr.f32.mxu0 0.0
      %1252 = vmatmul.mubr.f32.gmra.mrb[0].mxu0 %v543
      %v1253 = vpop.f32.mrb[0].mxu0
      %v1254 = vadd.f32 0.0, %v1253
      %v1255 = vpop.f32.mrb[0].mxu0
      %v1256 = vadd.f32 0.0, %v1255
      %1257 = vmatprep.mubr.f32.mxu0 0.0
      %1258 = vmatmul.mubr.f32.gmra.mrb[0].mxu0 %v546
      %v1259 = vpop.f32.mrb[0].mxu0
      %v1260 = vadd.f32 0.0, %v1259
      %v1261 = vpop.f32.mrb[0].mxu0
      %v1262 = vadd.f32 0.0, %v1261
      %1263 = vmatprep.mubr.f32.mxu0 0.0
      %1264 = vmatmul.mubr.f32.gmra.mrb[0].mxu0 %v549
      %v1265 = vpop.f32.mrb[0].mxu0
      %v1266 = vadd.f32 0.0, %v1265
      %v1267 = vpop.f32.mrb[0].mxu0
      %v1268 = vadd.f32 0.0, %v1267
      %1269 = vmatprep.mubr.f32.mxu0 0.0
      %1270 = vmatmul.mubr.f32.gmra.mrb[0].mxu0 %v552
      %v1271 = vpop.f32.mrb[0].mxu0
      %v1272 = vadd.f32 0.0, %v1271
      %v1273 = vpop.f32.mrb[0].mxu0
      %v1274 = vadd.f32 0.0, %v1273
      %1275 = vmatprep.mubr.f32.mxu0 0.0
      %1276 = vmatmul.mubr.f32.gmra.mrb[0].mxu0 %v555
      %v1277 = vpop.f32.mrb[0].mxu0
      %v1278 = vadd.f32 0.0, %v1277
      %v1279 = vpop.f32.mrb[0].mxu0
      %v1280 = vadd.f32 0.0, %v1279
      %1281 = vmatprep.mubr.f32.mxu0 0.0
      %1282 = vmatmul.mubr.f32.gmra.mrb[0].mxu0 %v558
      %v1283 = vpop.f32.mrb[0].mxu0
      %v1284 = vadd.f32 0.0, %v1283
      %v1285 = vpop.f32.mrb[0].mxu0
      %v1286 = vadd.f32 0.0, %v1285
      %1287 = vmatprep.mubr.f32.mxu0 0.0
      %1288 = vmatmul.mubr.f32.gmra.mrb[0].mxu0 %v561
      %v1289 = vpop.f32.mrb[0].mxu0
      %v1290 = vadd.f32 0.0, %v1289
      %v1291 = vpop.f32.mrb[0].mxu0
      %v1292 = vadd.f32 0.0, %v1291
      %1293 = vmatprep.mubr.f32.mxu0 0.0
      %1294 = vmatmul.mubr.f32.gmra.mrb[0].mxu0 %v564
      %v1295 = vpop.f32.mrb[0].mxu0
      %v1296 = vadd.f32 0.0, %v1295
      %v1297 = vpop.f32.mrb[0].mxu0
      %v1298 = vadd.f32 0.0, %v1297
      %1299 = vmatprep.mubr.f32.mxu0 0.0
      %1300 = vmatmul.mubr.f32.gmra.mrb[0].mxu0 %v567
      %v1301 = vpop.f32.mrb[0].mxu0
      %v1302 = vadd.f32 0.0, %v1301
      %v1303 = vpop.f32.mrb[0].mxu0
      %v1304 = vadd.f32 0.0, %v1303
      %1305 = vmatprep.mubr.f32.mxu0 0.0
      %1306 = vmatmul.mubr.f32.gmra.mrb[0].mxu0 %v570
      %v1307 = vpop.f32.mrb[0].mxu0
      %v1308 = vadd.f32 0.0, %v1307
      %v1309 = vpop.f32.mrb[0].mxu0
      %v1310 = vadd.f32 0.0, %v1309
      %1311 = vmatprep.mubr.f32.mxu0 0.0
      %1312 = vmatmul.mubr.f32.gmra.mrb[0].mxu0 %v573
      %v1313 = vpop.f32.mrb[0].mxu0
      %v1314 = vadd.f32 0.0, %v1313
      %v1315 = vpop.f32.mrb[0].mxu0
      %v1316 = vadd.f32 0.0, %v1315
      %1317 = vmatprep.mubr.f32.mxu0 0.0
      %1318 = vmatmul.mubr.f32.gmra.mrb[0].mxu0 %v576
      %v1319 = vpop.f32.mrb[0].mxu0
      %v1320 = vadd.f32 0.0, %v1319
      %v1321 = vpop.f32.mrb[0].mxu0
      %v1322 = vadd.f32 0.0, %v1321
      %1323 = vmatprep.mubr.f32.mxu0 0.0
      %1324 = vmatmul.mubr.f32.gmra.mrb[0].mxu0 %v579
      %v1325 = vpop.f32.mrb[0].mxu0
      %v1326 = vadd.f32 0.0, %v1325
      %v1327 = vpop.f32.mrb[0].mxu0
      %v1328 = vadd.f32 0.0, %v1327
      %1329 = vmatprep.mubr.f32.mxu0 0.0
      %1330 = vmatmul.mubr.f32.gmra.mrb[0].mxu0 %v582
      %v1331 = vpop.f32.mrb[0].mxu0
      %v1332 = vadd.f32 0.0, %v1331
      %v1333 = vpop.f32.mrb[0].mxu0
      %v1334 = vadd.f32 0.0, %v1333
      %1335 = vmatprep.mubr.f32.mxu0 0.0
      %1336 = vmatmul.mubr.f32.gmra.mrb[0].mxu0 %v585
      %v1337 = vpop.f32.mrb[0].mxu0
      %v1338 = vadd.f32 0.0, %v1337
      %v1339 = vpop.f32.mrb[0].mxu0
      %v1340 = vadd.f32 0.0, %v1339
      %1341 = vmatprep.mubr.f32.mxu0 0.0
      %1342 = vmatmul.mubr.f32.gmra.mrb[0].mxu0 %v588
      %v1343 = vpop.f32.mrb[0].mxu0
      %v1344 = vadd.f32 0.0, %v1343
      %v1345 = vpop.f32.mrb[0].mxu0
      %v1346 = vadd.f32 0.0, %v1345
      %1347 = vmatprep.mubr.f32.mxu0 0.0
      %1348 = vmatmul.mubr.f32.gmra.mrb[0].mxu0 %v591
      %v1349 = vpop.f32.mrb[0].mxu0
      %v1350 = vadd.f32 0.0, %v1349
      %v1351 = vpop.f32.mrb[0].mxu0
      %v1352 = vadd.f32 0.0, %v1351
      %1353 = vmatprep.mubr.f32.mxu0 0.0
      %1354 = vmatmul.mubr.f32.gmra.mrb[0].mxu0 %v594
      %v1355 = vpop.f32.mrb[0].mxu0
      %v1356 = vadd.f32 0.0, %v1355
      %v1357 = vpop.f32.mrb[0].mxu0
      %v1358 = vadd.f32 0.0, %v1357
      %1359 = vmatprep.mubr.f32.mxu0 0.0
      %1360 = vmatmul.mubr.f32.gmra.mrb[0].mxu0 %v597
      %v1361 = vpop.f32.mrb[0].mxu0
      %v1362 = vadd.f32 0.0, %v1361
      %v1363 = vpop.f32.mrb[0].mxu0
      %v1364 = vadd.f32 0.0, %v1363
      %1365 = vmatprep.mubr.f32.mxu0 0.0
      %1366 = vmatmul.mubr.f32.gmra.mrb[0].mxu0 %v600
      %v1367 = vpop.f32.mrb[0].mxu0
      %v1368 = vadd.f32 0.0, %v1367
      %v1369 = vpop.f32.mrb[0].mxu0
      %v1370 = vadd.f32 0.0, %v1369
      %1371 = vmatprep.mubr.f32.mxu0 0.0
      %1372 = vmatmul.mubr.f32.gmra.mrb[0].mxu0 %v603
      %v1373 = vpop.f32.mrb[0].mxu0
      %v1374 = vadd.f32 0.0, %v1373
      %v1375 = vpop.f32.mrb[0].mxu0
      %v1376 = vadd.f32 0.0, %v1375
      %1377 = vmatprep.mubr.f32.mxu0 0.0
      %1378 = vmatmul.mubr.f32.gmra.mrb[0].mxu0 %v606
      %v1379 = vpop.f32.mrb[0].mxu0
      %v1380 = vadd.f32 0.0, %v1379
      %v1381 = vpop.f32.mrb[0].mxu0
      %v1382 = vadd.f32 0.0, %v1381
      %1383 = vmatprep.mubr.f32.mxu0 0.0
      %1384 = vmatmul.mubr.f32.gmra.mrb[0].mxu0 %v609
      %v1385 = vpop.f32.mrb[0].mxu0
      %v1386 = vadd.f32 0.0, %v1385
      %v1387 = vpop.f32.mrb[0].mxu0
      %v1388 = vadd.f32 0.0, %v1387
      %1389 = vmatprep.mubr.f32.mxu0 0.0
      %1390 = vmatmul.mubr.f32.gmra.mrb[0].mxu0 %v612
      %v1391 = vpop.f32.mrb[0].mxu0
      %v1392 = vadd.f32 0.0, %v1391
      %v1393 = vpop.f32.mrb[0].mxu0
      %v1394 = vadd.f32 0.0, %v1393
      %1395 = vmatprep.mubr.f32.mxu0 0.0
      %1396 = vmatmul.mubr.f32.gmra.mrb[0].mxu0 %v615
      %v1397 = vpop.f32.mrb[0].mxu0
      %v1398 = vadd.f32 0.0, %v1397
      %v1399 = vpop.f32.mrb[0].mxu0
      %v1400 = vadd.f32 0.0, %v1399
      %1401 = vmatprep.mubr.f32.mxu0 0.0
      %1402 = vmatmul.mubr.f32.gmra.mrb[0].mxu0 %v618
      %v1403 = vpop.f32.mrb[0].mxu0
      %v1404 = vadd.f32 0.0, %v1403
      %v1405 = vpop.f32.mrb[0].mxu0
      %v1406 = vadd.f32 0.0, %v1405
      %1407 = vmatprep.mubr.f32.mxu0 0.0
      %1408 = vmatmul.mubr.f32.gmra.mrb[0].mxu0 %v621
      %v1409 = vpop.f32.mrb[0].mxu0
      %v1410 = vadd.f32 0.0, %v1409
      %v1411 = vpop.f32.mrb[0].mxu0
      %v1412 = vadd.f32 0.0, %v1411
      %1413 = vmatprep.mubr.f32.mxu0 0.0
      %1414 = vmatmul.mubr.f32.gmra.mrb[0].mxu0 %v624
      %v1415 = vpop.f32.mrb[0].mxu0
      %v1416 = vadd.f32 0.0, %v1415
      %v1417 = vpop.f32.mrb[0].mxu0
      %v1418 = vadd.f32 0.0, %v1417
      %1419 = vmatprep.mubr.f32.mxu0 0.0
      %1420 = vmatmul.mubr.f32.gmra.mrb[0].mxu0 %v627
      %v1421 = vpop.f32.mrb[0].mxu0
      %v1422 = vadd.f32 0.0, %v1421
      %v1423 = vpop.f32.mrb[0].mxu0
      %v1424 = vadd.f32 0.0, %v1423
      %1425 = vmatprep.mubr.f32.mxu0 0.0
      %1426 = vmatmul.mubr.f32.gmra.mrb[0].mxu0 %v630
      %v1427 = vpop.f32.mrb[0].mxu0
      %v1428 = vadd.f32 0.0, %v1427
      %v1429 = vpop.f32.mrb[0].mxu0
      %v1430 = vadd.f32 0.0, %v1429
      %1431 = vmatprep.mubr.f32.mxu0 0.0
      %1432 = vmatmul.mubr.f32.gmra.mrb[0].mxu0 %v633
      %v1433 = vpop.f32.mrb[0].mxu0
      %v1434 = vadd.f32 0.0, %v1433
      %v1435 = vpop.f32.mrb[0].mxu0
      %v1436 = vadd.f32 0.0, %v1435
      %1437 = vmatprep.mubr.f32.mxu0 0.0
      %1438 = vmatmul.mubr.f32.gmra.mrb[0].mxu0 %v636
      %v1439 = vpop.f32.mrb[0].mxu0
      %v1440 = vadd.f32 0.0, %v1439
      %v1441 = vpop.f32.mrb[0].mxu0
      %v1442 = vadd.f32 0.0, %v1441
      %1443 = vmatprep.mubr.f32.mxu0 0.0
      %1444 = vmatmul.mubr.f32.gmra.mrb[0].mxu0 %v639
      %v1445 = vpop.f32.mrb[0].mxu0
      %v1446 = vadd.f32 0.0, %v1445
      %v1447 = vpop.f32.mrb[0].mxu0
      %v1448 = vadd.f32 0.0, %v1447
      %1449 = vmatprep.mubr.f32.mxu0 0.0
      %1450 = vmatmul.mubr.f32.gmra.mrb[0].mxu0 %v642
      %v1451 = vpop.f32.mrb[0].mxu0
      %v1452 = vadd.f32 0.0, %v1451
      %v1453 = vpop.f32.mrb[0].mxu0
      %v1454 = vadd.f32 0.0, %v1453
      %1455 = vmatprep.mubr.f32.mxu0 0.0
      %1456 = vmatmul.mubr.f32.gmra.mrb[0].mxu0 %v645
      %v1457 = vpop.f32.mrb[0].mxu0
      %v1458 = vadd.f32 0.0, %v1457
      %v1459 = vpop.f32.mrb[0].mxu0
      %v1460 = vadd.f32 0.0, %v1459
      %1461 = vmatprep.mubr.f32.mxu0 0.0
      %1462 = vmatmul.mubr.f32.gmra.mrb[0].mxu0 %v648
      %v1463 = vpop.f32.mrb[0].mxu0
      %v1464 = vadd.f32 0.0, %v1463
      %v1465 = vpop.f32.mrb[0].mxu0
      %v1466 = vadd.f32 0.0, %v1465
      %1467 = vmatprep.mubr.f32.mxu0 0.0
      %1468 = vmatmul.mubr.f32.gmra.mrb[0].mxu0 %v651
      %v1469 = vpop.f32.mrb[0].mxu0
      %v1470 = vadd.f32 0.0, %v1469
      %v1471 = vpop.f32.mrb[0].mxu0
      %v1472 = vadd.f32 0.0, %v1471
      %1473 = vmatprep.mubr.f32.mxu0 0.0
      %1474 = vmatmul.mubr.f32.gmra.mrb[0].mxu0 %v654
      %v1475 = vpop.f32.mrb[0].mxu0
      %v1476 = vadd.f32 0.0, %v1475
      %v1477 = vpop.f32.mrb[0].mxu0
      %v1478 = vadd.f32 0.0, %v1477
      %1479 = vmatprep.mubr.f32.mxu0 0.0
      %1480 = vmatmul.mubr.f32.gmra.mrb[0].mxu0 %v657
      %v1481 = vpop.f32.mrb[0].mxu0
      %v1482 = vadd.f32 0.0, %v1481
      %v1483 = vpop.f32.mrb[0].mxu0
      %v1484 = vadd.f32 0.0, %v1483
      %1485 = vmatprep.mubr.f32.mxu0 0.0
      %1486 = vmatmul.mubr.f32.gmra.mrb[0].mxu0 %v660
      %v1487 = vpop.f32.mrb[0].mxu0
      %v1488 = vadd.f32 0.0, %v1487
      %v1489 = vpop.f32.mrb[0].mxu0
      %v1490 = vadd.f32 0.0, %v1489
      %1491 = vmatprep.mubr.f32.mxu0 0.0
      %1492 = vmatmul.mubr.f32.gmra.mrb[0].mxu0 %v663
      %v1493 = vpop.f32.mrb[0].mxu0
      %v1494 = vadd.f32 0.0, %v1493
      %v1495 = vpop.f32.mrb[0].mxu0
      %v1496 = vadd.f32 0.0, %v1495
      %1497 = vdwg.mxu0
      %vm1498 = vcmp.eq.f32.partialorder %v732, 0.0
      %vm1499 = vcmp.eq.f32.partialorder %v738, 0.0
      %vm1500 = vcmp.eq.f32.partialorder %v744, 0.0
      %vm1501 = vcmp.eq.f32.partialorder %v750, 0.0
      %vm1502 = vcmp.eq.f32.partialorder %v756, 0.0
      %vm1503 = vcmp.eq.f32.partialorder %v762, 0.0
      %vm1504 = vcmp.eq.f32.partialorder %v768, 0.0
      %vm1505 = vcmp.eq.f32.partialorder %v774, 0.0
      %vm1506 = vcmp.eq.f32.partialorder %v780, 0.0
      %vm1507 = vcmp.eq.f32.partialorder %v786, 0.0
      %vm1508 = vcmp.eq.f32.partialorder %v792, 0.0
      %vm1509 = vcmp.eq.f32.partialorder %v798, 0.0
      %vm1510 = vcmp.eq.f32.partialorder %v804, 0.0
      %vm1511 = vcmp.eq.f32.partialorder %v810, 0.0
      %vm1512 = vcmp.eq.f32.partialorder %v816, 0.0
      %vm1513 = vcmp.eq.f32.partialorder %v822, 0.0
      %vm1514 = vcmp.eq.f32.partialorder %v828, 0.0
      %vm1515 = vcmp.eq.f32.partialorder %v834, 0.0
      %vm1516 = vcmp.eq.f32.partialorder %v840, 0.0
      %vm1517 = vcmp.eq.f32.partialorder %v846, 0.0
      %vm1518 = vcmp.eq.f32.partialorder %v852, 0.0
      %vm1519 = vcmp.eq.f32.partialorder %v858, 0.0
      %vm1520 = vcmp.eq.f32.partialorder %v864, 0.0
      %vm1521 = vcmp.eq.f32.partialorder %v870, 0.0
      %vm1522 = vcmp.eq.f32.partialorder %v876, 0.0
      %vm1523 = vcmp.eq.f32.partialorder %v882, 0.0
      %vm1524 = vcmp.eq.f32.partialorder %v888, 0.0
      %vm1525 = vcmp.eq.f32.partialorder %v894, 0.0
      %vm1526 = vcmp.eq.f32.partialorder %v900, 0.0
      %vm1527 = vcmp.eq.f32.partialorder %v906, 0.0
      %vm1528 = vcmp.eq.f32.partialorder %v912, 0.0
      %vm1529 = vcmp.eq.f32.partialorder %v918, 0.0
      %vm1530 = vcmp.eq.f32.partialorder %v924, 0.0
      %vm1531 = vcmp.eq.f32.partialorder %v930, 0.0
      %vm1532 = vcmp.eq.f32.partialorder %v936, 0.0
      %vm1533 = vcmp.eq.f32.partialorder %v942, 0.0
      %vm1534 = vcmp.eq.f32.partialorder %v948, 0.0
      %vm1535 = vcmp.eq.f32.partialorder %v954, 0.0
      %vm1536 = vcmp.eq.f32.partialorder %v960, 0.0
      %vm1537 = vcmp.eq.f32.partialorder %v966, 0.0
      %vm1538 = vcmp.eq.f32.partialorder %v972, 0.0
      %vm1539 = vcmp.eq.f32.partialorder %v978, 0.0
      %vm1540 = vcmp.eq.f32.partialorder %v984, 0.0
      %vm1541 = vcmp.eq.f32.partialorder %v990, 0.0
      %vm1542 = vcmp.eq.f32.partialorder %v996, 0.0
      %vm1543 = vcmp.eq.f32.partialorder %v1002, 0.0
      %vm1544 = vcmp.eq.f32.partialorder %v1008, 0.0
      %vm1545 = vcmp.eq.f32.partialorder %v1014, 0.0
      %vm1546 = vcmp.eq.f32.partialorder %v1020, 0.0
      %vm1547 = vcmp.eq.f32.partialorder %v1026, 0.0
      %vm1548 = vcmp.eq.f32.partialorder %v1032, 0.0
      %vm1549 = vcmp.eq.f32.partialorder %v1038, 0.0
      %vm1550 = vcmp.eq.f32.partialorder %v1044, 0.0
      %vm1551 = vcmp.eq.f32.partialorder %v1050, 0.0
      %vm1552 = vcmp.eq.f32.partialorder %v1056, 0.0
      %vm1553 = vcmp.eq.f32.partialorder %v1062, 0.0
      %vm1554 = vcmp.eq.f32.partialorder %v1068, 0.0
      %vm1555 = vcmp.eq.f32.partialorder %v1074, 0.0
      %vm1556 = vcmp.eq.f32.partialorder %v1080, 0.0
      %vm1557 = vcmp.eq.f32.partialorder %v1086, 0.0
      %vm1558 = vcmp.eq.f32.partialorder %v1092, 0.0
      %vm1559 = vcmp.eq.f32.partialorder %v1098, 0.0
      %vm1560 = vcmp.eq.f32.partialorder %v1104, 0.0
      %vm1561 = vcmp.eq.f32.partialorder %v1110, 0.0
      %vm1562 = vcmp.eq.f32.partialorder %v1116, 0.0
      %vm1563 = vcmp.eq.f32.partialorder %v1122, 0.0
      %vm1564 = vcmp.eq.f32.partialorder %v1128, 0.0
      %vm1565 = vcmp.eq.f32.partialorder %v1134, 0.0
      %vm1566 = vcmp.eq.f32.partialorder %v1140, 0.0
      %vm1567 = vcmp.eq.f32.partialorder %v1146, 0.0
      %vm1568 = vcmp.eq.f32.partialorder %v1152, 0.0
      %vm1569 = vcmp.eq.f32.partialorder %v1158, 0.0
      %vm1570 = vcmp.eq.f32.partialorder %v1164, 0.0
      %vm1571 = vcmp.eq.f32.partialorder %v1170, 0.0
      %vm1572 = vcmp.eq.f32.partialorder %v1176, 0.0
      %vm1573 = vcmp.eq.f32.partialorder %v1182, 0.0
      %vm1574 = vcmp.eq.f32.partialorder %v1188, 0.0
      %vm1575 = vcmp.eq.f32.partialorder %v1194, 0.0
      %vm1576 = vcmp.eq.f32.partialorder %v1200, 0.0
      %vm1577 = vcmp.eq.f32.partialorder %v1206, 0.0
      %vm1578 = vcmp.eq.f32.partialorder %v1212, 0.0
      %vm1579 = vcmp.eq.f32.partialorder %v1218, 0.0
      %vm1580 = vcmp.eq.f32.partialorder %v1224, 0.0
      %vm1581 = vcmp.eq.f32.partialorder %v1230, 0.0
      %vm1582 = vcmp.eq.f32.partialorder %v1236, 0.0
      %vm1583 = vcmp.eq.f32.partialorder %v1242, 0.0
      %vm1584 = vcmp.eq.f32.partialorder %v1248, 0.0
      %vm1585 = vcmp.eq.f32.partialorder %v1254, 0.0
      %vm1586 = vcmp.eq.f32.partialorder %v1260, 0.0
      %vm1587 = vcmp.eq.f32.partialorder %v1266, 0.0
      %vm1588 = vcmp.eq.f32.partialorder %v1272, 0.0
      %vm1589 = vcmp.eq.f32.partialorder %v1278, 0.0
      %vm1590 = vcmp.eq.f32.partialorder %v1284, 0.0
      %vm1591 = vcmp.eq.f32.partialorder %v1290, 0.0
      %vm1592 = vcmp.eq.f32.partialorder %v1296, 0.0
      %vm1593 = vcmp.eq.f32.partialorder %v1302, 0.0
      %vm1594 = vcmp.eq.f32.partialorder %v1308, 0.0
      %vm1595 = vcmp.eq.f32.partialorder %v1314, 0.0
      %vm1596 = vcmp.eq.f32.partialorder %v1320, 0.0
      %vm1597 = vcmp.eq.f32.partialorder %v1326, 0.0
      %vm1598 = vcmp.eq.f32.partialorder %v1332, 0.0
      %vm1599 = vcmp.eq.f32.partialorder %v1338, 0.0
      %vm1600 = vcmp.eq.f32.partialorder %v1344, 0.0
      %vm1601 = vcmp.eq.f32.partialorder %v1350, 0.0
      %vm1602 = vcmp.eq.f32.partialorder %v1356, 0.0
      %vm1603 = vcmp.eq.f32.partialorder %v1362, 0.0
      %vm1604 = vcmp.eq.f32.partialorder %v1368, 0.0
      %vm1605 = vcmp.eq.f32.partialorder %v1374, 0.0
      %vm1606 = vcmp.eq.f32.partialorder %v1380, 0.0
      %vm1607 = vcmp.eq.f32.partialorder %v1386, 0.0
      %vm1608 = vcmp.eq.f32.partialorder %v1392, 0.0
      %vm1609 = vcmp.eq.f32.partialorder %v1398, 0.0
      %vm1610 = vcmp.eq.f32.partialorder %v1404, 0.0
      %vm1611 = vcmp.eq.f32.partialorder %v1410, 0.0
      %vm1612 = vcmp.eq.f32.partialorder %v1416, 0.0
      %vm1613 = vcmp.eq.f32.partialorder %v1422, 0.0
      %vm1614 = vcmp.eq.f32.partialorder %v1428, 0.0
      %vm1615 = vcmp.eq.f32.partialorder %v1434, 0.0
      %vm1616 = vcmp.eq.f32.partialorder %v1440, 0.0
      %vm1617 = vcmp.eq.f32.partialorder %v1446, 0.0
      %vm1618 = vcmp.eq.f32.partialorder %v1452, 0.0
      %vm1619 = vcmp.eq.f32.partialorder %v1458, 0.0
      %vm1620 = vcmp.eq.f32.partialorder %v1464, 0.0
      %vm1621 = vcmp.eq.f32.partialorder %v1470, 0.0
      %vm1622 = vcmp.eq.f32.partialorder %v1476, 0.0
      %vm1623 = vcmp.eq.f32.partialorder %v1482, 0.0
      %vm1624 = vcmp.eq.f32.partialorder %v1488, 0.0
      %vm1625 = vcmp.eq.f32.partialorder %v1494, 0.0
      %v1626 = vsel %vm1498, 1e-06, %v732
      %v1627 = vsel %vm1499, 1e-06, %v738
      %v1628 = vsel %vm1500, 1e-06, %v744
      %v1629 = vsel %vm1501, 1e-06, %v750
      %v1630 = vsel %vm1502, 1e-06, %v756
      %v1631 = vsel %vm1503, 1e-06, %v762
      %v1632 = vsel %vm1504, 1e-06, %v768
      %v1633 = vsel %vm1505, 1e-06, %v774
      %v1634 = vsel %vm1506, 1e-06, %v780
      %v1635 = vsel %vm1507, 1e-06, %v786
      %v1636 = vsel %vm1508, 1e-06, %v792
      %v1637 = vsel %vm1509, 1e-06, %v798
      %v1638 = vsel %vm1510, 1e-06, %v804
      %v1639 = vsel %vm1511, 1e-06, %v810
      %v1640 = vsel %vm1512, 1e-06, %v816
      %v1641 = vsel %vm1513, 1e-06, %v822
      %v1642 = vsel %vm1514, 1e-06, %v828
      %v1643 = vsel %vm1515, 1e-06, %v834
      %v1644 = vsel %vm1516, 1e-06, %v840
      %v1645 = vsel %vm1517, 1e-06, %v846
      %v1646 = vsel %vm1518, 1e-06, %v852
      %v1647 = vsel %vm1519, 1e-06, %v858
      %v1648 = vsel %vm1520, 1e-06, %v864
      %v1649 = vsel %vm1521, 1e-06, %v870
      %v1650 = vsel %vm1522, 1e-06, %v876
      %v1651 = vsel %vm1523, 1e-06, %v882
      %v1652 = vsel %vm1524, 1e-06, %v888
      %v1653 = vsel %vm1525, 1e-06, %v894
      %v1654 = vsel %vm1526, 1e-06, %v900
      %v1655 = vsel %vm1527, 1e-06, %v906
      %v1656 = vsel %vm1528, 1e-06, %v912
      %v1657 = vsel %vm1529, 1e-06, %v918
      %v1658 = vsel %vm1530, 1e-06, %v924
      %v1659 = vsel %vm1531, 1e-06, %v930
      %v1660 = vsel %vm1532, 1e-06, %v936
      %v1661 = vsel %vm1533, 1e-06, %v942
      %v1662 = vsel %vm1534, 1e-06, %v948
      %v1663 = vsel %vm1535, 1e-06, %v954
      %v1664 = vsel %vm1536, 1e-06, %v960
      %v1665 = vsel %vm1537, 1e-06, %v966
      %v1666 = vsel %vm1538, 1e-06, %v972
      %v1667 = vsel %vm1539, 1e-06, %v978
      %v1668 = vsel %vm1540, 1e-06, %v984
      %v1669 = vsel %vm1541, 1e-06, %v990
      %v1670 = vsel %vm1542, 1e-06, %v996
      %v1671 = vsel %vm1543, 1e-06, %v1002
      %v1672 = vsel %vm1544, 1e-06, %v1008
      %v1673 = vsel %vm1545, 1e-06, %v1014
      %v1674 = vsel %vm1546, 1e-06, %v1020
      %v1675 = vsel %vm1547, 1e-06, %v1026
      %v1676 = vsel %vm1548, 1e-06, %v1032
      %v1677 = vsel %vm1549, 1e-06, %v1038
      %v1678 = vsel %vm1550, 1e-06, %v1044
      %v1679 = vsel %vm1551, 1e-06, %v1050
      %v1680 = vsel %vm1552, 1e-06, %v1056
      %v1681 = vsel %vm1553, 1e-06, %v1062
      %v1682 = vsel %vm1554, 1e-06, %v1068
      %v1683 = vsel %vm1555, 1e-06, %v1074
      %v1684 = vsel %vm1556, 1e-06, %v1080
      %v1685 = vsel %vm1557, 1e-06, %v1086
      %v1686 = vsel %vm1558, 1e-06, %v1092
      %v1687 = vsel %vm1559, 1e-06, %v1098
      %v1688 = vsel %vm1560, 1e-06, %v1104
      %v1689 = vsel %vm1561, 1e-06, %v1110
      %v1690 = vsel %vm1562, 1e-06, %v1116
      %v1691 = vsel %vm1563, 1e-06, %v1122
      %v1692 = vsel %vm1564, 1e-06, %v1128
      %v1693 = vsel %vm1565, 1e-06, %v1134
      %v1694 = vsel %vm1566, 1e-06, %v1140
      %v1695 = vsel %vm1567, 1e-06, %v1146
      %v1696 = vsel %vm1568, 1e-06, %v1152
      %v1697 = vsel %vm1569, 1e-06, %v1158
      %v1698 = vsel %vm1570, 1e-06, %v1164
      %v1699 = vsel %vm1571, 1e-06, %v1170
      %v1700 = vsel %vm1572, 1e-06, %v1176
      %v1701 = vsel %vm1573, 1e-06, %v1182
      %v1702 = vsel %vm1574, 1e-06, %v1188
      %v1703 = vsel %vm1575, 1e-06, %v1194
      %v1704 = vsel %vm1576, 1e-06, %v1200
      %v1705 = vsel %vm1577, 1e-06, %v1206
      %v1706 = vsel %vm1578, 1e-06, %v1212
      %v1707 = vsel %vm1579, 1e-06, %v1218
      %v1708 = vsel %vm1580, 1e-06, %v1224
      %v1709 = vsel %vm1581, 1e-06, %v1230
      %v1710 = vsel %vm1582, 1e-06, %v1236
      %v1711 = vsel %vm1583, 1e-06, %v1242
      %v1712 = vsel %vm1584, 1e-06, %v1248
      %v1713 = vsel %vm1585, 1e-06, %v1254
      %v1714 = vsel %vm1586, 1e-06, %v1260
      %v1715 = vsel %vm1587, 1e-06, %v1266
      %v1716 = vsel %vm1588, 1e-06, %v1272
      %v1717 = vsel %vm1589, 1e-06, %v1278
      %v1718 = vsel %vm1590, 1e-06, %v1284
      %v1719 = vsel %vm1591, 1e-06, %v1290
      %v1720 = vsel %vm1592, 1e-06, %v1296
      %v1721 = vsel %vm1593, 1e-06, %v1302
      %v1722 = vsel %vm1594, 1e-06, %v1308
      %v1723 = vsel %vm1595, 1e-06, %v1314
      %v1724 = vsel %vm1596, 1e-06, %v1320
      %v1725 = vsel %vm1597, 1e-06, %v1326
      %v1726 = vsel %vm1598, 1e-06, %v1332
      %v1727 = vsel %vm1599, 1e-06, %v1338
      %v1728 = vsel %vm1600, 1e-06, %v1344
      %v1729 = vsel %vm1601, 1e-06, %v1350
      %v1730 = vsel %vm1602, 1e-06, %v1356
      %v1731 = vsel %vm1603, 1e-06, %v1362
      %v1732 = vsel %vm1604, 1e-06, %v1368
      %v1733 = vsel %vm1605, 1e-06, %v1374
      %v1734 = vsel %vm1606, 1e-06, %v1380
      %v1735 = vsel %vm1607, 1e-06, %v1386
      %v1736 = vsel %vm1608, 1e-06, %v1392
      %v1737 = vsel %vm1609, 1e-06, %v1398
      %v1738 = vsel %vm1610, 1e-06, %v1404
      %v1739 = vsel %vm1611, 1e-06, %v1410
      %v1740 = vsel %vm1612, 1e-06, %v1416
      %v1741 = vsel %vm1613, 1e-06, %v1422
      %v1742 = vsel %vm1614, 1e-06, %v1428
      %v1743 = vsel %vm1615, 1e-06, %v1434
      %v1744 = vsel %vm1616, 1e-06, %v1440
      %v1745 = vsel %vm1617, 1e-06, %v1446
      %v1746 = vsel %vm1618, 1e-06, %v1452
      %v1747 = vsel %vm1619, 1e-06, %v1458
      %v1748 = vsel %vm1620, 1e-06, %v1464
      %v1749 = vsel %vm1621, 1e-06, %v1470
      %v1750 = vsel %vm1622, 1e-06, %v1476
      %v1751 = vsel %vm1623, 1e-06, %v1482
      %v1752 = vsel %vm1624, 1e-06, %v1488
      %v1753 = vsel %vm1625, 1e-06, %v1494
      %v1754 = vmul.f32 %v1626, %v1626
      %v1755 = vmul.f32 %v1627, %v1627
      %v1756 = vmul.f32 %v1628, %v1628
      %v1757 = vmul.f32 %v1629, %v1629
      %v1758 = vmul.f32 %v1630, %v1630
      %v1759 = vmul.f32 %v1631, %v1631
      %v1760 = vmul.f32 %v1632, %v1632
      %v1761 = vmul.f32 %v1633, %v1633
      %v1762 = vmul.f32 %v1634, %v1634
      %v1763 = vmul.f32 %v1635, %v1635
      %v1764 = vmul.f32 %v1636, %v1636
      %v1765 = vmul.f32 %v1637, %v1637
      %v1766 = vmul.f32 %v1638, %v1638
      %v1767 = vmul.f32 %v1639, %v1639
      %v1768 = vmul.f32 %v1640, %v1640
      %v1769 = vmul.f32 %v1641, %v1641
      %v1770 = vmul.f32 %v1642, %v1642
      %v1771 = vmul.f32 %v1643, %v1643
      %v1772 = vmul.f32 %v1644, %v1644
      %v1773 = vmul.f32 %v1645, %v1645
      %v1774 = vmul.f32 %v1646, %v1646
      %v1775 = vmul.f32 %v1647, %v1647
      %v1776 = vmul.f32 %v1648, %v1648
      %v1777 = vmul.f32 %v1649, %v1649
      %v1778 = vmul.f32 %v1650, %v1650
      %v1779 = vmul.f32 %v1651, %v1651
      %v1780 = vmul.f32 %v1652, %v1652
      %v1781 = vmul.f32 %v1653, %v1653
      %v1782 = vmul.f32 %v1654, %v1654
      %v1783 = vmul.f32 %v1655, %v1655
      %v1784 = vmul.f32 %v1656, %v1656
      %v1785 = vmul.f32 %v1657, %v1657
      %v1786 = vmul.f32 %v1658, %v1658
      %v1787 = vmul.f32 %v1659, %v1659
      %v1788 = vmul.f32 %v1660, %v1660
      %v1789 = vmul.f32 %v1661, %v1661
      %v1790 = vmul.f32 %v1662, %v1662
      %v1791 = vmul.f32 %v1663, %v1663
      %v1792 = vmul.f32 %v1664, %v1664
      %v1793 = vmul.f32 %v1665, %v1665
      %v1794 = vmul.f32 %v1666, %v1666
      %v1795 = vmul.f32 %v1667, %v1667
      %v1796 = vmul.f32 %v1668, %v1668
      %v1797 = vmul.f32 %v1669, %v1669
      %v1798 = vmul.f32 %v1670, %v1670
      %v1799 = vmul.f32 %v1671, %v1671
      %v1800 = vmul.f32 %v1672, %v1672
      %v1801 = vmul.f32 %v1673, %v1673
      %v1802 = vmul.f32 %v1674, %v1674
      %v1803 = vmul.f32 %v1675, %v1675
      %v1804 = vmul.f32 %v1676, %v1676
      %v1805 = vmul.f32 %v1677, %v1677
      %v1806 = vmul.f32 %v1678, %v1678
      %v1807 = vmul.f32 %v1679, %v1679
      %v1808 = vmul.f32 %v1680, %v1680
      %v1809 = vmul.f32 %v1681, %v1681
      %v1810 = vmul.f32 %v1682, %v1682
      %v1811 = vmul.f32 %v1683, %v1683
      %v1812 = vmul.f32 %v1684, %v1684
      %v1813 = vmul.f32 %v1685, %v1685
      %v1814 = vmul.f32 %v1686, %v1686
      %v1815 = vmul.f32 %v1687, %v1687
      %v1816 = vmul.f32 %v1688, %v1688
      %v1817 = vmul.f32 %v1689, %v1689
      %v1818 = vmul.f32 %v1690, %v1690
      %v1819 = vmul.f32 %v1691, %v1691
      %v1820 = vmul.f32 %v1692, %v1692
      %v1821 = vmul.f32 %v1693, %v1693
      %v1822 = vmul.f32 %v1694, %v1694
      %v1823 = vmul.f32 %v1695, %v1695
      %v1824 = vmul.f32 %v1696, %v1696
      %v1825 = vmul.f32 %v1697, %v1697
      %v1826 = vmul.f32 %v1698, %v1698
      %v1827 = vmul.f32 %v1699, %v1699
      %v1828 = vmul.f32 %v1700, %v1700
      %v1829 = vmul.f32 %v1701, %v1701
      %v1830 = vmul.f32 %v1702, %v1702
      %v1831 = vmul.f32 %v1703, %v1703
      %v1832 = vmul.f32 %v1704, %v1704
      %v1833 = vmul.f32 %v1705, %v1705
      %v1834 = vmul.f32 %v1706, %v1706
      %v1835 = vmul.f32 %v1707, %v1707
      %v1836 = vmul.f32 %v1708, %v1708
      %v1837 = vmul.f32 %v1709, %v1709
      %v1838 = vmul.f32 %v1710, %v1710
      %v1839 = vmul.f32 %v1711, %v1711
      %v1840 = vmul.f32 %v1712, %v1712
      %v1841 = vmul.f32 %v1713, %v1713
      %v1842 = vmul.f32 %v1714, %v1714
      %v1843 = vmul.f32 %v1715, %v1715
      %v1844 = vmul.f32 %v1716, %v1716
      %v1845 = vmul.f32 %v1717, %v1717
      %v1846 = vmul.f32 %v1718, %v1718
      %v1847 = vmul.f32 %v1719, %v1719
      %v1848 = vmul.f32 %v1720, %v1720
      %v1849 = vmul.f32 %v1721, %v1721
      %v1850 = vmul.f32 %v1722, %v1722
      %v1851 = vmul.f32 %v1723, %v1723
      %v1852 = vmul.f32 %v1724, %v1724
      %v1853 = vmul.f32 %v1725, %v1725
      %v1854 = vmul.f32 %v1726, %v1726
      %v1855 = vmul.f32 %v1727, %v1727
      %v1856 = vmul.f32 %v1728, %v1728
      %v1857 = vmul.f32 %v1729, %v1729
      %v1858 = vmul.f32 %v1730, %v1730
      %v1859 = vmul.f32 %v1731, %v1731
      %v1860 = vmul.f32 %v1732, %v1732
      %v1861 = vmul.f32 %v1733, %v1733
      %v1862 = vmul.f32 %v1734, %v1734
      %v1863 = vmul.f32 %v1735, %v1735
      %v1864 = vmul.f32 %v1736, %v1736
      %v1865 = vmul.f32 %v1737, %v1737
      %v1866 = vmul.f32 %v1738, %v1738
      %v1867 = vmul.f32 %v1739, %v1739
      %v1868 = vmul.f32 %v1740, %v1740
      %v1869 = vmul.f32 %v1741, %v1741
      %v1870 = vmul.f32 %v1742, %v1742
      %v1871 = vmul.f32 %v1743, %v1743
      %v1872 = vmul.f32 %v1744, %v1744
      %v1873 = vmul.f32 %v1745, %v1745
      %v1874 = vmul.f32 %v1746, %v1746
      %v1875 = vmul.f32 %v1747, %v1747
      %v1876 = vmul.f32 %v1748, %v1748
      %v1877 = vmul.f32 %v1749, %v1749
      %v1878 = vmul.f32 %v1750, %v1750
      %v1879 = vmul.f32 %v1751, %v1751
      %v1880 = vmul.f32 %v1752, %v1752
      %v1881 = vmul.f32 %v1753, %v1753
      %vm1882 = vcmask 523264
      %v1883 = vsel %vm1882, %v1754, 0.0
      %1884 = vadd.xlane.f32.xlu0 %v1883
      %v1885 = vpop.xlane.xlu0 %1884
      %v1886 = vsel %vm1882, %v1755, 0.0
      %1887 = vadd.xlane.f32.xlu0 %v1886
      %v1888 = vpop.xlane.xlu0 %1887
      %v1889 = vsel %vm1882, %v1756, 0.0
      %1890 = vadd.xlane.f32.xlu0 %v1889
      %v1891 = vpop.xlane.xlu0 %1890
      %v1892 = vsel %vm1882, %v1757, 0.0
      %1893 = vadd.xlane.f32.xlu0 %v1892
      %v1894 = vpop.xlane.xlu0 %1893
      %v1895 = vsel %vm1882, %v1758, 0.0
      %1896 = vadd.xlane.f32.xlu0 %v1895
      %v1897 = vpop.xlane.xlu0 %1896
      %v1898 = vsel %vm1882, %v1759, 0.0
      %1899 = vadd.xlane.f32.xlu0 %v1898
      %v1900 = vpop.xlane.xlu0 %1899
      %v1901 = vsel %vm1882, %v1760, 0.0
      %1902 = vadd.xlane.f32.xlu0 %v1901
      %v1903 = vpop.xlane.xlu0 %1902
      %v1904 = vsel %vm1882, %v1761, 0.0
      %1905 = vadd.xlane.f32.xlu0 %v1904
      %v1906 = vpop.xlane.xlu0 %1905
      %v1907 = vsel %vm1882, %v1762, 0.0
      %1908 = vadd.xlane.f32.xlu0 %v1907
      %v1909 = vpop.xlane.xlu0 %1908
      %v1910 = vsel %vm1882, %v1763, 0.0
      %1911 = vadd.xlane.f32.xlu0 %v1910
      %v1912 = vpop.xlane.xlu0 %1911
      %v1913 = vsel %vm1882, %v1764, 0.0
      %1914 = vadd.xlane.f32.xlu0 %v1913
      %v1915 = vpop.xlane.xlu0 %1914
      %v1916 = vsel %vm1882, %v1765, 0.0
      %1917 = vadd.xlane.f32.xlu0 %v1916
      %v1918 = vpop.xlane.xlu0 %1917
      %v1919 = vsel %vm1882, %v1766, 0.0
      %1920 = vadd.xlane.f32.xlu0 %v1919
      %v1921 = vpop.xlane.xlu0 %1920
      %v1922 = vsel %vm1882, %v1767, 0.0
      %1923 = vadd.xlane.f32.xlu0 %v1922
      %v1924 = vpop.xlane.xlu0 %1923
      %v1925 = vsel %vm1882, %v1768, 0.0
      %1926 = vadd.xlane.f32.xlu0 %v1925
      %v1927 = vpop.xlane.xlu0 %1926
      %v1928 = vsel %vm1882, %v1769, 0.0
      %1929 = vadd.xlane.f32.xlu0 %v1928
      %v1930 = vpop.xlane.xlu0 %1929
      %v1931 = vsel %vm1882, %v1770, 0.0
      %1932 = vadd.xlane.f32.xlu0 %v1931
      %v1933 = vpop.xlane.xlu0 %1932
      %v1934 = vsel %vm1882, %v1771, 0.0
      %1935 = vadd.xlane.f32.xlu0 %v1934
      %v1936 = vpop.xlane.xlu0 %1935
      %v1937 = vsel %vm1882, %v1772, 0.0
      %1938 = vadd.xlane.f32.xlu0 %v1937
      %v1939 = vpop.xlane.xlu0 %1938
      %v1940 = vsel %vm1882, %v1773, 0.0
      %1941 = vadd.xlane.f32.xlu0 %v1940
      %v1942 = vpop.xlane.xlu0 %1941
      %v1943 = vsel %vm1882, %v1774, 0.0
      %1944 = vadd.xlane.f32.xlu0 %v1943
      %v1945 = vpop.xlane.xlu0 %1944
      %v1946 = vsel %vm1882, %v1775, 0.0
      %1947 = vadd.xlane.f32.xlu0 %v1946
      %v1948 = vpop.xlane.xlu0 %1947
      %v1949 = vsel %vm1882, %v1776, 0.0
      %1950 = vadd.xlane.f32.xlu0 %v1949
      %v1951 = vpop.xlane.xlu0 %1950
      %v1952 = vsel %vm1882, %v1777, 0.0
      %1953 = vadd.xlane.f32.xlu0 %v1952
      %v1954 = vpop.xlane.xlu0 %1953
      %v1955 = vsel %vm1882, %v1778, 0.0
      %1956 = vadd.xlane.f32.xlu0 %v1955
      %v1957 = vpop.xlane.xlu0 %1956
      %v1958 = vsel %vm1882, %v1779, 0.0
      %1959 = vadd.xlane.f32.xlu0 %v1958
      %v1960 = vpop.xlane.xlu0 %1959
      %v1961 = vsel %vm1882, %v1780, 0.0
      %1962 = vadd.xlane.f32.xlu0 %v1961
      %v1963 = vpop.xlane.xlu0 %1962
      %v1964 = vsel %vm1882, %v1781, 0.0
      %1965 = vadd.xlane.f32.xlu0 %v1964
      %v1966 = vpop.xlane.xlu0 %1965
      %v1967 = vsel %vm1882, %v1782, 0.0
      %1968 = vadd.xlane.f32.xlu0 %v1967
      %v1969 = vpop.xlane.xlu0 %1968
      %v1970 = vsel %vm1882, %v1783, 0.0
      %1971 = vadd.xlane.f32.xlu0 %v1970
      %v1972 = vpop.xlane.xlu0 %1971
      %v1973 = vsel %vm1882, %v1784, 0.0
      %1974 = vadd.xlane.f32.xlu0 %v1973
      %v1975 = vpop.xlane.xlu0 %1974
      %v1976 = vsel %vm1882, %v1785, 0.0
      %1977 = vadd.xlane.f32.xlu0 %v1976
      %v1978 = vpop.xlane.xlu0 %1977
      %v1979 = vsel %vm1882, %v1786, 0.0
      %1980 = vadd.xlane.f32.xlu0 %v1979
      %v1981 = vpop.xlane.xlu0 %1980
      %v1982 = vsel %vm1882, %v1787, 0.0
      %1983 = vadd.xlane.f32.xlu0 %v1982
      %v1984 = vpop.xlane.xlu0 %1983
      %v1985 = vsel %vm1882, %v1788, 0.0
      %1986 = vadd.xlane.f32.xlu0 %v1985
      %v1987 = vpop.xlane.xlu0 %1986
      %v1988 = vsel %vm1882, %v1789, 0.0
      %1989 = vadd.xlane.f32.xlu0 %v1988
      %v1990 = vpop.xlane.xlu0 %1989
      %v1991 = vsel %vm1882, %v1790, 0.0
      %1992 = vadd.xlane.f32.xlu0 %v1991
      %v1993 = vpop.xlane.xlu0 %1992
      %v1994 = vsel %vm1882, %v1791, 0.0
      %1995 = vadd.xlane.f32.xlu0 %v1994
      %v1996 = vpop.xlane.xlu0 %1995
      %v1997 = vsel %vm1882, %v1792, 0.0
      %1998 = vadd.xlane.f32.xlu0 %v1997
      %v1999 = vpop.xlane.xlu0 %1998
      %v2000 = vsel %vm1882, %v1793, 0.0
      %2001 = vadd.xlane.f32.xlu0 %v2000
      %v2002 = vpop.xlane.xlu0 %2001
      %v2003 = vsel %vm1882, %v1794, 0.0
      %2004 = vadd.xlane.f32.xlu0 %v2003
      %v2005 = vpop.xlane.xlu0 %2004
      %v2006 = vsel %vm1882, %v1795, 0.0
      %2007 = vadd.xlane.f32.xlu0 %v2006
      %v2008 = vpop.xlane.xlu0 %2007
      %v2009 = vsel %vm1882, %v1796, 0.0
      %2010 = vadd.xlane.f32.xlu0 %v2009
      %v2011 = vpop.xlane.xlu0 %2010
      %v2012 = vsel %vm1882, %v1797, 0.0
      %2013 = vadd.xlane.f32.xlu0 %v2012
      %v2014 = vpop.xlane.xlu0 %2013
      %v2015 = vsel %vm1882, %v1798, 0.0
      %2016 = vadd.xlane.f32.xlu0 %v2015
      %v2017 = vpop.xlane.xlu0 %2016
      %v2018 = vsel %vm1882, %v1799, 0.0
      %2019 = vadd.xlane.f32.xlu0 %v2018
      %v2020 = vpop.xlane.xlu0 %2019
      %v2021 = vsel %vm1882, %v1800, 0.0
      %2022 = vadd.xlane.f32.xlu0 %v2021
      %v2023 = vpop.xlane.xlu0 %2022
      %v2024 = vsel %vm1882, %v1801, 0.0
      %2025 = vadd.xlane.f32.xlu0 %v2024
      %v2026 = vpop.xlane.xlu0 %2025
      %v2027 = vsel %vm1882, %v1802, 0.0
      %2028 = vadd.xlane.f32.xlu0 %v2027
      %v2029 = vpop.xlane.xlu0 %2028
      %v2030 = vsel %vm1882, %v1803, 0.0
      %2031 = vadd.xlane.f32.xlu0 %v2030
      %v2032 = vpop.xlane.xlu0 %2031
      %v2033 = vsel %vm1882, %v1804, 0.0
      %2034 = vadd.xlane.f32.xlu0 %v2033
      %v2035 = vpop.xlane.xlu0 %2034
      %v2036 = vsel %vm1882, %v1805, 0.0
      %2037 = vadd.xlane.f32.xlu0 %v2036
      %v2038 = vpop.xlane.xlu0 %2037
      %v2039 = vsel %vm1882, %v1806, 0.0
      %2040 = vadd.xlane.f32.xlu0 %v2039
      %v2041 = vpop.xlane.xlu0 %2040
      %v2042 = vsel %vm1882, %v1807, 0.0
      %2043 = vadd.xlane.f32.xlu0 %v2042
      %v2044 = vpop.xlane.xlu0 %2043
      %v2045 = vsel %vm1882, %v1808, 0.0
      %2046 = vadd.xlane.f32.xlu0 %v2045
      %v2047 = vpop.xlane.xlu0 %2046
      %v2048 = vsel %vm1882, %v1809, 0.0
      %2049 = vadd.xlane.f32.xlu0 %v2048
      %v2050 = vpop.xlane.xlu0 %2049
      %v2051 = vsel %vm1882, %v1810, 0.0
      %2052 = vadd.xlane.f32.xlu0 %v2051
      %v2053 = vpop.xlane.xlu0 %2052
      %v2054 = vsel %vm1882, %v1811, 0.0
      %2055 = vadd.xlane.f32.xlu0 %v2054
      %v2056 = vpop.xlane.xlu0 %2055
      %v2057 = vsel %vm1882, %v1812, 0.0
      %2058 = vadd.xlane.f32.xlu0 %v2057
      %v2059 = vpop.xlane.xlu0 %2058
      %v2060 = vsel %vm1882, %v1813, 0.0
      %2061 = vadd.xlane.f32.xlu0 %v2060
      %v2062 = vpop.xlane.xlu0 %2061
      %v2063 = vsel %vm1882, %v1814, 0.0
      %2064 = vadd.xlane.f32.xlu0 %v2063
      %v2065 = vpop.xlane.xlu0 %2064
      %v2066 = vsel %vm1882, %v1815, 0.0
      %2067 = vadd.xlane.f32.xlu0 %v2066
      %v2068 = vpop.xlane.xlu0 %2067
      %v2069 = vsel %vm1882, %v1816, 0.0
      %2070 = vadd.xlane.f32.xlu0 %v2069
      %v2071 = vpop.xlane.xlu0 %2070
      %v2072 = vsel %vm1882, %v1817, 0.0
      %2073 = vadd.xlane.f32.xlu0 %v2072
      %v2074 = vpop.xlane.xlu0 %2073
      %v2075 = vsel %vm1882, %v1818, 0.0
      %2076 = vadd.xlane.f32.xlu0 %v2075
      %v2077 = vpop.xlane.xlu0 %2076
      %v2078 = vsel %vm1882, %v1819, 0.0
      %2079 = vadd.xlane.f32.xlu0 %v2078
      %v2080 = vpop.xlane.xlu0 %2079
      %v2081 = vsel %vm1882, %v1820, 0.0
      %2082 = vadd.xlane.f32.xlu0 %v2081
      %v2083 = vpop.xlane.xlu0 %2082
      %v2084 = vsel %vm1882, %v1821, 0.0
      %2085 = vadd.xlane.f32.xlu0 %v2084
      %v2086 = vpop.xlane.xlu0 %2085
      %v2087 = vsel %vm1882, %v1822, 0.0
      %2088 = vadd.xlane.f32.xlu0 %v2087
      %v2089 = vpop.xlane.xlu0 %2088
      %v2090 = vsel %vm1882, %v1823, 0.0
      %2091 = vadd.xlane.f32.xlu0 %v2090
      %v2092 = vpop.xlane.xlu0 %2091
      %v2093 = vsel %vm1882, %v1824, 0.0
      %2094 = vadd.xlane.f32.xlu0 %v2093
      %v2095 = vpop.xlane.xlu0 %2094
      %v2096 = vsel %vm1882, %v1825, 0.0
      %2097 = vadd.xlane.f32.xlu0 %v2096
      %v2098 = vpop.xlane.xlu0 %2097
      %v2099 = vsel %vm1882, %v1826, 0.0
      %2100 = vadd.xlane.f32.xlu0 %v2099
      %v2101 = vpop.xlane.xlu0 %2100
      %v2102 = vsel %vm1882, %v1827, 0.0
      %2103 = vadd.xlane.f32.xlu0 %v2102
      %v2104 = vpop.xlane.xlu0 %2103
      %v2105 = vsel %vm1882, %v1828, 0.0
      %2106 = vadd.xlane.f32.xlu0 %v2105
      %v2107 = vpop.xlane.xlu0 %2106
      %v2108 = vsel %vm1882, %v1829, 0.0
      %2109 = vadd.xlane.f32.xlu0 %v2108
      %v2110 = vpop.xlane.xlu0 %2109
      %v2111 = vsel %vm1882, %v1830, 0.0
      %2112 = vadd.xlane.f32.xlu0 %v2111
      %v2113 = vpop.xlane.xlu0 %2112
      %v2114 = vsel %vm1882, %v1831, 0.0
      %2115 = vadd.xlane.f32.xlu0 %v2114
      %v2116 = vpop.xlane.xlu0 %2115
      %v2117 = vsel %vm1882, %v1832, 0.0
      %2118 = vadd.xlane.f32.xlu0 %v2117
      %v2119 = vpop.xlane.xlu0 %2118
      %v2120 = vsel %vm1882, %v1833, 0.0
      %2121 = vadd.xlane.f32.xlu0 %v2120
      %v2122 = vpop.xlane.xlu0 %2121
      %v2123 = vsel %vm1882, %v1834, 0.0
      %2124 = vadd.xlane.f32.xlu0 %v2123
      %v2125 = vpop.xlane.xlu0 %2124
      %v2126 = vsel %vm1882, %v1835, 0.0
      %2127 = vadd.xlane.f32.xlu0 %v2126
      %v2128 = vpop.xlane.xlu0 %2127
      %v2129 = vsel %vm1882, %v1836, 0.0
      %2130 = vadd.xlane.f32.xlu0 %v2129
      %v2131 = vpop.xlane.xlu0 %2130
      %v2132 = vsel %vm1882, %v1837, 0.0
      %2133 = vadd.xlane.f32.xlu0 %v2132
      %v2134 = vpop.xlane.xlu0 %2133
      %v2135 = vsel %vm1882, %v1838, 0.0
      %2136 = vadd.xlane.f32.xlu0 %v2135
      %v2137 = vpop.xlane.xlu0 %2136
      %v2138 = vsel %vm1882, %v1839, 0.0
      %2139 = vadd.xlane.f32.xlu0 %v2138
      %v2140 = vpop.xlane.xlu0 %2139
      %v2141 = vsel %vm1882, %v1840, 0.0
      %2142 = vadd.xlane.f32.xlu0 %v2141
      %v2143 = vpop.xlane.xlu0 %2142
      %v2144 = vsel %vm1882, %v1841, 0.0
      %2145 = vadd.xlane.f32.xlu0 %v2144
      %v2146 = vpop.xlane.xlu0 %2145
      %v2147 = vsel %vm1882, %v1842, 0.0
      %2148 = vadd.xlane.f32.xlu0 %v2147
      %v2149 = vpop.xlane.xlu0 %2148
      %v2150 = vsel %vm1882, %v1843, 0.0
      %2151 = vadd.xlane.f32.xlu0 %v2150
      %v2152 = vpop.xlane.xlu0 %2151
      %v2153 = vsel %vm1882, %v1844, 0.0
      %2154 = vadd.xlane.f32.xlu0 %v2153
      %v2155 = vpop.xlane.xlu0 %2154
      %v2156 = vsel %vm1882, %v1845, 0.0
      %2157 = vadd.xlane.f32.xlu0 %v2156
      %v2158 = vpop.xlane.xlu0 %2157
      %v2159 = vsel %vm1882, %v1846, 0.0
      %2160 = vadd.xlane.f32.xlu0 %v2159
      %v2161 = vpop.xlane.xlu0 %2160
      %v2162 = vsel %vm1882, %v1847, 0.0
      %2163 = vadd.xlane.f32.xlu0 %v2162
      %v2164 = vpop.xlane.xlu0 %2163
      %v2165 = vsel %vm1882, %v1848, 0.0
      %2166 = vadd.xlane.f32.xlu0 %v2165
      %v2167 = vpop.xlane.xlu0 %2166
      %v2168 = vsel %vm1882, %v1849, 0.0
      %2169 = vadd.xlane.f32.xlu0 %v2168
      %v2170 = vpop.xlane.xlu0 %2169
      %v2171 = vsel %vm1882, %v1850, 0.0
      %2172 = vadd.xlane.f32.xlu0 %v2171
      %v2173 = vpop.xlane.xlu0 %2172
      %v2174 = vsel %vm1882, %v1851, 0.0
      %2175 = vadd.xlane.f32.xlu0 %v2174
      %v2176 = vpop.xlane.xlu0 %2175
      %v2177 = vsel %vm1882, %v1852, 0.0
      %2178 = vadd.xlane.f32.xlu0 %v2177
      %v2179 = vpop.xlane.xlu0 %2178
      %v2180 = vsel %vm1882, %v1853, 0.0
      %2181 = vadd.xlane.f32.xlu0 %v2180
      %v2182 = vpop.xlane.xlu0 %2181
      %v2183 = vsel %vm1882, %v1854, 0.0
      %2184 = vadd.xlane.f32.xlu0 %v2183
      %v2185 = vpop.xlane.xlu0 %2184
      %v2186 = vsel %vm1882, %v1855, 0.0
      %2187 = vadd.xlane.f32.xlu0 %v2186
      %v2188 = vpop.xlane.xlu0 %2187
      %v2189 = vsel %vm1882, %v1856, 0.0
      %2190 = vadd.xlane.f32.xlu0 %v2189
      %v2191 = vpop.xlane.xlu0 %2190
      %v2192 = vsel %vm1882, %v1857, 0.0
      %2193 = vadd.xlane.f32.xlu0 %v2192
      %v2194 = vpop.xlane.xlu0 %2193
      %v2195 = vsel %vm1882, %v1858, 0.0
      %2196 = vadd.xlane.f32.xlu0 %v2195
      %v2197 = vpop.xlane.xlu0 %2196
      %v2198 = vsel %vm1882, %v1859, 0.0
      %2199 = vadd.xlane.f32.xlu0 %v2198
      %v2200 = vpop.xlane.xlu0 %2199
      %v2201 = vsel %vm1882, %v1860, 0.0
      %2202 = vadd.xlane.f32.xlu0 %v2201
      %v2203 = vpop.xlane.xlu0 %2202
      %v2204 = vsel %vm1882, %v1861, 0.0
      %2205 = vadd.xlane.f32.xlu0 %v2204
      %v2206 = vpop.xlane.xlu0 %2205
      %v2207 = vsel %vm1882, %v1862, 0.0
      %2208 = vadd.xlane.f32.xlu0 %v2207
      %v2209 = vpop.xlane.xlu0 %2208
      %v2210 = vsel %vm1882, %v1863, 0.0
      %2211 = vadd.xlane.f32.xlu0 %v2210
      %v2212 = vpop.xlane.xlu0 %2211
      %v2213 = vsel %vm1882, %v1864, 0.0
      %2214 = vadd.xlane.f32.xlu0 %v2213
      %v2215 = vpop.xlane.xlu0 %2214
      %v2216 = vsel %vm1882, %v1865, 0.0
      %2217 = vadd.xlane.f32.xlu0 %v2216
      %v2218 = vpop.xlane.xlu0 %2217
      %v2219 = vsel %vm1882, %v1866, 0.0
      %2220 = vadd.xlane.f32.xlu0 %v2219
      %v2221 = vpop.xlane.xlu0 %2220
      %v2222 = vsel %vm1882, %v1867, 0.0
      %2223 = vadd.xlane.f32.xlu0 %v2222
      %v2224 = vpop.xlane.xlu0 %2223
      %v2225 = vsel %vm1882, %v1868, 0.0
      %2226 = vadd.xlane.f32.xlu0 %v2225
      %v2227 = vpop.xlane.xlu0 %2226
      %v2228 = vsel %vm1882, %v1869, 0.0
      %2229 = vadd.xlane.f32.xlu0 %v2228
      %v2230 = vpop.xlane.xlu0 %2229
      %v2231 = vsel %vm1882, %v1870, 0.0
      %2232 = vadd.xlane.f32.xlu0 %v2231
      %v2233 = vpop.xlane.xlu0 %2232
      %v2234 = vsel %vm1882, %v1871, 0.0
      %2235 = vadd.xlane.f32.xlu0 %v2234
      %v2236 = vpop.xlane.xlu0 %2235
      %v2237 = vsel %vm1882, %v1872, 0.0
      %2238 = vadd.xlane.f32.xlu0 %v2237
      %v2239 = vpop.xlane.xlu0 %2238
      %v2240 = vsel %vm1882, %v1873, 0.0
      %2241 = vadd.xlane.f32.xlu0 %v2240
      %v2242 = vpop.xlane.xlu0 %2241
      %v2243 = vsel %vm1882, %v1874, 0.0
      %2244 = vadd.xlane.f32.xlu0 %v2243
      %v2245 = vpop.xlane.xlu0 %2244
      %v2246 = vsel %vm1882, %v1875, 0.0
      %2247 = vadd.xlane.f32.xlu0 %v2246
      %v2248 = vpop.xlane.xlu0 %2247
      %v2249 = vsel %vm1882, %v1876, 0.0
      %2250 = vadd.xlane.f32.xlu0 %v2249
      %v2251 = vpop.xlane.xlu0 %2250
      %v2252 = vsel %vm1882, %v1877, 0.0
      %2253 = vadd.xlane.f32.xlu0 %v2252
      %v2254 = vpop.xlane.xlu0 %2253
      %v2255 = vsel %vm1882, %v1878, 0.0
      %2256 = vadd.xlane.f32.xlu0 %v2255
      %v2257 = vpop.xlane.xlu0 %2256
      %v2258 = vsel %vm1882, %v1879, 0.0
      %2259 = vadd.xlane.f32.xlu0 %v2258
      %v2260 = vpop.xlane.xlu0 %2259
      %v2261 = vsel %vm1882, %v1880, 0.0
      %2262 = vadd.xlane.f32.xlu0 %v2261
      %v2263 = vpop.xlane.xlu0 %2262
      %v2264 = vsel %vm1882, %v1881, 0.0
      %2265 = vadd.xlane.f32.xlu0 %v2264
      %v2266 = vpop.xlane.xlu0 %2265
      %v2267 = vrsqrt.pop %v1885
      %v2268 = vrsqrt.pop %v1888
      %v2269 = vrsqrt.pop %v1891
      %v2270 = vrsqrt.pop %v1894
      %v2271 = vrsqrt.pop %v1897
      %v2272 = vrsqrt.pop %v1900
      %v2273 = vrsqrt.pop %v1903
      %v2274 = vrsqrt.pop %v1906
      %v2275 = vrsqrt.pop %v1909
      %v2276 = vrsqrt.pop %v1912
      %v2277 = vrsqrt.pop %v1915
      %v2278 = vrsqrt.pop %v1918
      %v2279 = vrsqrt.pop %v1921
      %v2280 = vrsqrt.pop %v1924
      %v2281 = vrsqrt.pop %v1927
      %v2282 = vrsqrt.pop %v1930
      %v2283 = vrsqrt.pop %v1933
      %v2284 = vrsqrt.pop %v1936
      %v2285 = vrsqrt.pop %v1939
      %v2286 = vrsqrt.pop %v1942
      %v2287 = vrsqrt.pop %v1945
      %v2288 = vrsqrt.pop %v1948
      %v2289 = vrsqrt.pop %v1951
      %v2290 = vrsqrt.pop %v1954
      %v2291 = vrsqrt.pop %v1957
      %v2292 = vrsqrt.pop %v1960
      %v2293 = vrsqrt.pop %v1963
      %v2294 = vrsqrt.pop %v1966
      %v2295 = vrsqrt.pop %v1969
      %v2296 = vrsqrt.pop %v1972
      %v2297 = vrsqrt.pop %v1975
      %v2298 = vrsqrt.pop %v1978
      %v2299 = vrsqrt.pop %v1981
      %v2300 = vrsqrt.pop %v1984
      %v2301 = vrsqrt.pop %v1987
      %v2302 = vrsqrt.pop %v1990
      %v2303 = vrsqrt.pop %v1993
      %v2304 = vrsqrt.pop %v1996
      %v2305 = vrsqrt.pop %v1999
      %v2306 = vrsqrt.pop %v2002
      %v2307 = vrsqrt.pop %v2005
      %v2308 = vrsqrt.pop %v2008
      %v2309 = vrsqrt.pop %v2011
      %v2310 = vrsqrt.pop %v2014
      %v2311 = vrsqrt.pop %v2017
      %v2312 = vrsqrt.pop %v2020
      %v2313 = vrsqrt.pop %v2023
      %v2314 = vrsqrt.pop %v2026
      %v2315 = vrsqrt.pop %v2029
      %v2316 = vrsqrt.pop %v2032
      %v2317 = vrsqrt.pop %v2035
      %v2318 = vrsqrt.pop %v2038
      %v2319 = vrsqrt.pop %v2041
      %v2320 = vrsqrt.pop %v2044
      %v2321 = vrsqrt.pop %v2047
      %v2322 = vrsqrt.pop %v2050
      %v2323 = vrsqrt.pop %v2053
      %v2324 = vrsqrt.pop %v2056
      %v2325 = vrsqrt.pop %v2059
      %v2326 = vrsqrt.pop %v2062
      %v2327 = vrsqrt.pop %v2065
      %v2328 = vrsqrt.pop %v2068
      %v2329 = vrsqrt.pop %v2071
      %v2330 = vrsqrt.pop %v2074
      %v2331 = vrsqrt.pop %v2077
      %v2332 = vrsqrt.pop %v2080
      %v2333 = vrsqrt.pop %v2083
      %v2334 = vrsqrt.pop %v2086
      %v2335 = vrsqrt.pop %v2089
      %v2336 = vrsqrt.pop %v2092
      %v2337 = vrsqrt.pop %v2095
      %v2338 = vrsqrt.pop %v2098
      %v2339 = vrsqrt.pop %v2101
      %v2340 = vrsqrt.pop %v2104
      %v2341 = vrsqrt.pop %v2107
      %v2342 = vrsqrt.pop %v2110
      %v2343 = vrsqrt.pop %v2113
      %v2344 = vrsqrt.pop %v2116
      %v2345 = vrsqrt.pop %v2119
      %v2346 = vrsqrt.pop %v2122
      %v2347 = vrsqrt.pop %v2125
      %v2348 = vrsqrt.pop %v2128
      %v2349 = vrsqrt.pop %v2131
      %v2350 = vrsqrt.pop %v2134
      %v2351 = vrsqrt.pop %v2137
      %v2352 = vrsqrt.pop %v2140
      %v2353 = vrsqrt.pop %v2143
      %v2354 = vrsqrt.pop %v2146
      %v2355 = vrsqrt.pop %v2149
      %v2356 = vrsqrt.pop %v2152
      %v2357 = vrsqrt.pop %v2155
      %v2358 = vrsqrt.pop %v2158
      %v2359 = vrsqrt.pop %v2161
      %v2360 = vrsqrt.pop %v2164
      %v2361 = vrsqrt.pop %v2167
      %v2362 = vrsqrt.pop %v2170
      %v2363 = vrsqrt.pop %v2173
      %v2364 = vrsqrt.pop %v2176
      %v2365 = vrsqrt.pop %v2179
      %v2366 = vrsqrt.pop %v2182
      %v2367 = vrsqrt.pop %v2185
      %v2368 = vrsqrt.pop %v2188
      %v2369 = vrsqrt.pop %v2191
      %v2370 = vrsqrt.pop %v2194
      %v2371 = vrsqrt.pop %v2197
      %v2372 = vrsqrt.pop %v2200
      %v2373 = vrsqrt.pop %v2203
      %v2374 = vrsqrt.pop %v2206
      %v2375 = vrsqrt.pop %v2209
      %v2376 = vrsqrt.pop %v2212
      %v2377 = vrsqrt.pop %v2215
      %v2378 = vrsqrt.pop %v2218
      %v2379 = vrsqrt.pop %v2221
      %v2380 = vrsqrt.pop %v2224
      %v2381 = vrsqrt.pop %v2227
      %v2382 = vrsqrt.pop %v2230
      %v2383 = vrsqrt.pop %v2233
      %v2384 = vrsqrt.pop %v2236
      %v2385 = vrsqrt.pop %v2239
      %v2386 = vrsqrt.pop %v2242
      %v2387 = vrsqrt.pop %v2245
      %v2388 = vrsqrt.pop %v2248
      %v2389 = vrsqrt.pop %v2251
      %v2390 = vrsqrt.pop %v2254
      %v2391 = vrsqrt.pop %v2257
      %v2392 = vrsqrt.pop %v2260
      %v2393 = vrsqrt.pop %v2263
      %v2394 = vrsqrt.pop %v2266
      %v2395 = vmul.f32 %v1626, %v2267
      %v2396 = vmul.f32 %v1627, %v2268
      %v2397 = vmul.f32 %v1628, %v2269
      %v2398 = vmul.f32 %v1629, %v2270
      %v2399 = vmul.f32 %v1630, %v2271
      %v2400 = vmul.f32 %v1631, %v2272
      %v2401 = vmul.f32 %v1632, %v2273
      %v2402 = vmul.f32 %v1633, %v2274
      %v2403 = vmul.f32 %v1634, %v2275
      %v2404 = vmul.f32 %v1635, %v2276
      %v2405 = vmul.f32 %v1636, %v2277
      %v2406 = vmul.f32 %v1637, %v2278
      %v2407 = vmul.f32 %v1638, %v2279
      %v2408 = vmul.f32 %v1639, %v2280
      %v2409 = vmul.f32 %v1640, %v2281
      %v2410 = vmul.f32 %v1641, %v2282
      %v2411 = vmul.f32 %v1642, %v2283
      %v2412 = vmul.f32 %v1643, %v2284
      %v2413 = vmul.f32 %v1644, %v2285
      %v2414 = vmul.f32 %v1645, %v2286
      %v2415 = vmul.f32 %v1646, %v2287
      %v2416 = vmul.f32 %v1647, %v2288
      %v2417 = vmul.f32 %v1648, %v2289
      %v2418 = vmul.f32 %v1649, %v2290
      %v2419 = vmul.f32 %v1650, %v2291
      %v2420 = vmul.f32 %v1651, %v2292
      %v2421 = vmul.f32 %v1652, %v2293
      %v2422 = vmul.f32 %v1653, %v2294
      %v2423 = vmul.f32 %v1654, %v2295
      %v2424 = vmul.f32 %v1655, %v2296
      %v2425 = vmul.f32 %v1656, %v2297
      %v2426 = vmul.f32 %v1657, %v2298
      %v2427 = vmul.f32 %v1658, %v2299
      %v2428 = vmul.f32 %v1659, %v2300
      %v2429 = vmul.f32 %v1660, %v2301
      %v2430 = vmul.f32 %v1661, %v2302
      %v2431 = vmul.f32 %v1662, %v2303
      %v2432 = vmul.f32 %v1663, %v2304
      %v2433 = vmul.f32 %v1664, %v2305
      %v2434 = vmul.f32 %v1665, %v2306
      %v2435 = vmul.f32 %v1666, %v2307
      %v2436 = vmul.f32 %v1667, %v2308
      %v2437 = vmul.f32 %v1668, %v2309
      %v2438 = vmul.f32 %v1669, %v2310
      %v2439 = vmul.f32 %v1670, %v2311
      %v2440 = vmul.f32 %v1671, %v2312
      %v2441 = vmul.f32 %v1672, %v2313
      %v2442 = vmul.f32 %v1673, %v2314
      %v2443 = vmul.f32 %v1674, %v2315
      %v2444 = vmul.f32 %v1675, %v2316
      %v2445 = vmul.f32 %v1676, %v2317
      %v2446 = vmul.f32 %v1677, %v2318
      %v2447 = vmul.f32 %v1678, %v2319
      %v2448 = vmul.f32 %v1679, %v2320
      %v2449 = vmul.f32 %v1680, %v2321
      %v2450 = vmul.f32 %v1681, %v2322
      %v2451 = vmul.f32 %v1682, %v2323
      %v2452 = vmul.f32 %v1683, %v2324
      %v2453 = vmul.f32 %v1684, %v2325
      %v2454 = vmul.f32 %v1685, %v2326
      %v2455 = vmul.f32 %v1686, %v2327
      %v2456 = vmul.f32 %v1687, %v2328
      %v2457 = vmul.f32 %v1688, %v2329
      %v2458 = vmul.f32 %v1689, %v2330
      %v2459 = vmul.f32 %v1690, %v2331
      %v2460 = vmul.f32 %v1691, %v2332
      %v2461 = vmul.f32 %v1692, %v2333
      %v2462 = vmul.f32 %v1693, %v2334
      %v2463 = vmul.f32 %v1694, %v2335
      %v2464 = vmul.f32 %v1695, %v2336
      %v2465 = vmul.f32 %v1696, %v2337
      %v2466 = vmul.f32 %v1697, %v2338
      %v2467 = vmul.f32 %v1698, %v2339
      %v2468 = vmul.f32 %v1699, %v2340
      %v2469 = vmul.f32 %v1700, %v2341
      %v2470 = vmul.f32 %v1701, %v2342
      %v2471 = vmul.f32 %v1702, %v2343
      %v2472 = vmul.f32 %v1703, %v2344
      %v2473 = vmul.f32 %v1704, %v2345
      %v2474 = vmul.f32 %v1705, %v2346
      %v2475 = vmul.f32 %v1706, %v2347
      %v2476 = vmul.f32 %v1707, %v2348
      %v2477 = vmul.f32 %v1708, %v2349
      %v2478 = vmul.f32 %v1709, %v2350
      %v2479 = vmul.f32 %v1710, %v2351
      %v2480 = vmul.f32 %v1711, %v2352
      %v2481 = vmul.f32 %v1712, %v2353
      %v2482 = vmul.f32 %v1713, %v2354
      %v2483 = vmul.f32 %v1714, %v2355
      %v2484 = vmul.f32 %v1715, %v2356
      %v2485 = vmul.f32 %v1716, %v2357
      %v2486 = vmul.f32 %v1717, %v2358
      %v2487 = vmul.f32 %v1718, %v2359
      %v2488 = vmul.f32 %v1719, %v2360
      %v2489 = vmul.f32 %v1720, %v2361
      %v2490 = vmul.f32 %v1721, %v2362
      %v2491 = vmul.f32 %v1722, %v2363
      %v2492 = vmul.f32 %v1723, %v2364
      %v2493 = vmul.f32 %v1724, %v2365
      %v2494 = vmul.f32 %v1725, %v2366
      %v2495 = vmul.f32 %v1726, %v2367
      %v2496 = vmul.f32 %v1727, %v2368
      %v2497 = vmul.f32 %v1728, %v2369
      %v2498 = vmul.f32 %v1729, %v2370
      %v2499 = vmul.f32 %v1730, %v2371
      %v2500 = vmul.f32 %v1731, %v2372
      %v2501 = vmul.f32 %v1732, %v2373
      %v2502 = vmul.f32 %v1733, %v2374
      %v2503 = vmul.f32 %v1734, %v2375
      %v2504 = vmul.f32 %v1735, %v2376
      %v2505 = vmul.f32 %v1736, %v2377
      %v2506 = vmul.f32 %v1737, %v2378
      %v2507 = vmul.f32 %v1738, %v2379
      %v2508 = vmul.f32 %v1739, %v2380
      %v2509 = vmul.f32 %v1740, %v2381
      %v2510 = vmul.f32 %v1741, %v2382
      %v2511 = vmul.f32 %v1742, %v2383
      %v2512 = vmul.f32 %v1743, %v2384
      %v2513 = vmul.f32 %v1744, %v2385
      %v2514 = vmul.f32 %v1745, %v2386
      %v2515 = vmul.f32 %v1746, %v2387
      %v2516 = vmul.f32 %v1747, %v2388
      %v2517 = vmul.f32 %v1748, %v2389
      %v2518 = vmul.f32 %v1749, %v2390
      %v2519 = vmul.f32 %v1750, %v2391
      %v2520 = vmul.f32 %v1751, %v2392
      %v2521 = vmul.f32 %v1752, %v2393
      %v2522 = vmul.f32 %v1753, %v2394
      %2651 = vrot.lane.b32.xlu0 %v1754, 64
      %v2652 = vpop.permute.xlu0 %2651
      %2653 = vrot.lane.b32.xlu0 %v1755, 64
      %v2654 = vpop.permute.xlu0 %2653
      %2655 = vrot.lane.b32.xlu0 %v1756, 64
      %v2656 = vpop.permute.xlu0 %2655
      %2657 = vrot.lane.b32.xlu0 %v1757, 64
      %v2658 = vpop.permute.xlu0 %2657
      %2659 = vrot.lane.b32.xlu0 %v1758, 64
      %v2660 = vpop.permute.xlu0 %2659
      %2661 = vrot.lane.b32.xlu0 %v1759, 64
      %v2662 = vpop.permute.xlu0 %2661
      %2663 = vrot.lane.b32.xlu0 %v1760, 64
      %v2664 = vpop.permute.xlu0 %2663
      %2665 = vrot.lane.b32.xlu0 %v1761, 64
      %v2666 = vpop.permute.xlu0 %2665
      %2667 = vrot.lane.b32.xlu0 %v1762, 64
      %v2668 = vpop.permute.xlu0 %2667
      %2669 = vrot.lane.b32.xlu0 %v1763, 64
      %v2670 = vpop.permute.xlu0 %2669
      %2671 = vrot.lane.b32.xlu0 %v1764, 64
      %v2672 = vpop.permute.xlu0 %2671
      %2673 = vrot.lane.b32.xlu0 %v1765, 64
      %v2674 = vpop.permute.xlu0 %2673
      %2675 = vrot.lane.b32.xlu0 %v1766, 64
      %v2676 = vpop.permute.xlu0 %2675
      %2677 = vrot.lane.b32.xlu0 %v1767, 64
      %v2678 = vpop.permute.xlu0 %2677
      %2679 = vrot.lane.b32.xlu0 %v1768, 64
      %v2680 = vpop.permute.xlu0 %2679
      %2681 = vrot.lane.b32.xlu0 %v1769, 64
      %v2682 = vpop.permute.xlu0 %2681
      %2683 = vrot.lane.b32.xlu0 %v1770, 64
      %v2684 = vpop.permute.xlu0 %2683
      %2685 = vrot.lane.b32.xlu0 %v1771, 64
      %v2686 = vpop.permute.xlu0 %2685
      %2687 = vrot.lane.b32.xlu0 %v1772, 64
      %v2688 = vpop.permute.xlu0 %2687
      %2689 = vrot.lane.b32.xlu0 %v1773, 64
      %v2690 = vpop.permute.xlu0 %2689
      %2691 = vrot.lane.b32.xlu0 %v1774, 64
      %v2692 = vpop.permute.xlu0 %2691
      %2693 = vrot.lane.b32.xlu0 %v1775, 64
      %v2694 = vpop.permute.xlu0 %2693
      %2695 = vrot.lane.b32.xlu0 %v1776, 64
      %v2696 = vpop.permute.xlu0 %2695
      %2697 = vrot.lane.b32.xlu0 %v1777, 64
      %v2698 = vpop.permute.xlu0 %2697
      %2699 = vrot.lane.b32.xlu0 %v1778, 64
      %v2700 = vpop.permute.xlu0 %2699
      %2701 = vrot.lane.b32.xlu0 %v1779, 64
      %v2702 = vpop.permute.xlu0 %2701
      %2703 = vrot.lane.b32.xlu0 %v1780, 64
      %v2704 = vpop.permute.xlu0 %2703
      %2705 = vrot.lane.b32.xlu0 %v1781, 64
      %v2706 = vpop.permute.xlu0 %2705
      %2707 = vrot.lane.b32.xlu0 %v1782, 64
      %v2708 = vpop.permute.xlu0 %2707
      %2709 = vrot.lane.b32.xlu0 %v1783, 64
      %v2710 = vpop.permute.xlu0 %2709
      %2711 = vrot.lane.b32.xlu0 %v1784, 64
      %v2712 = vpop.permute.xlu0 %2711
      %2713 = vrot.lane.b32.xlu0 %v1785, 64
      %v2714 = vpop.permute.xlu0 %2713
      %2715 = vrot.lane.b32.xlu0 %v1786, 64
      %v2716 = vpop.permute.xlu0 %2715
      %2717 = vrot.lane.b32.xlu0 %v1787, 64
      %v2718 = vpop.permute.xlu0 %2717
      %2719 = vrot.lane.b32.xlu0 %v1788, 64
      %v2720 = vpop.permute.xlu0 %2719
      %2721 = vrot.lane.b32.xlu0 %v1789, 64
      %v2722 = vpop.permute.xlu0 %2721
      %2723 = vrot.lane.b32.xlu0 %v1790, 64
      %v2724 = vpop.permute.xlu0 %2723
      %2725 = vrot.lane.b32.xlu0 %v1791, 64
      %v2726 = vpop.permute.xlu0 %2725
      %2727 = vrot.lane.b32.xlu0 %v1792, 64
      %v2728 = vpop.permute.xlu0 %2727
      %2729 = vrot.lane.b32.xlu0 %v1793, 64
      %v2730 = vpop.permute.xlu0 %2729
      %2731 = vrot.lane.b32.xlu0 %v1794, 64
      %v2732 = vpop.permute.xlu0 %2731
      %2733 = vrot.lane.b32.xlu0 %v1795, 64
      %v2734 = vpop.permute.xlu0 %2733
      %2735 = vrot.lane.b32.xlu0 %v1796, 64
      %v2736 = vpop.permute.xlu0 %2735
      %2737 = vrot.lane.b32.xlu0 %v1797, 64
      %v2738 = vpop.permute.xlu0 %2737
      %2739 = vrot.lane.b32.xlu0 %v1798, 64
      %v2740 = vpop.permute.xlu0 %2739
      %2741 = vrot.lane.b32.xlu0 %v1799, 64
      %v2742 = vpop.permute.xlu0 %2741
      %2743 = vrot.lane.b32.xlu0 %v1800, 64
      %v2744 = vpop.permute.xlu0 %2743
      %2745 = vrot.lane.b32.xlu0 %v1801, 64
      %v2746 = vpop.permute.xlu0 %2745
      %2747 = vrot.lane.b32.xlu0 %v1802, 64
      %v2748 = vpop.permute.xlu0 %2747
      %2749 = vrot.lane.b32.xlu0 %v1803, 64
      %v2750 = vpop.permute.xlu0 %2749
      %2751 = vrot.lane.b32.xlu0 %v1804, 64
      %v2752 = vpop.permute.xlu0 %2751
      %2753 = vrot.lane.b32.xlu0 %v1805, 64
      %v2754 = vpop.permute.xlu0 %2753
      %2755 = vrot.lane.b32.xlu0 %v1806, 64
      %v2756 = vpop.permute.xlu0 %2755
      %2757 = vrot.lane.b32.xlu0 %v1807, 64
      %v2758 = vpop.permute.xlu0 %2757
      %2759 = vrot.lane.b32.xlu0 %v1808, 64
      %v2760 = vpop.permute.xlu0 %2759
      %2761 = vrot.lane.b32.xlu0 %v1809, 64
      %v2762 = vpop.permute.xlu0 %2761
      %2763 = vrot.lane.b32.xlu0 %v1810, 64
      %v2764 = vpop.permute.xlu0 %2763
      %2765 = vrot.lane.b32.xlu0 %v1811, 64
      %v2766 = vpop.permute.xlu0 %2765
      %2767 = vrot.lane.b32.xlu0 %v1812, 64
      %v2768 = vpop.permute.xlu0 %2767
      %2769 = vrot.lane.b32.xlu0 %v1813, 64
      %v2770 = vpop.permute.xlu0 %2769
      %2771 = vrot.lane.b32.xlu0 %v1814, 64
      %v2772 = vpop.permute.xlu0 %2771
      %2773 = vrot.lane.b32.xlu0 %v1815, 64
      %v2774 = vpop.permute.xlu0 %2773
      %2775 = vrot.lane.b32.xlu0 %v1816, 64
      %v2776 = vpop.permute.xlu0 %2775
      %2777 = vrot.lane.b32.xlu0 %v1817, 64
      %v2778 = vpop.permute.xlu0 %2777
      %2779 = vrot.lane.b32.xlu0 %v1818, 64
      %v2780 = vpop.permute.xlu0 %2779
      %2781 = vrot.lane.b32.xlu0 %v1819, 64
      %v2782 = vpop.permute.xlu0 %2781
      %2783 = vrot.lane.b32.xlu0 %v1820, 64
      %v2784 = vpop.permute.xlu0 %2783
      %2785 = vrot.lane.b32.xlu0 %v1821, 64
      %v2786 = vpop.permute.xlu0 %2785
      %2787 = vrot.lane.b32.xlu0 %v1822, 64
      %v2788 = vpop.permute.xlu0 %2787
      %2789 = vrot.lane.b32.xlu0 %v1823, 64
      %v2790 = vpop.permute.xlu0 %2789
      %2791 = vrot.lane.b32.xlu0 %v1824, 64
      %v2792 = vpop.permute.xlu0 %2791
      %2793 = vrot.lane.b32.xlu0 %v1825, 64
      %v2794 = vpop.permute.xlu0 %2793
      %2795 = vrot.lane.b32.xlu0 %v1826, 64
      %v2796 = vpop.permute.xlu0 %2795
      %2797 = vrot.lane.b32.xlu0 %v1827, 64
      %v2798 = vpop.permute.xlu0 %2797
      %2799 = vrot.lane.b32.xlu0 %v1828, 64
      %v2800 = vpop.permute.xlu0 %2799
      %2801 = vrot.lane.b32.xlu0 %v1829, 64
      %v2802 = vpop.permute.xlu0 %2801
      %2803 = vrot.lane.b32.xlu0 %v1830, 64
      %v2804 = vpop.permute.xlu0 %2803
      %2805 = vrot.lane.b32.xlu0 %v1831, 64
      %v2806 = vpop.permute.xlu0 %2805
      %2807 = vrot.lane.b32.xlu0 %v1832, 64
      %v2808 = vpop.permute.xlu0 %2807
      %2809 = vrot.lane.b32.xlu0 %v1833, 64
      %v2810 = vpop.permute.xlu0 %2809
      %2811 = vrot.lane.b32.xlu0 %v1834, 64
      %v2812 = vpop.permute.xlu0 %2811
      %2813 = vrot.lane.b32.xlu0 %v1835, 64
      %v2814 = vpop.permute.xlu0 %2813
      %2815 = vrot.lane.b32.xlu0 %v1836, 64
      %v2816 = vpop.permute.xlu0 %2815
      %2817 = vrot.lane.b32.xlu0 %v1837, 64
      %v2818 = vpop.permute.xlu0 %2817
      %2819 = vrot.lane.b32.xlu0 %v1838, 64
      %v2820 = vpop.permute.xlu0 %2819
      %2821 = vrot.lane.b32.xlu0 %v1839, 64
      %v2822 = vpop.permute.xlu0 %2821
      %2823 = vrot.lane.b32.xlu0 %v1840, 64
      %v2824 = vpop.permute.xlu0 %2823
      %2825 = vrot.lane.b32.xlu0 %v1841, 64
      %v2826 = vpop.permute.xlu0 %2825
      %2827 = vrot.lane.b32.xlu0 %v1842, 64
      %v2828 = vpop.permute.xlu0 %2827
      %2829 = vrot.lane.b32.xlu0 %v1843, 64
      %v2830 = vpop.permute.xlu0 %2829
      %2831 = vrot.lane.b32.xlu0 %v1844, 64
      %v2832 = vpop.permute.xlu0 %2831
      %2833 = vrot.lane.b32.xlu0 %v1845, 64
      %v2834 = vpop.permute.xlu0 %2833
      %2835 = vrot.lane.b32.xlu0 %v1846, 64
      %v2836 = vpop.permute.xlu0 %2835
      %2837 = vrot.lane.b32.xlu0 %v1847, 64
      %v2838 = vpop.permute.xlu0 %2837
      %2839 = vrot.lane.b32.xlu0 %v1848, 64
      %v2840 = vpop.permute.xlu0 %2839
      %2841 = vrot.lane.b32.xlu0 %v1849, 64
      %v2842 = vpop.permute.xlu0 %2841
      %2843 = vrot.lane.b32.xlu0 %v1850, 64
      %v2844 = vpop.permute.xlu0 %2843
      %2845 = vrot.lane.b32.xlu0 %v1851, 64
      %v2846 = vpop.permute.xlu0 %2845
      %2847 = vrot.lane.b32.xlu0 %v1852, 64
      %v2848 = vpop.permute.xlu0 %2847
      %2849 = vrot.lane.b32.xlu0 %v1853, 64
      %v2850 = vpop.permute.xlu0 %2849
      %2851 = vrot.lane.b32.xlu0 %v1854, 64
      %v2852 = vpop.permute.xlu0 %2851
      %2853 = vrot.lane.b32.xlu0 %v1855, 64
      %v2854 = vpop.permute.xlu0 %2853
      %2855 = vrot.lane.b32.xlu0 %v1856, 64
      %v2856 = vpop.permute.xlu0 %2855
      %2857 = vrot.lane.b32.xlu0 %v1857, 64
      %v2858 = vpop.permute.xlu0 %2857
      %2859 = vrot.lane.b32.xlu0 %v1858, 64
      %v2860 = vpop.permute.xlu0 %2859
      %2861 = vrot.lane.b32.xlu0 %v1859, 64
      %v2862 = vpop.permute.xlu0 %2861
      %2863 = vrot.lane.b32.xlu0 %v1860, 64
      %v2864 = vpop.permute.xlu0 %2863
      %2865 = vrot.lane.b32.xlu0 %v1861, 64
      %v2866 = vpop.permute.xlu0 %2865
      %2867 = vrot.lane.b32.xlu0 %v1862, 64
      %v2868 = vpop.permute.xlu0 %2867
      %2869 = vrot.lane.b32.xlu0 %v1863, 64
      %v2870 = vpop.permute.xlu0 %2869
      %2871 = vrot.lane.b32.xlu0 %v1864, 64
      %v2872 = vpop.permute.xlu0 %2871
      %2873 = vrot.lane.b32.xlu0 %v1865, 64
      %v2874 = vpop.permute.xlu0 %2873
      %2875 = vrot.lane.b32.xlu0 %v1866, 64
      %v2876 = vpop.permute.xlu0 %2875
      %2877 = vrot.lane.b32.xlu0 %v1867, 64
      %v2878 = vpop.permute.xlu0 %2877
      %2879 = vrot.lane.b32.xlu0 %v1868, 64
      %v2880 = vpop.permute.xlu0 %2879
      %2881 = vrot.lane.b32.xlu0 %v1869, 64
      %v2882 = vpop.permute.xlu0 %2881
      %2883 = vrot.lane.b32.xlu0 %v1870, 64
      %v2884 = vpop.permute.xlu0 %2883
      %2885 = vrot.lane.b32.xlu0 %v1871, 64
      %v2886 = vpop.permute.xlu0 %2885
      %2887 = vrot.lane.b32.xlu0 %v1872, 64
      %v2888 = vpop.permute.xlu0 %2887
      %2889 = vrot.lane.b32.xlu0 %v1873, 64
      %v2890 = vpop.permute.xlu0 %2889
      %2891 = vrot.lane.b32.xlu0 %v1874, 64
      %v2892 = vpop.permute.xlu0 %2891
      %2893 = vrot.lane.b32.xlu0 %v1875, 64
      %v2894 = vpop.permute.xlu0 %2893
      %2895 = vrot.lane.b32.xlu0 %v1876, 64
      %v2896 = vpop.permute.xlu0 %2895
      %2897 = vrot.lane.b32.xlu0 %v1877, 64
      %v2898 = vpop.permute.xlu0 %2897
      %2899 = vrot.lane.b32.xlu0 %v1878, 64
      %v2900 = vpop.permute.xlu0 %2899
      %2901 = vrot.lane.b32.xlu0 %v1879, 64
      %v2902 = vpop.permute.xlu0 %2901
      %2903 = vrot.lane.b32.xlu0 %v1880, 64
      %v2904 = vpop.permute.xlu0 %2903
      %2905 = vrot.lane.b32.xlu0 %v1881, 64
      %v2906 = vpop.permute.xlu0 %2905
      %v3035 = vsel %vm1882, %v2652, 0.0
      %3036 = vadd.xlane.f32.xlu0 %v3035
      %v3037 = vpop.xlane.xlu0 %3036
      %v3038 = vsel %vm1882, %v2654, 0.0
      %3039 = vadd.xlane.f32.xlu0 %v3038
      %v3040 = vpop.xlane.xlu0 %3039
      %v3041 = vsel %vm1882, %v2656, 0.0
      %3042 = vadd.xlane.f32.xlu0 %v3041
      %v3043 = vpop.xlane.xlu0 %3042
      %v3044 = vsel %vm1882, %v2658, 0.0
      %3045 = vadd.xlane.f32.xlu0 %v3044
      %v3046 = vpop.xlane.xlu0 %3045
      %v3047 = vsel %vm1882, %v2660, 0.0
      %3048 = vadd.xlane.f32.xlu0 %v3047
      %v3049 = vpop.xlane.xlu0 %3048
      %v3050 = vsel %vm1882, %v2662, 0.0
      %3051 = vadd.xlane.f32.xlu0 %v3050
      %v3052 = vpop.xlane.xlu0 %3051
      %v3053 = vsel %vm1882, %v2664, 0.0
      %3054 = vadd.xlane.f32.xlu0 %v3053
      %v3055 = vpop.xlane.xlu0 %3054
      %v3056 = vsel %vm1882, %v2666, 0.0
      %3057 = vadd.xlane.f32.xlu0 %v3056
      %v3058 = vpop.xlane.xlu0 %3057
      %v3059 = vsel %vm1882, %v2668, 0.0
      %3060 = vadd.xlane.f32.xlu0 %v3059
      %v3061 = vpop.xlane.xlu0 %3060
      %v3062 = vsel %vm1882, %v2670, 0.0
      %3063 = vadd.xlane.f32.xlu0 %v3062
      %v3064 = vpop.xlane.xlu0 %3063
      %v3065 = vsel %vm1882, %v2672, 0.0
      %3066 = vadd.xlane.f32.xlu0 %v3065
      %v3067 = vpop.xlane.xlu0 %3066
      %v3068 = vsel %vm1882, %v2674, 0.0
      %3069 = vadd.xlane.f32.xlu0 %v3068
      %v3070 = vpop.xlane.xlu0 %3069
      %v3071 = vsel %vm1882, %v2676, 0.0
      %3072 = vadd.xlane.f32.xlu0 %v3071
      %v3073 = vpop.xlane.xlu0 %3072
      %v3074 = vsel %vm1882, %v2678, 0.0
      %3075 = vadd.xlane.f32.xlu0 %v3074
      %v3076 = vpop.xlane.xlu0 %3075
      %v3077 = vsel %vm1882, %v2680, 0.0
      %3078 = vadd.xlane.f32.xlu0 %v3077
      %v3079 = vpop.xlane.xlu0 %3078
      %v3080 = vsel %vm1882, %v2682, 0.0
      %3081 = vadd.xlane.f32.xlu0 %v3080
      %v3082 = vpop.xlane.xlu0 %3081
      %v3083 = vsel %vm1882, %v2684, 0.0
      %3084 = vadd.xlane.f32.xlu0 %v3083
      %v3085 = vpop.xlane.xlu0 %3084
      %v3086 = vsel %vm1882, %v2686, 0.0
      %3087 = vadd.xlane.f32.xlu0 %v3086
      %v3088 = vpop.xlane.xlu0 %3087
      %v3089 = vsel %vm1882, %v2688, 0.0
      %3090 = vadd.xlane.f32.xlu0 %v3089
      %v3091 = vpop.xlane.xlu0 %3090
      %v3092 = vsel %vm1882, %v2690, 0.0
      %3093 = vadd.xlane.f32.xlu0 %v3092
      %v3094 = vpop.xlane.xlu0 %3093
      %v3095 = vsel %vm1882, %v2692, 0.0
      %3096 = vadd.xlane.f32.xlu0 %v3095
      %v3097 = vpop.xlane.xlu0 %3096
      %v3098 = vsel %vm1882, %v2694, 0.0
      %3099 = vadd.xlane.f32.xlu0 %v3098
      %v3100 = vpop.xlane.xlu0 %3099
      %v3101 = vsel %vm1882, %v2696, 0.0
      %3102 = vadd.xlane.f32.xlu0 %v3101
      %v3103 = vpop.xlane.xlu0 %3102
      %v3104 = vsel %vm1882, %v2698, 0.0
      %3105 = vadd.xlane.f32.xlu0 %v3104
      %v3106 = vpop.xlane.xlu0 %3105
      %v3107 = vsel %vm1882, %v2700, 0.0
      %3108 = vadd.xlane.f32.xlu0 %v3107
      %v3109 = vpop.xlane.xlu0 %3108
      %v3110 = vsel %vm1882, %v2702, 0.0
      %3111 = vadd.xlane.f32.xlu0 %v3110
      %v3112 = vpop.xlane.xlu0 %3111
      %v3113 = vsel %vm1882, %v2704, 0.0
      %3114 = vadd.xlane.f32.xlu0 %v3113
      %v3115 = vpop.xlane.xlu0 %3114
      %v3116 = vsel %vm1882, %v2706, 0.0
      %3117 = vadd.xlane.f32.xlu0 %v3116
      %v3118 = vpop.xlane.xlu0 %3117
      %v3119 = vsel %vm1882, %v2708, 0.0
      %3120 = vadd.xlane.f32.xlu0 %v3119
      %v3121 = vpop.xlane.xlu0 %3120
      %v3122 = vsel %vm1882, %v2710, 0.0
      %3123 = vadd.xlane.f32.xlu0 %v3122
      %v3124 = vpop.xlane.xlu0 %3123
      %v3125 = vsel %vm1882, %v2712, 0.0
      %3126 = vadd.xlane.f32.xlu0 %v3125
      %v3127 = vpop.xlane.xlu0 %3126
      %v3128 = vsel %vm1882, %v2714, 0.0
      %3129 = vadd.xlane.f32.xlu0 %v3128
      %v3130 = vpop.xlane.xlu0 %3129
      %v3131 = vsel %vm1882, %v2716, 0.0
      %3132 = vadd.xlane.f32.xlu0 %v3131
      %v3133 = vpop.xlane.xlu0 %3132
      %v3134 = vsel %vm1882, %v2718, 0.0
      %3135 = vadd.xlane.f32.xlu0 %v3134
      %v3136 = vpop.xlane.xlu0 %3135
      %v3137 = vsel %vm1882, %v2720, 0.0
      %3138 = vadd.xlane.f32.xlu0 %v3137
      %v3139 = vpop.xlane.xlu0 %3138
      %v3140 = vsel %vm1882, %v2722, 0.0
      %3141 = vadd.xlane.f32.xlu0 %v3140
      %v3142 = vpop.xlane.xlu0 %3141
      %v3143 = vsel %vm1882, %v2724, 0.0
      %3144 = vadd.xlane.f32.xlu0 %v3143
      %v3145 = vpop.xlane.xlu0 %3144
      %v3146 = vsel %vm1882, %v2726, 0.0
      %3147 = vadd.xlane.f32.xlu0 %v3146
      %v3148 = vpop.xlane.xlu0 %3147
      %v3149 = vsel %vm1882, %v2728, 0.0
      %3150 = vadd.xlane.f32.xlu0 %v3149
      %v3151 = vpop.xlane.xlu0 %3150
      %v3152 = vsel %vm1882, %v2730, 0.0
      %3153 = vadd.xlane.f32.xlu0 %v3152
      %v3154 = vpop.xlane.xlu0 %3153
      %v3155 = vsel %vm1882, %v2732, 0.0
      %3156 = vadd.xlane.f32.xlu0 %v3155
      %v3157 = vpop.xlane.xlu0 %3156
      %v3158 = vsel %vm1882, %v2734, 0.0
      %3159 = vadd.xlane.f32.xlu0 %v3158
      %v3160 = vpop.xlane.xlu0 %3159
      %v3161 = vsel %vm1882, %v2736, 0.0
      %3162 = vadd.xlane.f32.xlu0 %v3161
      %v3163 = vpop.xlane.xlu0 %3162
      %v3164 = vsel %vm1882, %v2738, 0.0
      %3165 = vadd.xlane.f32.xlu0 %v3164
      %v3166 = vpop.xlane.xlu0 %3165
      %v3167 = vsel %vm1882, %v2740, 0.0
      %3168 = vadd.xlane.f32.xlu0 %v3167
      %v3169 = vpop.xlane.xlu0 %3168
      %v3170 = vsel %vm1882, %v2742, 0.0
      %3171 = vadd.xlane.f32.xlu0 %v3170
      %v3172 = vpop.xlane.xlu0 %3171
      %v3173 = vsel %vm1882, %v2744, 0.0
      %3174 = vadd.xlane.f32.xlu0 %v3173
      %v3175 = vpop.xlane.xlu0 %3174
      %v3176 = vsel %vm1882, %v2746, 0.0
      %3177 = vadd.xlane.f32.xlu0 %v3176
      %v3178 = vpop.xlane.xlu0 %3177
      %v3179 = vsel %vm1882, %v2748, 0.0
      %3180 = vadd.xlane.f32.xlu0 %v3179
      %v3181 = vpop.xlane.xlu0 %3180
      %v3182 = vsel %vm1882, %v2750, 0.0
      %3183 = vadd.xlane.f32.xlu0 %v3182
      %v3184 = vpop.xlane.xlu0 %3183
      %v3185 = vsel %vm1882, %v2752, 0.0
      %3186 = vadd.xlane.f32.xlu0 %v3185
      %v3187 = vpop.xlane.xlu0 %3186
      %v3188 = vsel %vm1882, %v2754, 0.0
      %3189 = vadd.xlane.f32.xlu0 %v3188
      %v3190 = vpop.xlane.xlu0 %3189
      %v3191 = vsel %vm1882, %v2756, 0.0
      %3192 = vadd.xlane.f32.xlu0 %v3191
      %v3193 = vpop.xlane.xlu0 %3192
      %v3194 = vsel %vm1882, %v2758, 0.0
      %3195 = vadd.xlane.f32.xlu0 %v3194
      %v3196 = vpop.xlane.xlu0 %3195
      %v3197 = vsel %vm1882, %v2760, 0.0
      %3198 = vadd.xlane.f32.xlu0 %v3197
      %v3199 = vpop.xlane.xlu0 %3198
      %v3200 = vsel %vm1882, %v2762, 0.0
      %3201 = vadd.xlane.f32.xlu0 %v3200
      %v3202 = vpop.xlane.xlu0 %3201
      %v3203 = vsel %vm1882, %v2764, 0.0
      %3204 = vadd.xlane.f32.xlu0 %v3203
      %v3205 = vpop.xlane.xlu0 %3204
      %v3206 = vsel %vm1882, %v2766, 0.0
      %3207 = vadd.xlane.f32.xlu0 %v3206
      %v3208 = vpop.xlane.xlu0 %3207
      %v3209 = vsel %vm1882, %v2768, 0.0
      %3210 = vadd.xlane.f32.xlu0 %v3209
      %v3211 = vpop.xlane.xlu0 %3210
      %v3212 = vsel %vm1882, %v2770, 0.0
      %3213 = vadd.xlane.f32.xlu0 %v3212
      %v3214 = vpop.xlane.xlu0 %3213
      %v3215 = vsel %vm1882, %v2772, 0.0
      %3216 = vadd.xlane.f32.xlu0 %v3215
      %v3217 = vpop.xlane.xlu0 %3216
      %v3218 = vsel %vm1882, %v2774, 0.0
      %3219 = vadd.xlane.f32.xlu0 %v3218
      %v3220 = vpop.xlane.xlu0 %3219
      %v3221 = vsel %vm1882, %v2776, 0.0
      %3222 = vadd.xlane.f32.xlu0 %v3221
      %v3223 = vpop.xlane.xlu0 %3222
      %v3224 = vsel %vm1882, %v2778, 0.0
      %3225 = vadd.xlane.f32.xlu0 %v3224
      %v3226 = vpop.xlane.xlu0 %3225
      %v3227 = vsel %vm1882, %v2780, 0.0
      %3228 = vadd.xlane.f32.xlu0 %v3227
      %v3229 = vpop.xlane.xlu0 %3228
      %v3230 = vsel %vm1882, %v2782, 0.0
      %3231 = vadd.xlane.f32.xlu0 %v3230
      %v3232 = vpop.xlane.xlu0 %3231
      %v3233 = vsel %vm1882, %v2784, 0.0
      %3234 = vadd.xlane.f32.xlu0 %v3233
      %v3235 = vpop.xlane.xlu0 %3234
      %v3236 = vsel %vm1882, %v2786, 0.0
      %3237 = vadd.xlane.f32.xlu0 %v3236
      %v3238 = vpop.xlane.xlu0 %3237
      %v3239 = vsel %vm1882, %v2788, 0.0
      %3240 = vadd.xlane.f32.xlu0 %v3239
      %v3241 = vpop.xlane.xlu0 %3240
      %v3242 = vsel %vm1882, %v2790, 0.0
      %3243 = vadd.xlane.f32.xlu0 %v3242
      %v3244 = vpop.xlane.xlu0 %3243
      %v3245 = vsel %vm1882, %v2792, 0.0
      %3246 = vadd.xlane.f32.xlu0 %v3245
      %v3247 = vpop.xlane.xlu0 %3246
      %v3248 = vsel %vm1882, %v2794, 0.0
      %3249 = vadd.xlane.f32.xlu0 %v3248
      %v3250 = vpop.xlane.xlu0 %3249
      %v3251 = vsel %vm1882, %v2796, 0.0
      %3252 = vadd.xlane.f32.xlu0 %v3251
      %v3253 = vpop.xlane.xlu0 %3252
      %v3254 = vsel %vm1882, %v2798, 0.0
      %3255 = vadd.xlane.f32.xlu0 %v3254
      %v3256 = vpop.xlane.xlu0 %3255
      %v3257 = vsel %vm1882, %v2800, 0.0
      %3258 = vadd.xlane.f32.xlu0 %v3257
      %v3259 = vpop.xlane.xlu0 %3258
      %v3260 = vsel %vm1882, %v2802, 0.0
      %3261 = vadd.xlane.f32.xlu0 %v3260
      %v3262 = vpop.xlane.xlu0 %3261
      %v3263 = vsel %vm1882, %v2804, 0.0
      %3264 = vadd.xlane.f32.xlu0 %v3263
      %v3265 = vpop.xlane.xlu0 %3264
      %v3266 = vsel %vm1882, %v2806, 0.0
      %3267 = vadd.xlane.f32.xlu0 %v3266
      %v3268 = vpop.xlane.xlu0 %3267
      %v3269 = vsel %vm1882, %v2808, 0.0
      %3270 = vadd.xlane.f32.xlu0 %v3269
      %v3271 = vpop.xlane.xlu0 %3270
      %v3272 = vsel %vm1882, %v2810, 0.0
      %3273 = vadd.xlane.f32.xlu0 %v3272
      %v3274 = vpop.xlane.xlu0 %3273
      %v3275 = vsel %vm1882, %v2812, 0.0
      %3276 = vadd.xlane.f32.xlu0 %v3275
      %v3277 = vpop.xlane.xlu0 %3276
      %v3278 = vsel %vm1882, %v2814, 0.0
      %3279 = vadd.xlane.f32.xlu0 %v3278
      %v3280 = vpop.xlane.xlu0 %3279
      %v3281 = vsel %vm1882, %v2816, 0.0
      %3282 = vadd.xlane.f32.xlu0 %v3281
      %v3283 = vpop.xlane.xlu0 %3282
      %v3284 = vsel %vm1882, %v2818, 0.0
      %3285 = vadd.xlane.f32.xlu0 %v3284
      %v3286 = vpop.xlane.xlu0 %3285
      %v3287 = vsel %vm1882, %v2820, 0.0
      %3288 = vadd.xlane.f32.xlu0 %v3287
      %v3289 = vpop.xlane.xlu0 %3288
      %v3290 = vsel %vm1882, %v2822, 0.0
      %3291 = vadd.xlane.f32.xlu0 %v3290
      %v3292 = vpop.xlane.xlu0 %3291
      %v3293 = vsel %vm1882, %v2824, 0.0
      %3294 = vadd.xlane.f32.xlu0 %v3293
      %v3295 = vpop.xlane.xlu0 %3294
      %v3296 = vsel %vm1882, %v2826, 0.0
      %3297 = vadd.xlane.f32.xlu0 %v3296
      %v3298 = vpop.xlane.xlu0 %3297
      %v3299 = vsel %vm1882, %v2828, 0.0
      %3300 = vadd.xlane.f32.xlu0 %v3299
      %v3301 = vpop.xlane.xlu0 %3300
      %v3302 = vsel %vm1882, %v2830, 0.0
      %3303 = vadd.xlane.f32.xlu0 %v3302
      %v3304 = vpop.xlane.xlu0 %3303
      %v3305 = vsel %vm1882, %v2832, 0.0
      %3306 = vadd.xlane.f32.xlu0 %v3305
      %v3307 = vpop.xlane.xlu0 %3306
      %v3308 = vsel %vm1882, %v2834, 0.0
      %3309 = vadd.xlane.f32.xlu0 %v3308
      %v3310 = vpop.xlane.xlu0 %3309
      %v3311 = vsel %vm1882, %v2836, 0.0
      %3312 = vadd.xlane.f32.xlu0 %v3311
      %v3313 = vpop.xlane.xlu0 %3312
      %v3314 = vsel %vm1882, %v2838, 0.0
      %3315 = vadd.xlane.f32.xlu0 %v3314
      %v3316 = vpop.xlane.xlu0 %3315
      %v3317 = vsel %vm1882, %v2840, 0.0
      %3318 = vadd.xlane.f32.xlu0 %v3317
      %v3319 = vpop.xlane.xlu0 %3318
      %v3320 = vsel %vm1882, %v2842, 0.0
      %3321 = vadd.xlane.f32.xlu0 %v3320
      %v3322 = vpop.xlane.xlu0 %3321
      %v3323 = vsel %vm1882, %v2844, 0.0
      %3324 = vadd.xlane.f32.xlu0 %v3323
      %v3325 = vpop.xlane.xlu0 %3324
      %v3326 = vsel %vm1882, %v2846, 0.0
      %3327 = vadd.xlane.f32.xlu0 %v3326
      %v3328 = vpop.xlane.xlu0 %3327
      %v3329 = vsel %vm1882, %v2848, 0.0
      %3330 = vadd.xlane.f32.xlu0 %v3329
      %v3331 = vpop.xlane.xlu0 %3330
      %v3332 = vsel %vm1882, %v2850, 0.0
      %3333 = vadd.xlane.f32.xlu0 %v3332
      %v3334 = vpop.xlane.xlu0 %3333
      %v3335 = vsel %vm1882, %v2852, 0.0
      %3336 = vadd.xlane.f32.xlu0 %v3335
      %v3337 = vpop.xlane.xlu0 %3336
      %v3338 = vsel %vm1882, %v2854, 0.0
      %3339 = vadd.xlane.f32.xlu0 %v3338
      %v3340 = vpop.xlane.xlu0 %3339
      %v3341 = vsel %vm1882, %v2856, 0.0
      %3342 = vadd.xlane.f32.xlu0 %v3341
      %v3343 = vpop.xlane.xlu0 %3342
      %v3344 = vsel %vm1882, %v2858, 0.0
      %3345 = vadd.xlane.f32.xlu0 %v3344
      %v3346 = vpop.xlane.xlu0 %3345
      %v3347 = vsel %vm1882, %v2860, 0.0
      %3348 = vadd.xlane.f32.xlu0 %v3347
      %v3349 = vpop.xlane.xlu0 %3348
      %v3350 = vsel %vm1882, %v2862, 0.0
      %3351 = vadd.xlane.f32.xlu0 %v3350
      %v3352 = vpop.xlane.xlu0 %3351
      %v3353 = vsel %vm1882, %v2864, 0.0
      %3354 = vadd.xlane.f32.xlu0 %v3353
      %v3355 = vpop.xlane.xlu0 %3354
      %v3356 = vsel %vm1882, %v2866, 0.0
      %3357 = vadd.xlane.f32.xlu0 %v3356
      %v3358 = vpop.xlane.xlu0 %3357
      %v3359 = vsel %vm1882, %v2868, 0.0
      %3360 = vadd.xlane.f32.xlu0 %v3359
      %v3361 = vpop.xlane.xlu0 %3360
      %v3362 = vsel %vm1882, %v2870, 0.0
      %3363 = vadd.xlane.f32.xlu0 %v3362
      %v3364 = vpop.xlane.xlu0 %3363
      %v3365 = vsel %vm1882, %v2872, 0.0
      %3366 = vadd.xlane.f32.xlu0 %v3365
      %v3367 = vpop.xlane.xlu0 %3366
      %v3368 = vsel %vm1882, %v2874, 0.0
      %3369 = vadd.xlane.f32.xlu0 %v3368
      %v3370 = vpop.xlane.xlu0 %3369
      %v3371 = vsel %vm1882, %v2876, 0.0
      %3372 = vadd.xlane.f32.xlu0 %v3371
      %v3373 = vpop.xlane.xlu0 %3372
      %v3374 = vsel %vm1882, %v2878, 0.0
      %3375 = vadd.xlane.f32.xlu0 %v3374
      %v3376 = vpop.xlane.xlu0 %3375
      %v3377 = vsel %vm1882, %v2880, 0.0
      %3378 = vadd.xlane.f32.xlu0 %v3377
      %v3379 = vpop.xlane.xlu0 %3378
      %v3380 = vsel %vm1882, %v2882, 0.0
      %3381 = vadd.xlane.f32.xlu0 %v3380
      %v3382 = vpop.xlane.xlu0 %3381
      %v3383 = vsel %vm1882, %v2884, 0.0
      %3384 = vadd.xlane.f32.xlu0 %v3383
      %v3385 = vpop.xlane.xlu0 %3384
      %v3386 = vsel %vm1882, %v2886, 0.0
      %3387 = vadd.xlane.f32.xlu0 %v3386
      %v3388 = vpop.xlane.xlu0 %3387
      %v3389 = vsel %vm1882, %v2888, 0.0
      %3390 = vadd.xlane.f32.xlu0 %v3389
      %v3391 = vpop.xlane.xlu0 %3390
      %v3392 = vsel %vm1882, %v2890, 0.0
      %3393 = vadd.xlane.f32.xlu0 %v3392
      %v3394 = vpop.xlane.xlu0 %3393
      %v3395 = vsel %vm1882, %v2892, 0.0
      %3396 = vadd.xlane.f32.xlu0 %v3395
      %v3397 = vpop.xlane.xlu0 %3396
      %v3398 = vsel %vm1882, %v2894, 0.0
      %3399 = vadd.xlane.f32.xlu0 %v3398
      %v3400 = vpop.xlane.xlu0 %3399
      %v3401 = vsel %vm1882, %v2896, 0.0
      %3402 = vadd.xlane.f32.xlu0 %v3401
      %v3403 = vpop.xlane.xlu0 %3402
      %v3404 = vsel %vm1882, %v2898, 0.0
      %3405 = vadd.xlane.f32.xlu0 %v3404
      %v3406 = vpop.xlane.xlu0 %3405
      %v3407 = vsel %vm1882, %v2900, 0.0
      %3408 = vadd.xlane.f32.xlu0 %v3407
      %v3409 = vpop.xlane.xlu0 %3408
      %v3410 = vsel %vm1882, %v2902, 0.0
      %3411 = vadd.xlane.f32.xlu0 %v3410
      %v3412 = vpop.xlane.xlu0 %3411
      %v3413 = vsel %vm1882, %v2904, 0.0
      %3414 = vadd.xlane.f32.xlu0 %v3413
      %v3415 = vpop.xlane.xlu0 %3414
      %v3416 = vsel %vm1882, %v2906, 0.0
      %3417 = vadd.xlane.f32.xlu0 %v3416
      %v3418 = vpop.xlane.xlu0 %3417
      %v3419 = vrsqrt.pop %v3037
      %v3420 = vrsqrt.pop %v3040
      %v3421 = vrsqrt.pop %v3043
      %v3422 = vrsqrt.pop %v3046
      %v3423 = vrsqrt.pop %v3049
      %v3424 = vrsqrt.pop %v3052
      %v3425 = vrsqrt.pop %v3055
      %v3426 = vrsqrt.pop %v3058
      %v3427 = vrsqrt.pop %v3061
      %v3428 = vrsqrt.pop %v3064
      %v3429 = vrsqrt.pop %v3067
      %v3430 = vrsqrt.pop %v3070
      %v3431 = vrsqrt.pop %v3073
      %v3432 = vrsqrt.pop %v3076
      %v3433 = vrsqrt.pop %v3079
      %v3434 = vrsqrt.pop %v3082
      %v3435 = vrsqrt.pop %v3085
      %v3436 = vrsqrt.pop %v3088
      %v3437 = vrsqrt.pop %v3091
      %v3438 = vrsqrt.pop %v3094
      %v3439 = vrsqrt.pop %v3097
      %v3440 = vrsqrt.pop %v3100
      %v3441 = vrsqrt.pop %v3103
      %v3442 = vrsqrt.pop %v3106
      %v3443 = vrsqrt.pop %v3109
      %v3444 = vrsqrt.pop %v3112
      %v3445 = vrsqrt.pop %v3115
      %v3446 = vrsqrt.pop %v3118
      %v3447 = vrsqrt.pop %v3121
      %v3448 = vrsqrt.pop %v3124
      %v3449 = vrsqrt.pop %v3127
      %v3450 = vrsqrt.pop %v3130
      %v3451 = vrsqrt.pop %v3133
      %v3452 = vrsqrt.pop %v3136
      %v3453 = vrsqrt.pop %v3139
      %v3454 = vrsqrt.pop %v3142
      %v3455 = vrsqrt.pop %v3145
      %v3456 = vrsqrt.pop %v3148
      %v3457 = vrsqrt.pop %v3151
      %v3458 = vrsqrt.pop %v3154
      %v3459 = vrsqrt.pop %v3157
      %v3460 = vrsqrt.pop %v3160
      %v3461 = vrsqrt.pop %v3163
      %v3462 = vrsqrt.pop %v3166
      %v3463 = vrsqrt.pop %v3169
      %v3464 = vrsqrt.pop %v3172
      %v3465 = vrsqrt.pop %v3175
      %v3466 = vrsqrt.pop %v3178
      %v3467 = vrsqrt.pop %v3181
      %v3468 = vrsqrt.pop %v3184
      %v3469 = vrsqrt.pop %v3187
      %v3470 = vrsqrt.pop %v3190
      %v3471 = vrsqrt.pop %v3193
      %v3472 = vrsqrt.pop %v3196
      %v3473 = vrsqrt.pop %v3199
      %v3474 = vrsqrt.pop %v3202
      %v3475 = vrsqrt.pop %v3205
      %v3476 = vrsqrt.pop %v3208
      %v3477 = vrsqrt.pop %v3211
      %v3478 = vrsqrt.pop %v3214
      %v3479 = vrsqrt.pop %v3217
      %v3480 = vrsqrt.pop %v3220
      %v3481 = vrsqrt.pop %v3223
      %v3482 = vrsqrt.pop %v3226
      %v3483 = vrsqrt.pop %v3229
      %v3484 = vrsqrt.pop %v3232
      %v3485 = vrsqrt.pop %v3235
      %v3486 = vrsqrt.pop %v3238
      %v3487 = vrsqrt.pop %v3241
      %v3488 = vrsqrt.pop %v3244
      %v3489 = vrsqrt.pop %v3247
      %v3490 = vrsqrt.pop %v3250
      %v3491 = vrsqrt.pop %v3253
      %v3492 = vrsqrt.pop %v3256
      %v3493 = vrsqrt.pop %v3259
      %v3494 = vrsqrt.pop %v3262
      %v3495 = vrsqrt.pop %v3265
      %v3496 = vrsqrt.pop %v3268
      %v3497 = vrsqrt.pop %v3271
      %v3498 = vrsqrt.pop %v3274
      %v3499 = vrsqrt.pop %v3277
      %v3500 = vrsqrt.pop %v3280
      %v3501 = vrsqrt.pop %v3283
      %v3502 = vrsqrt.pop %v3286
      %v3503 = vrsqrt.pop %v3289
      %v3504 = vrsqrt.pop %v3292
      %v3505 = vrsqrt.pop %v3295
      %v3506 = vrsqrt.pop %v3298
      %v3507 = vrsqrt.pop %v3301
      %v3508 = vrsqrt.pop %v3304
      %v3509 = vrsqrt.pop %v3307
      %v3510 = vrsqrt.pop %v3310
      %v3511 = vrsqrt.pop %v3313
      %v3512 = vrsqrt.pop %v3316
      %v3513 = vrsqrt.pop %v3319
      %v3514 = vrsqrt.pop %v3322
      %v3515 = vrsqrt.pop %v3325
      %v3516 = vrsqrt.pop %v3328
      %v3517 = vrsqrt.pop %v3331
      %v3518 = vrsqrt.pop %v3334
      %v3519 = vrsqrt.pop %v3337
      %v3520 = vrsqrt.pop %v3340
      %v3521 = vrsqrt.pop %v3343
      %v3522 = vrsqrt.pop %v3346
      %v3523 = vrsqrt.pop %v3349
      %v3524 = vrsqrt.pop %v3352
      %v3525 = vrsqrt.pop %v3355
      %v3526 = vrsqrt.pop %v3358
      %v3527 = vrsqrt.pop %v3361
      %v3528 = vrsqrt.pop %v3364
      %v3529 = vrsqrt.pop %v3367
      %v3530 = vrsqrt.pop %v3370
      %v3531 = vrsqrt.pop %v3373
      %v3532 = vrsqrt.pop %v3376
      %v3533 = vrsqrt.pop %v3379
      %v3534 = vrsqrt.pop %v3382
      %v3535 = vrsqrt.pop %v3385
      %v3536 = vrsqrt.pop %v3388
      %v3537 = vrsqrt.pop %v3391
      %v3538 = vrsqrt.pop %v3394
      %v3539 = vrsqrt.pop %v3397
      %v3540 = vrsqrt.pop %v3400
      %v3541 = vrsqrt.pop %v3403
      %v3542 = vrsqrt.pop %v3406
      %v3543 = vrsqrt.pop %v3409
      %v3544 = vrsqrt.pop %v3412
      %v3545 = vrsqrt.pop %v3415
      %v3546 = vrsqrt.pop %v3418
      %v3547 = vmul.f32 %v1626, %v3419
      %v3548 = vmul.f32 %v1627, %v3420
      %v3549 = vmul.f32 %v1628, %v3421
      %v3550 = vmul.f32 %v1629, %v3422
      %v3551 = vmul.f32 %v1630, %v3423
      %v3552 = vmul.f32 %v1631, %v3424
      %v3553 = vmul.f32 %v1632, %v3425
      %v3554 = vmul.f32 %v1633, %v3426
      %v3555 = vmul.f32 %v1634, %v3427
      %v3556 = vmul.f32 %v1635, %v3428
      %v3557 = vmul.f32 %v1636, %v3429
      %v3558 = vmul.f32 %v1637, %v3430
      %v3559 = vmul.f32 %v1638, %v3431
      %v3560 = vmul.f32 %v1639, %v3432
      %v3561 = vmul.f32 %v1640, %v3433
      %v3562 = vmul.f32 %v1641, %v3434
      %v3563 = vmul.f32 %v1642, %v3435
      %v3564 = vmul.f32 %v1643, %v3436
      %v3565 = vmul.f32 %v1644, %v3437
      %v3566 = vmul.f32 %v1645, %v3438
      %v3567 = vmul.f32 %v1646, %v3439
      %v3568 = vmul.f32 %v1647, %v3440
      %v3569 = vmul.f32 %v1648, %v3441
      %v3570 = vmul.f32 %v1649, %v3442
      %v3571 = vmul.f32 %v1650, %v3443
      %v3572 = vmul.f32 %v1651, %v3444
      %v3573 = vmul.f32 %v1652, %v3445
      %v3574 = vmul.f32 %v1653, %v3446
      %v3575 = vmul.f32 %v1654, %v3447
      %v3576 = vmul.f32 %v1655, %v3448
      %v3577 = vmul.f32 %v1656, %v3449
      %v3578 = vmul.f32 %v1657, %v3450
      %v3579 = vmul.f32 %v1658, %v3451
      %v3580 = vmul.f32 %v1659, %v3452
      %v3581 = vmul.f32 %v1660, %v3453
      %v3582 = vmul.f32 %v1661, %v3454
      %v3583 = vmul.f32 %v1662, %v3455
      %v3584 = vmul.f32 %v1663, %v3456
      %v3585 = vmul.f32 %v1664, %v3457
      %v3586 = vmul.f32 %v1665, %v3458
      %v3587 = vmul.f32 %v1666, %v3459
      %v3588 = vmul.f32 %v1667, %v3460
      %v3589 = vmul.f32 %v1668, %v3461
      %v3590 = vmul.f32 %v1669, %v3462
      %v3591 = vmul.f32 %v1670, %v3463
      %v3592 = vmul.f32 %v1671, %v3464
      %v3593 = vmul.f32 %v1672, %v3465
      %v3594 = vmul.f32 %v1673, %v3466
      %v3595 = vmul.f32 %v1674, %v3467
      %v3596 = vmul.f32 %v1675, %v3468
      %v3597 = vmul.f32 %v1676, %v3469
      %v3598 = vmul.f32 %v1677, %v3470
      %v3599 = vmul.f32 %v1678, %v3471
      %v3600 = vmul.f32 %v1679, %v3472
      %v3601 = vmul.f32 %v1680, %v3473
      %v3602 = vmul.f32 %v1681, %v3474
      %v3603 = vmul.f32 %v1682, %v3475
      %v3604 = vmul.f32 %v1683, %v3476
      %v3605 = vmul.f32 %v1684, %v3477
      %v3606 = vmul.f32 %v1685, %v3478
      %v3607 = vmul.f32 %v1686, %v3479
      %v3608 = vmul.f32 %v1687, %v3480
      %v3609 = vmul.f32 %v1688, %v3481
      %v3610 = vmul.f32 %v1689, %v3482
      %v3611 = vmul.f32 %v1690, %v3483
      %v3612 = vmul.f32 %v1691, %v3484
      %v3613 = vmul.f32 %v1692, %v3485
      %v3614 = vmul.f32 %v1693, %v3486
      %v3615 = vmul.f32 %v1694, %v3487
      %v3616 = vmul.f32 %v1695, %v3488
      %v3617 = vmul.f32 %v1696, %v3489
      %v3618 = vmul.f32 %v1697, %v3490
      %v3619 = vmul.f32 %v1698, %v3491
      %v3620 = vmul.f32 %v1699, %v3492
      %v3621 = vmul.f32 %v1700, %v3493
      %v3622 = vmul.f32 %v1701, %v3494
      %v3623 = vmul.f32 %v1702, %v3495
      %v3624 = vmul.f32 %v1703, %v3496
      %v3625 = vmul.f32 %v1704, %v3497
      %v3626 = vmul.f32 %v1705, %v3498
      %v3627 = vmul.f32 %v1706, %v3499
      %v3628 = vmul.f32 %v1707, %v3500
      %v3629 = vmul.f32 %v1708, %v3501
      %v3630 = vmul.f32 %v1709, %v3502
      %v3631 = vmul.f32 %v1710, %v3503
      %v3632 = vmul.f32 %v1711, %v3504
      %v3633 = vmul.f32 %v1712, %v3505
      %v3634 = vmul.f32 %v1713, %v3506
      %v3635 = vmul.f32 %v1714, %v3507
      %v3636 = vmul.f32 %v1715, %v3508
      %v3637 = vmul.f32 %v1716, %v3509
      %v3638 = vmul.f32 %v1717, %v3510
      %v3639 = vmul.f32 %v1718, %v3511
      %v3640 = vmul.f32 %v1719, %v3512
      %v3641 = vmul.f32 %v1720, %v3513
      %v3642 = vmul.f32 %v1721, %v3514
      %v3643 = vmul.f32 %v1722, %v3515
      %v3644 = vmul.f32 %v1723, %v3516
      %v3645 = vmul.f32 %v1724, %v3517
      %v3646 = vmul.f32 %v1725, %v3518
      %v3647 = vmul.f32 %v1726, %v3519
      %v3648 = vmul.f32 %v1727, %v3520
      %v3649 = vmul.f32 %v1728, %v3521
      %v3650 = vmul.f32 %v1729, %v3522
      %v3651 = vmul.f32 %v1730, %v3523
      %v3652 = vmul.f32 %v1731, %v3524
      %v3653 = vmul.f32 %v1732, %v3525
      %v3654 = vmul.f32 %v1733, %v3526
      %v3655 = vmul.f32 %v1734, %v3527
      %v3656 = vmul.f32 %v1735, %v3528
      %v3657 = vmul.f32 %v1736, %v3529
      %v3658 = vmul.f32 %v1737, %v3530
      %v3659 = vmul.f32 %v1738, %v3531
      %v3660 = vmul.f32 %v1739, %v3532
      %v3661 = vmul.f32 %v1740, %v3533
      %v3662 = vmul.f32 %v1741, %v3534
      %v3663 = vmul.f32 %v1742, %v3535
      %v3664 = vmul.f32 %v1743, %v3536
      %v3665 = vmul.f32 %v1744, %v3537
      %v3666 = vmul.f32 %v1745, %v3538
      %v3667 = vmul.f32 %v1746, %v3539
      %v3668 = vmul.f32 %v1747, %v3540
      %v3669 = vmul.f32 %v1748, %v3541
      %v3670 = vmul.f32 %v1749, %v3542
      %v3671 = vmul.f32 %v1750, %v3543
      %v3672 = vmul.f32 %v1751, %v3544
      %v3673 = vmul.f32 %v1752, %v3545
      %v3674 = vmul.f32 %v1753, %v3546
      %3675 = vxpose.xlu0.b32.start [1/16] %v2395, 128
      %3676 = vxpose.xlu0.b32.cont [2/16] %v2396, 128
      %3677 = vxpose.xlu0.b32.cont [3/16] %v2397, 128
      %3678 = vxpose.xlu0.b32.cont [4/16] %v2398, 128
      %3679 = vxpose.xlu0.b32.cont [5/16] %v2399, 128
      %3680 = vxpose.xlu0.b32.cont [6/16] %v2400, 128
      %3681 = vxpose.xlu0.b32.cont [7/16] %v2401, 128
      %3682 = vxpose.xlu0.b32.cont [8/16] %v2402, 128
      %3683 = vxpose.xlu0.b32.cont [9/16] %v2403, 128
      %3684 = vxpose.xlu0.b32.cont [10/16] %v2404, 128
      %3685 = vxpose.xlu0.b32.cont [11/16] %v2405, 128
      %3686 = vxpose.xlu0.b32.cont [12/16] %v2406, 128
      %3687 = vxpose.xlu0.b32.cont [13/16] %v2407, 128
      %3688 = vxpose.xlu0.b32.cont [14/16] %v2408, 128
      %3689 = vxpose.xlu0.b32.cont [15/16] %v2409, 128
      %3690 = vxpose.xlu0.b32.end [16/16] %v2410, 128
      %v3691 = vpop.trf.xlu0
      %v3692 = vpop.trf.xlu0
      %v3693 = vpop.trf.xlu0
      %v3694 = vpop.trf.xlu0
      %v3695 = vpop.trf.xlu0
      %v3696 = vpop.trf.xlu0
      %v3697 = vpop.trf.xlu0
      %v3698 = vpop.trf.xlu0
      %v3699 = vpop.trf.xlu0
      %v3700 = vpop.trf.xlu0
      %v3701 = vpop.trf.xlu0
      %v3702 = vpop.trf.xlu0
      %v3703 = vpop.trf.xlu0
      %v3704 = vpop.trf.xlu0
      %v3705 = vpop.trf.xlu0
      %v3706 = vpop.trf.xlu0
      %3707 = vxpose.xlu0.b32.start [1/16] %v2411, 128
      %3708 = vxpose.xlu0.b32.cont [2/16] %v2412, 128
      %3709 = vxpose.xlu0.b32.cont [3/16] %v2413, 128
      %3710 = vxpose.xlu0.b32.cont [4/16] %v2414, 128
      %3711 = vxpose.xlu0.b32.cont [5/16] %v2415, 128
      %3712 = vxpose.xlu0.b32.cont [6/16] %v2416, 128
      %3713 = vxpose.xlu0.b32.cont [7/16] %v2417, 128
      %3714 = vxpose.xlu0.b32.cont [8/16] %v2418, 128
      %3715 = vxpose.xlu0.b32.cont [9/16] %v2419, 128
      %3716 = vxpose.xlu0.b32.cont [10/16] %v2420, 128
      %3717 = vxpose.xlu0.b32.cont [11/16] %v2421, 128
      %3718 = vxpose.xlu0.b32.cont [12/16] %v2422, 128
      %3719 = vxpose.xlu0.b32.cont [13/16] %v2423, 128
      %3720 = vxpose.xlu0.b32.cont [14/16] %v2424, 128
      %3721 = vxpose.xlu0.b32.cont [15/16] %v2425, 128
      %3722 = vxpose.xlu0.b32.end [16/16] %v2426, 128
      %v3723 = vpop.trf.xlu0
      %v3724 = vpop.trf.xlu0
      %v3725 = vpop.trf.xlu0
      %v3726 = vpop.trf.xlu0
      %v3727 = vpop.trf.xlu0
      %v3728 = vpop.trf.xlu0
      %v3729 = vpop.trf.xlu0
      %v3730 = vpop.trf.xlu0
      %v3731 = vpop.trf.xlu0
      %v3732 = vpop.trf.xlu0
      %v3733 = vpop.trf.xlu0
      %v3734 = vpop.trf.xlu0
      %v3735 = vpop.trf.xlu0
      %v3736 = vpop.trf.xlu0
      %v3737 = vpop.trf.xlu0
      %v3738 = vpop.trf.xlu0
      %3739 = vxpose.xlu0.b32.start [1/16] %v2427, 128
      %3740 = vxpose.xlu0.b32.cont [2/16] %v2428, 128
      %3741 = vxpose.xlu0.b32.cont [3/16] %v2429, 128
      %3742 = vxpose.xlu0.b32.cont [4/16] %v2430, 128
      %3743 = vxpose.xlu0.b32.cont [5/16] %v2431, 128
      %3744 = vxpose.xlu0.b32.cont [6/16] %v2432, 128
      %3745 = vxpose.xlu0.b32.cont [7/16] %v2433, 128
      %3746 = vxpose.xlu0.b32.cont [8/16] %v2434, 128
      %3747 = vxpose.xlu0.b32.cont [9/16] %v2435, 128
      %3748 = vxpose.xlu0.b32.cont [10/16] %v2436, 128
      %3749 = vxpose.xlu0.b32.cont [11/16] %v2437, 128
      %3750 = vxpose.xlu0.b32.cont [12/16] %v2438, 128
      %3751 = vxpose.xlu0.b32.cont [13/16] %v2439, 128
      %3752 = vxpose.xlu0.b32.cont [14/16] %v2440, 128
      %3753 = vxpose.xlu0.b32.cont [15/16] %v2441, 128
      %3754 = vxpose.xlu0.b32.end [16/16] %v2442, 128
      %v3755 = vpop.trf.xlu0
      %v3756 = vpop.trf.xlu0
      %v3757 = vpop.trf.xlu0
      %v3758 = vpop.trf.xlu0
      %v3759 = vpop.trf.xlu0
      %v3760 = vpop.trf.xlu0
      %v3761 = vpop.trf.xlu0
      %v3762 = vpop.trf.xlu0
      %v3763 = vpop.trf.xlu0
      %v3764 = vpop.trf.xlu0
      %v3765 = vpop.trf.xlu0
      %v3766 = vpop.trf.xlu0
      %v3767 = vpop.trf.xlu0
      %v3768 = vpop.trf.xlu0
      %v3769 = vpop.trf.xlu0
      %v3770 = vpop.trf.xlu0
      %3771 = vxpose.xlu0.b32.start [1/16] %v2443, 128
      %3772 = vxpose.xlu0.b32.cont [2/16] %v2444, 128
      %3773 = vxpose.xlu0.b32.cont [3/16] %v2445, 128
      %3774 = vxpose.xlu0.b32.cont [4/16] %v2446, 128
      %3775 = vxpose.xlu0.b32.cont [5/16] %v2447, 128
      %3776 = vxpose.xlu0.b32.cont [6/16] %v2448, 128
      %3777 = vxpose.xlu0.b32.cont [7/16] %v2449, 128
      %3778 = vxpose.xlu0.b32.cont [8/16] %v2450, 128
      %3779 = vxpose.xlu0.b32.cont [9/16] %v2451, 128
      %3780 = vxpose.xlu0.b32.cont [10/16] %v2452, 128
      %3781 = vxpose.xlu0.b32.cont [11/16] %v2453, 128
      %3782 = vxpose.xlu0.b32.cont [12/16] %v2454, 128
      %3783 = vxpose.xlu0.b32.cont [13/16] %v2455, 128
      %3784 = vxpose.xlu0.b32.cont [14/16] %v2456, 128
      %3785 = vxpose.xlu0.b32.cont [15/16] %v2457, 128
      %3786 = vxpose.xlu0.b32.end [16/16] %v2458, 128
      %v3787 = vpop.trf.xlu0
      %v3788 = vpop.trf.xlu0
      %v3789 = vpop.trf.xlu0
      %v3790 = vpop.trf.xlu0
      %v3791 = vpop.trf.xlu0
      %v3792 = vpop.trf.xlu0
      %v3793 = vpop.trf.xlu0
      %v3794 = vpop.trf.xlu0
      %v3795 = vpop.trf.xlu0
      %v3796 = vpop.trf.xlu0
      %v3797 = vpop.trf.xlu0
      %v3798 = vpop.trf.xlu0
      %v3799 = vpop.trf.xlu0
      %v3800 = vpop.trf.xlu0
      %v3801 = vpop.trf.xlu0
      %v3802 = vpop.trf.xlu0
      %3803 = vxpose.xlu0.b32.start [1/16] %v2459, 128
      %3804 = vxpose.xlu0.b32.cont [2/16] %v2460, 128
      %3805 = vxpose.xlu0.b32.cont [3/16] %v2461, 128
      %3806 = vxpose.xlu0.b32.cont [4/16] %v2462, 128
      %3807 = vxpose.xlu0.b32.cont [5/16] %v2463, 128
      %3808 = vxpose.xlu0.b32.cont [6/16] %v2464, 128
      %3809 = vxpose.xlu0.b32.cont [7/16] %v2465, 128
      %3810 = vxpose.xlu0.b32.cont [8/16] %v2466, 128
      %3811 = vxpose.xlu0.b32.cont [9/16] %v2467, 128
      %3812 = vxpose.xlu0.b32.cont [10/16] %v2468, 128
      %3813 = vxpose.xlu0.b32.cont [11/16] %v2469, 128
      %3814 = vxpose.xlu0.b32.cont [12/16] %v2470, 128
      %3815 = vxpose.xlu0.b32.cont [13/16] %v2471, 128
      %3816 = vxpose.xlu0.b32.cont [14/16] %v2472, 128
      %3817 = vxpose.xlu0.b32.cont [15/16] %v2473, 128
      %3818 = vxpose.xlu0.b32.end [16/16] %v2474, 128
      %v3819 = vpop.trf.xlu0
      %v3820 = vpop.trf.xlu0
      %v3821 = vpop.trf.xlu0
      %v3822 = vpop.trf.xlu0
      %v3823 = vpop.trf.xlu0
      %v3824 = vpop.trf.xlu0
      %v3825 = vpop.trf.xlu0
      %v3826 = vpop.trf.xlu0
      %v3827 = vpop.trf.xlu0
      %v3828 = vpop.trf.xlu0
      %v3829 = vpop.trf.xlu0
      %v3830 = vpop.trf.xlu0
      %v3831 = vpop.trf.xlu0
      %v3832 = vpop.trf.xlu0
      %v3833 = vpop.trf.xlu0
      %v3834 = vpop.trf.xlu0
      %3835 = vxpose.xlu0.b32.start [1/16] %v2475, 128
      %3836 = vxpose.xlu0.b32.cont [2/16] %v2476, 128
      %3837 = vxpose.xlu0.b32.cont [3/16] %v2477, 128
      %3838 = vxpose.xlu0.b32.cont [4/16] %v2478, 128
      %3839 = vxpose.xlu0.b32.cont [5/16] %v2479, 128
      %3840 = vxpose.xlu0.b32.cont [6/16] %v2480, 128
      %3841 = vxpose.xlu0.b32.cont [7/16] %v2481, 128
      %3842 = vxpose.xlu0.b32.cont [8/16] %v2482, 128
      %3843 = vxpose.xlu0.b32.cont [9/16] %v2483, 128
      %3844 = vxpose.xlu0.b32.cont [10/16] %v2484, 128
      %3845 = vxpose.xlu0.b32.cont [11/16] %v2485, 128
      %3846 = vxpose.xlu0.b32.cont [12/16] %v2486, 128
      %3847 = vxpose.xlu0.b32.cont [13/16] %v2487, 128
      %3848 = vxpose.xlu0.b32.cont [14/16] %v2488, 128
      %3849 = vxpose.xlu0.b32.cont [15/16] %v2489, 128
      %3850 = vxpose.xlu0.b32.end [16/16] %v2490, 128
      %v3851 = vpop.trf.xlu0
      %v3852 = vpop.trf.xlu0
      %v3853 = vpop.trf.xlu0
      %v3854 = vpop.trf.xlu0
      %v3855 = vpop.trf.xlu0
      %v3856 = vpop.trf.xlu0
      %v3857 = vpop.trf.xlu0
      %v3858 = vpop.trf.xlu0
      %v3859 = vpop.trf.xlu0
      %v3860 = vpop.trf.xlu0
      %v3861 = vpop.trf.xlu0
      %v3862 = vpop.trf.xlu0
      %v3863 = vpop.trf.xlu0
      %v3864 = vpop.trf.xlu0
      %v3865 = vpop.trf.xlu0
      %v3866 = vpop.trf.xlu0
      %3867 = vxpose.xlu0.b32.start [1/16] %v2491, 128
      %3868 = vxpose.xlu0.b32.cont [2/16] %v2492, 128
      %3869 = vxpose.xlu0.b32.cont [3/16] %v2493, 128
      %3870 = vxpose.xlu0.b32.cont [4/16] %v2494, 128
      %3871 = vxpose.xlu0.b32.cont [5/16] %v2495, 128
      %3872 = vxpose.xlu0.b32.cont [6/16] %v2496, 128
      %3873 = vxpose.xlu0.b32.cont [7/16] %v2497, 128
      %3874 = vxpose.xlu0.b32.cont [8/16] %v2498, 128
      %3875 = vxpose.xlu0.b32.cont [9/16] %v2499, 128
      %3876 = vxpose.xlu0.b32.cont [10/16] %v2500, 128
      %3877 = vxpose.xlu0.b32.cont [11/16] %v2501, 128
      %3878 = vxpose.xlu0.b32.cont [12/16] %v2502, 128
      %3879 = vxpose.xlu0.b32.cont [13/16] %v2503, 128
      %3880 = vxpose.xlu0.b32.cont [14/16] %v2504, 128
      %3881 = vxpose.xlu0.b32.cont [15/16] %v2505, 128
      %3882 = vxpose.xlu0.b32.end [16/16] %v2506, 128
      %v3883 = vpop.trf.xlu0
      %v3884 = vpop.trf.xlu0
      %v3885 = vpop.trf.xlu0
      %v3886 = vpop.trf.xlu0
      %v3887 = vpop.trf.xlu0
      %v3888 = vpop.trf.xlu0
      %v3889 = vpop.trf.xlu0
      %v3890 = vpop.trf.xlu0
      %v3891 = vpop.trf.xlu0
      %v3892 = vpop.trf.xlu0
      %v3893 = vpop.trf.xlu0
      %v3894 = vpop.trf.xlu0
      %v3895 = vpop.trf.xlu0
      %v3896 = vpop.trf.xlu0
      %v3897 = vpop.trf.xlu0
      %v3898 = vpop.trf.xlu0
      %3899 = vxpose.xlu0.b32.start [1/16] %v2507, 128
      %3900 = vxpose.xlu0.b32.cont [2/16] %v2508, 128
      %3901 = vxpose.xlu0.b32.cont [3/16] %v2509, 128
      %3902 = vxpose.xlu0.b32.cont [4/16] %v2510, 128
      %3903 = vxpose.xlu0.b32.cont [5/16] %v2511, 128
      %3904 = vxpose.xlu0.b32.cont [6/16] %v2512, 128
      %3905 = vxpose.xlu0.b32.cont [7/16] %v2513, 128
      %3906 = vxpose.xlu0.b32.cont [8/16] %v2514, 128
      %3907 = vxpose.xlu0.b32.cont [9/16] %v2515, 128
      %3908 = vxpose.xlu0.b32.cont [10/16] %v2516, 128
      %3909 = vxpose.xlu0.b32.cont [11/16] %v2517, 128
      %3910 = vxpose.xlu0.b32.cont [12/16] %v2518, 128
      %3911 = vxpose.xlu0.b32.cont [13/16] %v2519, 128
      %3912 = vxpose.xlu0.b32.cont [14/16] %v2520, 128
      %3913 = vxpose.xlu0.b32.cont [15/16] %v2521, 128
      %3914 = vxpose.xlu0.b32.end [16/16] %v2522, 128
      %v3915 = vpop.trf.xlu0
      %v3916 = vpop.trf.xlu0
      %v3917 = vpop.trf.xlu0
      %v3918 = vpop.trf.xlu0
      %v3919 = vpop.trf.xlu0
      %v3920 = vpop.trf.xlu0
      %v3921 = vpop.trf.xlu0
      %v3922 = vpop.trf.xlu0
      %v3923 = vpop.trf.xlu0
      %v3924 = vpop.trf.xlu0
      %v3925 = vpop.trf.xlu0
      %v3926 = vpop.trf.xlu0
      %v3927 = vpop.trf.xlu0
      %v3928 = vpop.trf.xlu0
      %v3929 = vpop.trf.xlu0
      %v3930 = vpop.trf.xlu0
      %3931 = vmatprep.subr.mxu0 0.0
      %3932 = vmatpush1.msra.mxu0 %v734
      %3933 = vmatprep.subr.mxu0 0.0
      %3934 = vmatpush1.msra.mxu0 %v740
      %3935 = vmatprep.subr.mxu0 0.0
      %3936 = vmatpush1.msra.mxu0 %v746
      %3937 = vmatprep.subr.mxu0 0.0
      %3938 = vmatpush1.msra.mxu0 %v752
      %3939 = vmatprep.subr.mxu0 0.0
      %3940 = vmatpush1.msra.mxu0 %v758
      %3941 = vmatprep.subr.mxu0 0.0
      %3942 = vmatpush1.msra.mxu0 %v764
      %3943 = vmatprep.subr.mxu0 0.0
      %3944 = vmatpush1.msra.mxu0 %v770
      %3945 = vmatprep.subr.mxu0 0.0
      %3946 = vmatpush1.msra.mxu0 %v776
      %3947 = vmatprep.subr.mxu0 0.0
      %3948 = vmatpush1.msra.mxu0 %v782
      %3949 = vmatprep.subr.mxu0 0.0
      %3950 = vmatpush1.msra.mxu0 %v788
      %3951 = vmatprep.subr.mxu0 0.0
      %3952 = vmatpush1.msra.mxu0 %v794
      %3953 = vmatprep.subr.mxu0 0.0
      %3954 = vmatpush1.msra.mxu0 %v800
      %3955 = vmatprep.subr.mxu0 0.0
      %3956 = vmatpush1.msra.mxu0 %v806
      %3957 = vmatprep.subr.mxu0 0.0
      %3958 = vmatpush1.msra.mxu0 %v812
      %3959 = vmatprep.subr.mxu0 0.0
      %3960 = vmatpush1.msra.mxu0 %v818
      %3961 = vmatprep.subr.mxu0 0.0
      %3962 = vmatpush1.msra.mxu0 %v824
      %3963 = vmatprep.subr.mxu0 0.0
      %3964 = vmatpush1.msra.mxu0 %v830
      %3965 = vmatprep.subr.mxu0 0.0
      %3966 = vmatpush1.msra.mxu0 %v836
      %3967 = vmatprep.subr.mxu0 0.0
      %3968 = vmatpush1.msra.mxu0 %v842
      %3969 = vmatprep.subr.mxu0 0.0
      %3970 = vmatpush1.msra.mxu0 %v848
      %3971 = vmatprep.subr.mxu0 0.0
      %3972 = vmatpush1.msra.mxu0 %v854
      %3973 = vmatprep.subr.mxu0 0.0
      %3974 = vmatpush1.msra.mxu0 %v860
      %3975 = vmatprep.subr.mxu0 0.0
      %3976 = vmatpush1.msra.mxu0 %v866
      %3977 = vmatprep.subr.mxu0 0.0
      %3978 = vmatpush1.msra.mxu0 %v872
      %3979 = vmatprep.subr.mxu0 0.0
      %3980 = vmatpush1.msra.mxu0 %v878
      %3981 = vmatprep.subr.mxu0 0.0
      %3982 = vmatpush1.msra.mxu0 %v884
      %3983 = vmatprep.subr.mxu0 0.0
      %3984 = vmatpush1.msra.mxu0 %v890
      %3985 = vmatprep.subr.mxu0 0.0
      %3986 = vmatpush1.msra.mxu0 %v896
      %3987 = vmatprep.subr.mxu0 0.0
      %3988 = vmatpush1.msra.mxu0 %v902
      %3989 = vmatprep.subr.mxu0 0.0
      %3990 = vmatpush1.msra.mxu0 %v908
      %3991 = vmatprep.subr.mxu0 0.0
      %3992 = vmatpush1.msra.mxu0 %v914
      %3993 = vmatprep.subr.mxu0 0.0
      %3994 = vmatpush1.msra.mxu0 %v920
      %3995 = vmatprep.mubr.f32.mxu0 %v3723
      %3996 = vmatmul.mubr.f32.gmra.mrb[0].mxu0 %v3691
      %v3997 = vpop.f32.mrb[0].mxu0
      %v3998 = vadd.f32 0.0, %v3997
      %v3999 = vpop.f32.mrb[0].mxu0
      %4000 = vmatprep.mubr.f32.mxu0 %v3724
      %4001 = vmatmul.mubr.f32.gmra.mrb[0].mxu0 %v3692
      %v4002 = vpop.f32.mrb[0].mxu0
      %v4003 = vadd.f32 0.0, %v4002
      %v4004 = vpop.f32.mrb[0].mxu0
      %4005 = vmatprep.mubr.f32.mxu0 %v3725
      %4006 = vmatmul.mubr.f32.gmra.mrb[0].mxu0 %v3693
      %v4007 = vpop.f32.mrb[0].mxu0
      %v4008 = vadd.f32 0.0, %v4007
      %v4009 = vpop.f32.mrb[0].mxu0
      %4010 = vmatprep.mubr.f32.mxu0 %v3726
      %4011 = vmatmul.mubr.f32.gmra.mrb[0].mxu0 %v3694
      %v4012 = vpop.f32.mrb[0].mxu0
      %v4013 = vadd.f32 0.0, %v4012
      %v4014 = vpop.f32.mrb[0].mxu0
      %4015 = vmatprep.mubr.f32.mxu0 %v3727
      %4016 = vmatmul.mubr.f32.gmra.mrb[0].mxu0 %v3695
      %v4017 = vpop.f32.mrb[0].mxu0
      %v4018 = vadd.f32 0.0, %v4017
      %v4019 = vpop.f32.mrb[0].mxu0
      %4020 = vmatprep.mubr.f32.mxu0 %v3728
      %4021 = vmatmul.mubr.f32.gmra.mrb[0].mxu0 %v3696
      %v4022 = vpop.f32.mrb[0].mxu0
      %v4023 = vadd.f32 0.0, %v4022
      %v4024 = vpop.f32.mrb[0].mxu0
      %4025 = vmatprep.mubr.f32.mxu0 %v3729
      %4026 = vmatmul.mubr.f32.gmra.mrb[0].mxu0 %v3697
      %v4027 = vpop.f32.mrb[0].mxu0
      %v4028 = vadd.f32 0.0, %v4027
      %v4029 = vpop.f32.mrb[0].mxu0
      %4030 = vmatprep.mubr.f32.mxu0 %v3730
      %4031 = vmatmul.mubr.f32.gmra.mrb[0].mxu0 %v3698
      %v4032 = vpop.f32.mrb[0].mxu0
      %v4033 = vadd.f32 0.0, %v4032
      %v4034 = vpop.f32.mrb[0].mxu0
      %4035 = vdwg.mxu0
      %4036 = vmatprep.subr.mxu0 0.0
      %4037 = vmatpush1.msra.mxu0 %v926
      %4038 = vmatprep.subr.mxu0 0.0
      %4039 = vmatpush1.msra.mxu0 %v932
      %4040 = vmatprep.subr.mxu0 0.0
      %4041 = vmatpush1.msra.mxu0 %v938
      %4042 = vmatprep.subr.mxu0 0.0
      %4043 = vmatpush1.msra.mxu0 %v944
      %4044 = vmatprep.subr.mxu0 0.0
      %4045 = vmatpush1.msra.mxu0 %v950
      %4046 = vmatprep.subr.mxu0 0.0
      %4047 = vmatpush1.msra.mxu0 %v956
      %4048 = vmatprep.subr.mxu0 0.0
      %4049 = vmatpush1.msra.mxu0 %v962
      %4050 = vmatprep.subr.mxu0 0.0
      %4051 = vmatpush1.msra.mxu0 %v968
      %4052 = vmatprep.subr.mxu0 0.0
      %4053 = vmatpush1.msra.mxu0 %v974
      %4054 = vmatprep.subr.mxu0 0.0
      %4055 = vmatpush1.msra.mxu0 %v980
      %4056 = vmatprep.subr.mxu0 0.0
      %4057 = vmatpush1.msra.mxu0 %v986
      %4058 = vmatprep.subr.mxu0 0.0
      %4059 = vmatpush1.msra.mxu0 %v992
      %4060 = vmatprep.subr.mxu0 0.0
      %4061 = vmatpush1.msra.mxu0 %v998
      %4062 = vmatprep.subr.mxu0 0.0
      %4063 = vmatpush1.msra.mxu0 %v1004
      %4064 = vmatprep.subr.mxu0 0.0
      %4065 = vmatpush1.msra.mxu0 %v1010
      %4066 = vmatprep.subr.mxu0 0.0
      %4067 = vmatpush1.msra.mxu0 %v1016
      %4068 = vmatprep.subr.mxu0 0.0
      %4069 = vmatpush1.msra.mxu0 %v1022
      %4070 = vmatprep.subr.mxu0 0.0
      %4071 = vmatpush1.msra.mxu0 %v1028
      %4072 = vmatprep.subr.mxu0 0.0
      %4073 = vmatpush1.msra.mxu0 %v1034
      %4074 = vmatprep.subr.mxu0 0.0
      %4075 = vmatpush1.msra.mxu0 %v1040
      %4076 = vmatprep.subr.mxu0 0.0
      %4077 = vmatpush1.msra.mxu0 %v1046
      %4078 = vmatprep.subr.mxu0 0.0
      %4079 = vmatpush1.msra.mxu0 %v1052
      %4080 = vmatprep.subr.mxu0 0.0
      %4081 = vmatpush1.msra.mxu0 %v1058
      %4082 = vmatprep.subr.mxu0 0.0
      %4083 = vmatpush1.msra.mxu0 %v1064
      %4084 = vmatprep.subr.mxu0 0.0
      %4085 = vmatpush1.msra.mxu0 %v1070
      %4086 = vmatprep.subr.mxu0 0.0
      %4087 = vmatpush1.msra.mxu0 %v1076
      %4088 = vmatprep.subr.mxu0 0.0
      %4089 = vmatpush1.msra.mxu0 %v1082
      %4090 = vmatprep.subr.mxu0 0.0
      %4091 = vmatpush1.msra.mxu0 %v1088
      %4092 = vmatprep.subr.mxu0 0.0
      %4093 = vmatpush1.msra.mxu0 %v1094
      %4094 = vmatprep.subr.mxu0 0.0
      %4095 = vmatpush1.msra.mxu0 %v1100
      %4096 = vmatprep.subr.mxu0 0.0
      %4097 = vmatpush1.msra.mxu0 %v1106
      %4098 = vmatprep.subr.mxu0 0.0
      %4099 = vmatpush1.msra.mxu0 %v1112
      %4100 = vmatprep.mubr.f32.mxu0 %v3787
      %4101 = vmatmul.mubr.f32.gmra.mrb[0].mxu0 %v3755
      %v4102 = vpop.f32.mrb[0].mxu0
      %v4103 = vadd.f32 %v3998, %v4102
      %v4104 = vpop.f32.mrb[0].mxu0
      %4105 = vmatprep.mubr.f32.mxu0 %v3788
      %4106 = vmatmul.mubr.f32.gmra.mrb[0].mxu0 %v3756
      %v4107 = vpop.f32.mrb[0].mxu0
      %v4108 = vadd.f32 %v4003, %v4107
      %v4109 = vpop.f32.mrb[0].mxu0
      %4110 = vmatprep.mubr.f32.mxu0 %v3789
      %4111 = vmatmul.mubr.f32.gmra.mrb[0].mxu0 %v3757
      %v4112 = vpop.f32.mrb[0].mxu0
      %v4113 = vadd.f32 %v4008, %v4112
      %v4114 = vpop.f32.mrb[0].mxu0
      %4115 = vmatprep.mubr.f32.mxu0 %v3790
      %4116 = vmatmul.mubr.f32.gmra.mrb[0].mxu0 %v3758
      %v4117 = vpop.f32.mrb[0].mxu0
      %v4118 = vadd.f32 %v4013, %v4117
      %v4119 = vpop.f32.mrb[0].mxu0
      %4120 = vmatprep.mubr.f32.mxu0 %v3791
      %4121 = vmatmul.mubr.f32.gmra.mrb[0].mxu0 %v3759
      %v4122 = vpop.f32.mrb[0].mxu0
      %v4123 = vadd.f32 %v4018, %v4122
      %v4124 = vpop.f32.mrb[0].mxu0
      %4125 = vmatprep.mubr.f32.mxu0 %v3792
      %4126 = vmatmul.mubr.f32.gmra.mrb[0].mxu0 %v3760
      %v4127 = vpop.f32.mrb[0].mxu0
      %v4128 = vadd.f32 %v4023, %v4127
      %v4129 = vpop.f32.mrb[0].mxu0
      %4130 = vmatprep.mubr.f32.mxu0 %v3793
      %4131 = vmatmul.mubr.f32.gmra.mrb[0].mxu0 %v3761
      %v4132 = vpop.f32.mrb[0].mxu0
      %v4133 = vadd.f32 %v4028, %v4132
      %v4134 = vpop.f32.mrb[0].mxu0
      %4135 = vmatprep.mubr.f32.mxu0 %v3794
      %4136 = vmatmul.mubr.f32.gmra.mrb[0].mxu0 %v3762
      %v4137 = vpop.f32.mrb[0].mxu0
      %v4138 = vadd.f32 %v4033, %v4137
      %v4139 = vpop.f32.mrb[0].mxu0
      %4140 = vdwg.mxu0
      %4141 = vmatprep.subr.mxu0 0.0
      %4142 = vmatpush1.msra.mxu0 %v1118
      %4143 = vmatprep.subr.mxu0 0.0
      %4144 = vmatpush1.msra.mxu0 %v1124
      %4145 = vmatprep.subr.mxu0 0.0
      %4146 = vmatpush1.msra.mxu0 %v1130
      %4147 = vmatprep.subr.mxu0 0.0
      %4148 = vmatpush1.msra.mxu0 %v1136
      %4149 = vmatprep.subr.mxu0 0.0
      %4150 = vmatpush1.msra.mxu0 %v1142
      %4151 = vmatprep.subr.mxu0 0.0
      %4152 = vmatpush1.msra.mxu0 %v1148
      %4153 = vmatprep.subr.mxu0 0.0
      %4154 = vmatpush1.msra.mxu0 %v1154
      %4155 = vmatprep.subr.mxu0 0.0
      %4156 = vmatpush1.msra.mxu0 %v1160
      %4157 = vmatprep.subr.mxu0 0.0
      %4158 = vmatpush1.msra.mxu0 %v1166
      %4159 = vmatprep.subr.mxu0 0.0
      %4160 = vmatpush1.msra.mxu0 %v1172
      %4161 = vmatprep.subr.mxu0 0.0
      %4162 = vmatpush1.msra.mxu0 %v1178
      %4163 = vmatprep.subr.mxu0 0.0
      %4164 = vmatpush1.msra.mxu0 %v1184
      %4165 = vmatprep.subr.mxu0 0.0
      %4166 = vmatpush1.msra.mxu0 %v1190
      %4167 = vmatprep.subr.mxu0 0.0
      %4168 = vmatpush1.msra.mxu0 %v1196
      %4169 = vmatprep.subr.mxu0 0.0
      %4170 = vmatpush1.msra.mxu0 %v1202
      %4171 = vmatprep.subr.mxu0 0.0
      %4172 = vmatpush1.msra.mxu0 %v1208
      %4173 = vmatprep.subr.mxu0 0.0
      %4174 = vmatpush1.msra.mxu0 %v1214
      %4175 = vmatprep.subr.mxu0 0.0
      %4176 = vmatpush1.msra.mxu0 %v1220
      %4177 = vmatprep.subr.mxu0 0.0
      %4178 = vmatpush1.msra.mxu0 %v1226
      %4179 = vmatprep.subr.mxu0 0.0
      %4180 = vmatpush1.msra.mxu0 %v1232
      %4181 = vmatprep.subr.mxu0 0.0
      %4182 = vmatpush1.msra.mxu0 %v1238
      %4183 = vmatprep.subr.mxu0 0.0
      %4184 = vmatpush1.msra.mxu0 %v1244
      %4185 = vmatprep.subr.mxu0 0.0
      %4186 = vmatpush1.msra.mxu0 %v1250
      %4187 = vmatprep.subr.mxu0 0.0
      %4188 = vmatpush1.msra.mxu0 %v1256
      %4189 = vmatprep.subr.mxu0 0.0
      %4190 = vmatpush1.msra.mxu0 %v1262
      %4191 = vmatprep.subr.mxu0 0.0
      %4192 = vmatpush1.msra.mxu0 %v1268
      %4193 = vmatprep.subr.mxu0 0.0
      %4194 = vmatpush1.msra.mxu0 %v1274
      %4195 = vmatprep.subr.mxu0 0.0
      %4196 = vmatpush1.msra.mxu0 %v1280
      %4197 = vmatprep.subr.mxu0 0.0
      %4198 = vmatpush1.msra.mxu0 %v1286
      %4199 = vmatprep.subr.mxu0 0.0
      %4200 = vmatpush1.msra.mxu0 %v1292
      %4201 = vmatprep.subr.mxu0 0.0
      %4202 = vmatpush1.msra.mxu0 %v1298
      %4203 = vmatprep.subr.mxu0 0.0
      %4204 = vmatpush1.msra.mxu0 %v1304
      %4205 = vmatprep.mubr.f32.mxu0 %v3851
      %4206 = vmatmul.mubr.f32.gmra.mrb[0].mxu0 %v3819
      %v4207 = vpop.f32.mrb[0].mxu0
      %v4208 = vadd.f32 %v4103, %v4207
      %v4209 = vpop.f32.mrb[0].mxu0
      %4210 = vmatprep.mubr.f32.mxu0 %v3852
      %4211 = vmatmul.mubr.f32.gmra.mrb[0].mxu0 %v3820
      %v4212 = vpop.f32.mrb[0].mxu0
      %v4213 = vadd.f32 %v4108, %v4212
      %v4214 = vpop.f32.mrb[0].mxu0
      %4215 = vmatprep.mubr.f32.mxu0 %v3853
      %4216 = vmatmul.mubr.f32.gmra.mrb[0].mxu0 %v3821
      %v4217 = vpop.f32.mrb[0].mxu0
      %v4218 = vadd.f32 %v4113, %v4217
      %v4219 = vpop.f32.mrb[0].mxu0
      %4220 = vmatprep.mubr.f32.mxu0 %v3854
      %4221 = vmatmul.mubr.f32.gmra.mrb[0].mxu0 %v3822
      %v4222 = vpop.f32.mrb[0].mxu0
      %v4223 = vadd.f32 %v4118, %v4222
      %v4224 = vpop.f32.mrb[0].mxu0
      %4225 = vmatprep.mubr.f32.mxu0 %v3855
      %4226 = vmatmul.mubr.f32.gmra.mrb[0].mxu0 %v3823
      %v4227 = vpop.f32.mrb[0].mxu0
      %v4228 = vadd.f32 %v4123, %v4227
      %v4229 = vpop.f32.mrb[0].mxu0
      %4230 = vmatprep.mubr.f32.mxu0 %v3856
      %4231 = vmatmul.mubr.f32.gmra.mrb[0].mxu0 %v3824
      %v4232 = vpop.f32.mrb[0].mxu0
      %v4233 = vadd.f32 %v4128, %v4232
      %v4234 = vpop.f32.mrb[0].mxu0
      %4235 = vmatprep.mubr.f32.mxu0 %v3857
      %4236 = vmatmul.mubr.f32.gmra.mrb[0].mxu0 %v3825
      %v4237 = vpop.f32.mrb[0].mxu0
      %v4238 = vadd.f32 %v4133, %v4237
      %v4239 = vpop.f32.mrb[0].mxu0
      %4240 = vmatprep.mubr.f32.mxu0 %v3858
      %4241 = vmatmul.mubr.f32.gmra.mrb[0].mxu0 %v3826
      %v4242 = vpop.f32.mrb[0].mxu0
      %v4243 = vadd.f32 %v4138, %v4242
      %v4244 = vpop.f32.mrb[0].mxu0
      %4245 = vdwg.mxu0
      %4246 = vmatprep.subr.mxu0 0.0
      %4247 = vmatpush1.msra.mxu0 %v1310
      %4248 = vmatprep.subr.mxu0 0.0
      %4249 = vmatpush1.msra.mxu0 %v1316
      %4250 = vmatprep.subr.mxu0 0.0
      %4251 = vmatpush1.msra.mxu0 %v1322
      %4252 = vmatprep.subr.mxu0 0.0
      %4253 = vmatpush1.msra.mxu0 %v1328
      %4254 = vmatprep.subr.mxu0 0.0
      %4255 = vmatpush1.msra.mxu0 %v1334
      %4256 = vmatprep.subr.mxu0 0.0
      %4257 = vmatpush1.msra.mxu0 %v1340
      %4258 = vmatprep.subr.mxu0 0.0
      %4259 = vmatpush1.msra.mxu0 %v1346
      %4260 = vmatprep.subr.mxu0 0.0
      %4261 = vmatpush1.msra.mxu0 %v1352
      %4262 = vmatprep.subr.mxu0 0.0
      %4263 = vmatpush1.msra.mxu0 %v1358
      %4264 = vmatprep.subr.mxu0 0.0
      %4265 = vmatpush1.msra.mxu0 %v1364
      %4266 = vmatprep.subr.mxu0 0.0
      %4267 = vmatpush1.msra.mxu0 %v1370
      %4268 = vmatprep.subr.mxu0 0.0
      %4269 = vmatpush1.msra.mxu0 %v1376
      %4270 = vmatprep.subr.mxu0 0.0
      %4271 = vmatpush1.msra.mxu0 %v1382
      %4272 = vmatprep.subr.mxu0 0.0
      %4273 = vmatpush1.msra.mxu0 %v1388
      %4274 = vmatprep.subr.mxu0 0.0
      %4275 = vmatpush1.msra.mxu0 %v1394
      %4276 = vmatprep.subr.mxu0 0.0
      %4277 = vmatpush1.msra.mxu0 %v1400
      %4278 = vmatprep.subr.mxu0 0.0
      %4279 = vmatpush1.msra.mxu0 %v1406
      %4280 = vmatprep.subr.mxu0 0.0
      %4281 = vmatpush1.msra.mxu0 %v1412
      %4282 = vmatprep.subr.mxu0 0.0
      %4283 = vmatpush1.msra.mxu0 %v1418
      %4284 = vmatprep.subr.mxu0 0.0
      %4285 = vmatpush1.msra.mxu0 %v1424
      %4286 = vmatprep.subr.mxu0 0.0
      %4287 = vmatpush1.msra.mxu0 %v1430
      %4288 = vmatprep.subr.mxu0 0.0
      %4289 = vmatpush1.msra.mxu0 %v1436
      %4290 = vmatprep.subr.mxu0 0.0
      %4291 = vmatpush1.msra.mxu0 %v1442
      %4292 = vmatprep.subr.mxu0 0.0
      %4293 = vmatpush1.msra.mxu0 %v1448
      %4294 = vmatprep.subr.mxu0 0.0
      %4295 = vmatpush1.msra.mxu0 %v1454
      %4296 = vmatprep.subr.mxu0 0.0
      %4297 = vmatpush1.msra.mxu0 %v1460
      %4298 = vmatprep.subr.mxu0 0.0
      %4299 = vmatpush1.msra.mxu0 %v1466
      %4300 = vmatprep.subr.mxu0 0.0
      %4301 = vmatpush1.msra.mxu0 %v1472
      %4302 = vmatprep.subr.mxu0 0.0
      %4303 = vmatpush1.msra.mxu0 %v1478
      %4304 = vmatprep.subr.mxu0 0.0
      %4305 = vmatpush1.msra.mxu0 %v1484
      %4306 = vmatprep.subr.mxu0 0.0
      %4307 = vmatpush1.msra.mxu0 %v1490
      %4308 = vmatprep.subr.mxu0 0.0
      %4309 = vmatpush1.msra.mxu0 %v1496
      %4310 = vmatprep.mubr.f32.mxu0 %v3915
      %4311 = vmatmul.mubr.f32.gmra.mrb[0].mxu0 %v3883
      %v4312 = vpop.f32.mrb[0].mxu0
      %v4313 = vadd.f32 %v4208, %v4312
      %v4314 = vpop.f32.mrb[0].mxu0
      %4315 = vmatprep.mubr.f32.mxu0 %v3916
      %4316 = vmatmul.mubr.f32.gmra.mrb[0].mxu0 %v3884
      %v4317 = vpop.f32.mrb[0].mxu0
      %v4318 = vadd.f32 %v4213, %v4317
      %v4319 = vpop.f32.mrb[0].mxu0
      %4320 = vmatprep.mubr.f32.mxu0 %v3917
      %4321 = vmatmul.mubr.f32.gmra.mrb[0].mxu0 %v3885
      %v4322 = vpop.f32.mrb[0].mxu0
      %v4323 = vadd.f32 %v4218, %v4322
      %v4324 = vpop.f32.mrb[0].mxu0
      %4325 = vmatprep.mubr.f32.mxu0 %v3918
      %4326 = vmatmul.mubr.f32.gmra.mrb[0].mxu0 %v3886
      %v4327 = vpop.f32.mrb[0].mxu0
      %v4328 = vadd.f32 %v4223, %v4327
      %v4329 = vpop.f32.mrb[0].mxu0
      %4330 = vmatprep.mubr.f32.mxu0 %v3919
      %4331 = vmatmul.mubr.f32.gmra.mrb[0].mxu0 %v3887
      %v4332 = vpop.f32.mrb[0].mxu0
      %v4333 = vadd.f32 %v4228, %v4332
      %v4334 = vpop.f32.mrb[0].mxu0
      %4335 = vmatprep.mubr.f32.mxu0 %v3920
      %4336 = vmatmul.mubr.f32.gmra.mrb[0].mxu0 %v3888
      %v4337 = vpop.f32.mrb[0].mxu0
      %v4338 = vadd.f32 %v4233, %v4337
      %v4339 = vpop.f32.mrb[0].mxu0
      %4340 = vmatprep.mubr.f32.mxu0 %v3921
      %4341 = vmatmul.mubr.f32.gmra.mrb[0].mxu0 %v3889
      %v4342 = vpop.f32.mrb[0].mxu0
      %v4343 = vadd.f32 %v4238, %v4342
      %v4344 = vpop.f32.mrb[0].mxu0
      %4345 = vmatprep.mubr.f32.mxu0 %v3922
      %4346 = vmatmul.mubr.f32.gmra.mrb[0].mxu0 %v3890
      %v4347 = vpop.f32.mrb[0].mxu0
      %v4348 = vadd.f32 %v4243, %v4347
      %v4349 = vpop.f32.mrb[0].mxu0
      %4350 = vdwg.mxu0
      %v4351 = vsel %vm1882, %v2395, 0.0
      %v4352 = vsel %vm1882, %v2396, 0.0
      %v4353 = vadd.f32 %v4351, %v4352
      %v4354 = vsel %vm1882, %v2397, 0.0
      %v4355 = vadd.f32 %v4353, %v4354
      %v4356 = vsel %vm1882, %v2398, 0.0
      %v4357 = vadd.f32 %v4355, %v4356
      %v4358 = vsel %vm1882, %v2399, 0.0
      %v4359 = vadd.f32 %v4357, %v4358
      %v4360 = vsel %vm1882, %v2400, 0.0
      %v4361 = vadd.f32 %v4359, %v4360
      %v4362 = vsel %vm1882, %v2401, 0.0
      %v4363 = vadd.f32 %v4361, %v4362
      %v4364 = vsel %vm1882, %v2402, 0.0
      %v4365 = vadd.f32 %v4363, %v4364
      %v4366 = vsel %vm1882, %v2403, 0.0
      %v4367 = vadd.f32 %v4365, %v4366
      %v4368 = vsel %vm1882, %v2404, 0.0
      %v4369 = vadd.f32 %v4367, %v4368
      %v4370 = vsel %vm1882, %v2405, 0.0
      %v4371 = vadd.f32 %v4369, %v4370
      %v4372 = vsel %vm1882, %v2406, 0.0
      %v4373 = vadd.f32 %v4371, %v4372
      %v4374 = vsel %vm1882, %v2407, 0.0
      %v4375 = vadd.f32 %v4373, %v4374
      %v4376 = vsel %vm1882, %v2408, 0.0
      %v4377 = vadd.f32 %v4375, %v4376
      %v4378 = vsel %vm1882, %v2409, 0.0
      %v4379 = vadd.f32 %v4377, %v4378
      %v4380 = vsel %vm1882, %v2410, 0.0
      %v4381 = vadd.f32 %v4379, %v4380
      %v4382 = vsel %vm1882, %v2411, 0.0
      %v4383 = vadd.f32 %v4381, %v4382
      %v4384 = vsel %vm1882, %v2412, 0.0
      %v4385 = vadd.f32 %v4383, %v4384
      %v4386 = vsel %vm1882, %v2413, 0.0
      %v4387 = vadd.f32 %v4385, %v4386
      %v4388 = vsel %vm1882, %v2414, 0.0
      %v4389 = vadd.f32 %v4387, %v4388
      %v4390 = vsel %vm1882, %v2415, 0.0
      %v4391 = vadd.f32 %v4389, %v4390
      %v4392 = vsel %vm1882, %v2416, 0.0
      %v4393 = vadd.f32 %v4391, %v4392
      %v4394 = vsel %vm1882, %v2417, 0.0
      %v4395 = vadd.f32 %v4393, %v4394
      %v4396 = vsel %vm1882, %v2418, 0.0
      %v4397 = vadd.f32 %v4395, %v4396
      %v4398 = vsel %vm1882, %v2419, 0.0
      %v4399 = vadd.f32 %v4397, %v4398
      %v4400 = vsel %vm1882, %v2420, 0.0
      %v4401 = vadd.f32 %v4399, %v4400
      %v4402 = vsel %vm1882, %v2421, 0.0
      %v4403 = vadd.f32 %v4401, %v4402
      %v4404 = vsel %vm1882, %v2422, 0.0
      %v4405 = vadd.f32 %v4403, %v4404
      %v4406 = vsel %vm1882, %v2423, 0.0
      %v4407 = vadd.f32 %v4405, %v4406
      %v4408 = vsel %vm1882, %v2424, 0.0
      %v4409 = vadd.f32 %v4407, %v4408
      %v4410 = vsel %vm1882, %v2425, 0.0
      %v4411 = vadd.f32 %v4409, %v4410
      %v4412 = vsel %vm1882, %v2426, 0.0
      %v4413 = vadd.f32 %v4411, %v4412
      %v4414 = vsel %vm1882, %v2427, 0.0
      %v4415 = vadd.f32 %v4413, %v4414
      %v4416 = vsel %vm1882, %v2428, 0.0
      %v4417 = vadd.f32 %v4415, %v4416
      %v4418 = vsel %vm1882, %v2429, 0.0
      %v4419 = vadd.f32 %v4417, %v4418
      %v4420 = vsel %vm1882, %v2430, 0.0
      %v4421 = vadd.f32 %v4419, %v4420
      %v4422 = vsel %vm1882, %v2431, 0.0
      %v4423 = vadd.f32 %v4421, %v4422
      %v4424 = vsel %vm1882, %v2432, 0.0
      %v4425 = vadd.f32 %v4423, %v4424
      %v4426 = vsel %vm1882, %v2433, 0.0
      %v4427 = vadd.f32 %v4425, %v4426
      %v4428 = vsel %vm1882, %v2434, 0.0
      %v4429 = vadd.f32 %v4427, %v4428
      %v4430 = vsel %vm1882, %v2435, 0.0
      %v4431 = vadd.f32 %v4429, %v4430
      %v4432 = vsel %vm1882, %v2436, 0.0
      %v4433 = vadd.f32 %v4431, %v4432
      %v4434 = vsel %vm1882, %v2437, 0.0
      %v4435 = vadd.f32 %v4433, %v4434
      %v4436 = vsel %vm1882, %v2438, 0.0
      %v4437 = vadd.f32 %v4435, %v4436
      %v4438 = vsel %vm1882, %v2439, 0.0
      %v4439 = vadd.f32 %v4437, %v4438
      %v4440 = vsel %vm1882, %v2440, 0.0
      %v4441 = vadd.f32 %v4439, %v4440
      %v4442 = vsel %vm1882, %v2441, 0.0
      %v4443 = vadd.f32 %v4441, %v4442
      %v4444 = vsel %vm1882, %v2442, 0.0
      %v4445 = vadd.f32 %v4443, %v4444
      %v4446 = vsel %vm1882, %v2443, 0.0
      %v4447 = vadd.f32 %v4445, %v4446
      %v4448 = vsel %vm1882, %v2444, 0.0
      %v4449 = vadd.f32 %v4447, %v4448
      %v4450 = vsel %vm1882, %v2445, 0.0
      %v4451 = vadd.f32 %v4449, %v4450
      %v4452 = vsel %vm1882, %v2446, 0.0
      %v4453 = vadd.f32 %v4451, %v4452
      %v4454 = vsel %vm1882, %v2447, 0.0
      %v4455 = vadd.f32 %v4453, %v4454
      %v4456 = vsel %vm1882, %v2448, 0.0
      %v4457 = vadd.f32 %v4455, %v4456
      %v4458 = vsel %vm1882, %v2449, 0.0
      %v4459 = vadd.f32 %v4457, %v4458
      %v4460 = vsel %vm1882, %v2450, 0.0
      %v4461 = vadd.f32 %v4459, %v4460
      %v4462 = vsel %vm1882, %v2451, 0.0
      %v4463 = vadd.f32 %v4461, %v4462
      %v4464 = vsel %vm1882, %v2452, 0.0
      %v4465 = vadd.f32 %v4463, %v4464
      %v4466 = vsel %vm1882, %v2453, 0.0
      %v4467 = vadd.f32 %v4465, %v4466
      %v4468 = vsel %vm1882, %v2454, 0.0
      %v4469 = vadd.f32 %v4467, %v4468
      %v4470 = vsel %vm1882, %v2455, 0.0
      %v4471 = vadd.f32 %v4469, %v4470
      %v4472 = vsel %vm1882, %v2456, 0.0
      %v4473 = vadd.f32 %v4471, %v4472
      %v4474 = vsel %vm1882, %v2457, 0.0
      %v4475 = vadd.f32 %v4473, %v4474
      %v4476 = vsel %vm1882, %v2458, 0.0
      %v4477 = vadd.f32 %v4475, %v4476
      %v4478 = vsel %vm1882, %v2459, 0.0
      %v4479 = vadd.f32 %v4477, %v4478
      %v4480 = vsel %vm1882, %v2460, 0.0
      %v4481 = vadd.f32 %v4479, %v4480
      %v4482 = vsel %vm1882, %v2461, 0.0
      %v4483 = vadd.f32 %v4481, %v4482
      %v4484 = vsel %vm1882, %v2462, 0.0
      %v4485 = vadd.f32 %v4483, %v4484
      %v4486 = vsel %vm1882, %v2463, 0.0
      %v4487 = vadd.f32 %v4485, %v4486
      %v4488 = vsel %vm1882, %v2464, 0.0
      %v4489 = vadd.f32 %v4487, %v4488
      %v4490 = vsel %vm1882, %v2465, 0.0
      %v4491 = vadd.f32 %v4489, %v4490
      %v4492 = vsel %vm1882, %v2466, 0.0
      %v4493 = vadd.f32 %v4491, %v4492
      %v4494 = vsel %vm1882, %v2467, 0.0
      %v4495 = vadd.f32 %v4493, %v4494
      %v4496 = vsel %vm1882, %v2468, 0.0
      %v4497 = vadd.f32 %v4495, %v4496
      %v4498 = vsel %vm1882, %v2469, 0.0
      %v4499 = vadd.f32 %v4497, %v4498
      %v4500 = vsel %vm1882, %v2470, 0.0
      %v4501 = vadd.f32 %v4499, %v4500
      %v4502 = vsel %vm1882, %v2471, 0.0
      %v4503 = vadd.f32 %v4501, %v4502
      %v4504 = vsel %vm1882, %v2472, 0.0
      %v4505 = vadd.f32 %v4503, %v4504
      %v4506 = vsel %vm1882, %v2473, 0.0
      %v4507 = vadd.f32 %v4505, %v4506
      %v4508 = vsel %vm1882, %v2474, 0.0
      %v4509 = vadd.f32 %v4507, %v4508
      %v4510 = vsel %vm1882, %v2475, 0.0
      %v4511 = vadd.f32 %v4509, %v4510
      %v4512 = vsel %vm1882, %v2476, 0.0
      %v4513 = vadd.f32 %v4511, %v4512
      %v4514 = vsel %vm1882, %v2477, 0.0
      %v4515 = vadd.f32 %v4513, %v4514
      %v4516 = vsel %vm1882, %v2478, 0.0
      %v4517 = vadd.f32 %v4515, %v4516
      %v4518 = vsel %vm1882, %v2479, 0.0
      %v4519 = vadd.f32 %v4517, %v4518
      %v4520 = vsel %vm1882, %v2480, 0.0
      %v4521 = vadd.f32 %v4519, %v4520
      %v4522 = vsel %vm1882, %v2481, 0.0
      %v4523 = vadd.f32 %v4521, %v4522
      %v4524 = vsel %vm1882, %v2482, 0.0
      %v4525 = vadd.f32 %v4523, %v4524
      %v4526 = vsel %vm1882, %v2483, 0.0
      %v4527 = vadd.f32 %v4525, %v4526
      %v4528 = vsel %vm1882, %v2484, 0.0
      %v4529 = vadd.f32 %v4527, %v4528
      %v4530 = vsel %vm1882, %v2485, 0.0
      %v4531 = vadd.f32 %v4529, %v4530
      %v4532 = vsel %vm1882, %v2486, 0.0
      %v4533 = vadd.f32 %v4531, %v4532
      %v4534 = vsel %vm1882, %v2487, 0.0
      %v4535 = vadd.f32 %v4533, %v4534
      %v4536 = vsel %vm1882, %v2488, 0.0
      %v4537 = vadd.f32 %v4535, %v4536
      %v4538 = vsel %vm1882, %v2489, 0.0
      %v4539 = vadd.f32 %v4537, %v4538
      %v4540 = vsel %vm1882, %v2490, 0.0
      %v4541 = vadd.f32 %v4539, %v4540
      %v4542 = vsel %vm1882, %v2491, 0.0
      %v4543 = vadd.f32 %v4541, %v4542
      %v4544 = vsel %vm1882, %v2492, 0.0
      %v4545 = vadd.f32 %v4543, %v4544
      %v4546 = vsel %vm1882, %v2493, 0.0
      %v4547 = vadd.f32 %v4545, %v4546
      %v4548 = vsel %vm1882, %v2494, 0.0
      %v4549 = vadd.f32 %v4547, %v4548
      %v4550 = vsel %vm1882, %v2495, 0.0
      %v4551 = vadd.f32 %v4549, %v4550
      %v4552 = vsel %vm1882, %v2496, 0.0
      %v4553 = vadd.f32 %v4551, %v4552
      %v4554 = vsel %vm1882, %v2497, 0.0
      %v4555 = vadd.f32 %v4553, %v4554
      %v4556 = vsel %vm1882, %v2498, 0.0
      %v4557 = vadd.f32 %v4555, %v4556
      %v4558 = vsel %vm1882, %v2499, 0.0
      %v4559 = vadd.f32 %v4557, %v4558
      %v4560 = vsel %vm1882, %v2500, 0.0
      %v4561 = vadd.f32 %v4559, %v4560
      %v4562 = vsel %vm1882, %v2501, 0.0
      %v4563 = vadd.f32 %v4561, %v4562
      %v4564 = vsel %vm1882, %v2502, 0.0
      %v4565 = vadd.f32 %v4563, %v4564
      %v4566 = vsel %vm1882, %v2503, 0.0
      %v4567 = vadd.f32 %v4565, %v4566
      %v4568 = vsel %vm1882, %v2504, 0.0
      %v4569 = vadd.f32 %v4567, %v4568
      %v4570 = vsel %vm1882, %v2505, 0.0
      %v4571 = vadd.f32 %v4569, %v4570
      %v4572 = vsel %vm1882, %v2506, 0.0
      %v4573 = vadd.f32 %v4571, %v4572
      %v4574 = vsel %vm1882, %v2507, 0.0
      %v4575 = vadd.f32 %v4573, %v4574
      %v4576 = vsel %vm1882, %v2508, 0.0
      %v4577 = vadd.f32 %v4575, %v4576
      %v4578 = vsel %vm1882, %v2509, 0.0
      %v4579 = vadd.f32 %v4577, %v4578
      %v4580 = vsel %vm1882, %v2510, 0.0
      %v4581 = vadd.f32 %v4579, %v4580
      %v4582 = vsel %vm1882, %v2511, 0.0
      %v4583 = vadd.f32 %v4581, %v4582
      %v4584 = vsel %vm1882, %v2512, 0.0
      %v4585 = vadd.f32 %v4583, %v4584
      %v4586 = vsel %vm1882, %v2513, 0.0
      %v4587 = vadd.f32 %v4585, %v4586
      %v4588 = vsel %vm1882, %v2514, 0.0
      %v4589 = vadd.f32 %v4587, %v4588
      %v4590 = vsel %vm1882, %v2515, 0.0
      %v4591 = vadd.f32 %v4589, %v4590
      %v4592 = vsel %vm1882, %v2516, 0.0
      %v4593 = vadd.f32 %v4591, %v4592
      %v4594 = vsel %vm1882, %v2517, 0.0
      %v4595 = vadd.f32 %v4593, %v4594
      %v4596 = vsel %vm1882, %v2518, 0.0
      %v4597 = vadd.f32 %v4595, %v4596
      %v4598 = vsel %vm1882, %v2519, 0.0
      %v4599 = vadd.f32 %v4597, %v4598
      %v4600 = vsel %vm1882, %v2520, 0.0
      %v4601 = vadd.f32 %v4599, %v4600
      %v4602 = vsel %vm1882, %v2521, 0.0
      %v4603 = vadd.f32 %v4601, %v4602
      %v4604 = vsel %vm1882, %v2522, 0.0
      %v4605 = vadd.f32 %v4603, %v4604
      %v4606 = vrot.slane %v4605, 4
      %v4607 = vadd.f32 %v4605, %v4606
      %v4608 = vrot.slane %v4607, 2
      %v4609 = vadd.f32 %v4607, %v4608
      %v4610 = vrot.slane %v4609, 1
      %v4611 = vadd.f32 %v4609, %v4610
      %v4612 = vmul.f32 %v734, 1024.0
      %v4613 = vmul.f32 %v740, 1024.0
      %v4614 = vmul.f32 %v746, 1024.0
      %v4615 = vmul.f32 %v752, 1024.0
      %v4616 = vmul.f32 %v758, 1024.0
      %v4617 = vmul.f32 %v764, 1024.0
      %v4618 = vmul.f32 %v770, 1024.0
      %v4619 = vmul.f32 %v776, 1024.0
      %v4620 = vmul.f32 %v782, 1024.0
      %v4621 = vmul.f32 %v788, 1024.0
      %v4622 = vmul.f32 %v794, 1024.0
      %v4623 = vmul.f32 %v800, 1024.0
      %v4624 = vmul.f32 %v806, 1024.0
      %v4625 = vmul.f32 %v812, 1024.0
      %v4626 = vmul.f32 %v818, 1024.0
      %v4627 = vmul.f32 %v824, 1024.0
      %v4628 = vmul.f32 %v830, 1024.0
      %v4629 = vmul.f32 %v836, 1024.0
      %v4630 = vmul.f32 %v842, 1024.0
      %v4631 = vmul.f32 %v848, 1024.0
      %v4632 = vmul.f32 %v854, 1024.0
      %v4633 = vmul.f32 %v860, 1024.0
      %v4634 = vmul.f32 %v866, 1024.0
      %v4635 = vmul.f32 %v872, 1024.0
      %v4636 = vmul.f32 %v878, 1024.0
      %v4637 = vmul.f32 %v884, 1024.0
      %v4638 = vmul.f32 %v890, 1024.0
      %v4639 = vmul.f32 %v896, 1024.0
      %v4640 = vmul.f32 %v902, 1024.0
      %v4641 = vmul.f32 %v908, 1024.0
      %v4642 = vmul.f32 %v914, 1024.0
      %v4643 = vmul.f32 %v920, 1024.0
      %v4644 = vmul.f32 %v926, 1024.0
      %v4645 = vmul.f32 %v932, 1024.0
      %v4646 = vmul.f32 %v938, 1024.0
      %v4647 = vmul.f32 %v944, 1024.0
      %v4648 = vmul.f32 %v950, 1024.0
      %v4649 = vmul.f32 %v956, 1024.0
      %v4650 = vmul.f32 %v962, 1024.0
      %v4651 = vmul.f32 %v968, 1024.0
      %v4652 = vmul.f32 %v974, 1024.0
      %v4653 = vmul.f32 %v980, 1024.0
      %v4654 = vmul.f32 %v986, 1024.0
      %v4655 = vmul.f32 %v992, 1024.0
      %v4656 = vmul.f32 %v998, 1024.0
      %v4657 = vmul.f32 %v1004, 1024.0
      %v4658 = vmul.f32 %v1010, 1024.0
      %v4659 = vmul.f32 %v1016, 1024.0
      %v4660 = vmul.f32 %v1022, 1024.0
      %v4661 = vmul.f32 %v1028, 1024.0
      %v4662 = vmul.f32 %v1034, 1024.0
      %v4663 = vmul.f32 %v1040, 1024.0
      %v4664 = vmul.f32 %v1046, 1024.0
      %v4665 = vmul.f32 %v1052, 1024.0
      %v4666 = vmul.f32 %v1058, 1024.0
      %v4667 = vmul.f32 %v1064, 1024.0
      %v4668 = vmul.f32 %v1070, 1024.0
      %v4669 = vmul.f32 %v1076, 1024.0
      %v4670 = vmul.f32 %v1082, 1024.0
      %v4671 = vmul.f32 %v1088, 1024.0
      %v4672 = vmul.f32 %v1094, 1024.0
      %v4673 = vmul.f32 %v1100, 1024.0
      %v4674 = vmul.f32 %v1106, 1024.0
      %v4675 = vmul.f32 %v1112, 1024.0
      %v4676 = vmul.f32 %v1118, 1024.0
      %v4677 = vmul.f32 %v1124, 1024.0
      %v4678 = vmul.f32 %v1130, 1024.0
      %v4679 = vmul.f32 %v1136, 1024.0
      %v4680 = vmul.f32 %v1142, 1024.0
      %v4681 = vmul.f32 %v1148, 1024.0
      %v4682 = vmul.f32 %v1154, 1024.0
      %v4683 = vmul.f32 %v1160, 1024.0
      %v4684 = vmul.f32 %v1166, 1024.0
      %v4685 = vmul.f32 %v1172, 1024.0
      %v4686 = vmul.f32 %v1178, 1024.0
      %v4687 = vmul.f32 %v1184, 1024.0
      %v4688 = vmul.f32 %v1190, 1024.0
      %v4689 = vmul.f32 %v1196, 1024.0
      %v4690 = vmul.f32 %v1202, 1024.0
      %v4691 = vmul.f32 %v1208, 1024.0
      %v4692 = vmul.f32 %v1214, 1024.0
      %v4693 = vmul.f32 %v1220, 1024.0
      %v4694 = vmul.f32 %v1226, 1024.0
      %v4695 = vmul.f32 %v1232, 1024.0
      %v4696 = vmul.f32 %v1238, 1024.0
      %v4697 = vmul.f32 %v1244, 1024.0
      %v4698 = vmul.f32 %v1250, 1024.0
      %v4699 = vmul.f32 %v1256, 1024.0
      %v4700 = vmul.f32 %v1262, 1024.0
      %v4701 = vmul.f32 %v1268, 1024.0
      %v4702 = vmul.f32 %v1274, 1024.0
      %v4703 = vmul.f32 %v1280, 1024.0
      %v4704 = vmul.f32 %v1286, 1024.0
      %v4705 = vmul.f32 %v1292, 1024.0
      %v4706 = vmul.f32 %v1298, 1024.0
      %v4707 = vmul.f32 %v1304, 1024.0
      %v4708 = vmul.f32 %v1310, 1024.0
      %v4709 = vmul.f32 %v1316, 1024.0
      %v4710 = vmul.f32 %v1322, 1024.0
      %v4711 = vmul.f32 %v1328, 1024.0
      %v4712 = vmul.f32 %v1334, 1024.0
      %v4713 = vmul.f32 %v1340, 1024.0
      %v4714 = vmul.f32 %v1346, 1024.0
      %v4715 = vmul.f32 %v1352, 1024.0
      %v4716 = vmul.f32 %v1358, 1024.0
      %v4717 = vmul.f32 %v1364, 1024.0
      %v4718 = vmul.f32 %v1370, 1024.0
      %v4719 = vmul.f32 %v1376, 1024.0
      %v4720 = vmul.f32 %v1382, 1024.0
      %v4721 = vmul.f32 %v1388, 1024.0
      %v4722 = vmul.f32 %v1394, 1024.0
      %v4723 = vmul.f32 %v1400, 1024.0
      %v4724 = vmul.f32 %v1406, 1024.0
      %v4725 = vmul.f32 %v1412, 1024.0
      %v4726 = vmul.f32 %v1418, 1024.0
      %v4727 = vmul.f32 %v1424, 1024.0
      %v4728 = vmul.f32 %v1430, 1024.0
      %v4729 = vmul.f32 %v1436, 1024.0
      %v4730 = vmul.f32 %v1442, 1024.0
      %v4731 = vmul.f32 %v1448, 1024.0
      %v4732 = vmul.f32 %v1454, 1024.0
      %v4733 = vmul.f32 %v1460, 1024.0
      %v4734 = vmul.f32 %v1466, 1024.0
      %v4735 = vmul.f32 %v1472, 1024.0
      %v4736 = vmul.f32 %v1478, 1024.0
      %v4737 = vmul.f32 %v1484, 1024.0
      %v4738 = vmul.f32 %v1490, 1024.0
      %v4739 = vmul.f32 %v1496, 1024.0
      %4868 = vrot.lane.b32.xlu0 %v3547, 64
      %v4869 = vpop.permute.xlu0 %4868
      %4870 = vrot.lane.b32.xlu0 %v3548, 64
      %v4871 = vpop.permute.xlu0 %4870
      %4872 = vrot.lane.b32.xlu0 %v3549, 64
      %v4873 = vpop.permute.xlu0 %4872
      %4874 = vrot.lane.b32.xlu0 %v3550, 64
      %v4875 = vpop.permute.xlu0 %4874
      %4876 = vrot.lane.b32.xlu0 %v3551, 64
      %v4877 = vpop.permute.xlu0 %4876
      %4878 = vrot.lane.b32.xlu0 %v3552, 64
      %v4879 = vpop.permute.xlu0 %4878
      %4880 = vrot.lane.b32.xlu0 %v3553, 64
      %v4881 = vpop.permute.xlu0 %4880
      %4882 = vrot.lane.b32.xlu0 %v3554, 64
      %v4883 = vpop.permute.xlu0 %4882
      %4884 = vrot.lane.b32.xlu0 %v3555, 64
      %v4885 = vpop.permute.xlu0 %4884
      %4886 = vrot.lane.b32.xlu0 %v3556, 64
      %v4887 = vpop.permute.xlu0 %4886
      %4888 = vrot.lane.b32.xlu0 %v3557, 64
      %v4889 = vpop.permute.xlu0 %4888
      %4890 = vrot.lane.b32.xlu0 %v3558, 64
      %v4891 = vpop.permute.xlu0 %4890
      %4892 = vrot.lane.b32.xlu0 %v3559, 64
      %v4893 = vpop.permute.xlu0 %4892
      %4894 = vrot.lane.b32.xlu0 %v3560, 64
      %v4895 = vpop.permute.xlu0 %4894
      %4896 = vrot.lane.b32.xlu0 %v3561, 64
      %v4897 = vpop.permute.xlu0 %4896
      %4898 = vrot.lane.b32.xlu0 %v3562, 64
      %v4899 = vpop.permute.xlu0 %4898
      %4900 = vrot.lane.b32.xlu0 %v3563, 64
      %v4901 = vpop.permute.xlu0 %4900
      %4902 = vrot.lane.b32.xlu0 %v3564, 64
      %v4903 = vpop.permute.xlu0 %4902
      %4904 = vrot.lane.b32.xlu0 %v3565, 64
      %v4905 = vpop.permute.xlu0 %4904
      %4906 = vrot.lane.b32.xlu0 %v3566, 64
      %v4907 = vpop.permute.xlu0 %4906
      %4908 = vrot.lane.b32.xlu0 %v3567, 64
      %v4909 = vpop.permute.xlu0 %4908
      %4910 = vrot.lane.b32.xlu0 %v3568, 64
      %v4911 = vpop.permute.xlu0 %4910
      %4912 = vrot.lane.b32.xlu0 %v3569, 64
      %v4913 = vpop.permute.xlu0 %4912
      %4914 = vrot.lane.b32.xlu0 %v3570, 64
      %v4915 = vpop.permute.xlu0 %4914
      %4916 = vrot.lane.b32.xlu0 %v3571, 64
      %v4917 = vpop.permute.xlu0 %4916
      %4918 = vrot.lane.b32.xlu0 %v3572, 64
      %v4919 = vpop.permute.xlu0 %4918
      %4920 = vrot.lane.b32.xlu0 %v3573, 64
      %v4921 = vpop.permute.xlu0 %4920
      %4922 = vrot.lane.b32.xlu0 %v3574, 64
      %v4923 = vpop.permute.xlu0 %4922
      %4924 = vrot.lane.b32.xlu0 %v3575, 64
      %v4925 = vpop.permute.xlu0 %4924
      %4926 = vrot.lane.b32.xlu0 %v3576, 64
      %v4927 = vpop.permute.xlu0 %4926
      %4928 = vrot.lane.b32.xlu0 %v3577, 64
      %v4929 = vpop.permute.xlu0 %4928
      %4930 = vrot.lane.b32.xlu0 %v3578, 64
      %v4931 = vpop.permute.xlu0 %4930
      %4932 = vrot.lane.b32.xlu0 %v3579, 64
      %v4933 = vpop.permute.xlu0 %4932
      %4934 = vrot.lane.b32.xlu0 %v3580, 64
      %v4935 = vpop.permute.xlu0 %4934
      %4936 = vrot.lane.b32.xlu0 %v3581, 64
      %v4937 = vpop.permute.xlu0 %4936
      %4938 = vrot.lane.b32.xlu0 %v3582, 64
      %v4939 = vpop.permute.xlu0 %4938
      %4940 = vrot.lane.b32.xlu0 %v3583, 64
      %v4941 = vpop.permute.xlu0 %4940
      %4942 = vrot.lane.b32.xlu0 %v3584, 64
      %v4943 = vpop.permute.xlu0 %4942
      %4944 = vrot.lane.b32.xlu0 %v3585, 64
      %v4945 = vpop.permute.xlu0 %4944
      %4946 = vrot.lane.b32.xlu0 %v3586, 64
      %v4947 = vpop.permute.xlu0 %4946
      %4948 = vrot.lane.b32.xlu0 %v3587, 64
      %v4949 = vpop.permute.xlu0 %4948
      %4950 = vrot.lane.b32.xlu0 %v3588, 64
      %v4951 = vpop.permute.xlu0 %4950
      %4952 = vrot.lane.b32.xlu0 %v3589, 64
      %v4953 = vpop.permute.xlu0 %4952
      %4954 = vrot.lane.b32.xlu0 %v3590, 64
      %v4955 = vpop.permute.xlu0 %4954
      %4956 = vrot.lane.b32.xlu0 %v3591, 64
      %v4957 = vpop.permute.xlu0 %4956
      %4958 = vrot.lane.b32.xlu0 %v3592, 64
      %v4959 = vpop.permute.xlu0 %4958
      %4960 = vrot.lane.b32.xlu0 %v3593, 64
      %v4961 = vpop.permute.xlu0 %4960
      %4962 = vrot.lane.b32.xlu0 %v3594, 64
      %v4963 = vpop.permute.xlu0 %4962
      %4964 = vrot.lane.b32.xlu0 %v3595, 64
      %v4965 = vpop.permute.xlu0 %4964
      %4966 = vrot.lane.b32.xlu0 %v3596, 64
      %v4967 = vpop.permute.xlu0 %4966
      %4968 = vrot.lane.b32.xlu0 %v3597, 64
      %v4969 = vpop.permute.xlu0 %4968
      %4970 = vrot.lane.b32.xlu0 %v3598, 64
      %v4971 = vpop.permute.xlu0 %4970
      %4972 = vrot.lane.b32.xlu0 %v3599, 64
      %v4973 = vpop.permute.xlu0 %4972
      %4974 = vrot.lane.b32.xlu0 %v3600, 64
      %v4975 = vpop.permute.xlu0 %4974
      %4976 = vrot.lane.b32.xlu0 %v3601, 64
      %v4977 = vpop.permute.xlu0 %4976
      %4978 = vrot.lane.b32.xlu0 %v3602, 64
      %v4979 = vpop.permute.xlu0 %4978
      %4980 = vrot.lane.b32.xlu0 %v3603, 64
      %v4981 = vpop.permute.xlu0 %4980
      %4982 = vrot.lane.b32.xlu0 %v3604, 64
      %v4983 = vpop.permute.xlu0 %4982
      %4984 = vrot.lane.b32.xlu0 %v3605, 64
      %v4985 = vpop.permute.xlu0 %4984
      %4986 = vrot.lane.b32.xlu0 %v3606, 64
      %v4987 = vpop.permute.xlu0 %4986
      %4988 = vrot.lane.b32.xlu0 %v3607, 64
      %v4989 = vpop.permute.xlu0 %4988
      %4990 = vrot.lane.b32.xlu0 %v3608, 64
      %v4991 = vpop.permute.xlu0 %4990
      %4992 = vrot.lane.b32.xlu0 %v3609, 64
      %v4993 = vpop.permute.xlu0 %4992
      %4994 = vrot.lane.b32.xlu0 %v3610, 64
      %v4995 = vpop.permute.xlu0 %4994
      %4996 = vrot.lane.b32.xlu0 %v3611, 64
      %v4997 = vpop.permute.xlu0 %4996
      %4998 = vrot.lane.b32.xlu0 %v3612, 64
      %v4999 = vpop.permute.xlu0 %4998
      %5000 = vrot.lane.b32.xlu0 %v3613, 64
      %v5001 = vpop.permute.xlu0 %5000
      %5002 = vrot.lane.b32.xlu0 %v3614, 64
      %v5003 = vpop.permute.xlu0 %5002
      %5004 = vrot.lane.b32.xlu0 %v3615, 64
      %v5005 = vpop.permute.xlu0 %5004
      %5006 = vrot.lane.b32.xlu0 %v3616, 64
      %v5007 = vpop.permute.xlu0 %5006
      %5008 = vrot.lane.b32.xlu0 %v3617, 64
      %v5009 = vpop.permute.xlu0 %5008
      %5010 = vrot.lane.b32.xlu0 %v3618, 64
      %v5011 = vpop.permute.xlu0 %5010
      %5012 = vrot.lane.b32.xlu0 %v3619, 64
      %v5013 = vpop.permute.xlu0 %5012
      %5014 = vrot.lane.b32.xlu0 %v3620, 64
      %v5015 = vpop.permute.xlu0 %5014
      %5016 = vrot.lane.b32.xlu0 %v3621, 64
      %v5017 = vpop.permute.xlu0 %5016
      %5018 = vrot.lane.b32.xlu0 %v3622, 64
      %v5019 = vpop.permute.xlu0 %5018
      %5020 = vrot.lane.b32.xlu0 %v3623, 64
      %v5021 = vpop.permute.xlu0 %5020
      %5022 = vrot.lane.b32.xlu0 %v3624, 64
      %v5023 = vpop.permute.xlu0 %5022
      %5024 = vrot.lane.b32.xlu0 %v3625, 64
      %v5025 = vpop.permute.xlu0 %5024
      %5026 = vrot.lane.b32.xlu0 %v3626, 64
      %v5027 = vpop.permute.xlu0 %5026
      %5028 = vrot.lane.b32.xlu0 %v3627, 64
      %v5029 = vpop.permute.xlu0 %5028
      %5030 = vrot.lane.b32.xlu0 %v3628, 64
      %v5031 = vpop.permute.xlu0 %5030
      %5032 = vrot.lane.b32.xlu0 %v3629, 64
      %v5033 = vpop.permute.xlu0 %5032
      %5034 = vrot.lane.b32.xlu0 %v3630, 64
      %v5035 = vpop.permute.xlu0 %5034
      %5036 = vrot.lane.b32.xlu0 %v3631, 64
      %v5037 = vpop.permute.xlu0 %5036
      %5038 = vrot.lane.b32.xlu0 %v3632, 64
      %v5039 = vpop.permute.xlu0 %5038
      %5040 = vrot.lane.b32.xlu0 %v3633, 64
      %v5041 = vpop.permute.xlu0 %5040
      %5042 = vrot.lane.b32.xlu0 %v3634, 64
      %v5043 = vpop.permute.xlu0 %5042
      %5044 = vrot.lane.b32.xlu0 %v3635, 64
      %v5045 = vpop.permute.xlu0 %5044
      %5046 = vrot.lane.b32.xlu0 %v3636, 64
      %v5047 = vpop.permute.xlu0 %5046
      %5048 = vrot.lane.b32.xlu0 %v3637, 64
      %v5049 = vpop.permute.xlu0 %5048
      %5050 = vrot.lane.b32.xlu0 %v3638, 64
      %v5051 = vpop.permute.xlu0 %5050
      %5052 = vrot.lane.b32.xlu0 %v3639, 64
      %v5053 = vpop.permute.xlu0 %5052
      %5054 = vrot.lane.b32.xlu0 %v3640, 64
      %v5055 = vpop.permute.xlu0 %5054
      %5056 = vrot.lane.b32.xlu0 %v3641, 64
      %v5057 = vpop.permute.xlu0 %5056
      %5058 = vrot.lane.b32.xlu0 %v3642, 64
      %v5059 = vpop.permute.xlu0 %5058
      %5060 = vrot.lane.b32.xlu0 %v3643, 64
      %v5061 = vpop.permute.xlu0 %5060
      %5062 = vrot.lane.b32.xlu0 %v3644, 64
      %v5063 = vpop.permute.xlu0 %5062
      %5064 = vrot.lane.b32.xlu0 %v3645, 64
      %v5065 = vpop.permute.xlu0 %5064
      %5066 = vrot.lane.b32.xlu0 %v3646, 64
      %v5067 = vpop.permute.xlu0 %5066
      %5068 = vrot.lane.b32.xlu0 %v3647, 64
      %v5069 = vpop.permute.xlu0 %5068
      %5070 = vrot.lane.b32.xlu0 %v3648, 64
      %v5071 = vpop.permute.xlu0 %5070
      %5072 = vrot.lane.b32.xlu0 %v3649, 64
      %v5073 = vpop.permute.xlu0 %5072
      %5074 = vrot.lane.b32.xlu0 %v3650, 64
      %v5075 = vpop.permute.xlu0 %5074
      %5076 = vrot.lane.b32.xlu0 %v3651, 64
      %v5077 = vpop.permute.xlu0 %5076
      %5078 = vrot.lane.b32.xlu0 %v3652, 64
      %v5079 = vpop.permute.xlu0 %5078
      %5080 = vrot.lane.b32.xlu0 %v3653, 64
      %v5081 = vpop.permute.xlu0 %5080
      %5082 = vrot.lane.b32.xlu0 %v3654, 64
      %v5083 = vpop.permute.xlu0 %5082
      %5084 = vrot.lane.b32.xlu0 %v3655, 64
      %v5085 = vpop.permute.xlu0 %5084
      %5086 = vrot.lane.b32.xlu0 %v3656, 64
      %v5087 = vpop.permute.xlu0 %5086
      %5088 = vrot.lane.b32.xlu0 %v3657, 64
      %v5089 = vpop.permute.xlu0 %5088
      %5090 = vrot.lane.b32.xlu0 %v3658, 64
      %v5091 = vpop.permute.xlu0 %5090
      %5092 = vrot.lane.b32.xlu0 %v3659, 64
      %v5093 = vpop.permute.xlu0 %5092
      %5094 = vrot.lane.b32.xlu0 %v3660, 64
      %v5095 = vpop.permute.xlu0 %5094
      %5096 = vrot.lane.b32.xlu0 %v3661, 64
      %v5097 = vpop.permute.xlu0 %5096
      %5098 = vrot.lane.b32.xlu0 %v3662, 64
      %v5099 = vpop.permute.xlu0 %5098
      %5100 = vrot.lane.b32.xlu0 %v3663, 64
      %v5101 = vpop.permute.xlu0 %5100
      %5102 = vrot.lane.b32.xlu0 %v3664, 64
      %v5103 = vpop.permute.xlu0 %5102
      %5104 = vrot.lane.b32.xlu0 %v3665, 64
      %v5105 = vpop.permute.xlu0 %5104
      %5106 = vrot.lane.b32.xlu0 %v3666, 64
      %v5107 = vpop.permute.xlu0 %5106
      %5108 = vrot.lane.b32.xlu0 %v3667, 64
      %v5109 = vpop.permute.xlu0 %5108
      %5110 = vrot.lane.b32.xlu0 %v3668, 64
      %v5111 = vpop.permute.xlu0 %5110
      %5112 = vrot.lane.b32.xlu0 %v3669, 64
      %v5113 = vpop.permute.xlu0 %5112
      %5114 = vrot.lane.b32.xlu0 %v3670, 64
      %v5115 = vpop.permute.xlu0 %5114
      %5116 = vrot.lane.b32.xlu0 %v3671, 64
      %v5117 = vpop.permute.xlu0 %5116
      %5118 = vrot.lane.b32.xlu0 %v3672, 64
      %v5119 = vpop.permute.xlu0 %5118
      %5120 = vrot.lane.b32.xlu0 %v3673, 64
      %v5121 = vpop.permute.xlu0 %5120
      %5122 = vrot.lane.b32.xlu0 %v3674, 64
      %v5123 = vpop.permute.xlu0 %5122
      %v5124 = vsel %vm1882, %v4869, 0
      %v5126 = vsel %vm1882, %v4871, 0
      %v5128 = vsel %vm1882, %v4873, 0
      %v5130 = vsel %vm1882, %v4875, 0
      %v5132 = vsel %vm1882, %v4877, 0
      %v5134 = vsel %vm1882, %v4879, 0
      %v5136 = vsel %vm1882, %v4881, 0
      %v5138 = vsel %vm1882, %v4883, 0
      %v5140 = vsel %vm1882, %v4885, 0
      %v5142 = vsel %vm1882, %v4887, 0
      %v5144 = vsel %vm1882, %v4889, 0
      %v5146 = vsel %vm1882, %v4891, 0
      %v5148 = vsel %vm1882, %v4893, 0
      %v5150 = vsel %vm1882, %v4895, 0
      %v5152 = vsel %vm1882, %v4897, 0
      %v5154 = vsel %vm1882, %v4899, 0
      %v5156 = vsel %vm1882, %v4901, 0
      %v5158 = vsel %vm1882, %v4903, 0
      %v5160 = vsel %vm1882, %v4905, 0
      %v5162 = vsel %vm1882, %v4907, 0
      %v5164 = vsel %vm1882, %v4909, 0
      %v5166 = vsel %vm1882, %v4911, 0
      %v5168 = vsel %vm1882, %v4913, 0
      %v5170 = vsel %vm1882, %v4915, 0
      %v5172 = vsel %vm1882, %v4917, 0
      %v5174 = vsel %vm1882, %v4919, 0
      %v5176 = vsel %vm1882, %v4921, 0
      %v5178 = vsel %vm1882, %v4923, 0
      %v5180 = vsel %vm1882, %v4925, 0
      %v5182 = vsel %vm1882, %v4927, 0
      %v5184 = vsel %vm1882, %v4929, 0
      %v5186 = vsel %vm1882, %v4931, 0
      %v5188 = vsel %vm1882, %v4933, 0
      %v5190 = vsel %vm1882, %v4935, 0
      %v5192 = vsel %vm1882, %v4937, 0
      %v5194 = vsel %vm1882, %v4939, 0
      %v5196 = vsel %vm1882, %v4941, 0
      %v5198 = vsel %vm1882, %v4943, 0
      %v5200 = vsel %vm1882, %v4945, 0
      %v5202 = vsel %vm1882, %v4947, 0
      %v5204 = vsel %vm1882, %v4949, 0
      %v5206 = vsel %vm1882, %v4951, 0
      %v5208 = vsel %vm1882, %v4953, 0
      %v5210 = vsel %vm1882, %v4955, 0
      %v5212 = vsel %vm1882, %v4957, 0
      %v5214 = vsel %vm1882, %v4959, 0
      %v5216 = vsel %vm1882, %v4961, 0
      %v5218 = vsel %vm1882, %v4963, 0
      %v5220 = vsel %vm1882, %v4965, 0
      %v5222 = vsel %vm1882, %v4967, 0
      %v5224 = vsel %vm1882, %v4969, 0
      %v5226 = vsel %vm1882, %v4971, 0
      %v5228 = vsel %vm1882, %v4973, 0
      %v5230 = vsel %vm1882, %v4975, 0
      %v5232 = vsel %vm1882, %v4977, 0
      %v5234 = vsel %vm1882, %v4979, 0
      %v5236 = vsel %vm1882, %v4981, 0
      %v5238 = vsel %vm1882, %v4983, 0
      %v5240 = vsel %vm1882, %v4985, 0
      %v5242 = vsel %vm1882, %v4987, 0
      %v5244 = vsel %vm1882, %v4989, 0
      %v5246 = vsel %vm1882, %v4991, 0
      %v5248 = vsel %vm1882, %v4993, 0
      %v5250 = vsel %vm1882, %v4995, 0
      %v5252 = vsel %vm1882, %v4997, 0
      %v5254 = vsel %vm1882, %v4999, 0
      %v5256 = vsel %vm1882, %v5001, 0
      %v5258 = vsel %vm1882, %v5003, 0
      %v5260 = vsel %vm1882, %v5005, 0
      %v5262 = vsel %vm1882, %v5007, 0
      %v5264 = vsel %vm1882, %v5009, 0
      %v5266 = vsel %vm1882, %v5011, 0
      %v5268 = vsel %vm1882, %v5013, 0
      %v5270 = vsel %vm1882, %v5015, 0
      %v5272 = vsel %vm1882, %v5017, 0
      %v5274 = vsel %vm1882, %v5019, 0
      %v5276 = vsel %vm1882, %v5021, 0
      %v5278 = vsel %vm1882, %v5023, 0
      %v5280 = vsel %vm1882, %v5025, 0
      %v5282 = vsel %vm1882, %v5027, 0
      %v5284 = vsel %vm1882, %v5029, 0
      %v5286 = vsel %vm1882, %v5031, 0
      %v5288 = vsel %vm1882, %v5033, 0
      %v5290 = vsel %vm1882, %v5035, 0
      %v5292 = vsel %vm1882, %v5037, 0
      %v5294 = vsel %vm1882, %v5039, 0
      %v5296 = vsel %vm1882, %v5041, 0
      %v5298 = vsel %vm1882, %v5043, 0
      %v5300 = vsel %vm1882, %v5045, 0
      %v5302 = vsel %vm1882, %v5047, 0
      %v5304 = vsel %vm1882, %v5049, 0
      %v5306 = vsel %vm1882, %v5051, 0
      %v5308 = vsel %vm1882, %v5053, 0
      %v5310 = vsel %vm1882, %v5055, 0
      %v5312 = vsel %vm1882, %v5057, 0
      %v5314 = vsel %vm1882, %v5059, 0
      %v5316 = vsel %vm1882, %v5061, 0
      %v5318 = vsel %vm1882, %v5063, 0
      %v5320 = vsel %vm1882, %v5065, 0
      %v5322 = vsel %vm1882, %v5067, 0
      %v5324 = vsel %vm1882, %v5069, 0
      %v5326 = vsel %vm1882, %v5071, 0
      %v5328 = vsel %vm1882, %v5073, 0
      %v5330 = vsel %vm1882, %v5075, 0
      %v5332 = vsel %vm1882, %v5077, 0
      %v5334 = vsel %vm1882, %v5079, 0
      %v5336 = vsel %vm1882, %v5081, 0
      %v5338 = vsel %vm1882, %v5083, 0
      %v5340 = vsel %vm1882, %v5085, 0
      %v5342 = vsel %vm1882, %v5087, 0
      %v5344 = vsel %vm1882, %v5089, 0
      %v5346 = vsel %vm1882, %v5091, 0
      %v5348 = vsel %vm1882, %v5093, 0
      %v5350 = vsel %vm1882, %v5095, 0
      %v5352 = vsel %vm1882, %v5097, 0
      %v5354 = vsel %vm1882, %v5099, 0
      %v5356 = vsel %vm1882, %v5101, 0
      %v5358 = vsel %vm1882, %v5103, 0
      %v5360 = vsel %vm1882, %v5105, 0
      %v5362 = vsel %vm1882, %v5107, 0
      %v5364 = vsel %vm1882, %v5109, 0
      %v5366 = vsel %vm1882, %v5111, 0
      %v5368 = vsel %vm1882, %v5113, 0
      %v5370 = vsel %vm1882, %v5115, 0
      %v5372 = vsel %vm1882, %v5117, 0
      %v5374 = vsel %vm1882, %v5119, 0
      %v5376 = vsel %vm1882, %v5121, 0
      %v5378 = vsel %vm1882, %v5123, 0
      %5380 = vmatprep.subr.mxu0 0.0
      %5381 = vmatpush1.msra.mxu0 %v4313
      %5382 = vmatprep.subr.mxu0 0.0
      %5383 = vmatpush1.msra.mxu0 %v4318
      %5384 = vmatprep.subr.mxu0 0.0
      %5385 = vmatpush1.msra.mxu0 %v4323
      %5386 = vmatprep.subr.mxu0 0.0
      %5387 = vmatpush1.msra.mxu0 %v4328
      %5388 = vmatprep.subr.mxu0 0.0
      %5389 = vmatpush1.msra.mxu0 %v4333
      %5390 = vmatprep.subr.mxu0 0.0
      %5391 = vmatpush1.msra.mxu0 %v4338
      %5392 = vmatprep.subr.mxu0 0.0
      %5393 = vmatpush1.msra.mxu0 %v4343
      %5394 = vmatprep.subr.mxu0 0.0
      %5395 = vmatpush1.msra.mxu0 %v4348
      %5396 = vmatprep.subr.mxu0 0.0
      %5397 = vmatpush1.msra.mxu0 0.0
      %5398 = vmatprep.subr.mxu0 0.0
      %5399 = vmatpush1.msra.mxu0 0.0
      %5400 = vmatprep.subr.mxu0 0.0
      %5401 = vmatpush1.msra.mxu0 0.0
      %5402 = vmatprep.subr.mxu0 0.0
      %5403 = vmatpush1.msra.mxu0 0.0
      %5404 = vmatprep.subr.mxu0 0.0
      %5405 = vmatpush1.msra.mxu0 0.0
      %5406 = vmatprep.subr.mxu0 0.0
      %5407 = vmatpush1.msra.mxu0 0.0
      %5408 = vmatprep.subr.mxu0 0.0
      %5409 = vmatpush1.msra.mxu0 0.0
      %5410 = vmatprep.subr.mxu0 0.0
      %5411 = vmatpush1.msra.mxu0 0.0
      %5412 = vmatprep.subr.mxu0 0.0
      %5413 = vmatpush1.msra.mxu0 0.0
      %5414 = vmatprep.subr.mxu0 0.0
      %5415 = vmatpush1.msra.mxu0 0.0
      %5416 = vmatprep.subr.mxu0 0.0
      %5417 = vmatpush1.msra.mxu0 0.0
      %5418 = vmatprep.subr.mxu0 0.0
      %5419 = vmatpush1.msra.mxu0 0.0
      %5420 = vmatprep.subr.mxu0 0.0
      %5421 = vmatpush1.msra.mxu0 0.0
      %5422 = vmatprep.subr.mxu0 0.0
      %5423 = vmatpush1.msra.mxu0 0.0
      %5424 = vmatprep.subr.mxu0 0.0
      %5425 = vmatpush1.msra.mxu0 0.0
      %5426 = vmatprep.subr.mxu0 0.0
      %5427 = vmatpush1.msra.mxu0 0.0
      %5428 = vmatprep.subr.mxu0 0.0
      %5429 = vmatpush1.msra.mxu0 0.0
      %5430 = vmatprep.subr.mxu0 0.0
      %5431 = vmatpush1.msra.mxu0 0.0
      %5432 = vmatprep.subr.mxu0 0.0
      %5433 = vmatpush1.msra.mxu0 0.0
      %5434 = vmatprep.subr.mxu0 0.0
      %5435 = vmatpush1.msra.mxu0 0.0
      %5436 = vmatprep.subr.mxu0 0.0
      %5437 = vmatpush1.msra.mxu0 0.0
      %5438 = vmatprep.subr.mxu0 0.0
      %5439 = vmatpush1.msra.mxu0 0.0
      %5440 = vmatprep.subr.mxu0 0.0
      %5441 = vmatpush1.msra.mxu0 0.0
      %5442 = vmatprep.subr.mxu0 0.0
      %5443 = vmatpush1.msra.mxu0 0.0
      %5444 = vmatprep.mubr.f32.mxu0 0.0
      %5445 = vmatmul.mubr.f32.gmra.mrb[0].mxu0 %v5124
      %v5446 = vpop.f32.mrb[0].mxu0
      %v5447 = vadd.f32 %v4612, %v5446
      %v5448 = vpop.f32.mrb[0].mxu0
      %5449 = vmatprep.mubr.f32.mxu0 0.0
      %5450 = vmatmul.mubr.f32.gmra.mrb[0].mxu0 %v5126
      %v5451 = vpop.f32.mrb[0].mxu0
      %v5452 = vadd.f32 %v4613, %v5451
      %v5453 = vpop.f32.mrb[0].mxu0
      %5454 = vmatprep.mubr.f32.mxu0 0.0
      %5455 = vmatmul.mubr.f32.gmra.mrb[0].mxu0 %v5128
      %v5456 = vpop.f32.mrb[0].mxu0
      %v5457 = vadd.f32 %v4614, %v5456
      %v5458 = vpop.f32.mrb[0].mxu0
      %5459 = vmatprep.mubr.f32.mxu0 0.0
      %5460 = vmatmul.mubr.f32.gmra.mrb[0].mxu0 %v5130
      %v5461 = vpop.f32.mrb[0].mxu0
      %v5462 = vadd.f32 %v4615, %v5461
      %v5463 = vpop.f32.mrb[0].mxu0
      %5464 = vmatprep.mubr.f32.mxu0 0.0
      %5465 = vmatmul.mubr.f32.gmra.mrb[0].mxu0 %v5132
      %v5466 = vpop.f32.mrb[0].mxu0
      %v5467 = vadd.f32 %v4616, %v5466
      %v5468 = vpop.f32.mrb[0].mxu0
      %5469 = vmatprep.mubr.f32.mxu0 0.0
      %5470 = vmatmul.mubr.f32.gmra.mrb[0].mxu0 %v5134
      %v5471 = vpop.f32.mrb[0].mxu0
      %v5472 = vadd.f32 %v4617, %v5471
      %v5473 = vpop.f32.mrb[0].mxu0
      %5474 = vmatprep.mubr.f32.mxu0 0.0
      %5475 = vmatmul.mubr.f32.gmra.mrb[0].mxu0 %v5136
      %v5476 = vpop.f32.mrb[0].mxu0
      %v5477 = vadd.f32 %v4618, %v5476
      %v5478 = vpop.f32.mrb[0].mxu0
      %5479 = vmatprep.mubr.f32.mxu0 0.0
      %5480 = vmatmul.mubr.f32.gmra.mrb[0].mxu0 %v5138
      %v5481 = vpop.f32.mrb[0].mxu0
      %v5482 = vadd.f32 %v4619, %v5481
      %v5483 = vpop.f32.mrb[0].mxu0
      %5484 = vmatprep.mubr.f32.mxu0 0.0
      %5485 = vmatmul.mubr.f32.gmra.mrb[0].mxu0 %v5140
      %v5486 = vpop.f32.mrb[0].mxu0
      %v5487 = vadd.f32 %v4620, %v5486
      %v5488 = vpop.f32.mrb[0].mxu0
      %5489 = vmatprep.mubr.f32.mxu0 0.0
      %5490 = vmatmul.mubr.f32.gmra.mrb[0].mxu0 %v5142
      %v5491 = vpop.f32.mrb[0].mxu0
      %v5492 = vadd.f32 %v4621, %v5491
      %v5493 = vpop.f32.mrb[0].mxu0
      %5494 = vmatprep.mubr.f32.mxu0 0.0
      %5495 = vmatmul.mubr.f32.gmra.mrb[0].mxu0 %v5144
      %v5496 = vpop.f32.mrb[0].mxu0
      %v5497 = vadd.f32 %v4622, %v5496
      %v5498 = vpop.f32.mrb[0].mxu0
      %5499 = vmatprep.mubr.f32.mxu0 0.0
      %5500 = vmatmul.mubr.f32.gmra.mrb[0].mxu0 %v5146
      %v5501 = vpop.f32.mrb[0].mxu0
      %v5502 = vadd.f32 %v4623, %v5501
      %v5503 = vpop.f32.mrb[0].mxu0
      %5504 = vmatprep.mubr.f32.mxu0 0.0
      %5505 = vmatmul.mubr.f32.gmra.mrb[0].mxu0 %v5148
      %v5506 = vpop.f32.mrb[0].mxu0
      %v5507 = vadd.f32 %v4624, %v5506
      %v5508 = vpop.f32.mrb[0].mxu0
      %5509 = vmatprep.mubr.f32.mxu0 0.0
      %5510 = vmatmul.mubr.f32.gmra.mrb[0].mxu0 %v5150
      %v5511 = vpop.f32.mrb[0].mxu0
      %v5512 = vadd.f32 %v4625, %v5511
      %v5513 = vpop.f32.mrb[0].mxu0
      %5514 = vmatprep.mubr.f32.mxu0 0.0
      %5515 = vmatmul.mubr.f32.gmra.mrb[0].mxu0 %v5152
      %v5516 = vpop.f32.mrb[0].mxu0
      %v5517 = vadd.f32 %v4626, %v5516
      %v5518 = vpop.f32.mrb[0].mxu0
      %5519 = vmatprep.mubr.f32.mxu0 0.0
      %5520 = vmatmul.mubr.f32.gmra.mrb[0].mxu0 %v5154
      %v5521 = vpop.f32.mrb[0].mxu0
      %v5522 = vadd.f32 %v4627, %v5521
      %v5523 = vpop.f32.mrb[0].mxu0
      %5524 = vmatprep.mubr.f32.mxu0 0.0
      %5525 = vmatmul.mubr.f32.gmra.mrb[0].mxu0 %v5156
      %v5526 = vpop.f32.mrb[0].mxu0
      %v5527 = vadd.f32 %v4628, %v5526
      %v5528 = vpop.f32.mrb[0].mxu0
      %5529 = vmatprep.mubr.f32.mxu0 0.0
      %5530 = vmatmul.mubr.f32.gmra.mrb[0].mxu0 %v5158
      %v5531 = vpop.f32.mrb[0].mxu0
      %v5532 = vadd.f32 %v4629, %v5531
      %v5533 = vpop.f32.mrb[0].mxu0
      %5534 = vmatprep.mubr.f32.mxu0 0.0
      %5535 = vmatmul.mubr.f32.gmra.mrb[0].mxu0 %v5160
      %v5536 = vpop.f32.mrb[0].mxu0
      %v5537 = vadd.f32 %v4630, %v5536
      %v5538 = vpop.f32.mrb[0].mxu0
      %5539 = vmatprep.mubr.f32.mxu0 0.0
      %5540 = vmatmul.mubr.f32.gmra.mrb[0].mxu0 %v5162
      %v5541 = vpop.f32.mrb[0].mxu0
      %v5542 = vadd.f32 %v4631, %v5541
      %v5543 = vpop.f32.mrb[0].mxu0
      %5544 = vmatprep.mubr.f32.mxu0 0.0
      %5545 = vmatmul.mubr.f32.gmra.mrb[0].mxu0 %v5164
      %v5546 = vpop.f32.mrb[0].mxu0
      %v5547 = vadd.f32 %v4632, %v5546
      %v5548 = vpop.f32.mrb[0].mxu0
      %5549 = vmatprep.mubr.f32.mxu0 0.0
      %5550 = vmatmul.mubr.f32.gmra.mrb[0].mxu0 %v5166
      %v5551 = vpop.f32.mrb[0].mxu0
      %v5552 = vadd.f32 %v4633, %v5551
      %v5553 = vpop.f32.mrb[0].mxu0
      %5554 = vmatprep.mubr.f32.mxu0 0.0
      %5555 = vmatmul.mubr.f32.gmra.mrb[0].mxu0 %v5168
      %v5556 = vpop.f32.mrb[0].mxu0
      %v5557 = vadd.f32 %v4634, %v5556
      %v5558 = vpop.f32.mrb[0].mxu0
      %5559 = vmatprep.mubr.f32.mxu0 0.0
      %5560 = vmatmul.mubr.f32.gmra.mrb[0].mxu0 %v5170
      %v5561 = vpop.f32.mrb[0].mxu0
      %v5562 = vadd.f32 %v4635, %v5561
      %v5563 = vpop.f32.mrb[0].mxu0
      %5564 = vmatprep.mubr.f32.mxu0 0.0
      %5565 = vmatmul.mubr.f32.gmra.mrb[0].mxu0 %v5172
      %v5566 = vpop.f32.mrb[0].mxu0
      %v5567 = vadd.f32 %v4636, %v5566
      %v5568 = vpop.f32.mrb[0].mxu0
      %5569 = vmatprep.mubr.f32.mxu0 0.0
      %5570 = vmatmul.mubr.f32.gmra.mrb[0].mxu0 %v5174
      %v5571 = vpop.f32.mrb[0].mxu0
      %v5572 = vadd.f32 %v4637, %v5571
      %v5573 = vpop.f32.mrb[0].mxu0
      %5574 = vmatprep.mubr.f32.mxu0 0.0
      %5575 = vmatmul.mubr.f32.gmra.mrb[0].mxu0 %v5176
      %v5576 = vpop.f32.mrb[0].mxu0
      %v5577 = vadd.f32 %v4638, %v5576
      %v5578 = vpop.f32.mrb[0].mxu0
      %5579 = vmatprep.mubr.f32.mxu0 0.0
      %5580 = vmatmul.mubr.f32.gmra.mrb[0].mxu0 %v5178
      %v5581 = vpop.f32.mrb[0].mxu0
      %v5582 = vadd.f32 %v4639, %v5581
      %v5583 = vpop.f32.mrb[0].mxu0
      %5584 = vmatprep.mubr.f32.mxu0 0.0
      %5585 = vmatmul.mubr.f32.gmra.mrb[0].mxu0 %v5180
      %v5586 = vpop.f32.mrb[0].mxu0
      %v5587 = vadd.f32 %v4640, %v5586
      %v5588 = vpop.f32.mrb[0].mxu0
      %5589 = vmatprep.mubr.f32.mxu0 0.0
      %5590 = vmatmul.mubr.f32.gmra.mrb[0].mxu0 %v5182
      %v5591 = vpop.f32.mrb[0].mxu0
      %v5592 = vadd.f32 %v4641, %v5591
      %v5593 = vpop.f32.mrb[0].mxu0
      %5594 = vmatprep.mubr.f32.mxu0 0.0
      %5595 = vmatmul.mubr.f32.gmra.mrb[0].mxu0 %v5184
      %v5596 = vpop.f32.mrb[0].mxu0
      %v5597 = vadd.f32 %v4642, %v5596
      %v5598 = vpop.f32.mrb[0].mxu0
      %5599 = vmatprep.mubr.f32.mxu0 0.0
      %5600 = vmatmul.mubr.f32.gmra.mrb[0].mxu0 %v5186
      %v5601 = vpop.f32.mrb[0].mxu0
      %v5602 = vadd.f32 %v4643, %v5601
      %v5603 = vpop.f32.mrb[0].mxu0
      %5604 = vmatprep.mubr.f32.mxu0 0.0
      %5605 = vmatmul.mubr.f32.gmra.mrb[0].mxu0 %v5188
      %v5606 = vpop.f32.mrb[0].mxu0
      %v5607 = vadd.f32 %v4644, %v5606
      %v5608 = vpop.f32.mrb[0].mxu0
      %5609 = vmatprep.mubr.f32.mxu0 0.0
      %5610 = vmatmul.mubr.f32.gmra.mrb[0].mxu0 %v5190
      %v5611 = vpop.f32.mrb[0].mxu0
      %v5612 = vadd.f32 %v4645, %v5611
      %v5613 = vpop.f32.mrb[0].mxu0
      %5614 = vmatprep.mubr.f32.mxu0 0.0
      %5615 = vmatmul.mubr.f32.gmra.mrb[0].mxu0 %v5192
      %v5616 = vpop.f32.mrb[0].mxu0
      %v5617 = vadd.f32 %v4646, %v5616
      %v5618 = vpop.f32.mrb[0].mxu0
      %5619 = vmatprep.mubr.f32.mxu0 0.0
      %5620 = vmatmul.mubr.f32.gmra.mrb[0].mxu0 %v5194
      %v5621 = vpop.f32.mrb[0].mxu0
      %v5622 = vadd.f32 %v4647, %v5621
      %v5623 = vpop.f32.mrb[0].mxu0
      %5624 = vmatprep.mubr.f32.mxu0 0.0
      %5625 = vmatmul.mubr.f32.gmra.mrb[0].mxu0 %v5196
      %v5626 = vpop.f32.mrb[0].mxu0
      %v5627 = vadd.f32 %v4648, %v5626
      %v5628 = vpop.f32.mrb[0].mxu0
      %5629 = vmatprep.mubr.f32.mxu0 0.0
      %5630 = vmatmul.mubr.f32.gmra.mrb[0].mxu0 %v5198
      %v5631 = vpop.f32.mrb[0].mxu0
      %v5632 = vadd.f32 %v4649, %v5631
      %v5633 = vpop.f32.mrb[0].mxu0
      %5634 = vmatprep.mubr.f32.mxu0 0.0
      %5635 = vmatmul.mubr.f32.gmra.mrb[0].mxu0 %v5200
      %v5636 = vpop.f32.mrb[0].mxu0
      %v5637 = vadd.f32 %v4650, %v5636
      %v5638 = vpop.f32.mrb[0].mxu0
      %5639 = vmatprep.mubr.f32.mxu0 0.0
      %5640 = vmatmul.mubr.f32.gmra.mrb[0].mxu0 %v5202
      %v5641 = vpop.f32.mrb[0].mxu0
      %v5642 = vadd.f32 %v4651, %v5641
      %v5643 = vpop.f32.mrb[0].mxu0
      %5644 = vmatprep.mubr.f32.mxu0 0.0
      %5645 = vmatmul.mubr.f32.gmra.mrb[0].mxu0 %v5204
      %v5646 = vpop.f32.mrb[0].mxu0
      %v5647 = vadd.f32 %v4652, %v5646
      %v5648 = vpop.f32.mrb[0].mxu0
      %5649 = vmatprep.mubr.f32.mxu0 0.0
      %5650 = vmatmul.mubr.f32.gmra.mrb[0].mxu0 %v5206
      %v5651 = vpop.f32.mrb[0].mxu0
      %v5652 = vadd.f32 %v4653, %v5651
      %v5653 = vpop.f32.mrb[0].mxu0
      %5654 = vmatprep.mubr.f32.mxu0 0.0
      %5655 = vmatmul.mubr.f32.gmra.mrb[0].mxu0 %v5208
      %v5656 = vpop.f32.mrb[0].mxu0
      %v5657 = vadd.f32 %v4654, %v5656
      %v5658 = vpop.f32.mrb[0].mxu0
      %5659 = vmatprep.mubr.f32.mxu0 0.0
      %5660 = vmatmul.mubr.f32.gmra.mrb[0].mxu0 %v5210
      %v5661 = vpop.f32.mrb[0].mxu0
      %v5662 = vadd.f32 %v4655, %v5661
      %v5663 = vpop.f32.mrb[0].mxu0
      %5664 = vmatprep.mubr.f32.mxu0 0.0
      %5665 = vmatmul.mubr.f32.gmra.mrb[0].mxu0 %v5212
      %v5666 = vpop.f32.mrb[0].mxu0
      %v5667 = vadd.f32 %v4656, %v5666
      %v5668 = vpop.f32.mrb[0].mxu0
      %5669 = vmatprep.mubr.f32.mxu0 0.0
      %5670 = vmatmul.mubr.f32.gmra.mrb[0].mxu0 %v5214
      %v5671 = vpop.f32.mrb[0].mxu0
      %v5672 = vadd.f32 %v4657, %v5671
      %v5673 = vpop.f32.mrb[0].mxu0
      %5674 = vmatprep.mubr.f32.mxu0 0.0
      %5675 = vmatmul.mubr.f32.gmra.mrb[0].mxu0 %v5216
      %v5676 = vpop.f32.mrb[0].mxu0
      %v5677 = vadd.f32 %v4658, %v5676
      %v5678 = vpop.f32.mrb[0].mxu0
      %5679 = vmatprep.mubr.f32.mxu0 0.0
      %5680 = vmatmul.mubr.f32.gmra.mrb[0].mxu0 %v5218
      %v5681 = vpop.f32.mrb[0].mxu0
      %v5682 = vadd.f32 %v4659, %v5681
      %v5683 = vpop.f32.mrb[0].mxu0
      %5684 = vmatprep.mubr.f32.mxu0 0.0
      %5685 = vmatmul.mubr.f32.gmra.mrb[0].mxu0 %v5220
      %v5686 = vpop.f32.mrb[0].mxu0
      %v5687 = vadd.f32 %v4660, %v5686
      %v5688 = vpop.f32.mrb[0].mxu0
      %5689 = vmatprep.mubr.f32.mxu0 0.0
      %5690 = vmatmul.mubr.f32.gmra.mrb[0].mxu0 %v5222
      %v5691 = vpop.f32.mrb[0].mxu0
      %v5692 = vadd.f32 %v4661, %v5691
      %v5693 = vpop.f32.mrb[0].mxu0
      %5694 = vmatprep.mubr.f32.mxu0 0.0
      %5695 = vmatmul.mubr.f32.gmra.mrb[0].mxu0 %v5224
      %v5696 = vpop.f32.mrb[0].mxu0
      %v5697 = vadd.f32 %v4662, %v5696
      %v5698 = vpop.f32.mrb[0].mxu0
      %5699 = vmatprep.mubr.f32.mxu0 0.0
      %5700 = vmatmul.mubr.f32.gmra.mrb[0].mxu0 %v5226
      %v5701 = vpop.f32.mrb[0].mxu0
      %v5702 = vadd.f32 %v4663, %v5701
      %v5703 = vpop.f32.mrb[0].mxu0
      %5704 = vmatprep.mubr.f32.mxu0 0.0
      %5705 = vmatmul.mubr.f32.gmra.mrb[0].mxu0 %v5228
      %v5706 = vpop.f32.mrb[0].mxu0
      %v5707 = vadd.f32 %v4664, %v5706
      %v5708 = vpop.f32.mrb[0].mxu0
      %5709 = vmatprep.mubr.f32.mxu0 0.0
      %5710 = vmatmul.mubr.f32.gmra.mrb[0].mxu0 %v5230
      %v5711 = vpop.f32.mrb[0].mxu0
      %v5712 = vadd.f32 %v4665, %v5711
      %v5713 = vpop.f32.mrb[0].mxu0
      %5714 = vmatprep.mubr.f32.mxu0 0.0
      %5715 = vmatmul.mubr.f32.gmra.mrb[0].mxu0 %v5232
      %v5716 = vpop.f32.mrb[0].mxu0
      %v5717 = vadd.f32 %v4666, %v5716
      %v5718 = vpop.f32.mrb[0].mxu0
      %5719 = vmatprep.mubr.f32.mxu0 0.0
      %5720 = vmatmul.mubr.f32.gmra.mrb[0].mxu0 %v5234
      %v5721 = vpop.f32.mrb[0].mxu0
      %v5722 = vadd.f32 %v4667, %v5721
      %v5723 = vpop.f32.mrb[0].mxu0
      %5724 = vmatprep.mubr.f32.mxu0 0.0
      %5725 = vmatmul.mubr.f32.gmra.mrb[0].mxu0 %v5236
      %v5726 = vpop.f32.mrb[0].mxu0
      %v5727 = vadd.f32 %v4668, %v5726
      %v5728 = vpop.f32.mrb[0].mxu0
      %5729 = vmatprep.mubr.f32.mxu0 0.0
      %5730 = vmatmul.mubr.f32.gmra.mrb[0].mxu0 %v5238
      %v5731 = vpop.f32.mrb[0].mxu0
      %v5732 = vadd.f32 %v4669, %v5731
      %v5733 = vpop.f32.mrb[0].mxu0
      %5734 = vmatprep.mubr.f32.mxu0 0.0
      %5735 = vmatmul.mubr.f32.gmra.mrb[0].mxu0 %v5240
      %v5736 = vpop.f32.mrb[0].mxu0
      %v5737 = vadd.f32 %v4670, %v5736
      %v5738 = vpop.f32.mrb[0].mxu0
      %5739 = vmatprep.mubr.f32.mxu0 0.0
      %5740 = vmatmul.mubr.f32.gmra.mrb[0].mxu0 %v5242
      %v5741 = vpop.f32.mrb[0].mxu0
      %v5742 = vadd.f32 %v4671, %v5741
      %v5743 = vpop.f32.mrb[0].mxu0
      %5744 = vmatprep.mubr.f32.mxu0 0.0
      %5745 = vmatmul.mubr.f32.gmra.mrb[0].mxu0 %v5244
      %v5746 = vpop.f32.mrb[0].mxu0
      %v5747 = vadd.f32 %v4672, %v5746
      %v5748 = vpop.f32.mrb[0].mxu0
      %5749 = vmatprep.mubr.f32.mxu0 0.0
      %5750 = vmatmul.mubr.f32.gmra.mrb[0].mxu0 %v5246
      %v5751 = vpop.f32.mrb[0].mxu0
      %v5752 = vadd.f32 %v4673, %v5751
      %v5753 = vpop.f32.mrb[0].mxu0
      %5754 = vmatprep.mubr.f32.mxu0 0.0
      %5755 = vmatmul.mubr.f32.gmra.mrb[0].mxu0 %v5248
      %v5756 = vpop.f32.mrb[0].mxu0
      %v5757 = vadd.f32 %v4674, %v5756
      %v5758 = vpop.f32.mrb[0].mxu0
      %5759 = vmatprep.mubr.f32.mxu0 0.0
      %5760 = vmatmul.mubr.f32.gmra.mrb[0].mxu0 %v5250
      %v5761 = vpop.f32.mrb[0].mxu0
      %v5762 = vadd.f32 %v4675, %v5761
      %v5763 = vpop.f32.mrb[0].mxu0
      %5764 = vmatprep.mubr.f32.mxu0 0.0
      %5765 = vmatmul.mubr.f32.gmra.mrb[0].mxu0 %v5252
      %v5766 = vpop.f32.mrb[0].mxu0
      %v5767 = vadd.f32 %v4676, %v5766
      %v5768 = vpop.f32.mrb[0].mxu0
      %5769 = vmatprep.mubr.f32.mxu0 0.0
      %5770 = vmatmul.mubr.f32.gmra.mrb[0].mxu0 %v5254
      %v5771 = vpop.f32.mrb[0].mxu0
      %v5772 = vadd.f32 %v4677, %v5771
      %v5773 = vpop.f32.mrb[0].mxu0
      %5774 = vmatprep.mubr.f32.mxu0 0.0
      %5775 = vmatmul.mubr.f32.gmra.mrb[0].mxu0 %v5256
      %v5776 = vpop.f32.mrb[0].mxu0
      %v5777 = vadd.f32 %v4678, %v5776
      %v5778 = vpop.f32.mrb[0].mxu0
      %5779 = vmatprep.mubr.f32.mxu0 0.0
      %5780 = vmatmul.mubr.f32.gmra.mrb[0].mxu0 %v5258
      %v5781 = vpop.f32.mrb[0].mxu0
      %v5782 = vadd.f32 %v4679, %v5781
      %v5783 = vpop.f32.mrb[0].mxu0
      %5784 = vmatprep.mubr.f32.mxu0 0.0
      %5785 = vmatmul.mubr.f32.gmra.mrb[0].mxu0 %v5260
      %v5786 = vpop.f32.mrb[0].mxu0
      %v5787 = vadd.f32 %v4680, %v5786
      %v5788 = vpop.f32.mrb[0].mxu0
      %5789 = vmatprep.mubr.f32.mxu0 0.0
      %5790 = vmatmul.mubr.f32.gmra.mrb[0].mxu0 %v5262
      %v5791 = vpop.f32.mrb[0].mxu0
      %v5792 = vadd.f32 %v4681, %v5791
      %v5793 = vpop.f32.mrb[0].mxu0
      %5794 = vmatprep.mubr.f32.mxu0 0.0
      %5795 = vmatmul.mubr.f32.gmra.mrb[0].mxu0 %v5264
      %v5796 = vpop.f32.mrb[0].mxu0
      %v5797 = vadd.f32 %v4682, %v5796
      %v5798 = vpop.f32.mrb[0].mxu0
      %5799 = vmatprep.mubr.f32.mxu0 0.0
      %5800 = vmatmul.mubr.f32.gmra.mrb[0].mxu0 %v5266
      %v5801 = vpop.f32.mrb[0].mxu0
      %v5802 = vadd.f32 %v4683, %v5801
      %v5803 = vpop.f32.mrb[0].mxu0
      %5804 = vmatprep.mubr.f32.mxu0 0.0
      %5805 = vmatmul.mubr.f32.gmra.mrb[0].mxu0 %v5268
      %v5806 = vpop.f32.mrb[0].mxu0
      %v5807 = vadd.f32 %v4684, %v5806
      %v5808 = vpop.f32.mrb[0].mxu0
      %5809 = vmatprep.mubr.f32.mxu0 0.0
      %5810 = vmatmul.mubr.f32.gmra.mrb[0].mxu0 %v5270
      %v5811 = vpop.f32.mrb[0].mxu0
      %v5812 = vadd.f32 %v4685, %v5811
      %v5813 = vpop.f32.mrb[0].mxu0
      %5814 = vmatprep.mubr.f32.mxu0 0.0
      %5815 = vmatmul.mubr.f32.gmra.mrb[0].mxu0 %v5272
      %v5816 = vpop.f32.mrb[0].mxu0
      %v5817 = vadd.f32 %v4686, %v5816
      %v5818 = vpop.f32.mrb[0].mxu0
      %5819 = vmatprep.mubr.f32.mxu0 0.0
      %5820 = vmatmul.mubr.f32.gmra.mrb[0].mxu0 %v5274
      %v5821 = vpop.f32.mrb[0].mxu0
      %v5822 = vadd.f32 %v4687, %v5821
      %v5823 = vpop.f32.mrb[0].mxu0
      %5824 = vmatprep.mubr.f32.mxu0 0.0
      %5825 = vmatmul.mubr.f32.gmra.mrb[0].mxu0 %v5276
      %v5826 = vpop.f32.mrb[0].mxu0
      %v5827 = vadd.f32 %v4688, %v5826
      %v5828 = vpop.f32.mrb[0].mxu0
      %5829 = vmatprep.mubr.f32.mxu0 0.0
      %5830 = vmatmul.mubr.f32.gmra.mrb[0].mxu0 %v5278
      %v5831 = vpop.f32.mrb[0].mxu0
      %v5832 = vadd.f32 %v4689, %v5831
      %v5833 = vpop.f32.mrb[0].mxu0
      %5834 = vmatprep.mubr.f32.mxu0 0.0
      %5835 = vmatmul.mubr.f32.gmra.mrb[0].mxu0 %v5280
      %v5836 = vpop.f32.mrb[0].mxu0
      %v5837 = vadd.f32 %v4690, %v5836
      %v5838 = vpop.f32.mrb[0].mxu0
      %5839 = vmatprep.mubr.f32.mxu0 0.0
      %5840 = vmatmul.mubr.f32.gmra.mrb[0].mxu0 %v5282
      %v5841 = vpop.f32.mrb[0].mxu0
      %v5842 = vadd.f32 %v4691, %v5841
      %v5843 = vpop.f32.mrb[0].mxu0
      %5844 = vmatprep.mubr.f32.mxu0 0.0
      %5845 = vmatmul.mubr.f32.gmra.mrb[0].mxu0 %v5284
      %v5846 = vpop.f32.mrb[0].mxu0
      %v5847 = vadd.f32 %v4692, %v5846
      %v5848 = vpop.f32.mrb[0].mxu0
      %5849 = vmatprep.mubr.f32.mxu0 0.0
      %5850 = vmatmul.mubr.f32.gmra.mrb[0].mxu0 %v5286
      %v5851 = vpop.f32.mrb[0].mxu0
      %v5852 = vadd.f32 %v4693, %v5851
      %v5853 = vpop.f32.mrb[0].mxu0
      %5854 = vmatprep.mubr.f32.mxu0 0.0
      %5855 = vmatmul.mubr.f32.gmra.mrb[0].mxu0 %v5288
      %v5856 = vpop.f32.mrb[0].mxu0
      %v5857 = vadd.f32 %v4694, %v5856
      %v5858 = vpop.f32.mrb[0].mxu0
      %5859 = vmatprep.mubr.f32.mxu0 0.0
      %5860 = vmatmul.mubr.f32.gmra.mrb[0].mxu0 %v5290
      %v5861 = vpop.f32.mrb[0].mxu0
      %v5862 = vadd.f32 %v4695, %v5861
      %v5863 = vpop.f32.mrb[0].mxu0
      %5864 = vmatprep.mubr.f32.mxu0 0.0
      %5865 = vmatmul.mubr.f32.gmra.mrb[0].mxu0 %v5292
      %v5866 = vpop.f32.mrb[0].mxu0
      %v5867 = vadd.f32 %v4696, %v5866
      %v5868 = vpop.f32.mrb[0].mxu0
      %5869 = vmatprep.mubr.f32.mxu0 0.0
      %5870 = vmatmul.mubr.f32.gmra.mrb[0].mxu0 %v5294
      %v5871 = vpop.f32.mrb[0].mxu0
      %v5872 = vadd.f32 %v4697, %v5871
      %v5873 = vpop.f32.mrb[0].mxu0
      %5874 = vmatprep.mubr.f32.mxu0 0.0
      %5875 = vmatmul.mubr.f32.gmra.mrb[0].mxu0 %v5296
      %v5876 = vpop.f32.mrb[0].mxu0
      %v5877 = vadd.f32 %v4698, %v5876
      %v5878 = vpop.f32.mrb[0].mxu0
      %5879 = vmatprep.mubr.f32.mxu0 0.0
      %5880 = vmatmul.mubr.f32.gmra.mrb[0].mxu0 %v5298
      %v5881 = vpop.f32.mrb[0].mxu0
      %v5882 = vadd.f32 %v4699, %v5881
      %v5883 = vpop.f32.mrb[0].mxu0
      %5884 = vmatprep.mubr.f32.mxu0 0.0
      %5885 = vmatmul.mubr.f32.gmra.mrb[0].mxu0 %v5300
      %v5886 = vpop.f32.mrb[0].mxu0
      %v5887 = vadd.f32 %v4700, %v5886
      %v5888 = vpop.f32.mrb[0].mxu0
      %5889 = vmatprep.mubr.f32.mxu0 0.0
      %5890 = vmatmul.mubr.f32.gmra.mrb[0].mxu0 %v5302
      %v5891 = vpop.f32.mrb[0].mxu0
      %v5892 = vadd.f32 %v4701, %v5891
      %v5893 = vpop.f32.mrb[0].mxu0
      %5894 = vmatprep.mubr.f32.mxu0 0.0
      %5895 = vmatmul.mubr.f32.gmra.mrb[0].mxu0 %v5304
      %v5896 = vpop.f32.mrb[0].mxu0
      %v5897 = vadd.f32 %v4702, %v5896
      %v5898 = vpop.f32.mrb[0].mxu0
      %5899 = vmatprep.mubr.f32.mxu0 0.0
      %5900 = vmatmul.mubr.f32.gmra.mrb[0].mxu0 %v5306
      %v5901 = vpop.f32.mrb[0].mxu0
      %v5902 = vadd.f32 %v4703, %v5901
      %v5903 = vpop.f32.mrb[0].mxu0
      %5904 = vmatprep.mubr.f32.mxu0 0.0
      %5905 = vmatmul.mubr.f32.gmra.mrb[0].mxu0 %v5308
      %v5906 = vpop.f32.mrb[0].mxu0
      %v5907 = vadd.f32 %v4704, %v5906
      %v5908 = vpop.f32.mrb[0].mxu0
      %5909 = vmatprep.mubr.f32.mxu0 0.0
      %5910 = vmatmul.mubr.f32.gmra.mrb[0].mxu0 %v5310
      %v5911 = vpop.f32.mrb[0].mxu0
      %v5912 = vadd.f32 %v4705, %v5911
      %v5913 = vpop.f32.mrb[0].mxu0
      %5914 = vmatprep.mubr.f32.mxu0 0.0
      %5915 = vmatmul.mubr.f32.gmra.mrb[0].mxu0 %v5312
      %v5916 = vpop.f32.mrb[0].mxu0
      %v5917 = vadd.f32 %v4706, %v5916
      %v5918 = vpop.f32.mrb[0].mxu0
      %5919 = vmatprep.mubr.f32.mxu0 0.0
      %5920 = vmatmul.mubr.f32.gmra.mrb[0].mxu0 %v5314
      %v5921 = vpop.f32.mrb[0].mxu0
      %v5922 = vadd.f32 %v4707, %v5921
      %v5923 = vpop.f32.mrb[0].mxu0
      %5924 = vmatprep.mubr.f32.mxu0 0.0
      %5925 = vmatmul.mubr.f32.gmra.mrb[0].mxu0 %v5316
      %v5926 = vpop.f32.mrb[0].mxu0
      %v5927 = vadd.f32 %v4708, %v5926
      %v5928 = vpop.f32.mrb[0].mxu0
      %5929 = vmatprep.mubr.f32.mxu0 0.0
      %5930 = vmatmul.mubr.f32.gmra.mrb[0].mxu0 %v5318
      %v5931 = vpop.f32.mrb[0].mxu0
      %v5932 = vadd.f32 %v4709, %v5931
      %v5933 = vpop.f32.mrb[0].mxu0
      %5934 = vmatprep.mubr.f32.mxu0 0.0
      %5935 = vmatmul.mubr.f32.gmra.mrb[0].mxu0 %v5320
      %v5936 = vpop.f32.mrb[0].mxu0
      %v5937 = vadd.f32 %v4710, %v5936
      %v5938 = vpop.f32.mrb[0].mxu0
      %5939 = vmatprep.mubr.f32.mxu0 0.0
      %5940 = vmatmul.mubr.f32.gmra.mrb[0].mxu0 %v5322
      %v5941 = vpop.f32.mrb[0].mxu0
      %v5942 = vadd.f32 %v4711, %v5941
      %v5943 = vpop.f32.mrb[0].mxu0
      %5944 = vmatprep.mubr.f32.mxu0 0.0
      %5945 = vmatmul.mubr.f32.gmra.mrb[0].mxu0 %v5324
      %v5946 = vpop.f32.mrb[0].mxu0
      %v5947 = vadd.f32 %v4712, %v5946
      %v5948 = vpop.f32.mrb[0].mxu0
      %5949 = vmatprep.mubr.f32.mxu0 0.0
      %5950 = vmatmul.mubr.f32.gmra.mrb[0].mxu0 %v5326
      %v5951 = vpop.f32.mrb[0].mxu0
      %v5952 = vadd.f32 %v4713, %v5951
      %v5953 = vpop.f32.mrb[0].mxu0
      %5954 = vmatprep.mubr.f32.mxu0 0.0
      %5955 = vmatmul.mubr.f32.gmra.mrb[0].mxu0 %v5328
      %v5956 = vpop.f32.mrb[0].mxu0
      %v5957 = vadd.f32 %v4714, %v5956
      %v5958 = vpop.f32.mrb[0].mxu0
      %5959 = vmatprep.mubr.f32.mxu0 0.0
      %5960 = vmatmul.mubr.f32.gmra.mrb[0].mxu0 %v5330
      %v5961 = vpop.f32.mrb[0].mxu0
      %v5962 = vadd.f32 %v4715, %v5961
      %v5963 = vpop.f32.mrb[0].mxu0
      %5964 = vmatprep.mubr.f32.mxu0 0.0
      %5965 = vmatmul.mubr.f32.gmra.mrb[0].mxu0 %v5332
      %v5966 = vpop.f32.mrb[0].mxu0
      %v5967 = vadd.f32 %v4716, %v5966
      %v5968 = vpop.f32.mrb[0].mxu0
      %5969 = vmatprep.mubr.f32.mxu0 0.0
      %5970 = vmatmul.mubr.f32.gmra.mrb[0].mxu0 %v5334
      %v5971 = vpop.f32.mrb[0].mxu0
      %v5972 = vadd.f32 %v4717, %v5971
      %v5973 = vpop.f32.mrb[0].mxu0
      %5974 = vmatprep.mubr.f32.mxu0 0.0
      %5975 = vmatmul.mubr.f32.gmra.mrb[0].mxu0 %v5336
      %v5976 = vpop.f32.mrb[0].mxu0
      %v5977 = vadd.f32 %v4718, %v5976
      %v5978 = vpop.f32.mrb[0].mxu0
      %5979 = vmatprep.mubr.f32.mxu0 0.0
      %5980 = vmatmul.mubr.f32.gmra.mrb[0].mxu0 %v5338
      %v5981 = vpop.f32.mrb[0].mxu0
      %v5982 = vadd.f32 %v4719, %v5981
      %v5983 = vpop.f32.mrb[0].mxu0
      %5984 = vmatprep.mubr.f32.mxu0 0.0
      %5985 = vmatmul.mubr.f32.gmra.mrb[0].mxu0 %v5340
      %v5986 = vpop.f32.mrb[0].mxu0
      %v5987 = vadd.f32 %v4720, %v5986
      %v5988 = vpop.f32.mrb[0].mxu0
      %5989 = vmatprep.mubr.f32.mxu0 0.0
      %5990 = vmatmul.mubr.f32.gmra.mrb[0].mxu0 %v5342
      %v5991 = vpop.f32.mrb[0].mxu0
      %v5992 = vadd.f32 %v4721, %v5991
      %v5993 = vpop.f32.mrb[0].mxu0
      %5994 = vmatprep.mubr.f32.mxu0 0.0
      %5995 = vmatmul.mubr.f32.gmra.mrb[0].mxu0 %v5344
      %v5996 = vpop.f32.mrb[0].mxu0
      %v5997 = vadd.f32 %v4722, %v5996
      %v5998 = vpop.f32.mrb[0].mxu0
      %5999 = vmatprep.mubr.f32.mxu0 0.0
      %6000 = vmatmul.mubr.f32.gmra.mrb[0].mxu0 %v5346
      %v6001 = vpop.f32.mrb[0].mxu0
      %v6002 = vadd.f32 %v4723, %v6001
      %v6003 = vpop.f32.mrb[0].mxu0
      %6004 = vmatprep.mubr.f32.mxu0 0.0
      %6005 = vmatmul.mubr.f32.gmra.mrb[0].mxu0 %v5348
      %v6006 = vpop.f32.mrb[0].mxu0
      %v6007 = vadd.f32 %v4724, %v6006
      %v6008 = vpop.f32.mrb[0].mxu0
      %6009 = vmatprep.mubr.f32.mxu0 0.0
      %6010 = vmatmul.mubr.f32.gmra.mrb[0].mxu0 %v5350
      %v6011 = vpop.f32.mrb[0].mxu0
      %v6012 = vadd.f32 %v4725, %v6011
      %v6013 = vpop.f32.mrb[0].mxu0
      %6014 = vmatprep.mubr.f32.mxu0 0.0
      %6015 = vmatmul.mubr.f32.gmra.mrb[0].mxu0 %v5352
      %v6016 = vpop.f32.mrb[0].mxu0
      %v6017 = vadd.f32 %v4726, %v6016
      %v6018 = vpop.f32.mrb[0].mxu0
      %6019 = vmatprep.mubr.f32.mxu0 0.0
      %6020 = vmatmul.mubr.f32.gmra.mrb[0].mxu0 %v5354
      %v6021 = vpop.f32.mrb[0].mxu0
      %v6022 = vadd.f32 %v4727, %v6021
      %v6023 = vpop.f32.mrb[0].mxu0
      %6024 = vmatprep.mubr.f32.mxu0 0.0
      %6025 = vmatmul.mubr.f32.gmra.mrb[0].mxu0 %v5356
      %v6026 = vpop.f32.mrb[0].mxu0
      %v6027 = vadd.f32 %v4728, %v6026
      %v6028 = vpop.f32.mrb[0].mxu0
      %6029 = vmatprep.mubr.f32.mxu0 0.0
      %6030 = vmatmul.mubr.f32.gmra.mrb[0].mxu0 %v5358
      %v6031 = vpop.f32.mrb[0].mxu0
      %v6032 = vadd.f32 %v4729, %v6031
      %v6033 = vpop.f32.mrb[0].mxu0
      %6034 = vmatprep.mubr.f32.mxu0 0.0
      %6035 = vmatmul.mubr.f32.gmra.mrb[0].mxu0 %v5360
      %v6036 = vpop.f32.mrb[0].mxu0
      %v6037 = vadd.f32 %v4730, %v6036
      %v6038 = vpop.f32.mrb[0].mxu0
      %6039 = vmatprep.mubr.f32.mxu0 0.0
      %6040 = vmatmul.mubr.f32.gmra.mrb[0].mxu0 %v5362
      %v6041 = vpop.f32.mrb[0].mxu0
      %v6042 = vadd.f32 %v4731, %v6041
      %v6043 = vpop.f32.mrb[0].mxu0
      %6044 = vmatprep.mubr.f32.mxu0 0.0
      %6045 = vmatmul.mubr.f32.gmra.mrb[0].mxu0 %v5364
      %v6046 = vpop.f32.mrb[0].mxu0
      %v6047 = vadd.f32 %v4732, %v6046
      %v6048 = vpop.f32.mrb[0].mxu0
      %6049 = vmatprep.mubr.f32.mxu0 0.0
      %6050 = vmatmul.mubr.f32.gmra.mrb[0].mxu0 %v5366
      %v6051 = vpop.f32.mrb[0].mxu0
      %v6052 = vadd.f32 %v4733, %v6051
      %v6053 = vpop.f32.mrb[0].mxu0
      %6054 = vmatprep.mubr.f32.mxu0 0.0
      %6055 = vmatmul.mubr.f32.gmra.mrb[0].mxu0 %v5368
      %v6056 = vpop.f32.mrb[0].mxu0
      %v6057 = vadd.f32 %v4734, %v6056
      %v6058 = vpop.f32.mrb[0].mxu0
      %6059 = vmatprep.mubr.f32.mxu0 0.0
      %6060 = vmatmul.mubr.f32.gmra.mrb[0].mxu0 %v5370
      %v6061 = vpop.f32.mrb[0].mxu0
      %v6062 = vadd.f32 %v4735, %v6061
      %v6063 = vpop.f32.mrb[0].mxu0
      %6064 = vmatprep.mubr.f32.mxu0 0.0
      %6065 = vmatmul.mubr.f32.gmra.mrb[0].mxu0 %v5372
      %v6066 = vpop.f32.mrb[0].mxu0
      %v6067 = vadd.f32 %v4736, %v6066
      %v6068 = vpop.f32.mrb[0].mxu0
      %6069 = vmatprep.mubr.f32.mxu0 0.0
      %6070 = vmatmul.mubr.f32.gmra.mrb[0].mxu0 %v5374
      %v6071 = vpop.f32.mrb[0].mxu0
      %v6072 = vadd.f32 %v4737, %v6071
      %v6073 = vpop.f32.mrb[0].mxu0
      %6074 = vmatprep.mubr.f32.mxu0 0.0
      %6075 = vmatmul.mubr.f32.gmra.mrb[0].mxu0 %v5376
      %v6076 = vpop.f32.mrb[0].mxu0
      %v6077 = vadd.f32 %v4738, %v6076
      %v6078 = vpop.f32.mrb[0].mxu0
      %6079 = vmatprep.mubr.f32.mxu0 0.0
      %6080 = vmatmul.mubr.f32.gmra.mrb[0].mxu0 %v5378
      %v6081 = vpop.f32.mrb[0].mxu0
      %v6082 = vadd.f32 %v4739, %v6081
      %v6083 = vpop.f32.mrb[0].mxu0
      %6084 = vdwg.mxu0
      %6086 = vrot.lane.b32.xlu0 %v4611, 64
      %v6087 = vpop.permute.xlu0 %6086
      %v6089 = vmul.f32 %v3547, %v6087
      %v6090 = vmul.f32 %v3548, %v6087
      %v6091 = vmul.f32 %v3549, %v6087
      %v6092 = vmul.f32 %v3550, %v6087
      %v6093 = vmul.f32 %v3551, %v6087
      %v6094 = vmul.f32 %v3552, %v6087
      %v6095 = vmul.f32 %v3553, %v6087
      %v6096 = vmul.f32 %v3554, %v6087
      %v6097 = vmul.f32 %v3555, %v6087
      %v6098 = vmul.f32 %v3556, %v6087
      %v6099 = vmul.f32 %v3557, %v6087
      %v6100 = vmul.f32 %v3558, %v6087
      %v6101 = vmul.f32 %v3559, %v6087
      %v6102 = vmul.f32 %v3560, %v6087
      %v6103 = vmul.f32 %v3561, %v6087
      %v6104 = vmul.f32 %v3562, %v6087
      %v6105 = vmul.f32 %v3563, %v6087
      %v6106 = vmul.f32 %v3564, %v6087
      %v6107 = vmul.f32 %v3565, %v6087
      %v6108 = vmul.f32 %v3566, %v6087
      %v6109 = vmul.f32 %v3567, %v6087
      %v6110 = vmul.f32 %v3568, %v6087
      %v6111 = vmul.f32 %v3569, %v6087
      %v6112 = vmul.f32 %v3570, %v6087
      %v6113 = vmul.f32 %v3571, %v6087
      %v6114 = vmul.f32 %v3572, %v6087
      %v6115 = vmul.f32 %v3573, %v6087
      %v6116 = vmul.f32 %v3574, %v6087
      %v6117 = vmul.f32 %v3575, %v6087
      %v6118 = vmul.f32 %v3576, %v6087
      %v6119 = vmul.f32 %v3577, %v6087
      %v6120 = vmul.f32 %v3578, %v6087
      %v6121 = vmul.f32 %v3579, %v6087
      %v6122 = vmul.f32 %v3580, %v6087
      %v6123 = vmul.f32 %v3581, %v6087
      %v6124 = vmul.f32 %v3582, %v6087
      %v6125 = vmul.f32 %v3583, %v6087
      %v6126 = vmul.f32 %v3584, %v6087
      %v6127 = vmul.f32 %v3585, %v6087
      %v6128 = vmul.f32 %v3586, %v6087
      %v6129 = vmul.f32 %v3587, %v6087
      %v6130 = vmul.f32 %v3588, %v6087
      %v6131 = vmul.f32 %v3589, %v6087
      %v6132 = vmul.f32 %v3590, %v6087
      %v6133 = vmul.f32 %v3591, %v6087
      %v6134 = vmul.f32 %v3592, %v6087
      %v6135 = vmul.f32 %v3593, %v6087
      %v6136 = vmul.f32 %v3594, %v6087
      %v6137 = vmul.f32 %v3595, %v6087
      %v6138 = vmul.f32 %v3596, %v6087
      %v6139 = vmul.f32 %v3597, %v6087
      %v6140 = vmul.f32 %v3598, %v6087
      %v6141 = vmul.f32 %v3599, %v6087
      %v6142 = vmul.f32 %v3600, %v6087
      %v6143 = vmul.f32 %v3601, %v6087
      %v6144 = vmul.f32 %v3602, %v6087
      %v6145 = vmul.f32 %v3603, %v6087
      %v6146 = vmul.f32 %v3604, %v6087
      %v6147 = vmul.f32 %v3605, %v6087
      %v6148 = vmul.f32 %v3606, %v6087
      %v6149 = vmul.f32 %v3607, %v6087
      %v6150 = vmul.f32 %v3608, %v6087
      %v6151 = vmul.f32 %v3609, %v6087
      %v6152 = vmul.f32 %v3610, %v6087
      %v6153 = vmul.f32 %v3611, %v6087
      %v6154 = vmul.f32 %v3612, %v6087
      %v6155 = vmul.f32 %v3613, %v6087
      %v6156 = vmul.f32 %v3614, %v6087
      %v6157 = vmul.f32 %v3615, %v6087
      %v6158 = vmul.f32 %v3616, %v6087
      %v6159 = vmul.f32 %v3617, %v6087
      %v6160 = vmul.f32 %v3618, %v6087
      %v6161 = vmul.f32 %v3619, %v6087
      %v6162 = vmul.f32 %v3620, %v6087
      %v6163 = vmul.f32 %v3621, %v6087
      %v6164 = vmul.f32 %v3622, %v6087
      %v6165 = vmul.f32 %v3623, %v6087
      %v6166 = vmul.f32 %v3624, %v6087
      %v6167 = vmul.f32 %v3625, %v6087
      %v6168 = vmul.f32 %v3626, %v6087
      %v6169 = vmul.f32 %v3627, %v6087
      %v6170 = vmul.f32 %v3628, %v6087
      %v6171 = vmul.f32 %v3629, %v6087
      %v6172 = vmul.f32 %v3630, %v6087
      %v6173 = vmul.f32 %v3631, %v6087
      %v6174 = vmul.f32 %v3632, %v6087
      %v6175 = vmul.f32 %v3633, %v6087
      %v6176 = vmul.f32 %v3634, %v6087
      %v6177 = vmul.f32 %v3635, %v6087
      %v6178 = vmul.f32 %v3636, %v6087
      %v6179 = vmul.f32 %v3637, %v6087
      %v6180 = vmul.f32 %v3638, %v6087
      %v6181 = vmul.f32 %v3639, %v6087
      %v6182 = vmul.f32 %v3640, %v6087
      %v6183 = vmul.f32 %v3641, %v6087
      %v6184 = vmul.f32 %v3642, %v6087
      %v6185 = vmul.f32 %v3643, %v6087
      %v6186 = vmul.f32 %v3644, %v6087
      %v6187 = vmul.f32 %v3645, %v6087
      %v6188 = vmul.f32 %v3646, %v6087
      %v6189 = vmul.f32 %v3647, %v6087
      %v6190 = vmul.f32 %v3648, %v6087
      %v6191 = vmul.f32 %v3649, %v6087
      %v6192 = vmul.f32 %v3650, %v6087
      %v6193 = vmul.f32 %v3651, %v6087
      %v6194 = vmul.f32 %v3652, %v6087
      %v6195 = vmul.f32 %v3653, %v6087
      %v6196 = vmul.f32 %v3654, %v6087
      %v6197 = vmul.f32 %v3655, %v6087
      %v6198 = vmul.f32 %v3656, %v6087
      %v6199 = vmul.f32 %v3657, %v6087
      %v6200 = vmul.f32 %v3658, %v6087
      %v6201 = vmul.f32 %v3659, %v6087
      %v6202 = vmul.f32 %v3660, %v6087
      %v6203 = vmul.f32 %v3661, %v6087
      %v6204 = vmul.f32 %v3662, %v6087
      %v6205 = vmul.f32 %v3663, %v6087
      %v6206 = vmul.f32 %v3664, %v6087
      %v6207 = vmul.f32 %v3665, %v6087
      %v6208 = vmul.f32 %v3666, %v6087
      %v6209 = vmul.f32 %v3667, %v6087
      %v6210 = vmul.f32 %v3668, %v6087
      %v6211 = vmul.f32 %v3669, %v6087
      %v6212 = vmul.f32 %v3670, %v6087
      %v6213 = vmul.f32 %v3671, %v6087
      %v6214 = vmul.f32 %v3672, %v6087
      %v6215 = vmul.f32 %v3673, %v6087
      %v6216 = vmul.f32 %v3674, %v6087
      %6345 = vrot.lane.b32.xlu0 %v6089, 64
      %v6346 = vpop.permute.xlu0 %6345
      %6347 = vrot.lane.b32.xlu0 %v6090, 64
      %v6348 = vpop.permute.xlu0 %6347
      %6349 = vrot.lane.b32.xlu0 %v6091, 64
      %v6350 = vpop.permute.xlu0 %6349
      %6351 = vrot.lane.b32.xlu0 %v6092, 64
      %v6352 = vpop.permute.xlu0 %6351
      %6353 = vrot.lane.b32.xlu0 %v6093, 64
      %v6354 = vpop.permute.xlu0 %6353
      %6355 = vrot.lane.b32.xlu0 %v6094, 64
      %v6356 = vpop.permute.xlu0 %6355
      %6357 = vrot.lane.b32.xlu0 %v6095, 64
      %v6358 = vpop.permute.xlu0 %6357
      %6359 = vrot.lane.b32.xlu0 %v6096, 64
      %v6360 = vpop.permute.xlu0 %6359
      %6361 = vrot.lane.b32.xlu0 %v6097, 64
      %v6362 = vpop.permute.xlu0 %6361
      %6363 = vrot.lane.b32.xlu0 %v6098, 64
      %v6364 = vpop.permute.xlu0 %6363
      %6365 = vrot.lane.b32.xlu0 %v6099, 64
      %v6366 = vpop.permute.xlu0 %6365
      %6367 = vrot.lane.b32.xlu0 %v6100, 64
      %v6368 = vpop.permute.xlu0 %6367
      %6369 = vrot.lane.b32.xlu0 %v6101, 64
      %v6370 = vpop.permute.xlu0 %6369
      %6371 = vrot.lane.b32.xlu0 %v6102, 64
      %v6372 = vpop.permute.xlu0 %6371
      %6373 = vrot.lane.b32.xlu0 %v6103, 64
      %v6374 = vpop.permute.xlu0 %6373
      %6375 = vrot.lane.b32.xlu0 %v6104, 64
      %v6376 = vpop.permute.xlu0 %6375
      %6377 = vrot.lane.b32.xlu0 %v6105, 64
      %v6378 = vpop.permute.xlu0 %6377
      %6379 = vrot.lane.b32.xlu0 %v6106, 64
      %v6380 = vpop.permute.xlu0 %6379
      %6381 = vrot.lane.b32.xlu0 %v6107, 64
      %v6382 = vpop.permute.xlu0 %6381
      %6383 = vrot.lane.b32.xlu0 %v6108, 64
      %v6384 = vpop.permute.xlu0 %6383
      %6385 = vrot.lane.b32.xlu0 %v6109, 64
      %v6386 = vpop.permute.xlu0 %6385
      %6387 = vrot.lane.b32.xlu0 %v6110, 64
      %v6388 = vpop.permute.xlu0 %6387
      %6389 = vrot.lane.b32.xlu0 %v6111, 64
      %v6390 = vpop.permute.xlu0 %6389
      %6391 = vrot.lane.b32.xlu0 %v6112, 64
      %v6392 = vpop.permute.xlu0 %6391
      %6393 = vrot.lane.b32.xlu0 %v6113, 64
      %v6394 = vpop.permute.xlu0 %6393
      %6395 = vrot.lane.b32.xlu0 %v6114, 64
      %v6396 = vpop.permute.xlu0 %6395
      %6397 = vrot.lane.b32.xlu0 %v6115, 64
      %v6398 = vpop.permute.xlu0 %6397
      %6399 = vrot.lane.b32.xlu0 %v6116, 64
      %v6400 = vpop.permute.xlu0 %6399
      %6401 = vrot.lane.b32.xlu0 %v6117, 64
      %v6402 = vpop.permute.xlu0 %6401
      %6403 = vrot.lane.b32.xlu0 %v6118, 64
      %v6404 = vpop.permute.xlu0 %6403
      %6405 = vrot.lane.b32.xlu0 %v6119, 64
      %v6406 = vpop.permute.xlu0 %6405
      %6407 = vrot.lane.b32.xlu0 %v6120, 64
      %v6408 = vpop.permute.xlu0 %6407
      %6409 = vrot.lane.b32.xlu0 %v6121, 64
      %v6410 = vpop.permute.xlu0 %6409
      %6411 = vrot.lane.b32.xlu0 %v6122, 64
      %v6412 = vpop.permute.xlu0 %6411
      %6413 = vrot.lane.b32.xlu0 %v6123, 64
      %v6414 = vpop.permute.xlu0 %6413
      %6415 = vrot.lane.b32.xlu0 %v6124, 64
      %v6416 = vpop.permute.xlu0 %6415
      %6417 = vrot.lane.b32.xlu0 %v6125, 64
      %v6418 = vpop.permute.xlu0 %6417
      %6419 = vrot.lane.b32.xlu0 %v6126, 64
      %v6420 = vpop.permute.xlu0 %6419
      %6421 = vrot.lane.b32.xlu0 %v6127, 64
      %v6422 = vpop.permute.xlu0 %6421
      %6423 = vrot.lane.b32.xlu0 %v6128, 64
      %v6424 = vpop.permute.xlu0 %6423
      %6425 = vrot.lane.b32.xlu0 %v6129, 64
      %v6426 = vpop.permute.xlu0 %6425
      %6427 = vrot.lane.b32.xlu0 %v6130, 64
      %v6428 = vpop.permute.xlu0 %6427
      %6429 = vrot.lane.b32.xlu0 %v6131, 64
      %v6430 = vpop.permute.xlu0 %6429
      %6431 = vrot.lane.b32.xlu0 %v6132, 64
      %v6432 = vpop.permute.xlu0 %6431
      %6433 = vrot.lane.b32.xlu0 %v6133, 64
      %v6434 = vpop.permute.xlu0 %6433
      %6435 = vrot.lane.b32.xlu0 %v6134, 64
      %v6436 = vpop.permute.xlu0 %6435
      %6437 = vrot.lane.b32.xlu0 %v6135, 64
      %v6438 = vpop.permute.xlu0 %6437
      %6439 = vrot.lane.b32.xlu0 %v6136, 64
      %v6440 = vpop.permute.xlu0 %6439
      %6441 = vrot.lane.b32.xlu0 %v6137, 64
      %v6442 = vpop.permute.xlu0 %6441
      %6443 = vrot.lane.b32.xlu0 %v6138, 64
      %v6444 = vpop.permute.xlu0 %6443
      %6445 = vrot.lane.b32.xlu0 %v6139, 64
      %v6446 = vpop.permute.xlu0 %6445
      %6447 = vrot.lane.b32.xlu0 %v6140, 64
      %v6448 = vpop.permute.xlu0 %6447
      %6449 = vrot.lane.b32.xlu0 %v6141, 64
      %v6450 = vpop.permute.xlu0 %6449
      %6451 = vrot.lane.b32.xlu0 %v6142, 64
      %v6452 = vpop.permute.xlu0 %6451
      %6453 = vrot.lane.b32.xlu0 %v6143, 64
      %v6454 = vpop.permute.xlu0 %6453
      %6455 = vrot.lane.b32.xlu0 %v6144, 64
      %v6456 = vpop.permute.xlu0 %6455
      %6457 = vrot.lane.b32.xlu0 %v6145, 64
      %v6458 = vpop.permute.xlu0 %6457
      %6459 = vrot.lane.b32.xlu0 %v6146, 64
      %v6460 = vpop.permute.xlu0 %6459
      %6461 = vrot.lane.b32.xlu0 %v6147, 64
      %v6462 = vpop.permute.xlu0 %6461
      %6463 = vrot.lane.b32.xlu0 %v6148, 64
      %v6464 = vpop.permute.xlu0 %6463
      %6465 = vrot.lane.b32.xlu0 %v6149, 64
      %v6466 = vpop.permute.xlu0 %6465
      %6467 = vrot.lane.b32.xlu0 %v6150, 64
      %v6468 = vpop.permute.xlu0 %6467
      %6469 = vrot.lane.b32.xlu0 %v6151, 64
      %v6470 = vpop.permute.xlu0 %6469
      %6471 = vrot.lane.b32.xlu0 %v6152, 64
      %v6472 = vpop.permute.xlu0 %6471
      %6473 = vrot.lane.b32.xlu0 %v6153, 64
      %v6474 = vpop.permute.xlu0 %6473
      %6475 = vrot.lane.b32.xlu0 %v6154, 64
      %v6476 = vpop.permute.xlu0 %6475
      %6477 = vrot.lane.b32.xlu0 %v6155, 64
      %v6478 = vpop.permute.xlu0 %6477
      %6479 = vrot.lane.b32.xlu0 %v6156, 64
      %v6480 = vpop.permute.xlu0 %6479
      %6481 = vrot.lane.b32.xlu0 %v6157, 64
      %v6482 = vpop.permute.xlu0 %6481
      %6483 = vrot.lane.b32.xlu0 %v6158, 64
      %v6484 = vpop.permute.xlu0 %6483
      %6485 = vrot.lane.b32.xlu0 %v6159, 64
      %v6486 = vpop.permute.xlu0 %6485
      %6487 = vrot.lane.b32.xlu0 %v6160, 64
      %v6488 = vpop.permute.xlu0 %6487
      %6489 = vrot.lane.b32.xlu0 %v6161, 64
      %v6490 = vpop.permute.xlu0 %6489
      %6491 = vrot.lane.b32.xlu0 %v6162, 64
      %v6492 = vpop.permute.xlu0 %6491
      %6493 = vrot.lane.b32.xlu0 %v6163, 64
      %v6494 = vpop.permute.xlu0 %6493
      %6495 = vrot.lane.b32.xlu0 %v6164, 64
      %v6496 = vpop.permute.xlu0 %6495
      %6497 = vrot.lane.b32.xlu0 %v6165, 64
      %v6498 = vpop.permute.xlu0 %6497
      %6499 = vrot.lane.b32.xlu0 %v6166, 64
      %v6500 = vpop.permute.xlu0 %6499
      %6501 = vrot.lane.b32.xlu0 %v6167, 64
      %v6502 = vpop.permute.xlu0 %6501
      %6503 = vrot.lane.b32.xlu0 %v6168, 64
      %v6504 = vpop.permute.xlu0 %6503
      %6505 = vrot.lane.b32.xlu0 %v6169, 64
      %v6506 = vpop.permute.xlu0 %6505
      %6507 = vrot.lane.b32.xlu0 %v6170, 64
      %v6508 = vpop.permute.xlu0 %6507
      %6509 = vrot.lane.b32.xlu0 %v6171, 64
      %v6510 = vpop.permute.xlu0 %6509
      %6511 = vrot.lane.b32.xlu0 %v6172, 64
      %v6512 = vpop.permute.xlu0 %6511
      %6513 = vrot.lane.b32.xlu0 %v6173, 64
      %v6514 = vpop.permute.xlu0 %6513
      %6515 = vrot.lane.b32.xlu0 %v6174, 64
      %v6516 = vpop.permute.xlu0 %6515
      %6517 = vrot.lane.b32.xlu0 %v6175, 64
      %v6518 = vpop.permute.xlu0 %6517
      %6519 = vrot.lane.b32.xlu0 %v6176, 64
      %v6520 = vpop.permute.xlu0 %6519
      %6521 = vrot.lane.b32.xlu0 %v6177, 64
      %v6522 = vpop.permute.xlu0 %6521
      %6523 = vrot.lane.b32.xlu0 %v6178, 64
      %v6524 = vpop.permute.xlu0 %6523
      %6525 = vrot.lane.b32.xlu0 %v6179, 64
      %v6526 = vpop.permute.xlu0 %6525
      %6527 = vrot.lane.b32.xlu0 %v6180, 64
      %v6528 = vpop.permute.xlu0 %6527
      %6529 = vrot.lane.b32.xlu0 %v6181, 64
      %v6530 = vpop.permute.xlu0 %6529
      %6531 = vrot.lane.b32.xlu0 %v6182, 64
      %v6532 = vpop.permute.xlu0 %6531
      %6533 = vrot.lane.b32.xlu0 %v6183, 64
      %v6534 = vpop.permute.xlu0 %6533
      %6535 = vrot.lane.b32.xlu0 %v6184, 64
      %v6536 = vpop.permute.xlu0 %6535
      %6537 = vrot.lane.b32.xlu0 %v6185, 64
      %v6538 = vpop.permute.xlu0 %6537
      %6539 = vrot.lane.b32.xlu0 %v6186, 64
      %v6540 = vpop.permute.xlu0 %6539
      %6541 = vrot.lane.b32.xlu0 %v6187, 64
      %v6542 = vpop.permute.xlu0 %6541
      %6543 = vrot.lane.b32.xlu0 %v6188, 64
      %v6544 = vpop.permute.xlu0 %6543
      %6545 = vrot.lane.b32.xlu0 %v6189, 64
      %v6546 = vpop.permute.xlu0 %6545
      %6547 = vrot.lane.b32.xlu0 %v6190, 64
      %v6548 = vpop.permute.xlu0 %6547
      %6549 = vrot.lane.b32.xlu0 %v6191, 64
      %v6550 = vpop.permute.xlu0 %6549
      %6551 = vrot.lane.b32.xlu0 %v6192, 64
      %v6552 = vpop.permute.xlu0 %6551
      %6553 = vrot.lane.b32.xlu0 %v6193, 64
      %v6554 = vpop.permute.xlu0 %6553
      %6555 = vrot.lane.b32.xlu0 %v6194, 64
      %v6556 = vpop.permute.xlu0 %6555
      %6557 = vrot.lane.b32.xlu0 %v6195, 64
      %v6558 = vpop.permute.xlu0 %6557
      %6559 = vrot.lane.b32.xlu0 %v6196, 64
      %v6560 = vpop.permute.xlu0 %6559
      %6561 = vrot.lane.b32.xlu0 %v6197, 64
      %v6562 = vpop.permute.xlu0 %6561
      %6563 = vrot.lane.b32.xlu0 %v6198, 64
      %v6564 = vpop.permute.xlu0 %6563
      %6565 = vrot.lane.b32.xlu0 %v6199, 64
      %v6566 = vpop.permute.xlu0 %6565
      %6567 = vrot.lane.b32.xlu0 %v6200, 64
      %v6568 = vpop.permute.xlu0 %6567
      %6569 = vrot.lane.b32.xlu0 %v6201, 64
      %v6570 = vpop.permute.xlu0 %6569
      %6571 = vrot.lane.b32.xlu0 %v6202, 64
      %v6572 = vpop.permute.xlu0 %6571
      %6573 = vrot.lane.b32.xlu0 %v6203, 64
      %v6574 = vpop.permute.xlu0 %6573
      %6575 = vrot.lane.b32.xlu0 %v6204, 64
      %v6576 = vpop.permute.xlu0 %6575
      %6577 = vrot.lane.b32.xlu0 %v6205, 64
      %v6578 = vpop.permute.xlu0 %6577
      %6579 = vrot.lane.b32.xlu0 %v6206, 64
      %v6580 = vpop.permute.xlu0 %6579
      %6581 = vrot.lane.b32.xlu0 %v6207, 64
      %v6582 = vpop.permute.xlu0 %6581
      %6583 = vrot.lane.b32.xlu0 %v6208, 64
      %v6584 = vpop.permute.xlu0 %6583
      %6585 = vrot.lane.b32.xlu0 %v6209, 64
      %v6586 = vpop.permute.xlu0 %6585
      %6587 = vrot.lane.b32.xlu0 %v6210, 64
      %v6588 = vpop.permute.xlu0 %6587
      %6589 = vrot.lane.b32.xlu0 %v6211, 64
      %v6590 = vpop.permute.xlu0 %6589
      %6591 = vrot.lane.b32.xlu0 %v6212, 64
      %v6592 = vpop.permute.xlu0 %6591
      %6593 = vrot.lane.b32.xlu0 %v6213, 64
      %v6594 = vpop.permute.xlu0 %6593
      %6595 = vrot.lane.b32.xlu0 %v6214, 64
      %v6596 = vpop.permute.xlu0 %6595
      %6597 = vrot.lane.b32.xlu0 %v6215, 64
      %v6598 = vpop.permute.xlu0 %6597
      %6599 = vrot.lane.b32.xlu0 %v6216, 64
      %v6600 = vpop.permute.xlu0 %6599
      %v6729 = vsel %vm1882, %v6346, 0.0
      %6730 = vadd.xlane.f32.xlu0 %v6729
      %v6731 = vpop.xlane.xlu0 %6730
      %v6732 = vsel %vm1882, %v6348, 0.0
      %6733 = vadd.xlane.f32.xlu0 %v6732
      %v6734 = vpop.xlane.xlu0 %6733
      %v6735 = vsel %vm1882, %v6350, 0.0
      %6736 = vadd.xlane.f32.xlu0 %v6735
      %v6737 = vpop.xlane.xlu0 %6736
      %v6738 = vsel %vm1882, %v6352, 0.0
      %6739 = vadd.xlane.f32.xlu0 %v6738
      %v6740 = vpop.xlane.xlu0 %6739
      %v6741 = vsel %vm1882, %v6354, 0.0
      %6742 = vadd.xlane.f32.xlu0 %v6741
      %v6743 = vpop.xlane.xlu0 %6742
      %v6744 = vsel %vm1882, %v6356, 0.0
      %6745 = vadd.xlane.f32.xlu0 %v6744
      %v6746 = vpop.xlane.xlu0 %6745
      %v6747 = vsel %vm1882, %v6358, 0.0
      %6748 = vadd.xlane.f32.xlu0 %v6747
      %v6749 = vpop.xlane.xlu0 %6748
      %v6750 = vsel %vm1882, %v6360, 0.0
      %6751 = vadd.xlane.f32.xlu0 %v6750
      %v6752 = vpop.xlane.xlu0 %6751
      %v6753 = vsel %vm1882, %v6362, 0.0
      %6754 = vadd.xlane.f32.xlu0 %v6753
      %v6755 = vpop.xlane.xlu0 %6754
      %v6756 = vsel %vm1882, %v6364, 0.0
      %6757 = vadd.xlane.f32.xlu0 %v6756
      %v6758 = vpop.xlane.xlu0 %6757
      %v6759 = vsel %vm1882, %v6366, 0.0
      %6760 = vadd.xlane.f32.xlu0 %v6759
      %v6761 = vpop.xlane.xlu0 %6760
      %v6762 = vsel %vm1882, %v6368, 0.0
      %6763 = vadd.xlane.f32.xlu0 %v6762
      %v6764 = vpop.xlane.xlu0 %6763
      %v6765 = vsel %vm1882, %v6370, 0.0
      %6766 = vadd.xlane.f32.xlu0 %v6765
      %v6767 = vpop.xlane.xlu0 %6766
      %v6768 = vsel %vm1882, %v6372, 0.0
      %6769 = vadd.xlane.f32.xlu0 %v6768
      %v6770 = vpop.xlane.xlu0 %6769
      %v6771 = vsel %vm1882, %v6374, 0.0
      %6772 = vadd.xlane.f32.xlu0 %v6771
      %v6773 = vpop.xlane.xlu0 %6772
      %v6774 = vsel %vm1882, %v6376, 0.0
      %6775 = vadd.xlane.f32.xlu0 %v6774
      %v6776 = vpop.xlane.xlu0 %6775
      %v6777 = vsel %vm1882, %v6378, 0.0
      %6778 = vadd.xlane.f32.xlu0 %v6777
      %v6779 = vpop.xlane.xlu0 %6778
      %v6780 = vsel %vm1882, %v6380, 0.0
      %6781 = vadd.xlane.f32.xlu0 %v6780
      %v6782 = vpop.xlane.xlu0 %6781
      %v6783 = vsel %vm1882, %v6382, 0.0
      %6784 = vadd.xlane.f32.xlu0 %v6783
      %v6785 = vpop.xlane.xlu0 %6784
      %v6786 = vsel %vm1882, %v6384, 0.0
      %6787 = vadd.xlane.f32.xlu0 %v6786
      %v6788 = vpop.xlane.xlu0 %6787
      %v6789 = vsel %vm1882, %v6386, 0.0
      %6790 = vadd.xlane.f32.xlu0 %v6789
      %v6791 = vpop.xlane.xlu0 %6790
      %v6792 = vsel %vm1882, %v6388, 0.0
      %6793 = vadd.xlane.f32.xlu0 %v6792
      %v6794 = vpop.xlane.xlu0 %6793
      %v6795 = vsel %vm1882, %v6390, 0.0
      %6796 = vadd.xlane.f32.xlu0 %v6795
      %v6797 = vpop.xlane.xlu0 %6796
      %v6798 = vsel %vm1882, %v6392, 0.0
      %6799 = vadd.xlane.f32.xlu0 %v6798
      %v6800 = vpop.xlane.xlu0 %6799
      %v6801 = vsel %vm1882, %v6394, 0.0
      %6802 = vadd.xlane.f32.xlu0 %v6801
      %v6803 = vpop.xlane.xlu0 %6802
      %v6804 = vsel %vm1882, %v6396, 0.0
      %6805 = vadd.xlane.f32.xlu0 %v6804
      %v6806 = vpop.xlane.xlu0 %6805
      %v6807 = vsel %vm1882, %v6398, 0.0
      %6808 = vadd.xlane.f32.xlu0 %v6807
      %v6809 = vpop.xlane.xlu0 %6808
      %v6810 = vsel %vm1882, %v6400, 0.0
      %6811 = vadd.xlane.f32.xlu0 %v6810
      %v6812 = vpop.xlane.xlu0 %6811
      %v6813 = vsel %vm1882, %v6402, 0.0
      %6814 = vadd.xlane.f32.xlu0 %v6813
      %v6815 = vpop.xlane.xlu0 %6814
      %v6816 = vsel %vm1882, %v6404, 0.0
      %6817 = vadd.xlane.f32.xlu0 %v6816
      %v6818 = vpop.xlane.xlu0 %6817
      %v6819 = vsel %vm1882, %v6406, 0.0
      %6820 = vadd.xlane.f32.xlu0 %v6819
      %v6821 = vpop.xlane.xlu0 %6820
      %v6822 = vsel %vm1882, %v6408, 0.0
      %6823 = vadd.xlane.f32.xlu0 %v6822
      %v6824 = vpop.xlane.xlu0 %6823
      %v6825 = vsel %vm1882, %v6410, 0.0
      %6826 = vadd.xlane.f32.xlu0 %v6825
      %v6827 = vpop.xlane.xlu0 %6826
      %v6828 = vsel %vm1882, %v6412, 0.0
      %6829 = vadd.xlane.f32.xlu0 %v6828
      %v6830 = vpop.xlane.xlu0 %6829
      %v6831 = vsel %vm1882, %v6414, 0.0
      %6832 = vadd.xlane.f32.xlu0 %v6831
      %v6833 = vpop.xlane.xlu0 %6832
      %v6834 = vsel %vm1882, %v6416, 0.0
      %6835 = vadd.xlane.f32.xlu0 %v6834
      %v6836 = vpop.xlane.xlu0 %6835
      %v6837 = vsel %vm1882, %v6418, 0.0
      %6838 = vadd.xlane.f32.xlu0 %v6837
      %v6839 = vpop.xlane.xlu0 %6838
      %v6840 = vsel %vm1882, %v6420, 0.0
      %6841 = vadd.xlane.f32.xlu0 %v6840
      %v6842 = vpop.xlane.xlu0 %6841
      %v6843 = vsel %vm1882, %v6422, 0.0
      %6844 = vadd.xlane.f32.xlu0 %v6843
      %v6845 = vpop.xlane.xlu0 %6844
      %v6846 = vsel %vm1882, %v6424, 0.0
      %6847 = vadd.xlane.f32.xlu0 %v6846
      %v6848 = vpop.xlane.xlu0 %6847
      %v6849 = vsel %vm1882, %v6426, 0.0
      %6850 = vadd.xlane.f32.xlu0 %v6849
      %v6851 = vpop.xlane.xlu0 %6850
      %v6852 = vsel %vm1882, %v6428, 0.0
      %6853 = vadd.xlane.f32.xlu0 %v6852
      %v6854 = vpop.xlane.xlu0 %6853
      %v6855 = vsel %vm1882, %v6430, 0.0
      %6856 = vadd.xlane.f32.xlu0 %v6855
      %v6857 = vpop.xlane.xlu0 %6856
      %v6858 = vsel %vm1882, %v6432, 0.0
      %6859 = vadd.xlane.f32.xlu0 %v6858
      %v6860 = vpop.xlane.xlu0 %6859
      %v6861 = vsel %vm1882, %v6434, 0.0
      %6862 = vadd.xlane.f32.xlu0 %v6861
      %v6863 = vpop.xlane.xlu0 %6862
      %v6864 = vsel %vm1882, %v6436, 0.0
      %6865 = vadd.xlane.f32.xlu0 %v6864
      %v6866 = vpop.xlane.xlu0 %6865
      %v6867 = vsel %vm1882, %v6438, 0.0
      %6868 = vadd.xlane.f32.xlu0 %v6867
      %v6869 = vpop.xlane.xlu0 %6868
      %v6870 = vsel %vm1882, %v6440, 0.0
      %6871 = vadd.xlane.f32.xlu0 %v6870
      %v6872 = vpop.xlane.xlu0 %6871
      %v6873 = vsel %vm1882, %v6442, 0.0
      %6874 = vadd.xlane.f32.xlu0 %v6873
      %v6875 = vpop.xlane.xlu0 %6874
      %v6876 = vsel %vm1882, %v6444, 0.0
      %6877 = vadd.xlane.f32.xlu0 %v6876
      %v6878 = vpop.xlane.xlu0 %6877
      %v6879 = vsel %vm1882, %v6446, 0.0
      %6880 = vadd.xlane.f32.xlu0 %v6879
      %v6881 = vpop.xlane.xlu0 %6880
      %v6882 = vsel %vm1882, %v6448, 0.0
      %6883 = vadd.xlane.f32.xlu0 %v6882
      %v6884 = vpop.xlane.xlu0 %6883
      %v6885 = vsel %vm1882, %v6450, 0.0
      %6886 = vadd.xlane.f32.xlu0 %v6885
      %v6887 = vpop.xlane.xlu0 %6886
      %v6888 = vsel %vm1882, %v6452, 0.0
      %6889 = vadd.xlane.f32.xlu0 %v6888
      %v6890 = vpop.xlane.xlu0 %6889
      %v6891 = vsel %vm1882, %v6454, 0.0
      %6892 = vadd.xlane.f32.xlu0 %v6891
      %v6893 = vpop.xlane.xlu0 %6892
      %v6894 = vsel %vm1882, %v6456, 0.0
      %6895 = vadd.xlane.f32.xlu0 %v6894
      %v6896 = vpop.xlane.xlu0 %6895
      %v6897 = vsel %vm1882, %v6458, 0.0
      %6898 = vadd.xlane.f32.xlu0 %v6897
      %v6899 = vpop.xlane.xlu0 %6898
      %v6900 = vsel %vm1882, %v6460, 0.0
      %6901 = vadd.xlane.f32.xlu0 %v6900
      %v6902 = vpop.xlane.xlu0 %6901
      %v6903 = vsel %vm1882, %v6462, 0.0
      %6904 = vadd.xlane.f32.xlu0 %v6903
      %v6905 = vpop.xlane.xlu0 %6904
      %v6906 = vsel %vm1882, %v6464, 0.0
      %6907 = vadd.xlane.f32.xlu0 %v6906
      %v6908 = vpop.xlane.xlu0 %6907
      %v6909 = vsel %vm1882, %v6466, 0.0
      %6910 = vadd.xlane.f32.xlu0 %v6909
      %v6911 = vpop.xlane.xlu0 %6910
      %v6912 = vsel %vm1882, %v6468, 0.0
      %6913 = vadd.xlane.f32.xlu0 %v6912
      %v6914 = vpop.xlane.xlu0 %6913
      %v6915 = vsel %vm1882, %v6470, 0.0
      %6916 = vadd.xlane.f32.xlu0 %v6915
      %v6917 = vpop.xlane.xlu0 %6916
      %v6918 = vsel %vm1882, %v6472, 0.0
      %6919 = vadd.xlane.f32.xlu0 %v6918
      %v6920 = vpop.xlane.xlu0 %6919
      %v6921 = vsel %vm1882, %v6474, 0.0
      %6922 = vadd.xlane.f32.xlu0 %v6921
      %v6923 = vpop.xlane.xlu0 %6922
      %v6924 = vsel %vm1882, %v6476, 0.0
      %6925 = vadd.xlane.f32.xlu0 %v6924
      %v6926 = vpop.xlane.xlu0 %6925
      %v6927 = vsel %vm1882, %v6478, 0.0
      %6928 = vadd.xlane.f32.xlu0 %v6927
      %v6929 = vpop.xlane.xlu0 %6928
      %v6930 = vsel %vm1882, %v6480, 0.0
      %6931 = vadd.xlane.f32.xlu0 %v6930
      %v6932 = vpop.xlane.xlu0 %6931
      %v6933 = vsel %vm1882, %v6482, 0.0
      %6934 = vadd.xlane.f32.xlu0 %v6933
      %v6935 = vpop.xlane.xlu0 %6934
      %v6936 = vsel %vm1882, %v6484, 0.0
      %6937 = vadd.xlane.f32.xlu0 %v6936
      %v6938 = vpop.xlane.xlu0 %6937
      %v6939 = vsel %vm1882, %v6486, 0.0
      %6940 = vadd.xlane.f32.xlu0 %v6939
      %v6941 = vpop.xlane.xlu0 %6940
      %v6942 = vsel %vm1882, %v6488, 0.0
      %6943 = vadd.xlane.f32.xlu0 %v6942
      %v6944 = vpop.xlane.xlu0 %6943
      %v6945 = vsel %vm1882, %v6490, 0.0
      %6946 = vadd.xlane.f32.xlu0 %v6945
      %v6947 = vpop.xlane.xlu0 %6946
      %v6948 = vsel %vm1882, %v6492, 0.0
      %6949 = vadd.xlane.f32.xlu0 %v6948
      %v6950 = vpop.xlane.xlu0 %6949
      %v6951 = vsel %vm1882, %v6494, 0.0
      %6952 = vadd.xlane.f32.xlu0 %v6951
      %v6953 = vpop.xlane.xlu0 %6952
      %v6954 = vsel %vm1882, %v6496, 0.0
      %6955 = vadd.xlane.f32.xlu0 %v6954
      %v6956 = vpop.xlane.xlu0 %6955
      %v6957 = vsel %vm1882, %v6498, 0.0
      %6958 = vadd.xlane.f32.xlu0 %v6957
      %v6959 = vpop.xlane.xlu0 %6958
      %v6960 = vsel %vm1882, %v6500, 0.0
      %6961 = vadd.xlane.f32.xlu0 %v6960
      %v6962 = vpop.xlane.xlu0 %6961
      %v6963 = vsel %vm1882, %v6502, 0.0
      %6964 = vadd.xlane.f32.xlu0 %v6963
      %v6965 = vpop.xlane.xlu0 %6964
      %v6966 = vsel %vm1882, %v6504, 0.0
      %6967 = vadd.xlane.f32.xlu0 %v6966
      %v6968 = vpop.xlane.xlu0 %6967
      %v6969 = vsel %vm1882, %v6506, 0.0
      %6970 = vadd.xlane.f32.xlu0 %v6969
      %v6971 = vpop.xlane.xlu0 %6970
      %v6972 = vsel %vm1882, %v6508, 0.0
      %6973 = vadd.xlane.f32.xlu0 %v6972
      %v6974 = vpop.xlane.xlu0 %6973
      %v6975 = vsel %vm1882, %v6510, 0.0
      %6976 = vadd.xlane.f32.xlu0 %v6975
      %v6977 = vpop.xlane.xlu0 %6976
      %v6978 = vsel %vm1882, %v6512, 0.0
      %6979 = vadd.xlane.f32.xlu0 %v6978
      %v6980 = vpop.xlane.xlu0 %6979
      %v6981 = vsel %vm1882, %v6514, 0.0
      %6982 = vadd.xlane.f32.xlu0 %v6981
      %v6983 = vpop.xlane.xlu0 %6982
      %v6984 = vsel %vm1882, %v6516, 0.0
      %6985 = vadd.xlane.f32.xlu0 %v6984
      %v6986 = vpop.xlane.xlu0 %6985
      %v6987 = vsel %vm1882, %v6518, 0.0
      %6988 = vadd.xlane.f32.xlu0 %v6987
      %v6989 = vpop.xlane.xlu0 %6988
      %v6990 = vsel %vm1882, %v6520, 0.0
      %6991 = vadd.xlane.f32.xlu0 %v6990
      %v6992 = vpop.xlane.xlu0 %6991
      %v6993 = vsel %vm1882, %v6522, 0.0
      %6994 = vadd.xlane.f32.xlu0 %v6993
      %v6995 = vpop.xlane.xlu0 %6994
      %v6996 = vsel %vm1882, %v6524, 0.0
      %6997 = vadd.xlane.f32.xlu0 %v6996
      %v6998 = vpop.xlane.xlu0 %6997
      %v6999 = vsel %vm1882, %v6526, 0.0
      %7000 = vadd.xlane.f32.xlu0 %v6999
      %v7001 = vpop.xlane.xlu0 %7000
      %v7002 = vsel %vm1882, %v6528, 0.0
      %7003 = vadd.xlane.f32.xlu0 %v7002
      %v7004 = vpop.xlane.xlu0 %7003
      %v7005 = vsel %vm1882, %v6530, 0.0
      %7006 = vadd.xlane.f32.xlu0 %v7005
      %v7007 = vpop.xlane.xlu0 %7006
      %v7008 = vsel %vm1882, %v6532, 0.0
      %7009 = vadd.xlane.f32.xlu0 %v7008
      %v7010 = vpop.xlane.xlu0 %7009
      %v7011 = vsel %vm1882, %v6534, 0.0
      %7012 = vadd.xlane.f32.xlu0 %v7011
      %v7013 = vpop.xlane.xlu0 %7012
      %v7014 = vsel %vm1882, %v6536, 0.0
      %7015 = vadd.xlane.f32.xlu0 %v7014
      %v7016 = vpop.xlane.xlu0 %7015
      %v7017 = vsel %vm1882, %v6538, 0.0
      %7018 = vadd.xlane.f32.xlu0 %v7017
      %v7019 = vpop.xlane.xlu0 %7018
      %v7020 = vsel %vm1882, %v6540, 0.0
      %7021 = vadd.xlane.f32.xlu0 %v7020
      %v7022 = vpop.xlane.xlu0 %7021
      %v7023 = vsel %vm1882, %v6542, 0.0
      %7024 = vadd.xlane.f32.xlu0 %v7023
      %v7025 = vpop.xlane.xlu0 %7024
      %v7026 = vsel %vm1882, %v6544, 0.0
      %7027 = vadd.xlane.f32.xlu0 %v7026
      %v7028 = vpop.xlane.xlu0 %7027
      %v7029 = vsel %vm1882, %v6546, 0.0
      %7030 = vadd.xlane.f32.xlu0 %v7029
      %v7031 = vpop.xlane.xlu0 %7030
      %v7032 = vsel %vm1882, %v6548, 0.0
      %7033 = vadd.xlane.f32.xlu0 %v7032
      %v7034 = vpop.xlane.xlu0 %7033
      %v7035 = vsel %vm1882, %v6550, 0.0
      %7036 = vadd.xlane.f32.xlu0 %v7035
      %v7037 = vpop.xlane.xlu0 %7036
      %v7038 = vsel %vm1882, %v6552, 0.0
      %7039 = vadd.xlane.f32.xlu0 %v7038
      %v7040 = vpop.xlane.xlu0 %7039
      %v7041 = vsel %vm1882, %v6554, 0.0
      %7042 = vadd.xlane.f32.xlu0 %v7041
      %v7043 = vpop.xlane.xlu0 %7042
      %v7044 = vsel %vm1882, %v6556, 0.0
      %7045 = vadd.xlane.f32.xlu0 %v7044
      %v7046 = vpop.xlane.xlu0 %7045
      %v7047 = vsel %vm1882, %v6558, 0.0
      %7048 = vadd.xlane.f32.xlu0 %v7047
      %v7049 = vpop.xlane.xlu0 %7048
      %v7050 = vsel %vm1882, %v6560, 0.0
      %7051 = vadd.xlane.f32.xlu0 %v7050
      %v7052 = vpop.xlane.xlu0 %7051
      %v7053 = vsel %vm1882, %v6562, 0.0
      %7054 = vadd.xlane.f32.xlu0 %v7053
      %v7055 = vpop.xlane.xlu0 %7054
      %v7056 = vsel %vm1882, %v6564, 0.0
      %7057 = vadd.xlane.f32.xlu0 %v7056
      %v7058 = vpop.xlane.xlu0 %7057
      %v7059 = vsel %vm1882, %v6566, 0.0
      %7060 = vadd.xlane.f32.xlu0 %v7059
      %v7061 = vpop.xlane.xlu0 %7060
      %v7062 = vsel %vm1882, %v6568, 0.0
      %7063 = vadd.xlane.f32.xlu0 %v7062
      %v7064 = vpop.xlane.xlu0 %7063
      %v7065 = vsel %vm1882, %v6570, 0.0
      %7066 = vadd.xlane.f32.xlu0 %v7065
      %v7067 = vpop.xlane.xlu0 %7066
      %v7068 = vsel %vm1882, %v6572, 0.0
      %7069 = vadd.xlane.f32.xlu0 %v7068
      %v7070 = vpop.xlane.xlu0 %7069
      %v7071 = vsel %vm1882, %v6574, 0.0
      %7072 = vadd.xlane.f32.xlu0 %v7071
      %v7073 = vpop.xlane.xlu0 %7072
      %v7074 = vsel %vm1882, %v6576, 0.0
      %7075 = vadd.xlane.f32.xlu0 %v7074
      %v7076 = vpop.xlane.xlu0 %7075
      %v7077 = vsel %vm1882, %v6578, 0.0
      %7078 = vadd.xlane.f32.xlu0 %v7077
      %v7079 = vpop.xlane.xlu0 %7078
      %v7080 = vsel %vm1882, %v6580, 0.0
      %7081 = vadd.xlane.f32.xlu0 %v7080
      %v7082 = vpop.xlane.xlu0 %7081
      %v7083 = vsel %vm1882, %v6582, 0.0
      %7084 = vadd.xlane.f32.xlu0 %v7083
      %v7085 = vpop.xlane.xlu0 %7084
      %v7086 = vsel %vm1882, %v6584, 0.0
      %7087 = vadd.xlane.f32.xlu0 %v7086
      %v7088 = vpop.xlane.xlu0 %7087
      %v7089 = vsel %vm1882, %v6586, 0.0
      %7090 = vadd.xlane.f32.xlu0 %v7089
      %v7091 = vpop.xlane.xlu0 %7090
      %v7092 = vsel %vm1882, %v6588, 0.0
      %7093 = vadd.xlane.f32.xlu0 %v7092
      %v7094 = vpop.xlane.xlu0 %7093
      %v7095 = vsel %vm1882, %v6590, 0.0
      %7096 = vadd.xlane.f32.xlu0 %v7095
      %v7097 = vpop.xlane.xlu0 %7096
      %v7098 = vsel %vm1882, %v6592, 0.0
      %7099 = vadd.xlane.f32.xlu0 %v7098
      %v7100 = vpop.xlane.xlu0 %7099
      %v7101 = vsel %vm1882, %v6594, 0.0
      %7102 = vadd.xlane.f32.xlu0 %v7101
      %v7103 = vpop.xlane.xlu0 %7102
      %v7104 = vsel %vm1882, %v6596, 0.0
      %7105 = vadd.xlane.f32.xlu0 %v7104
      %v7106 = vpop.xlane.xlu0 %7105
      %v7107 = vsel %vm1882, %v6598, 0.0
      %7108 = vadd.xlane.f32.xlu0 %v7107
      %v7109 = vpop.xlane.xlu0 %7108
      %v7110 = vsel %vm1882, %v6600, 0.0
      %7111 = vadd.xlane.f32.xlu0 %v7110
      %v7112 = vpop.xlane.xlu0 %7111
      %v7113 = vadd.f32 %v6731, 1024.0
      %v7114 = vadd.f32 %v6734, 1024.0
      %v7115 = vadd.f32 %v6737, 1024.0
      %v7116 = vadd.f32 %v6740, 1024.0
      %v7117 = vadd.f32 %v6743, 1024.0
      %v7118 = vadd.f32 %v6746, 1024.0
      %v7119 = vadd.f32 %v6749, 1024.0
      %v7120 = vadd.f32 %v6752, 1024.0
      %v7121 = vadd.f32 %v6755, 1024.0
      %v7122 = vadd.f32 %v6758, 1024.0
      %v7123 = vadd.f32 %v6761, 1024.0
      %v7124 = vadd.f32 %v6764, 1024.0
      %v7125 = vadd.f32 %v6767, 1024.0
      %v7126 = vadd.f32 %v6770, 1024.0
      %v7127 = vadd.f32 %v6773, 1024.0
      %v7128 = vadd.f32 %v6776, 1024.0
      %v7129 = vadd.f32 %v6779, 1024.0
      %v7130 = vadd.f32 %v6782, 1024.0
      %v7131 = vadd.f32 %v6785, 1024.0
      %v7132 = vadd.f32 %v6788, 1024.0
      %v7133 = vadd.f32 %v6791, 1024.0
      %v7134 = vadd.f32 %v6794, 1024.0
      %v7135 = vadd.f32 %v6797, 1024.0
      %v7136 = vadd.f32 %v6800, 1024.0
      %v7137 = vadd.f32 %v6803, 1024.0
      %v7138 = vadd.f32 %v6806, 1024.0
      %v7139 = vadd.f32 %v6809, 1024.0
      %v7140 = vadd.f32 %v6812, 1024.0
      %v7141 = vadd.f32 %v6815, 1024.0
      %v7142 = vadd.f32 %v6818, 1024.0
      %v7143 = vadd.f32 %v6821, 1024.0
      %v7144 = vadd.f32 %v6824, 1024.0
      %v7145 = vadd.f32 %v6827, 1024.0
      %v7146 = vadd.f32 %v6830, 1024.0
      %v7147 = vadd.f32 %v6833, 1024.0
      %v7148 = vadd.f32 %v6836, 1024.0
      %v7149 = vadd.f32 %v6839, 1024.0
      %v7150 = vadd.f32 %v6842, 1024.0
      %v7151 = vadd.f32 %v6845, 1024.0
      %v7152 = vadd.f32 %v6848, 1024.0
      %v7153 = vadd.f32 %v6851, 1024.0
      %v7154 = vadd.f32 %v6854, 1024.0
      %v7155 = vadd.f32 %v6857, 1024.0
      %v7156 = vadd.f32 %v6860, 1024.0
      %v7157 = vadd.f32 %v6863, 1024.0
      %v7158 = vadd.f32 %v6866, 1024.0
      %v7159 = vadd.f32 %v6869, 1024.0
      %v7160 = vadd.f32 %v6872, 1024.0
      %v7161 = vadd.f32 %v6875, 1024.0
      %v7162 = vadd.f32 %v6878, 1024.0
      %v7163 = vadd.f32 %v6881, 1024.0
      %v7164 = vadd.f32 %v6884, 1024.0
      %v7165 = vadd.f32 %v6887, 1024.0
      %v7166 = vadd.f32 %v6890, 1024.0
      %v7167 = vadd.f32 %v6893, 1024.0
      %v7168 = vadd.f32 %v6896, 1024.0
      %v7169 = vadd.f32 %v6899, 1024.0
      %v7170 = vadd.f32 %v6902, 1024.0
      %v7171 = vadd.f32 %v6905, 1024.0
      %v7172 = vadd.f32 %v6908, 1024.0
      %v7173 = vadd.f32 %v6911, 1024.0
      %v7174 = vadd.f32 %v6914, 1024.0
      %v7175 = vadd.f32 %v6917, 1024.0
      %v7176 = vadd.f32 %v6920, 1024.0
      %v7177 = vadd.f32 %v6923, 1024.0
      %v7178 = vadd.f32 %v6926, 1024.0
      %v7179 = vadd.f32 %v6929, 1024.0
      %v7180 = vadd.f32 %v6932, 1024.0
      %v7181 = vadd.f32 %v6935, 1024.0
      %v7182 = vadd.f32 %v6938, 1024.0
      %v7183 = vadd.f32 %v6941, 1024.0
      %v7184 = vadd.f32 %v6944, 1024.0
      %v7185 = vadd.f32 %v6947, 1024.0
      %v7186 = vadd.f32 %v6950, 1024.0
      %v7187 = vadd.f32 %v6953, 1024.0
      %v7188 = vadd.f32 %v6956, 1024.0
      %v7189 = vadd.f32 %v6959, 1024.0
      %v7190 = vadd.f32 %v6962, 1024.0
      %v7191 = vadd.f32 %v6965, 1024.0
      %v7192 = vadd.f32 %v6968, 1024.0
      %v7193 = vadd.f32 %v6971, 1024.0
      %v7194 = vadd.f32 %v6974, 1024.0
      %v7195 = vadd.f32 %v6977, 1024.0
      %v7196 = vadd.f32 %v6980, 1024.0
      %v7197 = vadd.f32 %v6983, 1024.0
      %v7198 = vadd.f32 %v6986, 1024.0
      %v7199 = vadd.f32 %v6989, 1024.0
      %v7200 = vadd.f32 %v6992, 1024.0
      %v7201 = vadd.f32 %v6995, 1024.0
      %v7202 = vadd.f32 %v6998, 1024.0
      %v7203 = vadd.f32 %v7001, 1024.0
      %v7204 = vadd.f32 %v7004, 1024.0
      %v7205 = vadd.f32 %v7007, 1024.0
      %v7206 = vadd.f32 %v7010, 1024.0
      %v7207 = vadd.f32 %v7013, 1024.0
      %v7208 = vadd.f32 %v7016, 1024.0
      %v7209 = vadd.f32 %v7019, 1024.0
      %v7210 = vadd.f32 %v7022, 1024.0
      %v7211 = vadd.f32 %v7025, 1024.0
      %v7212 = vadd.f32 %v7028, 1024.0
      %v7213 = vadd.f32 %v7031, 1024.0
      %v7214 = vadd.f32 %v7034, 1024.0
      %v7215 = vadd.f32 %v7037, 1024.0
      %v7216 = vadd.f32 %v7040, 1024.0
      %v7217 = vadd.f32 %v7043, 1024.0
      %v7218 = vadd.f32 %v7046, 1024.0
      %v7219 = vadd.f32 %v7049, 1024.0
      %v7220 = vadd.f32 %v7052, 1024.0
      %v7221 = vadd.f32 %v7055, 1024.0
      %v7222 = vadd.f32 %v7058, 1024.0
      %v7223 = vadd.f32 %v7061, 1024.0
      %v7224 = vadd.f32 %v7064, 1024.0
      %v7225 = vadd.f32 %v7067, 1024.0
      %v7226 = vadd.f32 %v7070, 1024.0
      %v7227 = vadd.f32 %v7073, 1024.0
      %v7228 = vadd.f32 %v7076, 1024.0
      %v7229 = vadd.f32 %v7079, 1024.0
      %v7230 = vadd.f32 %v7082, 1024.0
      %v7231 = vadd.f32 %v7085, 1024.0
      %v7232 = vadd.f32 %v7088, 1024.0
      %v7233 = vadd.f32 %v7091, 1024.0
      %v7234 = vadd.f32 %v7094, 1024.0
      %v7235 = vadd.f32 %v7097, 1024.0
      %v7236 = vadd.f32 %v7100, 1024.0
      %v7237 = vadd.f32 %v7103, 1024.0
      %v7238 = vadd.f32 %v7106, 1024.0
      %v7239 = vadd.f32 %v7109, 1024.0
      %v7240 = vadd.f32 %v7112, 1024.0
      %v7241 = vrcp.pop %v7113
      %v7242 = vrcp.pop %v7114
      %v7243 = vrcp.pop %v7115
      %v7244 = vrcp.pop %v7116
      %v7245 = vrcp.pop %v7117
      %v7246 = vrcp.pop %v7118
      %v7247 = vrcp.pop %v7119
      %v7248 = vrcp.pop %v7120
      %v7249 = vrcp.pop %v7121
      %v7250 = vrcp.pop %v7122
      %v7251 = vrcp.pop %v7123
      %v7252 = vrcp.pop %v7124
      %v7253 = vrcp.pop %v7125
      %v7254 = vrcp.pop %v7126
      %v7255 = vrcp.pop %v7127
      %v7256 = vrcp.pop %v7128
      %v7257 = vrcp.pop %v7129
      %v7258 = vrcp.pop %v7130
      %v7259 = vrcp.pop %v7131
      %v7260 = vrcp.pop %v7132
      %v7261 = vrcp.pop %v7133
      %v7262 = vrcp.pop %v7134
      %v7263 = vrcp.pop %v7135
      %v7264 = vrcp.pop %v7136
      %v7265 = vrcp.pop %v7137
      %v7266 = vrcp.pop %v7138
      %v7267 = vrcp.pop %v7139
      %v7268 = vrcp.pop %v7140
      %v7269 = vrcp.pop %v7141
      %v7270 = vrcp.pop %v7142
      %v7271 = vrcp.pop %v7143
      %v7272 = vrcp.pop %v7144
      %v7273 = vrcp.pop %v7145
      %v7274 = vrcp.pop %v7146
      %v7275 = vrcp.pop %v7147
      %v7276 = vrcp.pop %v7148
      %v7277 = vrcp.pop %v7149
      %v7278 = vrcp.pop %v7150
      %v7279 = vrcp.pop %v7151
      %v7280 = vrcp.pop %v7152
      %v7281 = vrcp.pop %v7153
      %v7282 = vrcp.pop %v7154
      %v7283 = vrcp.pop %v7155
      %v7284 = vrcp.pop %v7156
      %v7285 = vrcp.pop %v7157
      %v7286 = vrcp.pop %v7158
      %v7287 = vrcp.pop %v7159
      %v7288 = vrcp.pop %v7160
      %v7289 = vrcp.pop %v7161
      %v7290 = vrcp.pop %v7162
      %v7291 = vrcp.pop %v7163
      %v7292 = vrcp.pop %v7164
      %v7293 = vrcp.pop %v7165
      %v7294 = vrcp.pop %v7166
      %v7295 = vrcp.pop %v7167
      %v7296 = vrcp.pop %v7168
      %v7297 = vrcp.pop %v7169
      %v7298 = vrcp.pop %v7170
      %v7299 = vrcp.pop %v7171
      %v7300 = vrcp.pop %v7172
      %v7301 = vrcp.pop %v7173
      %v7302 = vrcp.pop %v7174
      %v7303 = vrcp.pop %v7175
      %v7304 = vrcp.pop %v7176
      %v7305 = vrcp.pop %v7177
      %v7306 = vrcp.pop %v7178
      %v7307 = vrcp.pop %v7179
      %v7308 = vrcp.pop %v7180
      %v7309 = vrcp.pop %v7181
      %v7310 = vrcp.pop %v7182
      %v7311 = vrcp.pop %v7183
      %v7312 = vrcp.pop %v7184
      %v7313 = vrcp.pop %v7185
      %v7314 = vrcp.pop %v7186
      %v7315 = vrcp.pop %v7187
      %v7316 = vrcp.pop %v7188
      %v7317 = vrcp.pop %v7189
      %v7318 = vrcp.pop %v7190
      %v7319 = vrcp.pop %v7191
      %v7320 = vrcp.pop %v7192
      %v7321 = vrcp.pop %v7193
      %v7322 = vrcp.pop %v7194
      %v7323 = vrcp.pop %v7195
      %v7324 = vrcp.pop %v7196
      %v7325 = vrcp.pop %v7197
      %v7326 = vrcp.pop %v7198
      %v7327 = vrcp.pop %v7199
      %v7328 = vrcp.pop %v7200
      %v7329 = vrcp.pop %v7201
      %v7330 = vrcp.pop %v7202
      %v7331 = vrcp.pop %v7203
      %v7332 = vrcp.pop %v7204
      %v7333 = vrcp.pop %v7205
      %v7334 = vrcp.pop %v7206
      %v7335 = vrcp.pop %v7207
      %v7336 = vrcp.pop %v7208
      %v7337 = vrcp.pop %v7209
      %v7338 = vrcp.pop %v7210
      %v7339 = vrcp.pop %v7211
      %v7340 = vrcp.pop %v7212
      %v7341 = vrcp.pop %v7213
      %v7342 = vrcp.pop %v7214
      %v7343 = vrcp.pop %v7215
      %v7344 = vrcp.pop %v7216
      %v7345 = vrcp.pop %v7217
      %v7346 = vrcp.pop %v7218
      %v7347 = vrcp.pop %v7219
      %v7348 = vrcp.pop %v7220
      %v7349 = vrcp.pop %v7221
      %v7350 = vrcp.pop %v7222
      %v7351 = vrcp.pop %v7223
      %v7352 = vrcp.pop %v7224
      %v7353 = vrcp.pop %v7225
      %v7354 = vrcp.pop %v7226
      %v7355 = vrcp.pop %v7227
      %v7356 = vrcp.pop %v7228
      %v7357 = vrcp.pop %v7229
      %v7358 = vrcp.pop %v7230
      %v7359 = vrcp.pop %v7231
      %v7360 = vrcp.pop %v7232
      %v7361 = vrcp.pop %v7233
      %v7362 = vrcp.pop %v7234
      %v7363 = vrcp.pop %v7235
      %v7364 = vrcp.pop %v7236
      %v7365 = vrcp.pop %v7237
      %v7366 = vrcp.pop %v7238
      %v7367 = vrcp.pop %v7239
      %v7368 = vrcp.pop %v7240
      %v7369 = vmul.f32 %v7113, %v7241
      %v7370 = vmul.f32 %v7114, %v7242
      %v7371 = vmul.f32 %v7115, %v7243
      %v7372 = vmul.f32 %v7116, %v7244
      %v7373 = vmul.f32 %v7117, %v7245
      %v7374 = vmul.f32 %v7118, %v7246
      %v7375 = vmul.f32 %v7119, %v7247
      %v7376 = vmul.f32 %v7120, %v7248
      %v7377 = vmul.f32 %v7121, %v7249
      %v7378 = vmul.f32 %v7122, %v7250
      %v7379 = vmul.f32 %v7123, %v7251
      %v7380 = vmul.f32 %v7124, %v7252
      %v7381 = vmul.f32 %v7125, %v7253
      %v7382 = vmul.f32 %v7126, %v7254
      %v7383 = vmul.f32 %v7127, %v7255
      %v7384 = vmul.f32 %v7128, %v7256
      %v7385 = vmul.f32 %v7129, %v7257
      %v7386 = vmul.f32 %v7130, %v7258
      %v7387 = vmul.f32 %v7131, %v7259
      %v7388 = vmul.f32 %v7132, %v7260
      %v7389 = vmul.f32 %v7133, %v7261
      %v7390 = vmul.f32 %v7134, %v7262
      %v7391 = vmul.f32 %v7135, %v7263
      %v7392 = vmul.f32 %v7136, %v7264
      %v7393 = vmul.f32 %v7137, %v7265
      %v7394 = vmul.f32 %v7138, %v7266
      %v7395 = vmul.f32 %v7139, %v7267
      %v7396 = vmul.f32 %v7140, %v7268
      %v7397 = vmul.f32 %v7141, %v7269
      %v7398 = vmul.f32 %v7142, %v7270
      %v7399 = vmul.f32 %v7143, %v7271
      %v7400 = vmul.f32 %v7144, %v7272
      %v7401 = vmul.f32 %v7145, %v7273
      %v7402 = vmul.f32 %v7146, %v7274
      %v7403 = vmul.f32 %v7147, %v7275
      %v7404 = vmul.f32 %v7148, %v7276
      %v7405 = vmul.f32 %v7149, %v7277
      %v7406 = vmul.f32 %v7150, %v7278
      %v7407 = vmul.f32 %v7151, %v7279
      %v7408 = vmul.f32 %v7152, %v7280
      %v7409 = vmul.f32 %v7153, %v7281
      %v7410 = vmul.f32 %v7154, %v7282
      %v7411 = vmul.f32 %v7155, %v7283
      %v7412 = vmul.f32 %v7156, %v7284
      %v7413 = vmul.f32 %v7157, %v7285
      %v7414 = vmul.f32 %v7158, %v7286
      %v7415 = vmul.f32 %v7159, %v7287
      %v7416 = vmul.f32 %v7160, %v7288
      %v7417 = vmul.f32 %v7161, %v7289
      %v7418 = vmul.f32 %v7162, %v7290
      %v7419 = vmul.f32 %v7163, %v7291
      %v7420 = vmul.f32 %v7164, %v7292
      %v7421 = vmul.f32 %v7165, %v7293
      %v7422 = vmul.f32 %v7166, %v7294
      %v7423 = vmul.f32 %v7167, %v7295
      %v7424 = vmul.f32 %v7168, %v7296
      %v7425 = vmul.f32 %v7169, %v7297
      %v7426 = vmul.f32 %v7170, %v7298
      %v7427 = vmul.f32 %v7171, %v7299
      %v7428 = vmul.f32 %v7172, %v7300
      %v7429 = vmul.f32 %v7173, %v7301
      %v7430 = vmul.f32 %v7174, %v7302
      %v7431 = vmul.f32 %v7175, %v7303
      %v7432 = vmul.f32 %v7176, %v7304
      %v7433 = vmul.f32 %v7177, %v7305
      %v7434 = vmul.f32 %v7178, %v7306
      %v7435 = vmul.f32 %v7179, %v7307
      %v7436 = vmul.f32 %v7180, %v7308
      %v7437 = vmul.f32 %v7181, %v7309
      %v7438 = vmul.f32 %v7182, %v7310
      %v7439 = vmul.f32 %v7183, %v7311
      %v7440 = vmul.f32 %v7184, %v7312
      %v7441 = vmul.f32 %v7185, %v7313
      %v7442 = vmul.f32 %v7186, %v7314
      %v7443 = vmul.f32 %v7187, %v7315
      %v7444 = vmul.f32 %v7188, %v7316
      %v7445 = vmul.f32 %v7189, %v7317
      %v7446 = vmul.f32 %v7190, %v7318
      %v7447 = vmul.f32 %v7191, %v7319
      %v7448 = vmul.f32 %v7192, %v7320
      %v7449 = vmul.f32 %v7193, %v7321
      %v7450 = vmul.f32 %v7194, %v7322
      %v7451 = vmul.f32 %v7195, %v7323
      %v7452 = vmul.f32 %v7196, %v7324
      %v7453 = vmul.f32 %v7197, %v7325
      %v7454 = vmul.f32 %v7198, %v7326
      %v7455 = vmul.f32 %v7199, %v7327
      %v7456 = vmul.f32 %v7200, %v7328
      %v7457 = vmul.f32 %v7201, %v7329
      %v7458 = vmul.f32 %v7202, %v7330
      %v7459 = vmul.f32 %v7203, %v7331
      %v7460 = vmul.f32 %v7204, %v7332
      %v7461 = vmul.f32 %v7205, %v7333
      %v7462 = vmul.f32 %v7206, %v7334
      %v7463 = vmul.f32 %v7207, %v7335
      %v7464 = vmul.f32 %v7208, %v7336
      %v7465 = vmul.f32 %v7209, %v7337
      %v7466 = vmul.f32 %v7210, %v7338
      %v7467 = vmul.f32 %v7211, %v7339
      %v7468 = vmul.f32 %v7212, %v7340
      %v7469 = vmul.f32 %v7213, %v7341
      %v7470 = vmul.f32 %v7214, %v7342
      %v7471 = vmul.f32 %v7215, %v7343
      %v7472 = vmul.f32 %v7216, %v7344
      %v7473 = vmul.f32 %v7217, %v7345
      %v7474 = vmul.f32 %v7218, %v7346
      %v7475 = vmul.f32 %v7219, %v7347
      %v7476 = vmul.f32 %v7220, %v7348
      %v7477 = vmul.f32 %v7221, %v7349
      %v7478 = vmul.f32 %v7222, %v7350
      %v7479 = vmul.f32 %v7223, %v7351
      %v7480 = vmul.f32 %v7224, %v7352
      %v7481 = vmul.f32 %v7225, %v7353
      %v7482 = vmul.f32 %v7226, %v7354
      %v7483 = vmul.f32 %v7227, %v7355
      %v7484 = vmul.f32 %v7228, %v7356
      %v7485 = vmul.f32 %v7229, %v7357
      %v7486 = vmul.f32 %v7230, %v7358
      %v7487 = vmul.f32 %v7231, %v7359
      %v7488 = vmul.f32 %v7232, %v7360
      %v7489 = vmul.f32 %v7233, %v7361
      %v7490 = vmul.f32 %v7234, %v7362
      %v7491 = vmul.f32 %v7235, %v7363
      %v7492 = vmul.f32 %v7236, %v7364
      %v7493 = vmul.f32 %v7237, %v7365
      %v7494 = vmul.f32 %v7238, %v7366
      %v7495 = vmul.f32 %v7239, %v7367
      %v7496 = vmul.f32 %v7240, %v7368
      %v7497 = vsub.f32 2.0, %v7369
      %v7498 = vsub.f32 2.0, %v7370
      %v7499 = vsub.f32 2.0, %v7371
      %v7500 = vsub.f32 2.0, %v7372
      %v7501 = vsub.f32 2.0, %v7373
      %v7502 = vsub.f32 2.0, %v7374
      %v7503 = vsub.f32 2.0, %v7375
      %v7504 = vsub.f32 2.0, %v7376
      %v7505 = vsub.f32 2.0, %v7377
      %v7506 = vsub.f32 2.0, %v7378
      %v7507 = vsub.f32 2.0, %v7379
      %v7508 = vsub.f32 2.0, %v7380
      %v7509 = vsub.f32 2.0, %v7381
      %v7510 = vsub.f32 2.0, %v7382
      %v7511 = vsub.f32 2.0, %v7383
      %v7512 = vsub.f32 2.0, %v7384
      %v7513 = vsub.f32 2.0, %v7385
      %v7514 = vsub.f32 2.0, %v7386
      %v7515 = vsub.f32 2.0, %v7387
      %v7516 = vsub.f32 2.0, %v7388
      %v7517 = vsub.f32 2.0, %v7389
      %v7518 = vsub.f32 2.0, %v7390
      %v7519 = vsub.f32 2.0, %v7391
      %v7520 = vsub.f32 2.0, %v7392
      %v7521 = vsub.f32 2.0, %v7393
      %v7522 = vsub.f32 2.0, %v7394
      %v7523 = vsub.f32 2.0, %v7395
      %v7524 = vsub.f32 2.0, %v7396
      %v7525 = vsub.f32 2.0, %v7397
      %v7526 = vsub.f32 2.0, %v7398
      %v7527 = vsub.f32 2.0, %v7399
      %v7528 = vsub.f32 2.0, %v7400
      %v7529 = vsub.f32 2.0, %v7401
      %v7530 = vsub.f32 2.0, %v7402
      %v7531 = vsub.f32 2.0, %v7403
      %v7532 = vsub.f32 2.0, %v7404
      %v7533 = vsub.f32 2.0, %v7405
      %v7534 = vsub.f32 2.0, %v7406
      %v7535 = vsub.f32 2.0, %v7407
      %v7536 = vsub.f32 2.0, %v7408
      %v7537 = vsub.f32 2.0, %v7409
      %v7538 = vsub.f32 2.0, %v7410
      %v7539 = vsub.f32 2.0, %v7411
      %v7540 = vsub.f32 2.0, %v7412
      %v7541 = vsub.f32 2.0, %v7413
      %v7542 = vsub.f32 2.0, %v7414
      %v7543 = vsub.f32 2.0, %v7415
      %v7544 = vsub.f32 2.0, %v7416
      %v7545 = vsub.f32 2.0, %v7417
      %v7546 = vsub.f32 2.0, %v7418
      %v7547 = vsub.f32 2.0, %v7419
      %v7548 = vsub.f32 2.0, %v7420
      %v7549 = vsub.f32 2.0, %v7421
      %v7550 = vsub.f32 2.0, %v7422
      %v7551 = vsub.f32 2.0, %v7423
      %v7552 = vsub.f32 2.0, %v7424
      %v7553 = vsub.f32 2.0, %v7425
      %v7554 = vsub.f32 2.0, %v7426
      %v7555 = vsub.f32 2.0, %v7427
      %v7556 = vsub.f32 2.0, %v7428
      %v7557 = vsub.f32 2.0, %v7429
      %v7558 = vsub.f32 2.0, %v7430
      %v7559 = vsub.f32 2.0, %v7431
      %v7560 = vsub.f32 2.0, %v7432
      %v7561 = vsub.f32 2.0, %v7433
      %v7562 = vsub.f32 2.0, %v7434
      %v7563 = vsub.f32 2.0, %v7435
      %v7564 = vsub.f32 2.0, %v7436
      %v7565 = vsub.f32 2.0, %v7437
      %v7566 = vsub.f32 2.0, %v7438
      %v7567 = vsub.f32 2.0, %v7439
      %v7568 = vsub.f32 2.0, %v7440
      %v7569 = vsub.f32 2.0, %v7441
      %v7570 = vsub.f32 2.0, %v7442
      %v7571 = vsub.f32 2.0, %v7443
      %v7572 = vsub.f32 2.0, %v7444
      %v7573 = vsub.f32 2.0, %v7445
      %v7574 = vsub.f32 2.0, %v7446
      %v7575 = vsub.f32 2.0, %v7447
      %v7576 = vsub.f32 2.0, %v7448
      %v7577 = vsub.f32 2.0, %v7449
      %v7578 = vsub.f32 2.0, %v7450
      %v7579 = vsub.f32 2.0, %v7451
      %v7580 = vsub.f32 2.0, %v7452
      %v7581 = vsub.f32 2.0, %v7453
      %v7582 = vsub.f32 2.0, %v7454
      %v7583 = vsub.f32 2.0, %v7455
      %v7584 = vsub.f32 2.0, %v7456
      %v7585 = vsub.f32 2.0, %v7457
      %v7586 = vsub.f32 2.0, %v7458
      %v7587 = vsub.f32 2.0, %v7459
      %v7588 = vsub.f32 2.0, %v7460
      %v7589 = vsub.f32 2.0, %v7461
      %v7590 = vsub.f32 2.0, %v7462
      %v7591 = vsub.f32 2.0, %v7463
      %v7592 = vsub.f32 2.0, %v7464
      %v7593 = vsub.f32 2.0, %v7465
      %v7594 = vsub.f32 2.0, %v7466
      %v7595 = vsub.f32 2.0, %v7467
      %v7596 = vsub.f32 2.0, %v7468
      %v7597 = vsub.f32 2.0, %v7469
      %v7598 = vsub.f32 2.0, %v7470
      %v7599 = vsub.f32 2.0, %v7471
      %v7600 = vsub.f32 2.0, %v7472
      %v7601 = vsub.f32 2.0, %v7473
      %v7602 = vsub.f32 2.0, %v7474
      %v7603 = vsub.f32 2.0, %v7475
      %v7604 = vsub.f32 2.0, %v7476
      %v7605 = vsub.f32 2.0, %v7477
      %v7606 = vsub.f32 2.0, %v7478
      %v7607 = vsub.f32 2.0, %v7479
      %v7608 = vsub.f32 2.0, %v7480
      %v7609 = vsub.f32 2.0, %v7481
      %v7610 = vsub.f32 2.0, %v7482
      %v7611 = vsub.f32 2.0, %v7483
      %v7612 = vsub.f32 2.0, %v7484
      %v7613 = vsub.f32 2.0, %v7485
      %v7614 = vsub.f32 2.0, %v7486
      %v7615 = vsub.f32 2.0, %v7487
      %v7616 = vsub.f32 2.0, %v7488
      %v7617 = vsub.f32 2.0, %v7489
      %v7618 = vsub.f32 2.0, %v7490
      %v7619 = vsub.f32 2.0, %v7491
      %v7620 = vsub.f32 2.0, %v7492
      %v7621 = vsub.f32 2.0, %v7493
      %v7622 = vsub.f32 2.0, %v7494
      %v7623 = vsub.f32 2.0, %v7495
      %v7624 = vsub.f32 2.0, %v7496
      %v7625 = vmul.f32 %v7241, %v7497
      %v7626 = vmul.f32 %v7242, %v7498
      %v7627 = vmul.f32 %v7243, %v7499
      %v7628 = vmul.f32 %v7244, %v7500
      %v7629 = vmul.f32 %v7245, %v7501
      %v7630 = vmul.f32 %v7246, %v7502
      %v7631 = vmul.f32 %v7247, %v7503
      %v7632 = vmul.f32 %v7248, %v7504
      %v7633 = vmul.f32 %v7249, %v7505
      %v7634 = vmul.f32 %v7250, %v7506
      %v7635 = vmul.f32 %v7251, %v7507
      %v7636 = vmul.f32 %v7252, %v7508
      %v7637 = vmul.f32 %v7253, %v7509
      %v7638 = vmul.f32 %v7254, %v7510
      %v7639 = vmul.f32 %v7255, %v7511
      %v7640 = vmul.f32 %v7256, %v7512
      %v7641 = vmul.f32 %v7257, %v7513
      %v7642 = vmul.f32 %v7258, %v7514
      %v7643 = vmul.f32 %v7259, %v7515
      %v7644 = vmul.f32 %v7260, %v7516
      %v7645 = vmul.f32 %v7261, %v7517
      %v7646 = vmul.f32 %v7262, %v7518
      %v7647 = vmul.f32 %v7263, %v7519
      %v7648 = vmul.f32 %v7264, %v7520
      %v7649 = vmul.f32 %v7265, %v7521
      %v7650 = vmul.f32 %v7266, %v7522
      %v7651 = vmul.f32 %v7267, %v7523
      %v7652 = vmul.f32 %v7268, %v7524
      %v7653 = vmul.f32 %v7269, %v7525
      %v7654 = vmul.f32 %v7270, %v7526
      %v7655 = vmul.f32 %v7271, %v7527
      %v7656 = vmul.f32 %v7272, %v7528
      %v7657 = vmul.f32 %v7273, %v7529
      %v7658 = vmul.f32 %v7274, %v7530
      %v7659 = vmul.f32 %v7275, %v7531
      %v7660 = vmul.f32 %v7276, %v7532
      %v7661 = vmul.f32 %v7277, %v7533
      %v7662 = vmul.f32 %v7278, %v7534
      %v7663 = vmul.f32 %v7279, %v7535
      %v7664 = vmul.f32 %v7280, %v7536
      %v7665 = vmul.f32 %v7281, %v7537
      %v7666 = vmul.f32 %v7282, %v7538
      %v7667 = vmul.f32 %v7283, %v7539
      %v7668 = vmul.f32 %v7284, %v7540
      %v7669 = vmul.f32 %v7285, %v7541
      %v7670 = vmul.f32 %v7286, %v7542
      %v7671 = vmul.f32 %v7287, %v7543
      %v7672 = vmul.f32 %v7288, %v7544
      %v7673 = vmul.f32 %v7289, %v7545
      %v7674 = vmul.f32 %v7290, %v7546
      %v7675 = vmul.f32 %v7291, %v7547
      %v7676 = vmul.f32 %v7292, %v7548
      %v7677 = vmul.f32 %v7293, %v7549
      %v7678 = vmul.f32 %v7294, %v7550
      %v7679 = vmul.f32 %v7295, %v7551
      %v7680 = vmul.f32 %v7296, %v7552
      %v7681 = vmul.f32 %v7297, %v7553
      %v7682 = vmul.f32 %v7298, %v7554
      %v7683 = vmul.f32 %v7299, %v7555
      %v7684 = vmul.f32 %v7300, %v7556
      %v7685 = vmul.f32 %v7301, %v7557
      %v7686 = vmul.f32 %v7302, %v7558
      %v7687 = vmul.f32 %v7303, %v7559
      %v7688 = vmul.f32 %v7304, %v7560
      %v7689 = vmul.f32 %v7305, %v7561
      %v7690 = vmul.f32 %v7306, %v7562
      %v7691 = vmul.f32 %v7307, %v7563
      %v7692 = vmul.f32 %v7308, %v7564
      %v7693 = vmul.f32 %v7309, %v7565
      %v7694 = vmul.f32 %v7310, %v7566
      %v7695 = vmul.f32 %v7311, %v7567
      %v7696 = vmul.f32 %v7312, %v7568
      %v7697 = vmul.f32 %v7313, %v7569
      %v7698 = vmul.f32 %v7314, %v7570
      %v7699 = vmul.f32 %v7315, %v7571
      %v7700 = vmul.f32 %v7316, %v7572
      %v7701 = vmul.f32 %v7317, %v7573
      %v7702 = vmul.f32 %v7318, %v7574
      %v7703 = vmul.f32 %v7319, %v7575
      %v7704 = vmul.f32 %v7320, %v7576
      %v7705 = vmul.f32 %v7321, %v7577
      %v7706 = vmul.f32 %v7322, %v7578
      %v7707 = vmul.f32 %v7323, %v7579
      %v7708 = vmul.f32 %v7324, %v7580
      %v7709 = vmul.f32 %v7325, %v7581
      %v7710 = vmul.f32 %v7326, %v7582
      %v7711 = vmul.f32 %v7327, %v7583
      %v7712 = vmul.f32 %v7328, %v7584
      %v7713 = vmul.f32 %v7329, %v7585
      %v7714 = vmul.f32 %v7330, %v7586
      %v7715 = vmul.f32 %v7331, %v7587
      %v7716 = vmul.f32 %v7332, %v7588
      %v7717 = vmul.f32 %v7333, %v7589
      %v7718 = vmul.f32 %v7334, %v7590
      %v7719 = vmul.f32 %v7335, %v7591
      %v7720 = vmul.f32 %v7336, %v7592
      %v7721 = vmul.f32 %v7337, %v7593
      %v7722 = vmul.f32 %v7338, %v7594
      %v7723 = vmul.f32 %v7339, %v7595
      %v7724 = vmul.f32 %v7340, %v7596
      %v7725 = vmul.f32 %v7341, %v7597
      %v7726 = vmul.f32 %v7342, %v7598
      %v7727 = vmul.f32 %v7343, %v7599
      %v7728 = vmul.f32 %v7344, %v7600
      %v7729 = vmul.f32 %v7345, %v7601
      %v7730 = vmul.f32 %v7346, %v7602
      %v7731 = vmul.f32 %v7347, %v7603
      %v7732 = vmul.f32 %v7348, %v7604
      %v7733 = vmul.f32 %v7349, %v7605
      %v7734 = vmul.f32 %v7350, %v7606
      %v7735 = vmul.f32 %v7351, %v7607
      %v7736 = vmul.f32 %v7352, %v7608
      %v7737 = vmul.f32 %v7353, %v7609
      %v7738 = vmul.f32 %v7354, %v7610
      %v7739 = vmul.f32 %v7355, %v7611
      %v7740 = vmul.f32 %v7356, %v7612
      %v7741 = vmul.f32 %v7357, %v7613
      %v7742 = vmul.f32 %v7358, %v7614
      %v7743 = vmul.f32 %v7359, %v7615
      %v7744 = vmul.f32 %v7360, %v7616
      %v7745 = vmul.f32 %v7361, %v7617
      %v7746 = vmul.f32 %v7362, %v7618
      %v7747 = vmul.f32 %v7363, %v7619
      %v7748 = vmul.f32 %v7364, %v7620
      %v7749 = vmul.f32 %v7365, %v7621
      %v7750 = vmul.f32 %v7366, %v7622
      %v7751 = vmul.f32 %v7367, %v7623
      %v7752 = vmul.f32 %v7368, %v7624
      %v7753 = vmul.f32 %v5447, %v7625
      %v7754 = vmul.f32 %v5452, %v7626
      %v7755 = vmul.f32 %v5457, %v7627
      %v7756 = vmul.f32 %v5462, %v7628
      %v7757 = vmul.f32 %v5467, %v7629
      %v7758 = vmul.f32 %v5472, %v7630
      %v7759 = vmul.f32 %v5477, %v7631
      %v7760 = vmul.f32 %v5482, %v7632
      %v7761 = vmul.f32 %v5487, %v7633
      %v7762 = vmul.f32 %v5492, %v7634
      %v7763 = vmul.f32 %v5497, %v7635
      %v7764 = vmul.f32 %v5502, %v7636
      %v7765 = vmul.f32 %v5507, %v7637
      %v7766 = vmul.f32 %v5512, %v7638
      %v7767 = vmul.f32 %v5517, %v7639
      %v7768 = vmul.f32 %v5522, %v7640
      %v7769 = vmul.f32 %v5527, %v7641
      %v7770 = vmul.f32 %v5532, %v7642
      %v7771 = vmul.f32 %v5537, %v7643
      %v7772 = vmul.f32 %v5542, %v7644
      %v7773 = vmul.f32 %v5547, %v7645
      %v7774 = vmul.f32 %v5552, %v7646
      %v7775 = vmul.f32 %v5557, %v7647
      %v7776 = vmul.f32 %v5562, %v7648
      %v7777 = vmul.f32 %v5567, %v7649
      %v7778 = vmul.f32 %v5572, %v7650
      %v7779 = vmul.f32 %v5577, %v7651
      %v7780 = vmul.f32 %v5582, %v7652
      %v7781 = vmul.f32 %v5587, %v7653
      %v7782 = vmul.f32 %v5592, %v7654
      %v7783 = vmul.f32 %v5597, %v7655
      %v7784 = vmul.f32 %v5602, %v7656
      %v7785 = vmul.f32 %v5607, %v7657
      %v7786 = vmul.f32 %v5612, %v7658
      %v7787 = vmul.f32 %v5617, %v7659
      %v7788 = vmul.f32 %v5622, %v7660
      %v7789 = vmul.f32 %v5627, %v7661
      %v7790 = vmul.f32 %v5632, %v7662
      %v7791 = vmul.f32 %v5637, %v7663
      %v7792 = vmul.f32 %v5642, %v7664
      %v7793 = vmul.f32 %v5647, %v7665
      %v7794 = vmul.f32 %v5652, %v7666
      %v7795 = vmul.f32 %v5657, %v7667
      %v7796 = vmul.f32 %v5662, %v7668
      %v7797 = vmul.f32 %v5667, %v7669
      %v7798 = vmul.f32 %v5672, %v7670
      %v7799 = vmul.f32 %v5677, %v7671
      %v7800 = vmul.f32 %v5682, %v7672
      %v7801 = vmul.f32 %v5687, %v7673
      %v7802 = vmul.f32 %v5692, %v7674
      %v7803 = vmul.f32 %v5697, %v7675
      %v7804 = vmul.f32 %v5702, %v7676
      %v7805 = vmul.f32 %v5707, %v7677
      %v7806 = vmul.f32 %v5712, %v7678
      %v7807 = vmul.f32 %v5717, %v7679
      %v7808 = vmul.f32 %v5722, %v7680
      %v7809 = vmul.f32 %v5727, %v7681
      %v7810 = vmul.f32 %v5732, %v7682
      %v7811 = vmul.f32 %v5737, %v7683
      %v7812 = vmul.f32 %v5742, %v7684
      %v7813 = vmul.f32 %v5747, %v7685
      %v7814 = vmul.f32 %v5752, %v7686
      %v7815 = vmul.f32 %v5757, %v7687
      %v7816 = vmul.f32 %v5762, %v7688
      %v7817 = vmul.f32 %v5767, %v7689
      %v7818 = vmul.f32 %v5772, %v7690
      %v7819 = vmul.f32 %v5777, %v7691
      %v7820 = vmul.f32 %v5782, %v7692
      %v7821 = vmul.f32 %v5787, %v7693
      %v7822 = vmul.f32 %v5792, %v7694
      %v7823 = vmul.f32 %v5797, %v7695
      %v7824 = vmul.f32 %v5802, %v7696
      %v7825 = vmul.f32 %v5807, %v7697
      %v7826 = vmul.f32 %v5812, %v7698
      %v7827 = vmul.f32 %v5817, %v7699
      %v7828 = vmul.f32 %v5822, %v7700
      %v7829 = vmul.f32 %v5827, %v7701
      %v7830 = vmul.f32 %v5832, %v7702
      %v7831 = vmul.f32 %v5837, %v7703
      %v7832 = vmul.f32 %v5842, %v7704
      %v7833 = vmul.f32 %v5847, %v7705
      %v7834 = vmul.f32 %v5852, %v7706
      %v7835 = vmul.f32 %v5857, %v7707
      %v7836 = vmul.f32 %v5862, %v7708
      %v7837 = vmul.f32 %v5867, %v7709
      %v7838 = vmul.f32 %v5872, %v7710
      %v7839 = vmul.f32 %v5877, %v7711
      %v7840 = vmul.f32 %v5882, %v7712
      %v7841 = vmul.f32 %v5887, %v7713
      %v7842 = vmul.f32 %v5892, %v7714
      %v7843 = vmul.f32 %v5897, %v7715
      %v7844 = vmul.f32 %v5902, %v7716
      %v7845 = vmul.f32 %v5907, %v7717
      %v7846 = vmul.f32 %v5912, %v7718
      %v7847 = vmul.f32 %v5917, %v7719
      %v7848 = vmul.f32 %v5922, %v7720
      %v7849 = vmul.f32 %v5927, %v7721
      %v7850 = vmul.f32 %v5932, %v7722
      %v7851 = vmul.f32 %v5937, %v7723
      %v7852 = vmul.f32 %v5942, %v7724
      %v7853 = vmul.f32 %v5947, %v7725
      %v7854 = vmul.f32 %v5952, %v7726
      %v7855 = vmul.f32 %v5957, %v7727
      %v7856 = vmul.f32 %v5962, %v7728
      %v7857 = vmul.f32 %v5967, %v7729
      %v7858 = vmul.f32 %v5972, %v7730
      %v7859 = vmul.f32 %v5977, %v7731
      %v7860 = vmul.f32 %v5982, %v7732
      %v7861 = vmul.f32 %v5987, %v7733
      %v7862 = vmul.f32 %v5992, %v7734
      %v7863 = vmul.f32 %v5997, %v7735
      %v7864 = vmul.f32 %v6002, %v7736
      %v7865 = vmul.f32 %v6007, %v7737
      %v7866 = vmul.f32 %v6012, %v7738
      %v7867 = vmul.f32 %v6017, %v7739
      %v7868 = vmul.f32 %v6022, %v7740
      %v7869 = vmul.f32 %v6027, %v7741
      %v7870 = vmul.f32 %v6032, %v7742
      %v7871 = vmul.f32 %v6037, %v7743
      %v7872 = vmul.f32 %v6042, %v7744
      %v7873 = vmul.f32 %v6047, %v7745
      %v7874 = vmul.f32 %v6052, %v7746
      %v7875 = vmul.f32 %v6057, %v7747
      %v7876 = vmul.f32 %v6062, %v7748
      %v7877 = vmul.f32 %v6067, %v7749
      %v7878 = vmul.f32 %v6072, %v7750
      %v7879 = vmul.f32 %v6077, %v7751
      %v7880 = vmul.f32 %v6082, %v7752
      %7881 = vst.msk [vmem:[%s143] sm:$0xff] %vm1882, %v7753
      %7882 = vst.msk [vmem:[%s143 + $0x8] sm:$0xff] %vm1882, %v7754
      %7883 = vst.msk [vmem:[%s143 + $0x10] sm:$0xff] %vm1882, %v7755
      %7884 = vst.msk [vmem:[%s143 + $0x18] sm:$0xff] %vm1882, %v7756
      %7885 = vst.msk [vmem:[%s143 + $0x20] sm:$0xff] %vm1882, %v7757
      %7886 = vst.msk [vmem:[%s143 + $0x28] sm:$0xff] %vm1882, %v7758
      %7887 = vst.msk [vmem:[%s143 + $0x30] sm:$0xff] %vm1882, %v7759
      %7888 = vst.msk [vmem:[%s143 + $0x38] sm:$0xff] %vm1882, %v7760
      %7889 = vst.msk [vmem:[%s143 + $0x40] sm:$0xff] %vm1882, %v7761
      %7890 = vst.msk [vmem:[%s143 + $0x48] sm:$0xff] %vm1882, %v7762
      %7891 = vst.msk [vmem:[%s143 + $0x50] sm:$0xff] %vm1882, %v7763
      %7892 = vst.msk [vmem:[%s143 + $0x58] sm:$0xff] %vm1882, %v7764
      %7893 = vst.msk [vmem:[%s143 + $0x60] sm:$0xff] %vm1882, %v7765
      %7894 = vst.msk [vmem:[%s143 + $0x68] sm:$0xff] %vm1882, %v7766
      %7895 = vst.msk [vmem:[%s143 + $0x70] sm:$0xff] %vm1882, %v7767
      %7896 = vst.msk [vmem:[%s143 + $0x78] sm:$0xff] %vm1882, %v7768
      %7897 = vst.msk [vmem:[%s143 + $0x80] sm:$0xff] %vm1882, %v7769
      %7898 = vst.msk [vmem:[%s143 + $0x88] sm:$0xff] %vm1882, %v7770
      %7899 = vst.msk [vmem:[%s143 + $0x90] sm:$0xff] %vm1882, %v7771
      %7900 = vst.msk [vmem:[%s143 + $0x98] sm:$0xff] %vm1882, %v7772
      %7901 = vst.msk [vmem:[%s143 + $0xa0] sm:$0xff] %vm1882, %v7773
      %7902 = vst.msk [vmem:[%s143 + $0xa8] sm:$0xff] %vm1882, %v7774
      %7903 = vst.msk [vmem:[%s143 + $0xb0] sm:$0xff] %vm1882, %v7775
      %7904 = vst.msk [vmem:[%s143 + $0xb8] sm:$0xff] %vm1882, %v7776
      %7905 = vst.msk [vmem:[%s143 + $0xc0] sm:$0xff] %vm1882, %v7777
      %7906 = vst.msk [vmem:[%s143 + $0xc8] sm:$0xff] %vm1882, %v7778
      %7907 = vst.msk [vmem:[%s143 + $0xd0] sm:$0xff] %vm1882, %v7779
      %7908 = vst.msk [vmem:[%s143 + $0xd8] sm:$0xff] %vm1882, %v7780
      %7909 = vst.msk [vmem:[%s143 + $0xe0] sm:$0xff] %vm1882, %v7781
      %7910 = vst.msk [vmem:[%s143 + $0xe8] sm:$0xff] %vm1882, %v7782
      %7911 = vst.msk [vmem:[%s143 + $0xf0] sm:$0xff] %vm1882, %v7783
      %7912 = vst.msk [vmem:[%s143 + $0xf8] sm:$0xff] %vm1882, %v7784
      %7913 = vst.msk [vmem:[%s143 + $0x100] sm:$0xff] %vm1882, %v7785
      %7914 = vst.msk [vmem:[%s143 + $0x108] sm:$0xff] %vm1882, %v7786
      %7915 = vst.msk [vmem:[%s143 + $0x110] sm:$0xff] %vm1882, %v7787
      %7916 = vst.msk [vmem:[%s143 + $0x118] sm:$0xff] %vm1882, %v7788
      %7917 = vst.msk [vmem:[%s143 + $0x120] sm:$0xff] %vm1882, %v7789
      %7918 = vst.msk [vmem:[%s143 + $0x128] sm:$0xff] %vm1882, %v7790
      %7919 = vst.msk [vmem:[%s143 + $0x130] sm:$0xff] %vm1882, %v7791
      %7920 = vst.msk [vmem:[%s143 + $0x138] sm:$0xff] %vm1882, %v7792
      %7921 = vst.msk [vmem:[%s143 + $0x140] sm:$0xff] %vm1882, %v7793
      %7922 = vst.msk [vmem:[%s143 + $0x148] sm:$0xff] %vm1882, %v7794
      %7923 = vst.msk [vmem:[%s143 + $0x150] sm:$0xff] %vm1882, %v7795
      %7924 = vst.msk [vmem:[%s143 + $0x158] sm:$0xff] %vm1882, %v7796
      %7925 = vst.msk [vmem:[%s143 + $0x160] sm:$0xff] %vm1882, %v7797
      %7926 = vst.msk [vmem:[%s143 + $0x168] sm:$0xff] %vm1882, %v7798
      %7927 = vst.msk [vmem:[%s143 + $0x170] sm:$0xff] %vm1882, %v7799
      %7928 = vst.msk [vmem:[%s143 + $0x178] sm:$0xff] %vm1882, %v7800
      %7929 = vst.msk [vmem:[%s143 + $0x180] sm:$0xff] %vm1882, %v7801
      %7930 = vst.msk [vmem:[%s143 + $0x188] sm:$0xff] %vm1882, %v7802
      %7931 = vst.msk [vmem:[%s143 + $0x190] sm:$0xff] %vm1882, %v7803
      %7932 = vst.msk [vmem:[%s143 + $0x198] sm:$0xff] %vm1882, %v7804
      %7933 = vst.msk [vmem:[%s143 + $0x1a0] sm:$0xff] %vm1882, %v7805
      %7934 = vst.msk [vmem:[%s143 + $0x1a8] sm:$0xff] %vm1882, %v7806
      %7935 = vst.msk [vmem:[%s143 + $0x1b0] sm:$0xff] %vm1882, %v7807
      %7936 = vst.msk [vmem:[%s143 + $0x1b8] sm:$0xff] %vm1882, %v7808
      %7937 = vst.msk [vmem:[%s143 + $0x1c0] sm:$0xff] %vm1882, %v7809
      %7938 = vst.msk [vmem:[%s143 + $0x1c8] sm:$0xff] %vm1882, %v7810
      %7939 = vst.msk [vmem:[%s143 + $0x1d0] sm:$0xff] %vm1882, %v7811
      %7940 = vst.msk [vmem:[%s143 + $0x1d8] sm:$0xff] %vm1882, %v7812
      %7941 = vst.msk [vmem:[%s143 + $0x1e0] sm:$0xff] %vm1882, %v7813
      %7942 = vst.msk [vmem:[%s143 + $0x1e8] sm:$0xff] %vm1882, %v7814
      %7943 = vst.msk [vmem:[%s143 + $0x1f0] sm:$0xff] %vm1882, %v7815
      %7944 = vst.msk [vmem:[%s143 + $0x1f8] sm:$0xff] %vm1882, %v7816
      %7945 = vst.msk [vmem:[%s143 + $0x200] sm:$0xff] %vm1882, %v7817
      %7946 = vst.msk [vmem:[%s143 + $0x208] sm:$0xff] %vm1882, %v7818
      %7947 = vst.msk [vmem:[%s143 + $0x210] sm:$0xff] %vm1882, %v7819
      %7948 = vst.msk [vmem:[%s143 + $0x218] sm:$0xff] %vm1882, %v7820
      %7949 = vst.msk [vmem:[%s143 + $0x220] sm:$0xff] %vm1882, %v7821
      %7950 = vst.msk [vmem:[%s143 + $0x228] sm:$0xff] %vm1882, %v7822
      %7951 = vst.msk [vmem:[%s143 + $0x230] sm:$0xff] %vm1882, %v7823
      %7952 = vst.msk [vmem:[%s143 + $0x238] sm:$0xff] %vm1882, %v7824
      %7953 = vst.msk [vmem:[%s143 + $0x240] sm:$0xff] %vm1882, %v7825
      %7954 = vst.msk [vmem:[%s143 + $0x248] sm:$0xff] %vm1882, %v7826
      %7955 = vst.msk [vmem:[%s143 + $0x250] sm:$0xff] %vm1882, %v7827
      %7956 = vst.msk [vmem:[%s143 + $0x258] sm:$0xff] %vm1882, %v7828
      %7957 = vst.msk [vmem:[%s143 + $0x260] sm:$0xff] %vm1882, %v7829
      %7958 = vst.msk [vmem:[%s143 + $0x268] sm:$0xff] %vm1882, %v7830
      %7959 = vst.msk [vmem:[%s143 + $0x270] sm:$0xff] %vm1882, %v7831
      %7960 = vst.msk [vmem:[%s143 + $0x278] sm:$0xff] %vm1882, %v7832
      %7961 = vst.msk [vmem:[%s143 + $0x280] sm:$0xff] %vm1882, %v7833
      %7962 = vst.msk [vmem:[%s143 + $0x288] sm:$0xff] %vm1882, %v7834
      %7963 = vst.msk [vmem:[%s143 + $0x290] sm:$0xff] %vm1882, %v7835
      %7964 = vst.msk [vmem:[%s143 + $0x298] sm:$0xff] %vm1882, %v7836
      %7965 = vst.msk [vmem:[%s143 + $0x2a0] sm:$0xff] %vm1882, %v7837
      %7966 = vst.msk [vmem:[%s143 + $0x2a8] sm:$0xff] %vm1882, %v7838
      %7967 = vst.msk [vmem:[%s143 + $0x2b0] sm:$0xff] %vm1882, %v7839
      %7968 = vst.msk [vmem:[%s143 + $0x2b8] sm:$0xff] %vm1882, %v7840
      %7969 = vst.msk [vmem:[%s143 + $0x2c0] sm:$0xff] %vm1882, %v7841
      %7970 = vst.msk [vmem:[%s143 + $0x2c8] sm:$0xff] %vm1882, %v7842
      %7971 = vst.msk [vmem:[%s143 + $0x2d0] sm:$0xff] %vm1882, %v7843
      %7972 = vst.msk [vmem:[%s143 + $0x2d8] sm:$0xff] %vm1882, %v7844
      %7973 = vst.msk [vmem:[%s143 + $0x2e0] sm:$0xff] %vm1882, %v7845
      %7974 = vst.msk [vmem:[%s143 + $0x2e8] sm:$0xff] %vm1882, %v7846
      %7975 = vst.msk [vmem:[%s143 + $0x2f0] sm:$0xff] %vm1882, %v7847
      %7976 = vst.msk [vmem:[%s143 + $0x2f8] sm:$0xff] %vm1882, %v7848
      %7977 = vst.msk [vmem:[%s143 + $0x300] sm:$0xff] %vm1882, %v7849
      %7978 = vst.msk [vmem:[%s143 + $0x308] sm:$0xff] %vm1882, %v7850
      %7979 = vst.msk [vmem:[%s143 + $0x310] sm:$0xff] %vm1882, %v7851
      %7980 = vst.msk [vmem:[%s143 + $0x318] sm:$0xff] %vm1882, %v7852
      %7981 = vst.msk [vmem:[%s143 + $0x320] sm:$0xff] %vm1882, %v7853
      %7982 = vst.msk [vmem:[%s143 + $0x328] sm:$0xff] %vm1882, %v7854
      %7983 = vst.msk [vmem:[%s143 + $0x330] sm:$0xff] %vm1882, %v7855
      %7984 = vst.msk [vmem:[%s143 + $0x338] sm:$0xff] %vm1882, %v7856
      %7985 = vst.msk [vmem:[%s143 + $0x340] sm:$0xff] %vm1882, %v7857
      %7986 = vst.msk [vmem:[%s143 + $0x348] sm:$0xff] %vm1882, %v7858
      %7987 = vst.msk [vmem:[%s143 + $0x350] sm:$0xff] %vm1882, %v7859
      %7988 = vst.msk [vmem:[%s143 + $0x358] sm:$0xff] %vm1882, %v7860
      %7989 = vst.msk [vmem:[%s143 + $0x360] sm:$0xff] %vm1882, %v7861
      %7990 = vst.msk [vmem:[%s143 + $0x368] sm:$0xff] %vm1882, %v7862
      %7991 = vst.msk [vmem:[%s143 + $0x370] sm:$0xff] %vm1882, %v7863
      %7992 = vst.msk [vmem:[%s143 + $0x378] sm:$0xff] %vm1882, %v7864
      %7993 = vst.msk [vmem:[%s143 + $0x380] sm:$0xff] %vm1882, %v7865
      %7994 = vst.msk [vmem:[%s143 + $0x388] sm:$0xff] %vm1882, %v7866
      %7995 = vst.msk [vmem:[%s143 + $0x390] sm:$0xff] %vm1882, %v7867
      %7996 = vst.msk [vmem:[%s143 + $0x398] sm:$0xff] %vm1882, %v7868
      %7997 = vst.msk [vmem:[%s143 + $0x3a0] sm:$0xff] %vm1882, %v7869
      %7998 = vst.msk [vmem:[%s143 + $0x3a8] sm:$0xff] %vm1882, %v7870
      %7999 = vst.msk [vmem:[%s143 + $0x3b0] sm:$0xff] %vm1882, %v7871
      %8000 = vst.msk [vmem:[%s143 + $0x3b8] sm:$0xff] %vm1882, %v7872
      %8001 = vst.msk [vmem:[%s143 + $0x3c0] sm:$0xff] %vm1882, %v7873
      %8002 = vst.msk [vmem:[%s143 + $0x3c8] sm:$0xff] %vm1882, %v7874
      %8003 = vst.msk [vmem:[%s143 + $0x3d0] sm:$0xff] %vm1882, %v7875
      %8004 = vst.msk [vmem:[%s143 + $0x3d8] sm:$0xff] %vm1882, %v7876
      %8005 = vst.msk [vmem:[%s143 + $0x3e0] sm:$0xff] %vm1882, %v7877
      %8006 = vst.msk [vmem:[%s143 + $0x3e8] sm:$0xff] %vm1882, %v7878
      %8007 = vst.msk [vmem:[%s143 + $0x3f0] sm:$0xff] %vm1882, %v7879
      %8008 = vst.msk [vmem:[%s143 + $0x3f8] sm:$0xff] %vm1882, %v7880
      %p8009 = scmp.lt.s32.totalorder %s13, 1
      %s8010 = scalar_select %p8009, %s13, 1
      %s8011 = smul.addr %s8010, 128
      %s8012 = smul.addr %s8011, 8
      %s8013 = scalar_lea.vmem %s2, %s8012
      // Predicated region
      $region29: #{tpu_custom_call.1} parent=27 // pred_check
        %p8014 = pneg %p78
      $region30: #{tpu_custom_call.1} parent=27 // pred_check_branch
        %8016 = sbr.rel (%p8014) target = $region32
      $region31: #{tpu_custom_call.1} parent=27 // pred_region
        _
      $region32: #{tpu_custom_call.1} parent=27 // pred_fallthru
        _
    $region28: #{tpu_custom_call.1} parent=5 // pred_fallthru
      _
    %p8017 = scmp.le.s32.totalorder 2, %s8
    // Predicated region
    $region33: #{tpu_custom_call.1} parent=5 // pred_check
      %p8018 = pneg %p8017
    $region34: #{tpu_custom_call.1} parent=5 // pred_check_branch
      %8020 = sbr.rel (%p8018) target = $region36
    $region35: #{tpu_custom_call.1} parent=5 // pred_region
      %s8021 = ssub.s32 %s8, 2
      // Predicated region
      $region37: #{tpu_custom_call.1} parent=35 // pred_check
        %p8022 = pneg %p84
      $region38: #{tpu_custom_call.1} parent=35 // pred_check_branch
        %8024 = sbr.rel (%p8022) target = $region40
      $region39: #{tpu_custom_call.1} parent=35 // pred_region
        %p8025 = scmp.lt.s32.totalorder %s14, 1
        %s8026 = scalar_select %p8025, %s14, 1
        %s8027 = smul.addr %s8026, 128
        %s8028 = smul.addr %s8027, 8
        %s8029 = scalar_lea.vmem %s2, %s8028
      $region40: #{tpu_custom_call.1} parent=35 // pred_fallthru
        _
    $region36: #{tpu_custom_call.1} parent=5 // pred_fallthru
      _
  $region6: #{tpu_custom_call.1} parent=0 // loop_footer
    %s12 = sadd.s32 1, %s8
  $region7: #{tpu_custom_call.1} parent=0 // loop_footer_branch
    %7 = sbr.rel target = $region3
  $region8: #{tpu_custom_call.1} parent=0 // loop_exit
    _

</llo_original>
